<compile_context>
chip_gen: v6e
topology: v6e:2x2x1
jax: 0.10.0
libtpu: 0.0.40
codegen_flags: <defaults>
</compile_context>

<pallas_src>
import functools

import jax
import jax.numpy as jnp
from jax import lax
from jax.experimental import pallas as pl
from jax.experimental.pallas import tpu as pltpu

LN_EPS = 1e-5
MXU_DTYPE = jnp.bfloat16

FUSED_ORDER = (
    "n1w", "n1b", "wqkv1", "wo1", "bo1",
    "n2w", "n2b", "wq2", "wkv2", "wo2", "bo2",
    "n3w", "n3b", "wff1", "bff1", "wf2", "bf2",
)


def _gelu_tanh(x):
    c = 0.7978845608028654  # sqrt(2/pi)
    return 0.5 * x * (1.0 + jnp.tanh(c * (x + 0.044715 * x * x * x)))


def _layernorm(h, w, b):
    mu = jnp.mean(h, axis=-1, keepdims=True)
    xc = h - mu
    var = jnp.mean(xc * xc, axis=-1, keepdims=True)
    return xc * lax.rsqrt(var + LN_EPS) * w + b


def _attention(q, k, v, *, bt, sq, skv, heads, d_head, mxu_dtype):
    """q: (bt*sq, H*Dh) f32, k/v: (bt*skv, H*Dh) f32 -> (bt*sq, H*Dh) f32.

    Scale is already folded into the Q projection weights.
    """
    inner = heads * d_head
    q3 = q.reshape(bt, sq, inner)
    k3 = k.reshape(bt, skv, inner)
    v3 = v.reshape(bt, skv, inner)
    outs = []
    for h in range(heads):
        lo, hi = h * d_head, (h + 1) * d_head
        qh = q3[:, :, lo:hi].astype(mxu_dtype)
        kh = k3[:, :, lo:hi].astype(mxu_dtype)
        vh = v3[:, :, lo:hi].astype(mxu_dtype)
        s = jnp.einsum("bqd,bkd->bqk", qh, kh,
                       preferred_element_type=jnp.float32)          # (bt, sq, skv)
        m = jnp.max(s, axis=-1, keepdims=True)
        p = jnp.exp(s - m)
        l = jnp.sum(p, axis=-1, keepdims=True)
        attn = p * pl.reciprocal(l, approx=True)
        outs.append(jnp.einsum("bqk,bkd->bqd", attn.astype(mxu_dtype), vh,
                               preferred_element_type=jnp.float32))  # (bt, sq, Dh)
    return jnp.concatenate(outs, axis=-1).reshape(bt * sq, inner)


def _transformer_block_kernel(
        x_ref, ctx_ref,
        n1w_ref, n1b_ref, wqkv1_ref, wo1_ref, bo1_ref,
        n2w_ref, n2b_ref, wq2_ref, wkv2_ref, wo2_ref, bo2_ref,
        n3w_ref, n3b_ref, wff1_ref, bff1_ref, wf2_ref, bf2_ref,
        o_ref, *, heads):
    bt, s, d = x_ref.shape
    _, sc, dc = ctx_ref.shape
    inner = wo1_ref.shape[0]
    d_head = inner // heads
    dff = wf2_ref.shape[0]
    mxu = wqkv1_ref.dtype

    x = x_ref[...].astype(jnp.float32).reshape(bt * s, d)          # (R, D)
    ctx = ctx_ref[...].astype(jnp.float32).reshape(bt * sc, dc)    # (Rc, Dc)

    # ---- self attention + residual -------------------------------------
    h1 = _layernorm(x, n1w_ref[...], n1b_ref[...])
    qkv = jnp.dot(h1.astype(mxu), wqkv1_ref[...],
                  preferred_element_type=jnp.float32)              # (R, 3*inner)
    q1 = qkv[:, :inner]
    k1 = qkv[:, inner:2 * inner]
    v1 = qkv[:, 2 * inner:]
    a1 = _attention(q1, k1, v1, bt=bt, sq=s, skv=s,
                    heads=heads, d_head=d_head, mxu_dtype=mxu)
    x = x + jnp.dot(a1.astype(mxu), wo1_ref[...],
                    preferred_element_type=jnp.float32) + bo1_ref[...]

    # ---- cross attention (context is NOT layer-normed) + residual ------
    h2 = _layernorm(x, n2w_ref[...], n2b_ref[...])
    q2 = jnp.dot(h2.astype(mxu), wq2_ref[...],
                 preferred_element_type=jnp.float32)               # (R, inner)
    kv2 = jnp.dot(ctx.astype(mxu), wkv2_ref[...],
                  preferred_element_type=jnp.float32)              # (Rc, 2*inner)
    k2 = kv2[:, :inner]
    v2 = kv2[:, inner:]
    a2 = _attention(q2, k2, v2, bt=bt, sq=s, skv=sc,
                    heads=heads, d_head=d_head, mxu_dtype=mxu)
    x = x + jnp.dot(a2.astype(mxu), wo2_ref[...],
                    preferred_element_type=jnp.float32) + bo2_ref[...]

    # ---- GEGLU feed-forward + residual ----------------------------------
    h3 = _layernorm(x, n3w_ref[...], n3b_ref[...])
    ff12 = jnp.dot(h3.astype(mxu), wff1_ref[...],
                   preferred_element_type=jnp.float32) + bff1_ref[...]   # (R, 2*dff)
    a = ff12[:, :dff]
    g = ff12[:, dff:]
    h = a * _gelu_tanh(g)
    x = x + jnp.dot(h.astype(mxu), wf2_ref[...],
                    preferred_element_type=jnp.float32) + bf2_ref[...]

    o_ref[...] = x.reshape(bt, s, d).astype(o_ref.dtype)


def prepare_block_params(params, *, heads, mxu_dtype=MXU_DTYPE):
    """One-time host-side weight transform: fuse QKV / out-proj / GEGLU weights,
    fold the attention scale into Wq, and downcast MXU operands to bf16."""
    d_head = params["wq1"].shape[2]
    scale = d_head ** (-0.5)

    def heads_to_cols(w):  # (H, Din, Dh) -> (Din, H*Dh)
        H, Din, Dh = w.shape
        return jnp.transpose(w, (1, 0, 2)).reshape(Din, H * Dh)

    def heads_to_rows(w):  # (H, Dh, D) -> (H*Dh, D)
        H, Dh, D = w.shape
        return w.reshape(H * Dh, D)

    f = {}
    for k in ("n1w", "n1b", "n2w", "n2b", "n3w", "n3b", "bo1", "bo2", "bf2"):
        f[k] = params[k].astype(jnp.float32)
    f["wqkv1"] = jnp.concatenate(
        [heads_to_cols(params["wq1"]) * scale,
         heads_to_cols(params["wk1"]),
         heads_to_cols(params["wv1"])], axis=-1).astype(mxu_dtype)
    f["wo1"] = heads_to_rows(params["wo1"]).astype(mxu_dtype)
    f["wq2"] = (heads_to_cols(params["wq2"]) * scale).astype(mxu_dtype)
    f["wkv2"] = jnp.concatenate(
        [heads_to_cols(params["wk2"]),
         heads_to_cols(params["wv2"])], axis=-1).astype(mxu_dtype)
    f["wo2"] = heads_to_rows(params["wo2"]).astype(mxu_dtype)
    f["wff1"] = jnp.concatenate([params["wfa"], params["wfg"]], axis=-1).astype(mxu_dtype)
    f["bff1"] = jnp.concatenate([params["bfa"], params["bfg"]], axis=-1).astype(jnp.float32)
    f["wf2"] = params["wf2"].astype(mxu_dtype)
    return f


def _pick_batch_tile(B, S, target_rows=256):
    best = 1
    for bt in range(1, B + 1):
        if B % bt:
            continue
        if bt * S > target_rows:
            continue
        if B > 1 and bt != 1 and B // bt < 2:
            continue  # keep grid length >= 2 so both v7x TensorCores get work
        best = bt
    return best


def basic_transformer_block(x, context, fused, *, heads):
    """x: (B, S, D) float32, context: (B, Sc, Dc) float32, fused = prepare_block_params(...)."""
    B, S, D = x.shape
    _, Sc, Dc = context.shape
    Bt = _pick_batch_tile(B, S)

    weights = [fused[k] for k in FUSED_ORDER]

    def const_spec(arr):
        nd = arr.ndim
        return pl.BlockSpec(arr.shape, lambda b, _nd=nd: (0,) * _nd)

    in_specs = [
        pl.BlockSpec((Bt, S, D), lambda b: (b, 0, 0)),
        pl.BlockSpec((Bt, Sc, Dc), lambda b: (b, 0, 0)),
    ] + [const_spec(w) for w in weights]

    kernel = functools.partial(_transformer_block_kernel, heads=heads)

    return pl.pallas_call(
        kernel,
        out_shape=jax.ShapeDtypeStruct((B, S, D), x.dtype),
        grid=(B // Bt,),
        in_specs=in_specs,
        out_specs=pl.BlockSpec((Bt, S, D), lambda b: (b, 0, 0)),
        compiler_params=pltpu.CompilerParams(
            dimension_semantics=("parallel",),
            vmem_limit_bytes=64 * 1024 * 1024),
    )(x, context, *weights)


# ---------------- pure-JAX reference (matches PyTorch forward) ----------------

def reference_block(x, context, params, *, heads, matmul_dtype=jnp.float32):
    """matmul_dtype=float32 -> exact f32 semantics; bfloat16 -> mirrors the
    kernel's mixed precision (bf16 MXU operands, f32 accumulation)."""
    P = lax.Precision.HIGHEST
    d_head = params["wq1"].shape[2]
    scale = d_head ** (-0.5)

    def mm(eq, a, b):
        return jnp.einsum(eq, a.astype(matmul_dtype), b.astype(matmul_dtype),
                          precision=P, preferred_element_type=jnp.float32)

    def ln(h, w, b):
        mu = jnp.mean(h, axis=-1, keepdims=True)
        var = jnp.mean(jnp.square(h - mu), axis=-1, keepdims=True)
        return (h - mu) / jnp.sqrt(var + LN_EPS) * w + b

    def mha(xq, xkv, wq, wk, wv, wo, bo):
        q = mm("bsd,hde->bhse", xq, wq)
        k = mm("btd,hde->bhte", xkv, wk)
        v = mm("btd,hde->bhte", xkv, wv)
        s = mm("bhse,bhte->bhst", q, k) * scale
        s = s - jnp.max(s, axis=-1, keepdims=True)
        p = jnp.exp(s)
        p = p / jnp.sum(p, axis=-1, keepdims=True)
        o = mm("bhst,bhte->bhse", p, v)
        return mm("bhse,hed->bsd", o, wo) + bo

    h = x
    xn = ln(h, params["n1w"], params["n1b"])
    h = h + mha(xn, xn, params["wq1"], params["wk1"], params["wv1"],
                params["wo1"], params["bo1"])
    xn = ln(h, params["n2w"], params["n2b"])
    h = h + mha(xn, context, params["wq2"], params["wk2"], params["wv2"],
                params["wo2"], params["bo2"])
    xn = ln(h, params["n3w"], params["n3b"])
    a = mm("bsd,df->bsf", xn, params["wfa"]) + params["bfa"]
    g = mm("bsd,df->bsf", xn, params["wfg"]) + params["bfg"]
    ff = mm("bsf,fd->bsd", a * _gelu_tanh(g), params["wf2"]) + params["bf2"]
    return h + ff


def init_params(key, dim, n_heads, d_head, context_dim, mult=4):
    dff = dim * mult
    ks = iter(jax.random.split(key, 32))

    def w(shape, fan_in):
        return jax.random.normal(next(ks), shape, jnp.float32) / (fan_in ** 0.5)

    p = {}
    for i in (1, 2, 3):
        p[f"n{i}w"] = 1.0 + 0.1 * jax.random.normal(next(ks), (1, dim), jnp.float32)
        p[f"n{i}b"] = 0.1 * jax.random.normal(next(ks), (1, dim), jnp.float32)
    # attn1 (self-attention): q/k/v from dim
    p["wq1"] = w((n_heads, dim, d_head), dim)
    p["wk1"] = w((n_heads, dim, d_head), dim)
    p["wv1"] = w((n_heads, dim, d_head), dim)
    p["wo1"] = w((n_heads, d_head, dim), n_heads * d_head)
    p["bo1"] = 0.1 * jax.random.normal(next(ks), (1, dim), jnp.float32)
    # attn2 (cross-attention): k/v from context_dim
    p["wq2"] = w((n_heads, dim, d_head), dim)
    p["wk2"] = w((n_heads, context_dim, d_head), context_dim)
    p["wv2"] = w((n_heads, context_dim, d_head), context_dim)
    p["wo2"] = w((n_heads, d_head, dim), n_heads * d_head)
    p["bo2"] = 0.1 * jax.random.normal(next(ks), (1, dim), jnp.float32)
    # GEGLU feed-forward (proj stored pre-split into value / gate halves)
    p["wfa"] = w((dim, dff), dim)
    p["bfa"] = 0.1 * jax.random.normal(next(ks), (1, dff), jnp.float32)
    p["wfg"] = w((dim, dff), dim)
    p["bfg"] = 0.1 * jax.random.normal(next(ks), (1, dff), jnp.float32)
    p["wf2"] = w((dff, dim), dff)
    p["bf2"] = 0.1 * jax.random.normal(next(ks), (1, dim), jnp.float32)
    return p


if __name__ == "__main__":
    key = jax.random.PRNGKey(0)
    B, S, D = 8, 32, 128          # batch, sequence, model dim
    heads, d_head = 4, 32         # inner_dim = heads * d_head = 128
    Sc, Dc = 16, 64               # cross-attention context

    k1, k2, k3 = jax.random.split(key, 3)
    x = jax.random.normal(k1, (B, S, D), jnp.float32)
    ctx = jax.random.normal(k2, (B, Sc, Dc), jnp.float32)
    params = init_params(k3, D, heads, d_head, Dc)
    fused = prepare_block_params(params, heads=heads)

    out = basic_transformer_block(x, ctx, fused, heads=heads)
    out = jax.block_until_ready(out)

    # Mirror reference: same mixed precision (bf16 MXU operands, f32 accum).
    ref_mixed = reference_block(x, ctx, params, heads=heads, matmul_dtype=jnp.bfloat16)
    # Full-f32 reference (PyTorch-default semantics) for a sanity bound.
    ref_f32 = reference_block(x, ctx, params, heads=heads, matmul_dtype=jnp.float32)

    assert out.shape == ref_f32.shape, (out.shape, ref_f32.shape)
    err_mixed = float(jnp.max(jnp.abs(out - ref_mixed)))
    err_f32 = float(jnp.max(jnp.abs(out - ref_f32)))
    assert jnp.allclose(out, ref_mixed, atol=4e-2, rtol=4e-2), (err_mixed, err_f32)
    assert jnp.allclose(out, ref_f32, atol=2e-1, rtol=1e-1), (err_mixed, err_f32)

    print("KERNEL_OK")
</pallas_src>

<mosaic_0001>
module attributes {stable_mosaic.version = 11 : i64} {
  func.func @_transformer_block_kernel(%arg0: i32, %arg1: memref<4x32x128xf32, #tpu.memory_space<vmem>>, %arg2: memref<4x16x64xf32, #tpu.memory_space<vmem>>, %arg3: memref<1x128xf32, #tpu.memory_space<vmem>>, %arg4: memref<1x128xf32, #tpu.memory_space<vmem>>, %arg5: memref<128x384xbf16, #tpu.memory_space<vmem>>, %arg6: memref<128x128xbf16, #tpu.memory_space<vmem>>, %arg7: memref<1x128xf32, #tpu.memory_space<vmem>>, %arg8: memref<1x128xf32, #tpu.memory_space<vmem>>, %arg9: memref<1x128xf32, #tpu.memory_space<vmem>>, %arg10: memref<128x128xbf16, #tpu.memory_space<vmem>>, %arg11: memref<64x256xbf16, #tpu.memory_space<vmem>>, %arg12: memref<128x128xbf16, #tpu.memory_space<vmem>>, %arg13: memref<1x128xf32, #tpu.memory_space<vmem>>, %arg14: memref<1x128xf32, #tpu.memory_space<vmem>>, %arg15: memref<1x128xf32, #tpu.memory_space<vmem>>, %arg16: memref<128x1024xbf16, #tpu.memory_space<vmem>>, %arg17: memref<1x1024xf32, #tpu.memory_space<vmem>>, %arg18: memref<512x128xbf16, #tpu.memory_space<vmem>>, %arg19: memref<1x128xf32, #tpu.memory_space<vmem>>, %arg20: memref<4x32x128xf32, #tpu.memory_space<vmem>>) attributes {dimension_semantics = [#tpu.dimension_semantics<parallel>], iteration_bounds = array<i64: 2>, scalar_prefetch = 0 : i64, scratch_operands = 0 : i64, tpu.core_type = #tpu.core_type<tc>, window_params = [{transform_indices = @transform_0, window_bounds = array<i64: 4, 32, 128>}, {transform_indices = @transform_1, window_bounds = array<i64: 4, 16, 64>}, {pipeline_mode = #tpu.pipeline_mode<synchronous>, transform_indices = @transform_2, window_bounds = array<i64: 1, 128>}, {pipeline_mode = #tpu.pipeline_mode<synchronous>, transform_indices = @transform_3, window_bounds = array<i64: 1, 128>}, {pipeline_mode = #tpu.pipeline_mode<synchronous>, transform_indices = @transform_4, window_bounds = array<i64: 128, 384>}, {pipeline_mode = #tpu.pipeline_mode<synchronous>, transform_indices = @transform_5, window_bounds = array<i64: 128, 128>}, {pipeline_mode = #tpu.pipeline_mode<synchronous>, transform_indices = @transform_6, window_bounds = array<i64: 1, 128>}, {pipeline_mode = #tpu.pipeline_mode<synchronous>, transform_indices = @transform_7, window_bounds = array<i64: 1, 128>}, {pipeline_mode = #tpu.pipeline_mode<synchronous>, transform_indices = @transform_8, window_bounds = array<i64: 1, 128>}, {pipeline_mode = #tpu.pipeline_mode<synchronous>, transform_indices = @transform_9, window_bounds = array<i64: 128, 128>}, {pipeline_mode = #tpu.pipeline_mode<synchronous>, transform_indices = @transform_10, window_bounds = array<i64: 64, 256>}, {pipeline_mode = #tpu.pipeline_mode<synchronous>, transform_indices = @transform_11, window_bounds = array<i64: 128, 128>}, {pipeline_mode = #tpu.pipeline_mode<synchronous>, transform_indices = @transform_12, window_bounds = array<i64: 1, 128>}, {pipeline_mode = #tpu.pipeline_mode<synchronous>, transform_indices = @transform_13, window_bounds = array<i64: 1, 128>}, {pipeline_mode = #tpu.pipeline_mode<synchronous>, transform_indices = @transform_14, window_bounds = array<i64: 1, 128>}, {pipeline_mode = #tpu.pipeline_mode<synchronous>, transform_indices = @transform_15, window_bounds = array<i64: 128, 1024>}, {pipeline_mode = #tpu.pipeline_mode<synchronous>, transform_indices = @transform_16, window_bounds = array<i64: 1, 1024>}, {pipeline_mode = #tpu.pipeline_mode<synchronous>, transform_indices = @transform_17, window_bounds = array<i64: 512, 128>}, {pipeline_mode = #tpu.pipeline_mode<synchronous>, transform_indices = @transform_18, window_bounds = array<i64: 1, 128>}, {transform_indices = @transform_19, window_bounds = array<i64: 4, 32, 128>}]} {
    %c0 = arith.constant 0 : index
    %c0_0 = arith.constant 0 : index
    %c0_1 = arith.constant 0 : index
    %0 = vector.load %arg1[%c0, %c0_0, %c0_1] : memref<4x32x128xf32, #tpu.memory_space<vmem>>, vector<4x32x128xf32>
    %1 = vector.shape_cast %0 : vector<4x32x128xf32> to vector<128x128xf32>
    %c0_2 = arith.constant 0 : index
    %c0_3 = arith.constant 0 : index
    %c0_4 = arith.constant 0 : index
    %2 = vector.load %arg2[%c0_2, %c0_3, %c0_4] : memref<4x16x64xf32, #tpu.memory_space<vmem>>, vector<4x16x64xf32>
    %3 = vector.shape_cast %2 : vector<4x16x64xf32> to vector<64x64xf32>
    %c0_5 = arith.constant 0 : index
    %c0_6 = arith.constant 0 : index
    %4 = vector.load %arg3[%c0_5, %c0_6] : memref<1x128xf32, #tpu.memory_space<vmem>>, vector<1x128xf32>
    %c0_7 = arith.constant 0 : index
    %c0_8 = arith.constant 0 : index
    %5 = vector.load %arg4[%c0_7, %c0_8] : memref<1x128xf32, #tpu.memory_space<vmem>>, vector<1x128xf32>
    %cst = arith.constant dense<0.000000e+00> : vector<128xf32>
    %6 = vector.multi_reduction <add>, %1, %cst [1] : vector<128x128xf32> to vector<128xf32>
    %7 = vector.shape_cast %6 : vector<128xf32> to vector<128x1xf32>
    %cst_9 = arith.constant 1.280000e+02 : f32
    %8 = vector.broadcast %cst_9 : f32 to vector<128x1xf32>
    %9 = arith.divf %7, %8 : vector<128x1xf32>
    %10 = vector.broadcast %9 : vector<128x1xf32> to vector<128x128xf32>
    %11 = arith.subf %1, %10 : vector<128x128xf32>
    %12 = arith.mulf %11, %11 : vector<128x128xf32>
    %cst_10 = arith.constant dense<0.000000e+00> : vector<128xf32>
    %13 = vector.multi_reduction <add>, %12, %cst_10 [1] : vector<128x128xf32> to vector<128xf32>
    %14 = vector.shape_cast %13 : vector<128xf32> to vector<128x1xf32>
    %cst_11 = arith.constant 1.280000e+02 : f32
    %15 = vector.broadcast %cst_11 : f32 to vector<128x1xf32>
    %16 = arith.divf %14, %15 : vector<128x1xf32>
    %cst_12 = arith.constant 9.99999974E-6 : f32
    %17 = vector.broadcast %cst_12 : f32 to vector<128x1xf32>
    %18 = arith.addf %16, %17 : vector<128x1xf32>
    %19 = math.rsqrt %18 : vector<128x1xf32>
    %20 = vector.broadcast %19 : vector<128x1xf32> to vector<128x128xf32>
    %21 = arith.mulf %11, %20 : vector<128x128xf32>
    %22 = vector.broadcast %4 : vector<1x128xf32> to vector<128x128xf32>
    %23 = arith.mulf %21, %22 : vector<128x128xf32>
    %24 = vector.broadcast %5 : vector<1x128xf32> to vector<128x128xf32>
    %25 = arith.addf %23, %24 : vector<128x128xf32>
    %26 = arith.truncf %25 : vector<128x128xf32> to vector<128x128xbf16>
    %c0_13 = arith.constant 0 : index
    %c0_14 = arith.constant 0 : index
    %27 = vector.load %arg5[%c0_13, %c0_14] : memref<128x384xbf16, #tpu.memory_space<vmem>>, vector<128x384xbf16>
    %cst_15 = arith.constant dense<0.000000e+00> : vector<128x384xf32>
    %28 = tpu.matmul %26, %27, %cst_15 {dimension_numbers = #tpu.dot_dimension_numbers<[1], [0], [0], [1], [0, 0, 1, 1], [], []>} : vector<128x128xbf16>, vector<128x384xbf16>, vector<128x384xf32> -> vector<128x384xf32>
    %29 = vector.extract_strided_slice %28 {offsets = [0, 0], sizes = [128, 128], strides = [1, 1]} : vector<128x384xf32> to vector<128x128xf32>
    %30 = vector.extract_strided_slice %28 {offsets = [0, 128], sizes = [128, 128], strides = [1, 1]} : vector<128x384xf32> to vector<128x128xf32>
    %31 = vector.extract_strided_slice %28 {offsets = [0, 256], sizes = [128, 128], strides = [1, 1]} : vector<128x384xf32> to vector<128x128xf32>
    %32 = vector.shape_cast %29 : vector<128x128xf32> to vector<4x32x128xf32>
    %33 = vector.shape_cast %30 : vector<128x128xf32> to vector<4x32x128xf32>
    %34 = vector.shape_cast %31 : vector<128x128xf32> to vector<4x32x128xf32>
    %35 = vector.extract_strided_slice %32 {offsets = [0, 0, 0], sizes = [4, 32, 32], strides = [1, 1, 1]} : vector<4x32x128xf32> to vector<4x32x32xf32>
    %36 = arith.truncf %35 : vector<4x32x32xf32> to vector<4x32x32xbf16>
    %37 = vector.extract_strided_slice %33 {offsets = [0, 0, 0], sizes = [4, 32, 32], strides = [1, 1, 1]} : vector<4x32x128xf32> to vector<4x32x32xf32>
    %38 = arith.truncf %37 : vector<4x32x32xf32> to vector<4x32x32xbf16>
    %39 = vector.extract_strided_slice %34 {offsets = [0, 0, 0], sizes = [4, 32, 32], strides = [1, 1, 1]} : vector<4x32x128xf32> to vector<4x32x32xf32>
    %40 = arith.truncf %39 : vector<4x32x32xf32> to vector<4x32x32xbf16>
    "tpu.trace_start"() <{level = 10 : i32, message = "bqd,bkd->bqk"}> : () -> ()
    %cst_16 = arith.constant dense<0.000000e+00> : vector<4x32x32xf32>
    %41 = tpu.matmul %36, %38, %cst_16 {dimension_numbers = #tpu.dot_dimension_numbers<[2], [2], [1], [1], [0, 0, 0, 1, 1, 1], [0], [0]>} : vector<4x32x32xbf16>, vector<4x32x32xbf16>, vector<4x32x32xf32> -> vector<4x32x32xf32>
    "tpu.trace_stop"() : () -> ()
    %cst_17 = arith.constant dense<0xFF800000> : vector<4x32xf32>
    %42 = vector.multi_reduction <maximumf>, %41, %cst_17 [2] : vector<4x32x32xf32> to vector<4x32xf32>
    %43 = vector.shape_cast %42 : vector<4x32xf32> to vector<4x32x1xf32>
    %44 = vector.broadcast %43 : vector<4x32x1xf32> to vector<4x32x32xf32>
    %45 = arith.subf %41, %44 : vector<4x32x32xf32>
    %46 = math.exp %45 : vector<4x32x32xf32>
    %cst_18 = arith.constant dense<0.000000e+00> : vector<4x32xf32>
    %47 = vector.multi_reduction <add>, %46, %cst_18 [2] : vector<4x32x32xf32> to vector<4x32xf32>
    %48 = vector.shape_cast %47 : vector<4x32xf32> to vector<4x32x1xf32>
    %49 = tpu.reciprocal %48 {approx = true} : vector<4x32x1xf32> -> vector<4x32x1xf32>
    %50 = vector.broadcast %49 : vector<4x32x1xf32> to vector<4x32x32xf32>
    %51 = arith.mulf %46, %50 : vector<4x32x32xf32>
    %52 = arith.truncf %51 : vector<4x32x32xf32> to vector<4x32x32xbf16>
    "tpu.trace_start"() <{level = 10 : i32, message = "bqk,bkd->bqd"}> : () -> ()
    %cst_19 = arith.constant dense<0.000000e+00> : vector<4x32x32xf32>
    %53 = tpu.matmul %52, %40, %cst_19 {dimension_numbers = #tpu.dot_dimension_numbers<[2], [1], [1], [2], [0, 0, 0, 1, 1, 2], [0], [0]>} : vector<4x32x32xbf16>, vector<4x32x32xbf16>, vector<4x32x32xf32> -> vector<4x32x32xf32>
    "tpu.trace_stop"() : () -> ()
    %54 = vector.extract_strided_slice %32 {offsets = [0, 0, 32], sizes = [4, 32, 32], strides = [1, 1, 1]} : vector<4x32x128xf32> to vector<4x32x32xf32>
    %55 = arith.truncf %54 : vector<4x32x32xf32> to vector<4x32x32xbf16>
    %56 = vector.extract_strided_slice %33 {offsets = [0, 0, 32], sizes = [4, 32, 32], strides = [1, 1, 1]} : vector<4x32x128xf32> to vector<4x32x32xf32>
    %57 = arith.truncf %56 : vector<4x32x32xf32> to vector<4x32x32xbf16>
    %58 = vector.extract_strided_slice %34 {offsets = [0, 0, 32], sizes = [4, 32, 32], strides = [1, 1, 1]} : vector<4x32x128xf32> to vector<4x32x32xf32>
    %59 = arith.truncf %58 : vector<4x32x32xf32> to vector<4x32x32xbf16>
    "tpu.trace_start"() <{level = 10 : i32, message = "bqd,bkd->bqk"}> : () -> ()
    %cst_20 = arith.constant dense<0.000000e+00> : vector<4x32x32xf32>
    %60 = tpu.matmul %55, %57, %cst_20 {dimension_numbers = #tpu.dot_dimension_numbers<[2], [2], [1], [1], [0, 0, 0, 1, 1, 1], [0], [0]>} : vector<4x32x32xbf16>, vector<4x32x32xbf16>, vector<4x32x32xf32> -> vector<4x32x32xf32>
    "tpu.trace_stop"() : () -> ()
    %cst_21 = arith.constant dense<0xFF800000> : vector<4x32xf32>
    %61 = vector.multi_reduction <maximumf>, %60, %cst_21 [2] : vector<4x32x32xf32> to vector<4x32xf32>
    %62 = vector.shape_cast %61 : vector<4x32xf32> to vector<4x32x1xf32>
    %63 = vector.broadcast %62 : vector<4x32x1xf32> to vector<4x32x32xf32>
    %64 = arith.subf %60, %63 : vector<4x32x32xf32>
    %65 = math.exp %64 : vector<4x32x32xf32>
    %cst_22 = arith.constant dense<0.000000e+00> : vector<4x32xf32>
    %66 = vector.multi_reduction <add>, %65, %cst_22 [2] : vector<4x32x32xf32> to vector<4x32xf32>
    %67 = vector.shape_cast %66 : vector<4x32xf32> to vector<4x32x1xf32>
    %68 = tpu.reciprocal %67 {approx = true} : vector<4x32x1xf32> -> vector<4x32x1xf32>
    %69 = vector.broadcast %68 : vector<4x32x1xf32> to vector<4x32x32xf32>
    %70 = arith.mulf %65, %69 : vector<4x32x32xf32>
    %71 = arith.truncf %70 : vector<4x32x32xf32> to vector<4x32x32xbf16>
    "tpu.trace_start"() <{level = 10 : i32, message = "bqk,bkd->bqd"}> : () -> ()
    %cst_23 = arith.constant dense<0.000000e+00> : vector<4x32x32xf32>
    %72 = tpu.matmul %71, %59, %cst_23 {dimension_numbers = #tpu.dot_dimension_numbers<[2], [1], [1], [2], [0, 0, 0, 1, 1, 2], [0], [0]>} : vector<4x32x32xbf16>, vector<4x32x32xbf16>, vector<4x32x32xf32> -> vector<4x32x32xf32>
    "tpu.trace_stop"() : () -> ()
    %73 = vector.extract_strided_slice %32 {offsets = [0, 0, 64], sizes = [4, 32, 32], strides = [1, 1, 1]} : vector<4x32x128xf32> to vector<4x32x32xf32>
    %74 = arith.truncf %73 : vector<4x32x32xf32> to vector<4x32x32xbf16>
    %75 = vector.extract_strided_slice %33 {offsets = [0, 0, 64], sizes = [4, 32, 32], strides = [1, 1, 1]} : vector<4x32x128xf32> to vector<4x32x32xf32>
    %76 = arith.truncf %75 : vector<4x32x32xf32> to vector<4x32x32xbf16>
    %77 = vector.extract_strided_slice %34 {offsets = [0, 0, 64], sizes = [4, 32, 32], strides = [1, 1, 1]} : vector<4x32x128xf32> to vector<4x32x32xf32>
    %78 = arith.truncf %77 : vector<4x32x32xf32> to vector<4x32x32xbf16>
    "tpu.trace_start"() <{level = 10 : i32, message = "bqd,bkd->bqk"}> : () -> ()
    %cst_24 = arith.constant dense<0.000000e+00> : vector<4x32x32xf32>
    %79 = tpu.matmul %74, %76, %cst_24 {dimension_numbers = #tpu.dot_dimension_numbers<[2], [2], [1], [1], [0, 0, 0, 1, 1, 1], [0], [0]>} : vector<4x32x32xbf16>, vector<4x32x32xbf16>, vector<4x32x32xf32> -> vector<4x32x32xf32>
    "tpu.trace_stop"() : () -> ()
    %cst_25 = arith.constant dense<0xFF800000> : vector<4x32xf32>
    %80 = vector.multi_reduction <maximumf>, %79, %cst_25 [2] : vector<4x32x32xf32> to vector<4x32xf32>
    %81 = vector.shape_cast %80 : vector<4x32xf32> to vector<4x32x1xf32>
    %82 = vector.broadcast %81 : vector<4x32x1xf32> to vector<4x32x32xf32>
    %83 = arith.subf %79, %82 : vector<4x32x32xf32>
    %84 = math.exp %83 : vector<4x32x32xf32>
    %cst_26 = arith.constant dense<0.000000e+00> : vector<4x32xf32>
    %85 = vector.multi_reduction <add>, %84, %cst_26 [2] : vector<4x32x32xf32> to vector<4x32xf32>
    %86 = vector.shape_cast %85 : vector<4x32xf32> to vector<4x32x1xf32>
    %87 = tpu.reciprocal %86 {approx = true} : vector<4x32x1xf32> -> vector<4x32x1xf32>
    %88 = vector.broadcast %87 : vector<4x32x1xf32> to vector<4x32x32xf32>
    %89 = arith.mulf %84, %88 : vector<4x32x32xf32>
    %90 = arith.truncf %89 : vector<4x32x32xf32> to vector<4x32x32xbf16>
    "tpu.trace_start"() <{level = 10 : i32, message = "bqk,bkd->bqd"}> : () -> ()
    %cst_27 = arith.constant dense<0.000000e+00> : vector<4x32x32xf32>
    %91 = tpu.matmul %90, %78, %cst_27 {dimension_numbers = #tpu.dot_dimension_numbers<[2], [1], [1], [2], [0, 0, 0, 1, 1, 2], [0], [0]>} : vector<4x32x32xbf16>, vector<4x32x32xbf16>, vector<4x32x32xf32> -> vector<4x32x32xf32>
    "tpu.trace_stop"() : () -> ()
    %92 = vector.extract_strided_slice %32 {offsets = [0, 0, 96], sizes = [4, 32, 32], strides = [1, 1, 1]} : vector<4x32x128xf32> to vector<4x32x32xf32>
    %93 = arith.truncf %92 : vector<4x32x32xf32> to vector<4x32x32xbf16>
    %94 = vector.extract_strided_slice %33 {offsets = [0, 0, 96], sizes = [4, 32, 32], strides = [1, 1, 1]} : vector<4x32x128xf32> to vector<4x32x32xf32>
    %95 = arith.truncf %94 : vector<4x32x32xf32> to vector<4x32x32xbf16>
    %96 = vector.extract_strided_slice %34 {offsets = [0, 0, 96], sizes = [4, 32, 32], strides = [1, 1, 1]} : vector<4x32x128xf32> to vector<4x32x32xf32>
    %97 = arith.truncf %96 : vector<4x32x32xf32> to vector<4x32x32xbf16>
    "tpu.trace_start"() <{level = 10 : i32, message = "bqd,bkd->bqk"}> : () -> ()
    %cst_28 = arith.constant dense<0.000000e+00> : vector<4x32x32xf32>
    %98 = tpu.matmul %93, %95, %cst_28 {dimension_numbers = #tpu.dot_dimension_numbers<[2], [2], [1], [1], [0, 0, 0, 1, 1, 1], [0], [0]>} : vector<4x32x32xbf16>, vector<4x32x32xbf16>, vector<4x32x32xf32> -> vector<4x32x32xf32>
    "tpu.trace_stop"() : () -> ()
    %cst_29 = arith.constant dense<0xFF800000> : vector<4x32xf32>
    %99 = vector.multi_reduction <maximumf>, %98, %cst_29 [2] : vector<4x32x32xf32> to vector<4x32xf32>
    %100 = vector.shape_cast %99 : vector<4x32xf32> to vector<4x32x1xf32>
    %101 = vector.broadcast %100 : vector<4x32x1xf32> to vector<4x32x32xf32>
    %102 = arith.subf %98, %101 : vector<4x32x32xf32>
    %103 = math.exp %102 : vector<4x32x32xf32>
    %cst_30 = arith.constant dense<0.000000e+00> : vector<4x32xf32>
    %104 = vector.multi_reduction <add>, %103, %cst_30 [2] : vector<4x32x32xf32> to vector<4x32xf32>
    %105 = vector.shape_cast %104 : vector<4x32xf32> to vector<4x32x1xf32>
    %106 = tpu.reciprocal %105 {approx = true} : vector<4x32x1xf32> -> vector<4x32x1xf32>
    %107 = vector.broadcast %106 : vector<4x32x1xf32> to vector<4x32x32xf32>
    %108 = arith.mulf %103, %107 : vector<4x32x32xf32>
    %109 = arith.truncf %108 : vector<4x32x32xf32> to vector<4x32x32xbf16>
    "tpu.trace_start"() <{level = 10 : i32, message = "bqk,bkd->bqd"}> : () -> ()
    %cst_31 = arith.constant dense<0.000000e+00> : vector<4x32x32xf32>
    %110 = tpu.matmul %109, %97, %cst_31 {dimension_numbers = #tpu.dot_dimension_numbers<[2], [1], [1], [2], [0, 0, 0, 1, 1, 2], [0], [0]>} : vector<4x32x32xbf16>, vector<4x32x32xbf16>, vector<4x32x32xf32> -> vector<4x32x32xf32>
    "tpu.trace_stop"() : () -> ()
    %111 = tpu.concatenate %53, %72, %91, %110 in 2 : vector<4x32x32xf32>, vector<4x32x32xf32>, vector<4x32x32xf32>, vector<4x32x32xf32> -> vector<4x32x128xf32>
    %112 = vector.shape_cast %111 : vector<4x32x128xf32> to vector<128x128xf32>
    %113 = arith.truncf %112 : vector<128x128xf32> to vector<128x128xbf16>
    %c0_32 = arith.constant 0 : index
    %c0_33 = arith.constant 0 : index
    %114 = vector.load %arg6[%c0_32, %c0_33] : memref<128x128xbf16, #tpu.memory_space<vmem>>, vector<128x128xbf16>
    %cst_34 = arith.constant dense<0.000000e+00> : vector<128x128xf32>
    %115 = tpu.matmul %113, %114, %cst_34 {dimension_numbers = #tpu.dot_dimension_numbers<[1], [0], [0], [1], [0, 0, 1, 1], [], []>} : vector<128x128xbf16>, vector<128x128xbf16>, vector<128x128xf32> -> vector<128x128xf32>
    %116 = arith.addf %1, %115 : vector<128x128xf32>
    %c0_35 = arith.constant 0 : index
    %c0_36 = arith.constant 0 : index
    %117 = vector.load %arg7[%c0_35, %c0_36] : memref<1x128xf32, #tpu.memory_space<vmem>>, vector<1x128xf32>
    %118 = vector.broadcast %117 : vector<1x128xf32> to vector<128x128xf32>
    %119 = arith.addf %116, %118 : vector<128x128xf32>
    %c0_37 = arith.constant 0 : index
    %c0_38 = arith.constant 0 : index
    %120 = vector.load %arg8[%c0_37, %c0_38] : memref<1x128xf32, #tpu.memory_space<vmem>>, vector<1x128xf32>
    %c0_39 = arith.constant 0 : index
    %c0_40 = arith.constant 0 : index
    %121 = vector.load %arg9[%c0_39, %c0_40] : memref<1x128xf32, #tpu.memory_space<vmem>>, vector<1x128xf32>
    %cst_41 = arith.constant dense<0.000000e+00> : vector<128xf32>
    %122 = vector.multi_reduction <add>, %119, %cst_41 [1] : vector<128x128xf32> to vector<128xf32>
    %123 = vector.shape_cast %122 : vector<128xf32> to vector<128x1xf32>
    %cst_42 = arith.constant 1.280000e+02 : f32
    %124 = vector.broadcast %cst_42 : f32 to vector<128x1xf32>
    %125 = arith.divf %123, %124 : vector<128x1xf32>
    %126 = vector.broadcast %125 : vector<128x1xf32> to vector<128x128xf32>
    %127 = arith.subf %119, %126 : vector<128x128xf32>
    %128 = arith.mulf %127, %127 : vector<128x128xf32>
    %cst_43 = arith.constant dense<0.000000e+00> : vector<128xf32>
    %129 = vector.multi_reduction <add>, %128, %cst_43 [1] : vector<128x128xf32> to vector<128xf32>
    %130 = vector.shape_cast %129 : vector<128xf32> to vector<128x1xf32>
    %cst_44 = arith.constant 1.280000e+02 : f32
    %131 = vector.broadcast %cst_44 : f32 to vector<128x1xf32>
    %132 = arith.divf %130, %131 : vector<128x1xf32>
    %cst_45 = arith.constant 9.99999974E-6 : f32
    %133 = vector.broadcast %cst_45 : f32 to vector<128x1xf32>
    %134 = arith.addf %132, %133 : vector<128x1xf32>
    %135 = math.rsqrt %134 : vector<128x1xf32>
    %136 = vector.broadcast %135 : vector<128x1xf32> to vector<128x128xf32>
    %137 = arith.mulf %127, %136 : vector<128x128xf32>
    %138 = vector.broadcast %120 : vector<1x128xf32> to vector<128x128xf32>
    %139 = arith.mulf %137, %138 : vector<128x128xf32>
    %140 = vector.broadcast %121 : vector<1x128xf32> to vector<128x128xf32>
    %141 = arith.addf %139, %140 : vector<128x128xf32>
    %142 = arith.truncf %141 : vector<128x128xf32> to vector<128x128xbf16>
    %c0_46 = arith.constant 0 : index
    %c0_47 = arith.constant 0 : index
    %143 = vector.load %arg10[%c0_46, %c0_47] : memref<128x128xbf16, #tpu.memory_space<vmem>>, vector<128x128xbf16>
    %cst_48 = arith.constant dense<0.000000e+00> : vector<128x128xf32>
    %144 = tpu.matmul %142, %143, %cst_48 {dimension_numbers = #tpu.dot_dimension_numbers<[1], [0], [0], [1], [0, 0, 1, 1], [], []>} : vector<128x128xbf16>, vector<128x128xbf16>, vector<128x128xf32> -> vector<128x128xf32>
    %145 = arith.truncf %3 : vector<64x64xf32> to vector<64x64xbf16>
    %c0_49 = arith.constant 0 : index
    %c0_50 = arith.constant 0 : index
    %146 = vector.load %arg11[%c0_49, %c0_50] : memref<64x256xbf16, #tpu.memory_space<vmem>>, vector<64x256xbf16>
    %cst_51 = arith.constant dense<0.000000e+00> : vector<64x256xf32>
    %147 = tpu.matmul %145, %146, %cst_51 {dimension_numbers = #tpu.dot_dimension_numbers<[1], [0], [0], [1], [0, 0, 1, 1], [], []>} : vector<64x64xbf16>, vector<64x256xbf16>, vector<64x256xf32> -> vector<64x256xf32>
    %148 = vector.extract_strided_slice %147 {offsets = [0, 0], sizes = [64, 128], strides = [1, 1]} : vector<64x256xf32> to vector<64x128xf32>
    %149 = vector.extract_strided_slice %147 {offsets = [0, 128], sizes = [64, 128], strides = [1, 1]} : vector<64x256xf32> to vector<64x128xf32>
    %150 = vector.shape_cast %144 : vector<128x128xf32> to vector<4x32x128xf32>
    %151 = vector.shape_cast %148 : vector<64x128xf32> to vector<4x16x128xf32>
    %152 = vector.shape_cast %149 : vector<64x128xf32> to vector<4x16x128xf32>
    %153 = vector.extract_strided_slice %150 {offsets = [0, 0, 0], sizes = [4, 32, 32], strides = [1, 1, 1]} : vector<4x32x128xf32> to vector<4x32x32xf32>
    %154 = arith.truncf %153 : vector<4x32x32xf32> to vector<4x32x32xbf16>
    %155 = vector.extract_strided_slice %151 {offsets = [0, 0, 0], sizes = [4, 16, 32], strides = [1, 1, 1]} : vector<4x16x128xf32> to vector<4x16x32xf32>
    %156 = arith.truncf %155 : vector<4x16x32xf32> to vector<4x16x32xbf16>
    %157 = vector.extract_strided_slice %152 {offsets = [0, 0, 0], sizes = [4, 16, 32], strides = [1, 1, 1]} : vector<4x16x128xf32> to vector<4x16x32xf32>
    %158 = arith.truncf %157 : vector<4x16x32xf32> to vector<4x16x32xbf16>
    "tpu.trace_start"() <{level = 10 : i32, message = "bqd,bkd->bqk"}> : () -> ()
    %cst_52 = arith.constant dense<0.000000e+00> : vector<4x32x16xf32>
    %159 = tpu.matmul %154, %156, %cst_52 {dimension_numbers = #tpu.dot_dimension_numbers<[2], [2], [1], [1], [0, 0, 0, 1, 1, 1], [0], [0]>} : vector<4x32x32xbf16>, vector<4x16x32xbf16>, vector<4x32x16xf32> -> vector<4x32x16xf32>
    "tpu.trace_stop"() : () -> ()
    %cst_53 = arith.constant dense<0xFF800000> : vector<4x32xf32>
    %160 = vector.multi_reduction <maximumf>, %159, %cst_53 [2] : vector<4x32x16xf32> to vector<4x32xf32>
    %161 = vector.shape_cast %160 : vector<4x32xf32> to vector<4x32x1xf32>
    %162 = vector.broadcast %161 : vector<4x32x1xf32> to vector<4x32x16xf32>
    %163 = arith.subf %159, %162 : vector<4x32x16xf32>
    %164 = math.exp %163 : vector<4x32x16xf32>
    %cst_54 = arith.constant dense<0.000000e+00> : vector<4x32xf32>
    %165 = vector.multi_reduction <add>, %164, %cst_54 [2] : vector<4x32x16xf32> to vector<4x32xf32>
    %166 = vector.shape_cast %165 : vector<4x32xf32> to vector<4x32x1xf32>
    %167 = tpu.reciprocal %166 {approx = true} : vector<4x32x1xf32> -> vector<4x32x1xf32>
    %168 = vector.broadcast %167 : vector<4x32x1xf32> to vector<4x32x16xf32>
    %169 = arith.mulf %164, %168 : vector<4x32x16xf32>
    %170 = arith.truncf %169 : vector<4x32x16xf32> to vector<4x32x16xbf16>
    "tpu.trace_start"() <{level = 10 : i32, message = "bqk,bkd->bqd"}> : () -> ()
    %cst_55 = arith.constant dense<0.000000e+00> : vector<4x32x32xf32>
    %171 = tpu.matmul %170, %158, %cst_55 {dimension_numbers = #tpu.dot_dimension_numbers<[2], [1], [1], [2], [0, 0, 0, 1, 1, 2], [0], [0]>} : vector<4x32x16xbf16>, vector<4x16x32xbf16>, vector<4x32x32xf32> -> vector<4x32x32xf32>
    "tpu.trace_stop"() : () -> ()
    %172 = vector.extract_strided_slice %150 {offsets = [0, 0, 32], sizes = [4, 32, 32], strides = [1, 1, 1]} : vector<4x32x128xf32> to vector<4x32x32xf32>
    %173 = arith.truncf %172 : vector<4x32x32xf32> to vector<4x32x32xbf16>
    %174 = vector.extract_strided_slice %151 {offsets = [0, 0, 32], sizes = [4, 16, 32], strides = [1, 1, 1]} : vector<4x16x128xf32> to vector<4x16x32xf32>
    %175 = arith.truncf %174 : vector<4x16x32xf32> to vector<4x16x32xbf16>
    %176 = vector.extract_strided_slice %152 {offsets = [0, 0, 32], sizes = [4, 16, 32], strides = [1, 1, 1]} : vector<4x16x128xf32> to vector<4x16x32xf32>
    %177 = arith.truncf %176 : vector<4x16x32xf32> to vector<4x16x32xbf16>
    "tpu.trace_start"() <{level = 10 : i32, message = "bqd,bkd->bqk"}> : () -> ()
    %cst_56 = arith.constant dense<0.000000e+00> : vector<4x32x16xf32>
    %178 = tpu.matmul %173, %175, %cst_56 {dimension_numbers = #tpu.dot_dimension_numbers<[2], [2], [1], [1], [0, 0, 0, 1, 1, 1], [0], [0]>} : vector<4x32x32xbf16>, vector<4x16x32xbf16>, vector<4x32x16xf32> -> vector<4x32x16xf32>
    "tpu.trace_stop"() : () -> ()
    %cst_57 = arith.constant dense<0xFF800000> : vector<4x32xf32>
    %179 = vector.multi_reduction <maximumf>, %178, %cst_57 [2] : vector<4x32x16xf32> to vector<4x32xf32>
    %180 = vector.shape_cast %179 : vector<4x32xf32> to vector<4x32x1xf32>
    %181 = vector.broadcast %180 : vector<4x32x1xf32> to vector<4x32x16xf32>
    %182 = arith.subf %178, %181 : vector<4x32x16xf32>
    %183 = math.exp %182 : vector<4x32x16xf32>
    %cst_58 = arith.constant dense<0.000000e+00> : vector<4x32xf32>
    %184 = vector.multi_reduction <add>, %183, %cst_58 [2] : vector<4x32x16xf32> to vector<4x32xf32>
    %185 = vector.shape_cast %184 : vector<4x32xf32> to vector<4x32x1xf32>
    %186 = tpu.reciprocal %185 {approx = true} : vector<4x32x1xf32> -> vector<4x32x1xf32>
    %187 = vector.broadcast %186 : vector<4x32x1xf32> to vector<4x32x16xf32>
    %188 = arith.mulf %183, %187 : vector<4x32x16xf32>
    %189 = arith.truncf %188 : vector<4x32x16xf32> to vector<4x32x16xbf16>
    "tpu.trace_start"() <{level = 10 : i32, message = "bqk,bkd->bqd"}> : () -> ()
    %cst_59 = arith.constant dense<0.000000e+00> : vector<4x32x32xf32>
    %190 = tpu.matmul %189, %177, %cst_59 {dimension_numbers = #tpu.dot_dimension_numbers<[2], [1], [1], [2], [0, 0, 0, 1, 1, 2], [0], [0]>} : vector<4x32x16xbf16>, vector<4x16x32xbf16>, vector<4x32x32xf32> -> vector<4x32x32xf32>
    "tpu.trace_stop"() : () -> ()
    %191 = vector.extract_strided_slice %150 {offsets = [0, 0, 64], sizes = [4, 32, 32], strides = [1, 1, 1]} : vector<4x32x128xf32> to vector<4x32x32xf32>
    %192 = arith.truncf %191 : vector<4x32x32xf32> to vector<4x32x32xbf16>
    %193 = vector.extract_strided_slice %151 {offsets = [0, 0, 64], sizes = [4, 16, 32], strides = [1, 1, 1]} : vector<4x16x128xf32> to vector<4x16x32xf32>
    %194 = arith.truncf %193 : vector<4x16x32xf32> to vector<4x16x32xbf16>
    %195 = vector.extract_strided_slice %152 {offsets = [0, 0, 64], sizes = [4, 16, 32], strides = [1, 1, 1]} : vector<4x16x128xf32> to vector<4x16x32xf32>
    %196 = arith.truncf %195 : vector<4x16x32xf32> to vector<4x16x32xbf16>
    "tpu.trace_start"() <{level = 10 : i32, message = "bqd,bkd->bqk"}> : () -> ()
    %cst_60 = arith.constant dense<0.000000e+00> : vector<4x32x16xf32>
    %197 = tpu.matmul %192, %194, %cst_60 {dimension_numbers = #tpu.dot_dimension_numbers<[2], [2], [1], [1], [0, 0, 0, 1, 1, 1], [0], [0]>} : vector<4x32x32xbf16>, vector<4x16x32xbf16>, vector<4x32x16xf32> -> vector<4x32x16xf32>
    "tpu.trace_stop"() : () -> ()
    %cst_61 = arith.constant dense<0xFF800000> : vector<4x32xf32>
    %198 = vector.multi_reduction <maximumf>, %197, %cst_61 [2] : vector<4x32x16xf32> to vector<4x32xf32>
    %199 = vector.shape_cast %198 : vector<4x32xf32> to vector<4x32x1xf32>
    %200 = vector.broadcast %199 : vector<4x32x1xf32> to vector<4x32x16xf32>
    %201 = arith.subf %197, %200 : vector<4x32x16xf32>
    %202 = math.exp %201 : vector<4x32x16xf32>
    %cst_62 = arith.constant dense<0.000000e+00> : vector<4x32xf32>
    %203 = vector.multi_reduction <add>, %202, %cst_62 [2] : vector<4x32x16xf32> to vector<4x32xf32>
    %204 = vector.shape_cast %203 : vector<4x32xf32> to vector<4x32x1xf32>
    %205 = tpu.reciprocal %204 {approx = true} : vector<4x32x1xf32> -> vector<4x32x1xf32>
    %206 = vector.broadcast %205 : vector<4x32x1xf32> to vector<4x32x16xf32>
    %207 = arith.mulf %202, %206 : vector<4x32x16xf32>
    %208 = arith.truncf %207 : vector<4x32x16xf32> to vector<4x32x16xbf16>
    "tpu.trace_start"() <{level = 10 : i32, message = "bqk,bkd->bqd"}> : () -> ()
    %cst_63 = arith.constant dense<0.000000e+00> : vector<4x32x32xf32>
    %209 = tpu.matmul %208, %196, %cst_63 {dimension_numbers = #tpu.dot_dimension_numbers<[2], [1], [1], [2], [0, 0, 0, 1, 1, 2], [0], [0]>} : vector<4x32x16xbf16>, vector<4x16x32xbf16>, vector<4x32x32xf32> -> vector<4x32x32xf32>
    "tpu.trace_stop"() : () -> ()
    %210 = vector.extract_strided_slice %150 {offsets = [0, 0, 96], sizes = [4, 32, 32], strides = [1, 1, 1]} : vector<4x32x128xf32> to vector<4x32x32xf32>
    %211 = arith.truncf %210 : vector<4x32x32xf32> to vector<4x32x32xbf16>
    %212 = vector.extract_strided_slice %151 {offsets = [0, 0, 96], sizes = [4, 16, 32], strides = [1, 1, 1]} : vector<4x16x128xf32> to vector<4x16x32xf32>
    %213 = arith.truncf %212 : vector<4x16x32xf32> to vector<4x16x32xbf16>
    %214 = vector.extract_strided_slice %152 {offsets = [0, 0, 96], sizes = [4, 16, 32], strides = [1, 1, 1]} : vector<4x16x128xf32> to vector<4x16x32xf32>
    %215 = arith.truncf %214 : vector<4x16x32xf32> to vector<4x16x32xbf16>
    "tpu.trace_start"() <{level = 10 : i32, message = "bqd,bkd->bqk"}> : () -> ()
    %cst_64 = arith.constant dense<0.000000e+00> : vector<4x32x16xf32>
    %216 = tpu.matmul %211, %213, %cst_64 {dimension_numbers = #tpu.dot_dimension_numbers<[2], [2], [1], [1], [0, 0, 0, 1, 1, 1], [0], [0]>} : vector<4x32x32xbf16>, vector<4x16x32xbf16>, vector<4x32x16xf32> -> vector<4x32x16xf32>
    "tpu.trace_stop"() : () -> ()
    %cst_65 = arith.constant dense<0xFF800000> : vector<4x32xf32>
    %217 = vector.multi_reduction <maximumf>, %216, %cst_65 [2] : vector<4x32x16xf32> to vector<4x32xf32>
    %218 = vector.shape_cast %217 : vector<4x32xf32> to vector<4x32x1xf32>
    %219 = vector.broadcast %218 : vector<4x32x1xf32> to vector<4x32x16xf32>
    %220 = arith.subf %216, %219 : vector<4x32x16xf32>
    %221 = math.exp %220 : vector<4x32x16xf32>
    %cst_66 = arith.constant dense<0.000000e+00> : vector<4x32xf32>
    %222 = vector.multi_reduction <add>, %221, %cst_66 [2] : vector<4x32x16xf32> to vector<4x32xf32>
    %223 = vector.shape_cast %222 : vector<4x32xf32> to vector<4x32x1xf32>
    %224 = tpu.reciprocal %223 {approx = true} : vector<4x32x1xf32> -> vector<4x32x1xf32>
    %225 = vector.broadcast %224 : vector<4x32x1xf32> to vector<4x32x16xf32>
    %226 = arith.mulf %221, %225 : vector<4x32x16xf32>
    %227 = arith.truncf %226 : vector<4x32x16xf32> to vector<4x32x16xbf16>
    "tpu.trace_start"() <{level = 10 : i32, message = "bqk,bkd->bqd"}> : () -> ()
    %cst_67 = arith.constant dense<0.000000e+00> : vector<4x32x32xf32>
    %228 = tpu.matmul %227, %215, %cst_67 {dimension_numbers = #tpu.dot_dimension_numbers<[2], [1], [1], [2], [0, 0, 0, 1, 1, 2], [0], [0]>} : vector<4x32x16xbf16>, vector<4x16x32xbf16>, vector<4x32x32xf32> -> vector<4x32x32xf32>
    "tpu.trace_stop"() : () -> ()
    %229 = tpu.concatenate %171, %190, %209, %228 in 2 : vector<4x32x32xf32>, vector<4x32x32xf32>, vector<4x32x32xf32>, vector<4x32x32xf32> -> vector<4x32x128xf32>
    %230 = vector.shape_cast %229 : vector<4x32x128xf32> to vector<128x128xf32>
    %231 = arith.truncf %230 : vector<128x128xf32> to vector<128x128xbf16>
    %c0_68 = arith.constant 0 : index
    %c0_69 = arith.constant 0 : index
    %232 = vector.load %arg12[%c0_68, %c0_69] : memref<128x128xbf16, #tpu.memory_space<vmem>>, vector<128x128xbf16>
    %cst_70 = arith.constant dense<0.000000e+00> : vector<128x128xf32>
    %233 = tpu.matmul %231, %232, %cst_70 {dimension_numbers = #tpu.dot_dimension_numbers<[1], [0], [0], [1], [0, 0, 1, 1], [], []>} : vector<128x128xbf16>, vector<128x128xbf16>, vector<128x128xf32> -> vector<128x128xf32>
    %234 = arith.addf %119, %233 : vector<128x128xf32>
    %c0_71 = arith.constant 0 : index
    %c0_72 = arith.constant 0 : index
    %235 = vector.load %arg13[%c0_71, %c0_72] : memref<1x128xf32, #tpu.memory_space<vmem>>, vector<1x128xf32>
    %236 = vector.broadcast %235 : vector<1x128xf32> to vector<128x128xf32>
    %237 = arith.addf %234, %236 : vector<128x128xf32>
    %c0_73 = arith.constant 0 : index
    %c0_74 = arith.constant 0 : index
    %238 = vector.load %arg14[%c0_73, %c0_74] : memref<1x128xf32, #tpu.memory_space<vmem>>, vector<1x128xf32>
    %c0_75 = arith.constant 0 : index
    %c0_76 = arith.constant 0 : index
    %239 = vector.load %arg15[%c0_75, %c0_76] : memref<1x128xf32, #tpu.memory_space<vmem>>, vector<1x128xf32>
    %cst_77 = arith.constant dense<0.000000e+00> : vector<128xf32>
    %240 = vector.multi_reduction <add>, %237, %cst_77 [1] : vector<128x128xf32> to vector<128xf32>
    %241 = vector.shape_cast %240 : vector<128xf32> to vector<128x1xf32>
    %cst_78 = arith.constant 1.280000e+02 : f32
    %242 = vector.broadcast %cst_78 : f32 to vector<128x1xf32>
    %243 = arith.divf %241, %242 : vector<128x1xf32>
    %244 = vector.broadcast %243 : vector<128x1xf32> to vector<128x128xf32>
    %245 = arith.subf %237, %244 : vector<128x128xf32>
    %246 = arith.mulf %245, %245 : vector<128x128xf32>
    %cst_79 = arith.constant dense<0.000000e+00> : vector<128xf32>
    %247 = vector.multi_reduction <add>, %246, %cst_79 [1] : vector<128x128xf32> to vector<128xf32>
    %248 = vector.shape_cast %247 : vector<128xf32> to vector<128x1xf32>
    %cst_80 = arith.constant 1.280000e+02 : f32
    %249 = vector.broadcast %cst_80 : f32 to vector<128x1xf32>
    %250 = arith.divf %248, %249 : vector<128x1xf32>
    %cst_81 = arith.constant 9.99999974E-6 : f32
    %251 = vector.broadcast %cst_81 : f32 to vector<128x1xf32>
    %252 = arith.addf %250, %251 : vector<128x1xf32>
    %253 = math.rsqrt %252 : vector<128x1xf32>
    %254 = vector.broadcast %253 : vector<128x1xf32> to vector<128x128xf32>
    %255 = arith.mulf %245, %254 : vector<128x128xf32>
    %256 = vector.broadcast %238 : vector<1x128xf32> to vector<128x128xf32>
    %257 = arith.mulf %255, %256 : vector<128x128xf32>
    %258 = vector.broadcast %239 : vector<1x128xf32> to vector<128x128xf32>
    %259 = arith.addf %257, %258 : vector<128x128xf32>
    %260 = arith.truncf %259 : vector<128x128xf32> to vector<128x128xbf16>
    %c0_82 = arith.constant 0 : index
    %c0_83 = arith.constant 0 : index
    %261 = vector.load %arg16[%c0_82, %c0_83] : memref<128x1024xbf16, #tpu.memory_space<vmem>>, vector<128x1024xbf16>
    %cst_84 = arith.constant dense<0.000000e+00> : vector<128x1024xf32>
    %262 = tpu.matmul %260, %261, %cst_84 {dimension_numbers = #tpu.dot_dimension_numbers<[1], [0], [0], [1], [0, 0, 1, 1], [], []>} : vector<128x128xbf16>, vector<128x1024xbf16>, vector<128x1024xf32> -> vector<128x1024xf32>
    %c0_85 = arith.constant 0 : index
    %c0_86 = arith.constant 0 : index
    %263 = vector.load %arg17[%c0_85, %c0_86] : memref<1x1024xf32, #tpu.memory_space<vmem>>, vector<1x1024xf32>
    %264 = vector.broadcast %263 : vector<1x1024xf32> to vector<128x1024xf32>
    %265 = arith.addf %262, %264 : vector<128x1024xf32>
    %266 = vector.extract_strided_slice %265 {offsets = [0, 0], sizes = [128, 512], strides = [1, 1]} : vector<128x1024xf32> to vector<128x512xf32>
    %267 = vector.extract_strided_slice %265 {offsets = [0, 512], sizes = [128, 512], strides = [1, 1]} : vector<128x1024xf32> to vector<128x512xf32>
    %cst_87 = arith.constant 5.000000e-01 : f32
    %268 = vector.broadcast %cst_87 : f32 to vector<128x512xf32>
    %269 = arith.mulf %268, %267 : vector<128x512xf32>
    %cst_88 = arith.constant 4.471500e-02 : f32
    %270 = vector.broadcast %cst_88 : f32 to vector<128x512xf32>
    %271 = arith.mulf %270, %267 : vector<128x512xf32>
    %272 = arith.mulf %271, %267 : vector<128x512xf32>
    %273 = arith.mulf %272, %267 : vector<128x512xf32>
    %274 = arith.addf %267, %273 : vector<128x512xf32>
    %cst_89 = arith.constant 0.797884583 : f32
    %275 = vector.broadcast %cst_89 : f32 to vector<128x512xf32>
    %276 = arith.mulf %275, %274 : vector<128x512xf32>
    %277 = math.tanh %276 : vector<128x512xf32>
    %cst_90 = arith.constant 1.000000e+00 : f32
    %278 = vector.broadcast %cst_90 : f32 to vector<128x512xf32>
    %279 = arith.addf %278, %277 : vector<128x512xf32>
    %280 = arith.mulf %269, %279 : vector<128x512xf32>
    %281 = arith.mulf %266, %280 : vector<128x512xf32>
    %282 = arith.truncf %281 : vector<128x512xf32> to vector<128x512xbf16>
    %c0_91 = arith.constant 0 : index
    %c0_92 = arith.constant 0 : index
    %283 = vector.load %arg18[%c0_91, %c0_92] : memref<512x128xbf16, #tpu.memory_space<vmem>>, vector<512x128xbf16>
    %cst_93 = arith.constant dense<0.000000e+00> : vector<128x128xf32>
    %284 = tpu.matmul %282, %283, %cst_93 {dimension_numbers = #tpu.dot_dimension_numbers<[1], [0], [0], [1], [0, 0, 1, 1], [], []>} : vector<128x512xbf16>, vector<512x128xbf16>, vector<128x128xf32> -> vector<128x128xf32>
    %285 = arith.addf %237, %284 : vector<128x128xf32>
    %c0_94 = arith.constant 0 : index
    %c0_95 = arith.constant 0 : index
    %286 = vector.load %arg19[%c0_94, %c0_95] : memref<1x128xf32, #tpu.memory_space<vmem>>, vector<1x128xf32>
    %287 = vector.broadcast %286 : vector<1x128xf32> to vector<128x128xf32>
    %288 = arith.addf %285, %287 : vector<128x128xf32>
    %289 = vector.shape_cast %288 : vector<128x128xf32> to vector<4x32x128xf32>
    %c0_96 = arith.constant 0 : index
    %c0_97 = arith.constant 0 : index
    %c0_98 = arith.constant 0 : index
    %290 = vector.load %arg20[%c0_96, %c0_97, %c0_98] : memref<4x32x128xf32, #tpu.memory_space<vmem>>, vector<4x32x128xf32>
    tpu.vector_store %arg20[%c0_96, %c0_97, %c0_98], %289 {strides = array<i32>} : memref<4x32x128xf32, #tpu.memory_space<vmem>>, vector<4x32x128xf32>,
    return
  }
  func.func @transform_0(%arg0: i32) -> (i32, i32, i32) {
    %c0_i32 = arith.constant 0 : i32
    %c0_i32_0 = arith.constant 0 : i32
    %c0_i32_1 = arith.constant 0 : i32
    return %arg0, %c0_i32, %c0_i32_0 : i32, i32, i32
  }
  func.func @transform_1(%arg0: i32) -> (i32, i32, i32) {
    %c0_i32 = arith.constant 0 : i32
    %c0_i32_0 = arith.constant 0 : i32
    %c0_i32_1 = arith.constant 0 : i32
    return %arg0, %c0_i32, %c0_i32_0 : i32, i32, i32
  }
  func.func @transform_2(%arg0: i32) -> (i32, i32) {
    %c0_i32 = arith.constant 0 : i32
    %c0_i32_0 = arith.constant 0 : i32
    %c0_i32_1 = arith.constant 0 : i32
    return %c0_i32, %c0_i32_0 : i32, i32
  }
  func.func @transform_3(%arg0: i32) -> (i32, i32) {
    %c0_i32 = arith.constant 0 : i32
    %c0_i32_0 = arith.constant 0 : i32
    %c0_i32_1 = arith.constant 0 : i32
    return %c0_i32, %c0_i32_0 : i32, i32
  }
  func.func @transform_4(%arg0: i32) -> (i32, i32) {
    %c0_i32 = arith.constant 0 : i32
    %c0_i32_0 = arith.constant 0 : i32
    %c0_i32_1 = arith.constant 0 : i32
    return %c0_i32, %c0_i32_0 : i32, i32
  }
  func.func @transform_5(%arg0: i32) -> (i32, i32) {
    %c0_i32 = arith.constant 0 : i32
    %c0_i32_0 = arith.constant 0 : i32
    %c0_i32_1 = arith.constant 0 : i32
    return %c0_i32, %c0_i32_0 : i32, i32
  }
  func.func @transform_6(%arg0: i32) -> (i32, i32) {
    %c0_i32 = arith.constant 0 : i32
    %c0_i32_0 = arith.constant 0 : i32
    %c0_i32_1 = arith.constant 0 : i32
    return %c0_i32, %c0_i32_0 : i32, i32
  }
  func.func @transform_7(%arg0: i32) -> (i32, i32) {
    %c0_i32 = arith.constant 0 : i32
    %c0_i32_0 = arith.constant 0 : i32
    %c0_i32_1 = arith.constant 0 : i32
    return %c0_i32, %c0_i32_0 : i32, i32
  }
  func.func @transform_8(%arg0: i32) -> (i32, i32) {
    %c0_i32 = arith.constant 0 : i32
    %c0_i32_0 = arith.constant 0 : i32
    %c0_i32_1 = arith.constant 0 : i32
    return %c0_i32, %c0_i32_0 : i32, i32
  }
  func.func @transform_9(%arg0: i32) -> (i32, i32) {
    %c0_i32 = arith.constant 0 : i32
    %c0_i32_0 = arith.constant 0 : i32
    %c0_i32_1 = arith.constant 0 : i32
    return %c0_i32, %c0_i32_0 : i32, i32
  }
  func.func @transform_10(%arg0: i32) -> (i32, i32) {
    %c0_i32 = arith.constant 0 : i32
    %c0_i32_0 = arith.constant 0 : i32
    %c0_i32_1 = arith.constant 0 : i32
    return %c0_i32, %c0_i32_0 : i32, i32
  }
  func.func @transform_11(%arg0: i32) -> (i32, i32) {
    %c0_i32 = arith.constant 0 : i32
    %c0_i32_0 = arith.constant 0 : i32
    %c0_i32_1 = arith.constant 0 : i32
    return %c0_i32, %c0_i32_0 : i32, i32
  }
  func.func @transform_12(%arg0: i32) -> (i32, i32) {
    %c0_i32 = arith.constant 0 : i32
    %c0_i32_0 = arith.constant 0 : i32
    %c0_i32_1 = arith.constant 0 : i32
    return %c0_i32, %c0_i32_0 : i32, i32
  }
  func.func @transform_13(%arg0: i32) -> (i32, i32) {
    %c0_i32 = arith.constant 0 : i32
    %c0_i32_0 = arith.constant 0 : i32
    %c0_i32_1 = arith.constant 0 : i32
    return %c0_i32, %c0_i32_0 : i32, i32
  }
  func.func @transform_14(%arg0: i32) -> (i32, i32) {
    %c0_i32 = arith.constant 0 : i32
    %c0_i32_0 = arith.constant 0 : i32
    %c0_i32_1 = arith.constant 0 : i32
    return %c0_i32, %c0_i32_0 : i32, i32
  }
  func.func @transform_15(%arg0: i32) -> (i32, i32) {
    %c0_i32 = arith.constant 0 : i32
    %c0_i32_0 = arith.constant 0 : i32
    %c0_i32_1 = arith.constant 0 : i32
    return %c0_i32, %c0_i32_0 : i32, i32
  }
  func.func @transform_16(%arg0: i32) -> (i32, i32) {
    %c0_i32 = arith.constant 0 : i32
    %c0_i32_0 = arith.constant 0 : i32
    %c0_i32_1 = arith.constant 0 : i32
    return %c0_i32, %c0_i32_0 : i32, i32
  }
  func.func @transform_17(%arg0: i32) -> (i32, i32) {
    %c0_i32 = arith.constant 0 : i32
    %c0_i32_0 = arith.constant 0 : i32
    %c0_i32_1 = arith.constant 0 : i32
    return %c0_i32, %c0_i32_0 : i32, i32
  }
  func.func @transform_18(%arg0: i32) -> (i32, i32) {
    %c0_i32 = arith.constant 0 : i32
    %c0_i32_0 = arith.constant 0 : i32
    %c0_i32_1 = arith.constant 0 : i32
    return %c0_i32, %c0_i32_0 : i32, i32
  }
  func.func @transform_19(%arg0: i32) -> (i32, i32, i32) {
    %c0_i32 = arith.constant 0 : i32
    %c0_i32_0 = arith.constant 0 : i32
    %c0_i32_1 = arith.constant 0 : i32
    return %arg0, %c0_i32, %c0_i32_0 : i32, i32, i32
  }
}

</mosaic_0001>

<llo_original>
// kernel: tpu_custom_call.1
$region0: #{tpu_custom_call.1}
  #allocation0 [shape = 'u32[]', space=smem, size = 0x4, offset = 0x4, fixed_abs, tag = 'smem constant byte address 0x4 - core index']
  #allocation1 [shape = 'u32[144,128]{1,0:T(1,128)}', space=vmem, size = 0x12000, scoped, tag = 'internal scratch']
  %s0 = inlined_call_operand.hbm [shape: f32[8,32,128], index: 0, kind: input, shape index: {}]
  %s1 = inlined_call_operand.hbm [shape: f32[8,16,64], index: 1, kind: input, shape index: {}]
  %s2 = inlined_call_operand.vmem [shape: f32[1,128], index: 2, kind: input, shape index: {}]
  %s3 = inlined_call_operand.vmem [shape: f32[1,128], index: 3, kind: input, shape index: {}]
  %s4 = inlined_call_operand.hbm [shape: bf16[128,384], index: 4, kind: input, shape index: {}]
  %s5 = inlined_call_operand.hbm [shape: bf16[128,128], index: 5, kind: input, shape index: {}]
  %s6 = inlined_call_operand.vmem [shape: f32[1,128], index: 6, kind: input, shape index: {}]
  %s7 = inlined_call_operand.vmem [shape: f32[1,128], index: 7, kind: input, shape index: {}]
  %s8 = inlined_call_operand.vmem [shape: f32[1,128], index: 8, kind: input, shape index: {}]
  %s9 = inlined_call_operand.hbm [shape: bf16[128,128], index: 9, kind: input, shape index: {}]
  %s10 = inlined_call_operand.hbm [shape: bf16[64,256], index: 10, kind: input, shape index: {}]
  %s11 = inlined_call_operand.hbm [shape: bf16[128,128], index: 11, kind: input, shape index: {}]
  %s12 = inlined_call_operand.vmem [shape: f32[1,128], index: 12, kind: input, shape index: {}]
  %s13 = inlined_call_operand.vmem [shape: f32[1,128], index: 13, kind: input, shape index: {}]
  %s14 = inlined_call_operand.vmem [shape: f32[1,128], index: 14, kind: input, shape index: {}]
  %s15 = inlined_call_operand.hbm [shape: bf16[128,1024], index: 15, kind: input, shape index: {}]
  %s16 = inlined_call_operand.vmem [shape: f32[1,1024], index: 16, kind: input, shape index: {}]
  %s17 = inlined_call_operand.hbm [shape: bf16[512,128], index: 17, kind: input, shape index: {}]
  %s18 = inlined_call_operand.vmem [shape: f32[1,128], index: 18, kind: input, shape index: {}]
  %s19 = inlined_call_operand.hbm [shape: f32[8,32,128], index: 19, kind: output, shape index: {}]
  %s20 = sld [smem:[#allocation0]]
  $region145: #{tpu_custom_call.1} parent=0
    _
  %s22 = ssub.s32 1, %s20
  %s23 = scalar_select 0, %s22, %s20
  $region1: #{tpu_custom_call.1} parent=0
    #allocation2 [shape = 'u8[131072]{0}', space=vmem, size = 0x20000, scoped, tag = 'input window, operand 0']
    #allocation3 [shape = 's32[2]{0}', space=sflag, size = 0x8, scoped, tag = 'scoped memory for tpu_custom_call.1']
    #allocation4 [shape = 's32[2]{0}', space=sflag, size = 0x8, scoped, tag = 'scoped memory for tpu_custom_call.1']
    #allocation5 [shape = 'u8[65536]{0}', space=vmem, size = 0x10000, scoped, tag = 'input window, operand 1']
    #allocation6 [shape = 's32[2]{0}', space=sflag, size = 0x8, scoped, tag = 'scoped memory for tpu_custom_call.1']
    #allocation7 [shape = 'u8[98304]{0}', space=vmem, size = 0x18000, scoped, tag = 'input window, operand 4, single buffered']
    #allocation8 [shape = 'u8[32768]{0}', space=vmem, size = 0x8000, scoped, tag = 'input window, operand 5, single buffered']
    #allocation9 [shape = 's32[1]{0}', space=sflag, size = 0x4, scoped, tag = 'scoped memory for tpu_custom_call.1']
    #allocation10 [shape = 'u8[32768]{0}', space=vmem, size = 0x8000, scoped, tag = 'input window, operand 9, single buffered']
    #allocation11 [shape = 'u8[32768]{0}', space=vmem, size = 0x8000, scoped, tag = 'input window, operand 10, single buffered']
    #allocation12 [shape = 's32[1]{0}', space=sflag, size = 0x4, scoped, tag = 'scoped memory for tpu_custom_call.1']
    #allocation13 [shape = 'u8[32768]{0}', space=vmem, size = 0x8000, scoped, tag = 'input window, operand 11, single buffered']
    #allocation14 [shape = 'u8[262144]{0}', space=vmem, size = 0x40000, scoped, tag = 'input window, operand 15, single buffered']
    #allocation15 [shape = 's32[1]{0}', space=sflag, size = 0x4, scoped, tag = 'scoped memory for tpu_custom_call.1']
    #allocation16 [shape = 'u8[131072]{0}', space=vmem, size = 0x20000, scoped, tag = 'input window, operand 17, single buffered']
    #allocation17 [shape = 'u8[131072]{0}', space=vmem, size = 0x20000, scoped, tag = 'output window, operand 0']
    %24 = vsyncpa [#allocation3], 0
    %s25 = scalar_lea.sflag [#allocation3], 1
    %26 = vsyncpa %s25, 0
    %27 = vsyncpa [#allocation6], 0
    %s28 = scalar_lea.sflag [#allocation6], 1
    %29 = vsyncpa %s28, 0
    %30 = vsyncpa [#allocation9], 0
    %31 = vsyncpa [#allocation12], 0
    %32 = vsyncpa [#allocation15], 0
    %33 = vsyncpa [#allocation4], 0
    %s34 = scalar_lea.sflag [#allocation4], 1
    %35 = vsyncpa %s34, 0
    loop: start=0, step=1, limit=4
    $region2: #{tpu_custom_call.1} parent=1 // loop_pre_header
      _
    $region3: #{tpu_custom_call.1} parent=1 // loop_header
      %s37 = sphi 0, %s41
      %p38 = scmp.ge.s32.totalorder %s37, 4
      %s47 = sphi 0, %s49
      %s50 = sphi 0, %s47
      %s51 = sphi 0, %s50
      %s67 = sphi 0, %s51
      %s73 = sphi 0, %s75
      %s76 = sphi 0, %s73
      %s77 = sphi 0, %s76
      %s93 = sphi 0, %s77
      %s97 = sphi 0, %s97
      %s99 = sphi 0, %s97
      %s100 = sphi 0, %s99
      %s114 = sphi 0, %s100
      %s118 = sphi 0, %s118
      %s120 = sphi 0, %s118
      %s121 = sphi 0, %s120
      %s135 = sphi 0, %s121
      %s139 = sphi 0, %s139
      %s141 = sphi 0, %s139
      %s142 = sphi 0, %s141
      %s156 = sphi 0, %s142
      %s160 = sphi 0, %s160
      %s162 = sphi 0, %s160
      %s163 = sphi 0, %s162
      %s177 = sphi 0, %s163
      %s181 = sphi 0, %s181
      %s183 = sphi 0, %s181
      %s184 = sphi 0, %s183
      %s198 = sphi 0, %s184
      %s202 = sphi 0, %s202
      %s204 = sphi 0, %s202
      %s205 = sphi 0, %s204
      %s219 = sphi 0, %s205
      %s223 = sphi 0, %s223
      %s225 = sphi 0, %s223
      %s226 = sphi 0, %s225
      %s240 = sphi 0, %s226
      %s244 = sphi 0, %s244
      %s246 = sphi 0, %s244
      %s247 = sphi 0, %s246
      %s261 = sphi 0, %s247
      %s265 = sphi 0, %s265
      %s267 = sphi 0, %s265
      %s268 = sphi 0, %s267
      %s282 = sphi 0, %s268
      %s286 = sphi 0, %s286
      %s288 = sphi 0, %s286
      %s289 = sphi 0, %s288
      %s303 = sphi 0, %s289
      %s307 = sphi 0, %s307
      %s309 = sphi 0, %s307
      %s310 = sphi 0, %s309
      %s324 = sphi 0, %s310
      %s328 = sphi 0, %s328
      %s330 = sphi 0, %s328
      %s331 = sphi 0, %s330
      %s345 = sphi 0, %s331
      %s349 = sphi 0, %s349
      %s351 = sphi 0, %s349
      %s352 = sphi 0, %s351
      %s366 = sphi 0, %s352
      %s370 = sphi 0, %s370
      %s372 = sphi 0, %s370
      %s373 = sphi 0, %s372
      %s387 = sphi 0, %s373
      %s391 = sphi 0, %s391
      %s393 = sphi 0, %s391
      %s394 = sphi 0, %s393
      %s408 = sphi 0, %s394
      %s412 = sphi 0, %s412
      %s414 = sphi 0, %s412
      %s415 = sphi 0, %s414
      %s429 = sphi 0, %s415
      %s433 = sphi 0, %s433
      %s435 = sphi 0, %s433
      %s436 = sphi 0, %s435
      %s450 = sphi 0, %s436
      %s456 = sphi 0, %s458
      %s459 = sphi 0, %s456
      %s460 = sphi 0, %s459
      %s476 = sphi 0, %s460
    $region4: #{tpu_custom_call.1} parent=1 // loop_header_branch
      %40 = sbr.rel (%p38) target = $region8
    $region5: #{tpu_custom_call.1} parent=1 // loop_body
      %s42 = ssub.s32 %s37, 1
      %s43 = ssub.s32 %s37, 2
      %s44 = sadd.s32 %s37, 1
      %s45 = ssub.s32 %s37, %s44
      %p46 = scmp.eq.s32.totalorder %s45, 0
      %s48 = sadd.s32 %s47, 1
      %s49 = scalar_select %p46, %s47, %s48
      %p52 = pneg %p46
      %p53 = scmp.eq.s32.totalorder %s37, 1
      %p54 = por %p52, %p53
      %p55 = scmp.ne.s32.totalorder %s47, %s50
      %p56 = scmp.eq.s32.totalorder %s37, 0
      %p57 = por %p55, %p56
      %p58 = scmp.ne.s32.totalorder %s47, %s50
      %p59 = scmp.eq.s32.totalorder %s42, 1
      %p60 = por %p58, %p59
      %p61 = scmp.ne.s32.totalorder %s50, %s51
      %p62 = scmp.eq.s32.totalorder %s42, 0
      %p63 = por %p61, %p62
      %p64 = scmp.ne.s32.totalorder %s50, %s51
      %p65 = scmp.eq.s32.totalorder %s43, 1
      %p66 = por %p64, %p65
      %p68 = scmp.ne.s32.totalorder %s51, %s67
      %p69 = scmp.eq.s32.totalorder %s43, 0
      %p70 = por %p68, %p69
      %s71 = ssub.s32 %s37, %s44
      %p72 = scmp.eq.s32.totalorder %s71, 0
      %s74 = sadd.s32 %s73, 1
      %s75 = scalar_select %p72, %s73, %s74
      %p78 = pneg %p72
      %p79 = scmp.eq.s32.totalorder %s37, 1
      %p80 = por %p78, %p79
      %p81 = scmp.ne.s32.totalorder %s73, %s76
      %p82 = scmp.eq.s32.totalorder %s37, 0
      %p83 = por %p81, %p82
      %p84 = scmp.ne.s32.totalorder %s73, %s76
      %p85 = scmp.eq.s32.totalorder %s42, 1
      %p86 = por %p84, %p85
      %p87 = scmp.ne.s32.totalorder %s76, %s77
      %p88 = scmp.eq.s32.totalorder %s42, 0
      %p89 = por %p87, %p88
      %p90 = scmp.ne.s32.totalorder %s76, %s77
      %p91 = scmp.eq.s32.totalorder %s43, 1
      %p92 = por %p90, %p91
      %p94 = scmp.ne.s32.totalorder %s77, %s93
      %p95 = scmp.eq.s32.totalorder %s43, 0
      %p96 = por %p94, %p95
      %s98 = sadd.s32 %s97, 1
      %p101 = scmp.eq.s32.totalorder %s37, 1
      %p102 = scmp.ne.s32.totalorder %s97, %s99
      %p103 = scmp.eq.s32.totalorder %s37, 0
      %p104 = por %p102, %p103
      %p105 = scmp.ne.s32.totalorder %s97, %s99
      %p106 = scmp.eq.s32.totalorder %s42, 1
      %p107 = por %p105, %p106
      %p108 = scmp.ne.s32.totalorder %s99, %s100
      %p109 = scmp.eq.s32.totalorder %s42, 0
      %p110 = por %p108, %p109
      %p111 = scmp.ne.s32.totalorder %s99, %s100
      %p112 = scmp.eq.s32.totalorder %s43, 1
      %p113 = por %p111, %p112
      %p115 = scmp.ne.s32.totalorder %s100, %s114
      %p116 = scmp.eq.s32.totalorder %s43, 0
      %p117 = por %p115, %p116
      %s119 = sadd.s32 %s118, 1
      %p122 = scmp.eq.s32.totalorder %s37, 1
      %p123 = scmp.ne.s32.totalorder %s118, %s120
      %p124 = scmp.eq.s32.totalorder %s37, 0
      %p125 = por %p123, %p124
      %p126 = scmp.ne.s32.totalorder %s118, %s120
      %p127 = scmp.eq.s32.totalorder %s42, 1
      %p128 = por %p126, %p127
      %p129 = scmp.ne.s32.totalorder %s120, %s121
      %p130 = scmp.eq.s32.totalorder %s42, 0
      %p131 = por %p129, %p130
      %p132 = scmp.ne.s32.totalorder %s120, %s121
      %p133 = scmp.eq.s32.totalorder %s43, 1
      %p134 = por %p132, %p133
      %p136 = scmp.ne.s32.totalorder %s121, %s135
      %p137 = scmp.eq.s32.totalorder %s43, 0
      %p138 = por %p136, %p137
      %s140 = sadd.s32 %s139, 1
      %p143 = scmp.eq.s32.totalorder %s37, 1
      %p144 = scmp.ne.s32.totalorder %s139, %s141
      %p145 = scmp.eq.s32.totalorder %s37, 0
      %p146 = por %p144, %p145
      %p147 = scmp.ne.s32.totalorder %s139, %s141
      %p148 = scmp.eq.s32.totalorder %s42, 1
      %p149 = por %p147, %p148
      %p150 = scmp.ne.s32.totalorder %s141, %s142
      %p151 = scmp.eq.s32.totalorder %s42, 0
      %p152 = por %p150, %p151
      %p153 = scmp.ne.s32.totalorder %s141, %s142
      %p154 = scmp.eq.s32.totalorder %s43, 1
      %p155 = por %p153, %p154
      %p157 = scmp.ne.s32.totalorder %s142, %s156
      %p158 = scmp.eq.s32.totalorder %s43, 0
      %p159 = por %p157, %p158
      %s161 = sadd.s32 %s160, 1
      %p164 = scmp.eq.s32.totalorder %s37, 1
      %p165 = scmp.ne.s32.totalorder %s160, %s162
      %p166 = scmp.eq.s32.totalorder %s37, 0
      %p167 = por %p165, %p166
      %p168 = scmp.ne.s32.totalorder %s160, %s162
      %p169 = scmp.eq.s32.totalorder %s42, 1
      %p170 = por %p168, %p169
      %p171 = scmp.ne.s32.totalorder %s162, %s163
      %p172 = scmp.eq.s32.totalorder %s42, 0
      %p173 = por %p171, %p172
      %p174 = scmp.ne.s32.totalorder %s162, %s163
      %p175 = scmp.eq.s32.totalorder %s43, 1
      %p176 = por %p174, %p175
      %p178 = scmp.ne.s32.totalorder %s163, %s177
      %p179 = scmp.eq.s32.totalorder %s43, 0
      %p180 = por %p178, %p179
      %s182 = sadd.s32 %s181, 1
      %p185 = scmp.eq.s32.totalorder %s37, 1
      %p186 = scmp.ne.s32.totalorder %s181, %s183
      %p187 = scmp.eq.s32.totalorder %s37, 0
      %p188 = por %p186, %p187
      %p189 = scmp.ne.s32.totalorder %s181, %s183
      %p190 = scmp.eq.s32.totalorder %s42, 1
      %p191 = por %p189, %p190
      %p192 = scmp.ne.s32.totalorder %s183, %s184
      %p193 = scmp.eq.s32.totalorder %s42, 0
      %p194 = por %p192, %p193
      %p195 = scmp.ne.s32.totalorder %s183, %s184
      %p196 = scmp.eq.s32.totalorder %s43, 1
      %p197 = por %p195, %p196
      %p199 = scmp.ne.s32.totalorder %s184, %s198
      %p200 = scmp.eq.s32.totalorder %s43, 0
      %p201 = por %p199, %p200
      %s203 = sadd.s32 %s202, 1
      %p206 = scmp.eq.s32.totalorder %s37, 1
      %p207 = scmp.ne.s32.totalorder %s202, %s204
      %p208 = scmp.eq.s32.totalorder %s37, 0
      %p209 = por %p207, %p208
      %p210 = scmp.ne.s32.totalorder %s202, %s204
      %p211 = scmp.eq.s32.totalorder %s42, 1
      %p212 = por %p210, %p211
      %p213 = scmp.ne.s32.totalorder %s204, %s205
      %p214 = scmp.eq.s32.totalorder %s42, 0
      %p215 = por %p213, %p214
      %p216 = scmp.ne.s32.totalorder %s204, %s205
      %p217 = scmp.eq.s32.totalorder %s43, 1
      %p218 = por %p216, %p217
      %p220 = scmp.ne.s32.totalorder %s205, %s219
      %p221 = scmp.eq.s32.totalorder %s43, 0
      %p222 = por %p220, %p221
      %s224 = sadd.s32 %s223, 1
      %p227 = scmp.eq.s32.totalorder %s37, 1
      %p228 = scmp.ne.s32.totalorder %s223, %s225
      %p229 = scmp.eq.s32.totalorder %s37, 0
      %p230 = por %p228, %p229
      %p231 = scmp.ne.s32.totalorder %s223, %s225
      %p232 = scmp.eq.s32.totalorder %s42, 1
      %p233 = por %p231, %p232
      %p234 = scmp.ne.s32.totalorder %s225, %s226
      %p235 = scmp.eq.s32.totalorder %s42, 0
      %p236 = por %p234, %p235
      %p237 = scmp.ne.s32.totalorder %s225, %s226
      %p238 = scmp.eq.s32.totalorder %s43, 1
      %p239 = por %p237, %p238
      %p241 = scmp.ne.s32.totalorder %s226, %s240
      %p242 = scmp.eq.s32.totalorder %s43, 0
      %p243 = por %p241, %p242
      %s245 = sadd.s32 %s244, 1
      %p248 = scmp.eq.s32.totalorder %s37, 1
      %p249 = scmp.ne.s32.totalorder %s244, %s246
      %p250 = scmp.eq.s32.totalorder %s37, 0
      %p251 = por %p249, %p250
      %p252 = scmp.ne.s32.totalorder %s244, %s246
      %p253 = scmp.eq.s32.totalorder %s42, 1
      %p254 = por %p252, %p253
      %p255 = scmp.ne.s32.totalorder %s246, %s247
      %p256 = scmp.eq.s32.totalorder %s42, 0
      %p257 = por %p255, %p256
      %p258 = scmp.ne.s32.totalorder %s246, %s247
      %p259 = scmp.eq.s32.totalorder %s43, 1
      %p260 = por %p258, %p259
      %p262 = scmp.ne.s32.totalorder %s247, %s261
      %p263 = scmp.eq.s32.totalorder %s43, 0
      %p264 = por %p262, %p263
      %s266 = sadd.s32 %s265, 1
      %p269 = scmp.eq.s32.totalorder %s37, 1
      %p270 = scmp.ne.s32.totalorder %s265, %s267
      %p271 = scmp.eq.s32.totalorder %s37, 0
      %p272 = por %p270, %p271
      %p273 = scmp.ne.s32.totalorder %s265, %s267
      %p274 = scmp.eq.s32.totalorder %s42, 1
      %p275 = por %p273, %p274
      %p276 = scmp.ne.s32.totalorder %s267, %s268
      %p277 = scmp.eq.s32.totalorder %s42, 0
      %p278 = por %p276, %p277
      %p279 = scmp.ne.s32.totalorder %s267, %s268
      %p280 = scmp.eq.s32.totalorder %s43, 1
      %p281 = por %p279, %p280
      %p283 = scmp.ne.s32.totalorder %s268, %s282
      %p284 = scmp.eq.s32.totalorder %s43, 0
      %p285 = por %p283, %p284
      %s287 = sadd.s32 %s286, 1
      %p290 = scmp.eq.s32.totalorder %s37, 1
      %p291 = scmp.ne.s32.totalorder %s286, %s288
      %p292 = scmp.eq.s32.totalorder %s37, 0
      %p293 = por %p291, %p292
      %p294 = scmp.ne.s32.totalorder %s286, %s288
      %p295 = scmp.eq.s32.totalorder %s42, 1
      %p296 = por %p294, %p295
      %p297 = scmp.ne.s32.totalorder %s288, %s289
      %p298 = scmp.eq.s32.totalorder %s42, 0
      %p299 = por %p297, %p298
      %p300 = scmp.ne.s32.totalorder %s288, %s289
      %p301 = scmp.eq.s32.totalorder %s43, 1
      %p302 = por %p300, %p301
      %p304 = scmp.ne.s32.totalorder %s289, %s303
      %p305 = scmp.eq.s32.totalorder %s43, 0
      %p306 = por %p304, %p305
      %s308 = sadd.s32 %s307, 1
      %p311 = scmp.eq.s32.totalorder %s37, 1
      %p312 = scmp.ne.s32.totalorder %s307, %s309
      %p313 = scmp.eq.s32.totalorder %s37, 0
      %p314 = por %p312, %p313
      %p315 = scmp.ne.s32.totalorder %s307, %s309
      %p316 = scmp.eq.s32.totalorder %s42, 1
      %p317 = por %p315, %p316
      %p318 = scmp.ne.s32.totalorder %s309, %s310
      %p319 = scmp.eq.s32.totalorder %s42, 0
      %p320 = por %p318, %p319
      %p321 = scmp.ne.s32.totalorder %s309, %s310
      %p322 = scmp.eq.s32.totalorder %s43, 1
      %p323 = por %p321, %p322
      %p325 = scmp.ne.s32.totalorder %s310, %s324
      %p326 = scmp.eq.s32.totalorder %s43, 0
      %p327 = por %p325, %p326
      %s329 = sadd.s32 %s328, 1
      %p332 = scmp.eq.s32.totalorder %s37, 1
      %p333 = scmp.ne.s32.totalorder %s328, %s330
      %p334 = scmp.eq.s32.totalorder %s37, 0
      %p335 = por %p333, %p334
      %p336 = scmp.ne.s32.totalorder %s328, %s330
      %p337 = scmp.eq.s32.totalorder %s42, 1
      %p338 = por %p336, %p337
      %p339 = scmp.ne.s32.totalorder %s330, %s331
      %p340 = scmp.eq.s32.totalorder %s42, 0
      %p341 = por %p339, %p340
      %p342 = scmp.ne.s32.totalorder %s330, %s331
      %p343 = scmp.eq.s32.totalorder %s43, 1
      %p344 = por %p342, %p343
      %p346 = scmp.ne.s32.totalorder %s331, %s345
      %p347 = scmp.eq.s32.totalorder %s43, 0
      %p348 = por %p346, %p347
      %s350 = sadd.s32 %s349, 1
      %p353 = scmp.eq.s32.totalorder %s37, 1
      %p354 = scmp.ne.s32.totalorder %s349, %s351
      %p355 = scmp.eq.s32.totalorder %s37, 0
      %p356 = por %p354, %p355
      %p357 = scmp.ne.s32.totalorder %s349, %s351
      %p358 = scmp.eq.s32.totalorder %s42, 1
      %p359 = por %p357, %p358
      %p360 = scmp.ne.s32.totalorder %s351, %s352
      %p361 = scmp.eq.s32.totalorder %s42, 0
      %p362 = por %p360, %p361
      %p363 = scmp.ne.s32.totalorder %s351, %s352
      %p364 = scmp.eq.s32.totalorder %s43, 1
      %p365 = por %p363, %p364
      %p367 = scmp.ne.s32.totalorder %s352, %s366
      %p368 = scmp.eq.s32.totalorder %s43, 0
      %p369 = por %p367, %p368
      %s371 = sadd.s32 %s370, 1
      %p374 = scmp.eq.s32.totalorder %s37, 1
      %p375 = scmp.ne.s32.totalorder %s370, %s372
      %p376 = scmp.eq.s32.totalorder %s37, 0
      %p377 = por %p375, %p376
      %p378 = scmp.ne.s32.totalorder %s370, %s372
      %p379 = scmp.eq.s32.totalorder %s42, 1
      %p380 = por %p378, %p379
      %p381 = scmp.ne.s32.totalorder %s372, %s373
      %p382 = scmp.eq.s32.totalorder %s42, 0
      %p383 = por %p381, %p382
      %p384 = scmp.ne.s32.totalorder %s372, %s373
      %p385 = scmp.eq.s32.totalorder %s43, 1
      %p386 = por %p384, %p385
      %p388 = scmp.ne.s32.totalorder %s373, %s387
      %p389 = scmp.eq.s32.totalorder %s43, 0
      %p390 = por %p388, %p389
      %s392 = sadd.s32 %s391, 1
      %p395 = scmp.eq.s32.totalorder %s37, 1
      %p396 = scmp.ne.s32.totalorder %s391, %s393
      %p397 = scmp.eq.s32.totalorder %s37, 0
      %p398 = por %p396, %p397
      %p399 = scmp.ne.s32.totalorder %s391, %s393
      %p400 = scmp.eq.s32.totalorder %s42, 1
      %p401 = por %p399, %p400
      %p402 = scmp.ne.s32.totalorder %s393, %s394
      %p403 = scmp.eq.s32.totalorder %s42, 0
      %p404 = por %p402, %p403
      %p405 = scmp.ne.s32.totalorder %s393, %s394
      %p406 = scmp.eq.s32.totalorder %s43, 1
      %p407 = por %p405, %p406
      %p409 = scmp.ne.s32.totalorder %s394, %s408
      %p410 = scmp.eq.s32.totalorder %s43, 0
      %p411 = por %p409, %p410
      %s413 = sadd.s32 %s412, 1
      %p416 = scmp.eq.s32.totalorder %s37, 1
      %p417 = scmp.ne.s32.totalorder %s412, %s414
      %p418 = scmp.eq.s32.totalorder %s37, 0
      %p419 = por %p417, %p418
      %p420 = scmp.ne.s32.totalorder %s412, %s414
      %p421 = scmp.eq.s32.totalorder %s42, 1
      %p422 = por %p420, %p421
      %p423 = scmp.ne.s32.totalorder %s414, %s415
      %p424 = scmp.eq.s32.totalorder %s42, 0
      %p425 = por %p423, %p424
      %p426 = scmp.ne.s32.totalorder %s414, %s415
      %p427 = scmp.eq.s32.totalorder %s43, 1
      %p428 = por %p426, %p427
      %p430 = scmp.ne.s32.totalorder %s415, %s429
      %p431 = scmp.eq.s32.totalorder %s43, 0
      %p432 = por %p430, %p431
      %s434 = sadd.s32 %s433, 1
      %p437 = scmp.eq.s32.totalorder %s37, 1
      %p438 = scmp.ne.s32.totalorder %s433, %s435
      %p439 = scmp.eq.s32.totalorder %s37, 0
      %p440 = por %p438, %p439
      %p441 = scmp.ne.s32.totalorder %s433, %s435
      %p442 = scmp.eq.s32.totalorder %s42, 1
      %p443 = por %p441, %p442
      %p444 = scmp.ne.s32.totalorder %s435, %s436
      %p445 = scmp.eq.s32.totalorder %s42, 0
      %p446 = por %p444, %p445
      %p447 = scmp.ne.s32.totalorder %s435, %s436
      %p448 = scmp.eq.s32.totalorder %s43, 1
      %p449 = por %p447, %p448
      %p451 = scmp.ne.s32.totalorder %s436, %s450
      %p452 = scmp.eq.s32.totalorder %s43, 0
      %p453 = por %p451, %p452
      %s454 = ssub.s32 %s37, %s44
      %p455 = scmp.eq.s32.totalorder %s454, 0
      %s457 = sadd.s32 %s456, 1
      %s458 = scalar_select %p455, %s456, %s457
      %p461 = pneg %p455
      %p462 = scmp.eq.s32.totalorder %s37, 1
      %p463 = por %p461, %p462
      %p464 = scmp.ne.s32.totalorder %s456, %s459
      %p465 = scmp.eq.s32.totalorder %s37, 0
      %p466 = por %p464, %p465
      %p467 = scmp.ne.s32.totalorder %s456, %s459
      %p468 = scmp.eq.s32.totalorder %s42, 1
      %p469 = por %p467, %p468
      %p470 = scmp.ne.s32.totalorder %s459, %s460
      %p471 = scmp.eq.s32.totalorder %s42, 0
      %p472 = por %p470, %p471
      %p473 = scmp.ne.s32.totalorder %s459, %s460
      %p474 = scmp.eq.s32.totalorder %s43, 1
      %p475 = por %p473, %p474
      %p477 = scmp.ne.s32.totalorder %s460, %s476
      %p478 = scmp.eq.s32.totalorder %s43, 0
      %p479 = por %p477, %p478
      %p480 = scmp.le.s32.totalorder 1, %s37
      %p481 = scmp.lt.s32.totalorder %s37, 3
      %p482 = pnand %p480, %p481
      %p483 = pneg %p482
      // Predicated region
      $region9: #{tpu_custom_call.1} parent=5 // pred_check
        _
      $region10: #{tpu_custom_call.1} parent=5 // pred_check_branch
        %485 = sbr.rel (%p482) target = $region12
      $region11: #{tpu_custom_call.1} parent=5 // pred_region
        %s486 = ssub.s32 %s37, 1
        // Predicated region
        $region13: #{tpu_custom_call.1} parent=11 // pred_check
          %p487 = pneg %p110
        $region14: #{tpu_custom_call.1} parent=11 // pred_check_branch
          %489 = sbr.rel (%p487) target = $region16
        $region15: #{tpu_custom_call.1} parent=11 // pred_region
          _
        $region16: #{tpu_custom_call.1} parent=11 // pred_fallthru
          _
        // Predicated region
        $region17: #{tpu_custom_call.1} parent=11 // pred_check
          %p490 = pneg %p131
        $region18: #{tpu_custom_call.1} parent=11 // pred_check_branch
          %492 = sbr.rel (%p490) target = $region20
        $region19: #{tpu_custom_call.1} parent=11 // pred_region
          _
        $region20: #{tpu_custom_call.1} parent=11 // pred_fallthru
          _
        // Predicated region
        $region21: #{tpu_custom_call.1} parent=11 // pred_check
          %p493 = pneg %p152
        $region22: #{tpu_custom_call.1} parent=11 // pred_check_branch
          %495 = sbr.rel (%p493) target = $region24
        $region23: #{tpu_custom_call.1} parent=11 // pred_region
          %s497 = ssub.s32 3072, 3072
          %498 = vsyncadd [#allocation6], %s497
          %s499 = sshll.u32 [#allocation7], 4
          %s500 = int_to_ptr.vmem [resolvable:$true] %s499
          %505 = dma.hbm_to_vmem [thread:$0]  %s4, 3072, %s500, [#allocation6], 192, 192, 12
        $region24: #{tpu_custom_call.1} parent=11 // pred_fallthru
          _
        // Predicated region
        $region25: #{tpu_custom_call.1} parent=11 // pred_check
          %p506 = pneg %p173
        $region26: #{tpu_custom_call.1} parent=11 // pred_check_branch
          %508 = sbr.rel (%p506) target = $region28
        $region27: #{tpu_custom_call.1} parent=11 // pred_region
          %s510 = ssub.s32 1024, 1024
          %511 = vsyncadd [#allocation9], %s510
          %s512 = sshll.u32 [#allocation8], 4
          %s513 = int_to_ptr.vmem [resolvable:$true] %s512
          %518 = dma.hbm_to_vmem [thread:$0]  %s5, 1024, %s513, [#allocation9], 64, 64, 4
        $region28: #{tpu_custom_call.1} parent=11 // pred_fallthru
          _
        // Predicated region
        $region29: #{tpu_custom_call.1} parent=11 // pred_check
          %p519 = pneg %p194
        $region30: #{tpu_custom_call.1} parent=11 // pred_check_branch
          %521 = sbr.rel (%p519) target = $region32
        $region31: #{tpu_custom_call.1} parent=11 // pred_region
          _
        $region32: #{tpu_custom_call.1} parent=11 // pred_fallthru
          _
        // Predicated region
        $region33: #{tpu_custom_call.1} parent=11 // pred_check
          %p522 = pneg %p215
        $region34: #{tpu_custom_call.1} parent=11 // pred_check_branch
          %524 = sbr.rel (%p522) target = $region36
        $region35: #{tpu_custom_call.1} parent=11 // pred_region
          _
        $region36: #{tpu_custom_call.1} parent=11 // pred_fallthru
          _
        // Predicated region
        $region37: #{tpu_custom_call.1} parent=11 // pred_check
          %p525 = pneg %p236
        $region38: #{tpu_custom_call.1} parent=11 // pred_check_branch
          %527 = sbr.rel (%p525) target = $region40
        $region39: #{tpu_custom_call.1} parent=11 // pred_region
          _
        $region40: #{tpu_custom_call.1} parent=11 // pred_fallthru
          _
        // Predicated region
        $region41: #{tpu_custom_call.1} parent=11 // pred_check
          %p528 = pneg %p257
        $region42: #{tpu_custom_call.1} parent=11 // pred_check_branch
          %530 = sbr.rel (%p528) target = $region44
        $region43: #{tpu_custom_call.1} parent=11 // pred_region
          %s532 = ssub.s32 1024, 1024
          %533 = vsyncadd [#allocation9], %s532
          %s534 = sshll.u32 [#allocation10], 4
          %s535 = int_to_ptr.vmem [resolvable:$true] %s534
          %540 = dma.hbm_to_vmem [thread:$0]  %s9, 1024, %s535, [#allocation9], 64, 64, 4
        $region44: #{tpu_custom_call.1} parent=11 // pred_fallthru
          _
        // Predicated region
        $region45: #{tpu_custom_call.1} parent=11 // pred_check
          %p541 = pneg %p278
        $region46: #{tpu_custom_call.1} parent=11 // pred_check_branch
          %543 = sbr.rel (%p541) target = $region48
        $region47: #{tpu_custom_call.1} parent=11 // pred_region
          %s545 = ssub.s32 1024, 1024
          %546 = vsyncadd [#allocation12], %s545
          %s547 = sshll.u32 [#allocation11], 4
          %s548 = int_to_ptr.vmem [resolvable:$true] %s547
          %553 = dma.hbm_to_vmem [thread:$0]  %s10, 1024, %s548, [#allocation12], 128, 128, 8
        $region48: #{tpu_custom_call.1} parent=11 // pred_fallthru
          _
        // Predicated region
        $region49: #{tpu_custom_call.1} parent=11 // pred_check
          %p554 = pneg %p299
        $region50: #{tpu_custom_call.1} parent=11 // pred_check_branch
          %556 = sbr.rel (%p554) target = $region52
        $region51: #{tpu_custom_call.1} parent=11 // pred_region
          %s558 = ssub.s32 1024, 1024
          %559 = vsyncadd [#allocation12], %s558
          %s560 = sshll.u32 [#allocation13], 4
          %s561 = int_to_ptr.vmem [resolvable:$true] %s560
          %566 = dma.hbm_to_vmem [thread:$0]  %s11, 1024, %s561, [#allocation12], 64, 64, 4
        $region52: #{tpu_custom_call.1} parent=11 // pred_fallthru
          _
        // Predicated region
        $region53: #{tpu_custom_call.1} parent=11 // pred_check
          %p567 = pneg %p320
        $region54: #{tpu_custom_call.1} parent=11 // pred_check_branch
          %569 = sbr.rel (%p567) target = $region56
        $region55: #{tpu_custom_call.1} parent=11 // pred_region
          _
        $region56: #{tpu_custom_call.1} parent=11 // pred_fallthru
          _
        // Predicated region
        $region57: #{tpu_custom_call.1} parent=11 // pred_check
          %p570 = pneg %p341
        $region58: #{tpu_custom_call.1} parent=11 // pred_check_branch
          %572 = sbr.rel (%p570) target = $region60
        $region59: #{tpu_custom_call.1} parent=11 // pred_region
          _
        $region60: #{tpu_custom_call.1} parent=11 // pred_fallthru
          _
        // Predicated region
        $region61: #{tpu_custom_call.1} parent=11 // pred_check
          %p573 = pneg %p362
        $region62: #{tpu_custom_call.1} parent=11 // pred_check_branch
          %575 = sbr.rel (%p573) target = $region64
        $region63: #{tpu_custom_call.1} parent=11 // pred_region
          _
        $region64: #{tpu_custom_call.1} parent=11 // pred_fallthru
          _
        // Predicated region
        $region65: #{tpu_custom_call.1} parent=11 // pred_check
          %p576 = pneg %p383
        $region66: #{tpu_custom_call.1} parent=11 // pred_check_branch
          %578 = sbr.rel (%p576) target = $region68
        $region67: #{tpu_custom_call.1} parent=11 // pred_region
          %s580 = ssub.s32 8192, 8192
          %581 = vsyncadd [#allocation15], %s580
          %s582 = sshll.u32 [#allocation14], 4
          %s583 = int_to_ptr.vmem [resolvable:$true] %s582
          %588 = dma.hbm_to_vmem [thread:$0]  %s15, 8192, %s583, [#allocation15], 512, 512, 32
        $region68: #{tpu_custom_call.1} parent=11 // pred_fallthru
          _
        // Predicated region
        $region69: #{tpu_custom_call.1} parent=11 // pred_check
          %p589 = pneg %p404
        $region70: #{tpu_custom_call.1} parent=11 // pred_check_branch
          %591 = sbr.rel (%p589) target = $region72
        $region71: #{tpu_custom_call.1} parent=11 // pred_region
          _
        $region72: #{tpu_custom_call.1} parent=11 // pred_fallthru
          _
        // Predicated region
        $region73: #{tpu_custom_call.1} parent=11 // pred_check
          %p592 = pneg %p425
        $region74: #{tpu_custom_call.1} parent=11 // pred_check_branch
          %594 = sbr.rel (%p592) target = $region76
        $region75: #{tpu_custom_call.1} parent=11 // pred_region
          %s596 = ssub.s32 4096, 4096
          %597 = vsyncadd [#allocation15], %s596
          %s598 = sshll.u32 [#allocation16], 4
          %s599 = int_to_ptr.vmem [resolvable:$true] %s598
          %604 = dma.hbm_to_vmem [thread:$0]  %s17, 4096, %s599, [#allocation15], 64, 64, 4
        $region76: #{tpu_custom_call.1} parent=11 // pred_fallthru
          _
        // Predicated region
        $region77: #{tpu_custom_call.1} parent=11 // pred_check
          %p605 = pneg %p446
        $region78: #{tpu_custom_call.1} parent=11 // pred_check_branch
          %607 = sbr.rel (%p605) target = $region80
        $region79: #{tpu_custom_call.1} parent=11 // pred_region
          _
        $region80: #{tpu_custom_call.1} parent=11 // pred_fallthru
          _
      $region12: #{tpu_custom_call.1} parent=5 // pred_fallthru
        _
      %p608 = scmp.lt.s32.totalorder %s37, 2
      // Predicated region
      $region81: #{tpu_custom_call.1} parent=5 // pred_check
        %p609 = pneg %p608
      $region82: #{tpu_custom_call.1} parent=5 // pred_check_branch
        %611 = sbr.rel (%p609) target = $region84
      $region83: #{tpu_custom_call.1} parent=5 // pred_region
        // Predicated region
        $region85: #{tpu_custom_call.1} parent=83 // pred_check
          %p612 = pneg %p57
        $region86: #{tpu_custom_call.1} parent=83 // pred_check_branch
          %614 = sbr.rel (%p612) target = $region88
        $region87: #{tpu_custom_call.1} parent=83 // pred_region
          %s615 = sand.u32 %s47, 1
          %s616 = scalar_lea.sflag [#allocation3], %s615
          %s617 = sand.u32 %s47, 1
          %s618 = smul.addr %s617, 128
          %s619 = scalar_lea.vmem [#allocation2], %s618
          %s620 = smul.u32 4, %s37
          %s622 = ssub.s32 2048, 2048
          %623 = vsyncadd %s616, %s622
          %s624 = smul.addr %s620, 4
          %s625 = smul.addr %s624, 128
          %s626 = scalar_lea.hbm %s0, %s625
          %s627 = sshll.u32 %s619, 4
          %s628 = int_to_ptr.vmem [resolvable:$true] %s627
          %633 = dma.hbm_to_vmem [thread:$0]  %s626, 2048, %s628, %s616, 128, 128, 8
        $region88: #{tpu_custom_call.1} parent=83 // pred_fallthru
          _
        // Predicated region
        $region89: #{tpu_custom_call.1} parent=83 // pred_check
          %p634 = pneg %p83
        $region90: #{tpu_custom_call.1} parent=83 // pred_check_branch
          %636 = sbr.rel (%p634) target = $region92
        $region91: #{tpu_custom_call.1} parent=83 // pred_region
          %s637 = sand.u32 %s37, 1
          %s638 = scalar_lea.sflag [#allocation6], %s637
          %s639 = sand.u32 %s73, 1
          %s640 = smul.addr %s639, 64
          %s641 = scalar_lea.vmem [#allocation5], %s640
          %s642 = smul.u32 4, %s37
          %s644 = ssub.s32 1024, 1024
          %645 = vsyncadd %s638, %s644
          %s646 = smul.addr %s642, 2
          %s647 = smul.addr %s646, 128
          %s648 = scalar_lea.hbm %s1, %s647
          %s649 = sshll.u32 %s641, 4
          %s650 = int_to_ptr.vmem [resolvable:$true] %s649
          %655 = dma.hbm_to_vmem [thread:$0]  %s648, 1024, %s650, %s638, 128, 128, 8
        $region92: #{tpu_custom_call.1} parent=83 // pred_fallthru
          _
      $region84: #{tpu_custom_call.1} parent=5 // pred_fallthru
        _
      %p656 = scmp.le.s32.totalorder 1, %s37
      %p657 = scmp.lt.s32.totalorder %s37, 3
      %p658 = pnand %p656, %p657
      %p659 = pneg %p658
      // Predicated region
      $region93: #{tpu_custom_call.1} parent=5 // pred_check
        _
      $region94: #{tpu_custom_call.1} parent=5 // pred_check_branch
        %661 = sbr.rel (%p658) target = $region96
      $region95: #{tpu_custom_call.1} parent=5 // pred_region
        %s662 = ssub.s32 %s37, 1
        %s663 = sand.u32 %s50, 1
        %s664 = scalar_lea.sflag [#allocation3], %s663
        %s665 = sand.u32 %s50, 1
        %s666 = smul.addr %s665, 128
        %s667 = scalar_lea.vmem [#allocation2], %s666
        // Predicated region
        $region97: #{tpu_custom_call.1} parent=95 // pred_check
          %p668 = pneg %p63
        $region98: #{tpu_custom_call.1} parent=95 // pred_check_branch
          %670 = sbr.rel (%p668) target = $region100
        $region99: #{tpu_custom_call.1} parent=95 // pred_region
          %671 = dma.done %s664, 2048
        $region100: #{tpu_custom_call.1} parent=95 // pred_fallthru
          _
        %s672 = sand.u32 %s42, 1
        %s673 = scalar_lea.sflag [#allocation6], %s672
        %s674 = sand.u32 %s76, 1
        %s675 = smul.addr %s674, 64
        %s676 = scalar_lea.vmem [#allocation5], %s675
        // Predicated region
        $region101: #{tpu_custom_call.1} parent=95 // pred_check
          %p677 = pneg %p89
        $region102: #{tpu_custom_call.1} parent=95 // pred_check_branch
          %679 = sbr.rel (%p677) target = $region104
        $region103: #{tpu_custom_call.1} parent=95 // pred_region
          %680 = dma.done %s673, 1024
        $region104: #{tpu_custom_call.1} parent=95 // pred_fallthru
          _
        // Predicated region
        $region105: #{tpu_custom_call.1} parent=95 // pred_check
          %p681 = pneg %p152
        $region106: #{tpu_custom_call.1} parent=95 // pred_check_branch
          %683 = sbr.rel (%p681) target = $region108
        $region107: #{tpu_custom_call.1} parent=95 // pred_region
          %684 = dma.done [#allocation6], 3072
        $region108: #{tpu_custom_call.1} parent=95 // pred_fallthru
          _
        // Predicated region
        $region109: #{tpu_custom_call.1} parent=95 // pred_check
          %p685 = pneg %p173
        $region110: #{tpu_custom_call.1} parent=95 // pred_check_branch
          %687 = sbr.rel (%p685) target = $region112
        $region111: #{tpu_custom_call.1} parent=95 // pred_region
          %688 = dma.done [#allocation9], 1024
        $region112: #{tpu_custom_call.1} parent=95 // pred_fallthru
          _
        // Predicated region
        $region113: #{tpu_custom_call.1} parent=95 // pred_check
          %p689 = pneg %p257
        $region114: #{tpu_custom_call.1} parent=95 // pred_check_branch
          %691 = sbr.rel (%p689) target = $region116
        $region115: #{tpu_custom_call.1} parent=95 // pred_region
          %692 = dma.done [#allocation9], 1024
        $region116: #{tpu_custom_call.1} parent=95 // pred_fallthru
          _
        // Predicated region
        $region117: #{tpu_custom_call.1} parent=95 // pred_check
          %p693 = pneg %p278
        $region118: #{tpu_custom_call.1} parent=95 // pred_check_branch
          %695 = sbr.rel (%p693) target = $region120
        $region119: #{tpu_custom_call.1} parent=95 // pred_region
          %696 = dma.done [#allocation12], 1024
        $region120: #{tpu_custom_call.1} parent=95 // pred_fallthru
          _
        // Predicated region
        $region121: #{tpu_custom_call.1} parent=95 // pred_check
          %p697 = pneg %p299
        $region122: #{tpu_custom_call.1} parent=95 // pred_check_branch
          %699 = sbr.rel (%p697) target = $region124
        $region123: #{tpu_custom_call.1} parent=95 // pred_region
          %700 = dma.done [#allocation12], 1024
        $region124: #{tpu_custom_call.1} parent=95 // pred_fallthru
          _
        // Predicated region
        $region125: #{tpu_custom_call.1} parent=95 // pred_check
          %p701 = pneg %p383
        $region126: #{tpu_custom_call.1} parent=95 // pred_check_branch
          %703 = sbr.rel (%p701) target = $region128
        $region127: #{tpu_custom_call.1} parent=95 // pred_region
          %704 = dma.done [#allocation15], 8192
        $region128: #{tpu_custom_call.1} parent=95 // pred_fallthru
          _
        // Predicated region
        $region129: #{tpu_custom_call.1} parent=95 // pred_check
          %p705 = pneg %p425
        $region130: #{tpu_custom_call.1} parent=95 // pred_check_branch
          %707 = sbr.rel (%p705) target = $region132
        $region131: #{tpu_custom_call.1} parent=95 // pred_region
          %708 = dma.done [#allocation15], 4096
        $region132: #{tpu_custom_call.1} parent=95 // pred_fallthru
          _
        %s709 = sand.u32 %s50, 1
        %s710 = scalar_lea.sflag [#allocation3], %s709
        %s711 = sand.u32 %s50, 1
        %s712 = smul.addr %s711, 128
        %s713 = scalar_lea.vmem [#allocation2], %s712
        %p714 = pneg %p63
        %p715 = pneg %p60
        %s716 = sand.u32 %s42, 1
        %s717 = scalar_lea.sflag [#allocation6], %s716
        %s718 = sand.u32 %s76, 1
        %s719 = smul.addr %s718, 64
        %s720 = scalar_lea.vmem [#allocation5], %s719
        %p721 = pneg %p89
        %p722 = pneg %p86
        %p723 = pneg %p110
        %p724 = pneg %p107
        %p725 = pneg %p131
        %p726 = pneg %p128
        %p727 = pneg %p152
        %p728 = pneg %p149
        %p729 = pneg %p173
        %p730 = pneg %p170
        %p731 = pneg %p194
        %p732 = pneg %p191
        %p733 = pneg %p215
        %p734 = pneg %p212
        %p735 = pneg %p236
        %p736 = pneg %p233
        %p737 = pneg %p257
        %p738 = pneg %p254
        %p739 = pneg %p278
        %p740 = pneg %p275
        %p741 = pneg %p299
        %p742 = pneg %p296
        %p743 = pneg %p320
        %p744 = pneg %p317
        %p745 = pneg %p341
        %p746 = pneg %p338
        %p747 = pneg %p362
        %p748 = pneg %p359
        %p749 = pneg %p383
        %p750 = pneg %p380
        %p751 = pneg %p404
        %p752 = pneg %p401
        %p753 = pneg %p425
        %p754 = pneg %p422
        %p755 = pneg %p446
        %p756 = pneg %p443
        %p757 = pneg %p472
        %p758 = pneg %p469
        %s759 = sand.u32 %s459, 1
        %s760 = scalar_lea.sflag [#allocation4], %s759
        %s761 = sand.u32 %s459, 1
        %s762 = smul.addr %s761, 128
        %s763 = scalar_lea.vmem [#allocation17], %s762
        %s764 = smul.u32 4, %s42
        %s765 = smul.u32 4, %s42
        %s766 = smul.u32 4, %s42
        %v768 = vld [vmem:[%s667] sm:$0xff]
        %v769 = vld [vmem:[%s667 + $0x8] sm:$0xff]
        %v770 = vld [vmem:[%s667 + $0x10] sm:$0xff]
        %v771 = vld [vmem:[%s667 + $0x18] sm:$0xff]
        %v772 = vld [vmem:[%s667 + $0x20] sm:$0xff]
        %v773 = vld [vmem:[%s667 + $0x28] sm:$0xff]
        %v774 = vld [vmem:[%s667 + $0x30] sm:$0xff]
        %v775 = vld [vmem:[%s667 + $0x38] sm:$0xff]
        %v776 = vld [vmem:[%s667 + $0x40] sm:$0xff]
        %v777 = vld [vmem:[%s667 + $0x48] sm:$0xff]
        %v778 = vld [vmem:[%s667 + $0x50] sm:$0xff]
        %v779 = vld [vmem:[%s667 + $0x58] sm:$0xff]
        %v780 = vld [vmem:[%s667 + $0x60] sm:$0xff]
        %v781 = vld [vmem:[%s667 + $0x68] sm:$0xff]
        %v782 = vld [vmem:[%s667 + $0x70] sm:$0xff]
        %v783 = vld [vmem:[%s667 + $0x78] sm:$0xff]
        %v784 = vld [vmem:[%s676] sm:$0xff]
        %v785 = vld [vmem:[%s676 + $0x8] sm:$0xff]
        %v786 = vld [vmem:[%s676 + $0x10] sm:$0xff]
        %v787 = vld [vmem:[%s676 + $0x18] sm:$0xff]
        %v788 = vld [vmem:[%s676 + $0x20] sm:$0xff]
        %v789 = vld [vmem:[%s676 + $0x28] sm:$0xff]
        %v790 = vld [vmem:[%s676 + $0x30] sm:$0xff]
        %v791 = vld [vmem:[%s676 + $0x38] sm:$0xff]
        %v792 = vld [vmem:[%s2] sm:$0x1]
        %v793 = vld [vmem:[%s3] sm:$0x1]
        %794 = vadd.xlane.f32.xlu0 %v768
        %v795 = vpop.xlane.xlu0 %794
        %796 = vadd.xlane.f32.xlu0 %v769
        %v797 = vpop.xlane.xlu0 %796
        %798 = vadd.xlane.f32.xlu0 %v770
        %v799 = vpop.xlane.xlu0 %798
        %800 = vadd.xlane.f32.xlu0 %v771
        %v801 = vpop.xlane.xlu0 %800
        %802 = vadd.xlane.f32.xlu0 %v772
        %v803 = vpop.xlane.xlu0 %802
        %804 = vadd.xlane.f32.xlu0 %v773
        %v805 = vpop.xlane.xlu0 %804
        %806 = vadd.xlane.f32.xlu0 %v774
        %v807 = vpop.xlane.xlu0 %806
        %808 = vadd.xlane.f32.xlu0 %v775
        %v809 = vpop.xlane.xlu0 %808
        %810 = vadd.xlane.f32.xlu0 %v776
        %v811 = vpop.xlane.xlu0 %810
        %812 = vadd.xlane.f32.xlu0 %v777
        %v813 = vpop.xlane.xlu0 %812
        %814 = vadd.xlane.f32.xlu0 %v778
        %v815 = vpop.xlane.xlu0 %814
        %816 = vadd.xlane.f32.xlu0 %v779
        %v817 = vpop.xlane.xlu0 %816
        %818 = vadd.xlane.f32.xlu0 %v780
        %v819 = vpop.xlane.xlu0 %818
        %820 = vadd.xlane.f32.xlu0 %v781
        %v821 = vpop.xlane.xlu0 %820
        %822 = vadd.xlane.f32.xlu0 %v782
        %v823 = vpop.xlane.xlu0 %822
        %824 = vadd.xlane.f32.xlu0 %v783
        %v825 = vpop.xlane.xlu0 %824
        %v826 = vrcp.pop 128.0
        %v827 = vmul.f32 %v795, %v826
        %v828 = vmul.f32 %v797, %v826
        %v829 = vmul.f32 %v799, %v826
        %v830 = vmul.f32 %v801, %v826
        %v831 = vmul.f32 %v803, %v826
        %v832 = vmul.f32 %v805, %v826
        %v833 = vmul.f32 %v807, %v826
        %v834 = vmul.f32 %v809, %v826
        %v835 = vmul.f32 %v811, %v826
        %v836 = vmul.f32 %v813, %v826
        %v837 = vmul.f32 %v815, %v826
        %v838 = vmul.f32 %v817, %v826
        %v839 = vmul.f32 %v819, %v826
        %v840 = vmul.f32 %v821, %v826
        %v841 = vmul.f32 %v823, %v826
        %v842 = vmul.f32 %v825, %v826
        %v843 = vsub.f32 %v768, %v827
        %v844 = vsub.f32 %v769, %v828
        %v845 = vsub.f32 %v770, %v829
        %v846 = vsub.f32 %v771, %v830
        %v847 = vsub.f32 %v772, %v831
        %v848 = vsub.f32 %v773, %v832
        %v849 = vsub.f32 %v774, %v833
        %v850 = vsub.f32 %v775, %v834
        %v851 = vsub.f32 %v776, %v835
        %v852 = vsub.f32 %v777, %v836
        %v853 = vsub.f32 %v778, %v837
        %v854 = vsub.f32 %v779, %v838
        %v855 = vsub.f32 %v780, %v839
        %v856 = vsub.f32 %v781, %v840
        %v857 = vsub.f32 %v782, %v841
        %v858 = vsub.f32 %v783, %v842
        %v859 = vmul.f32 %v843, %v843
        %v860 = vmul.f32 %v844, %v844
        %v861 = vmul.f32 %v845, %v845
        %v862 = vmul.f32 %v846, %v846
        %v863 = vmul.f32 %v847, %v847
        %v864 = vmul.f32 %v848, %v848
        %v865 = vmul.f32 %v849, %v849
        %v866 = vmul.f32 %v850, %v850
        %v867 = vmul.f32 %v851, %v851
        %v868 = vmul.f32 %v852, %v852
        %v869 = vmul.f32 %v853, %v853
        %v870 = vmul.f32 %v854, %v854
        %v871 = vmul.f32 %v855, %v855
        %v872 = vmul.f32 %v856, %v856
        %v873 = vmul.f32 %v857, %v857
        %v874 = vmul.f32 %v858, %v858
        %875 = vadd.xlane.f32.xlu0 %v859
        %v876 = vpop.xlane.xlu0 %875
        %877 = vadd.xlane.f32.xlu0 %v860
        %v878 = vpop.xlane.xlu0 %877
        %879 = vadd.xlane.f32.xlu0 %v861
        %v880 = vpop.xlane.xlu0 %879
        %881 = vadd.xlane.f32.xlu0 %v862
        %v882 = vpop.xlane.xlu0 %881
        %883 = vadd.xlane.f32.xlu0 %v863
        %v884 = vpop.xlane.xlu0 %883
        %885 = vadd.xlane.f32.xlu0 %v864
        %v886 = vpop.xlane.xlu0 %885
        %887 = vadd.xlane.f32.xlu0 %v865
        %v888 = vpop.xlane.xlu0 %887
        %889 = vadd.xlane.f32.xlu0 %v866
        %v890 = vpop.xlane.xlu0 %889
        %891 = vadd.xlane.f32.xlu0 %v867
        %v892 = vpop.xlane.xlu0 %891
        %893 = vadd.xlane.f32.xlu0 %v868
        %v894 = vpop.xlane.xlu0 %893
        %895 = vadd.xlane.f32.xlu0 %v869
        %v896 = vpop.xlane.xlu0 %895
        %897 = vadd.xlane.f32.xlu0 %v870
        %v898 = vpop.xlane.xlu0 %897
        %899 = vadd.xlane.f32.xlu0 %v871
        %v900 = vpop.xlane.xlu0 %899
        %901 = vadd.xlane.f32.xlu0 %v872
        %v902 = vpop.xlane.xlu0 %901
        %903 = vadd.xlane.f32.xlu0 %v873
        %v904 = vpop.xlane.xlu0 %903
        %905 = vadd.xlane.f32.xlu0 %v874
        %v906 = vpop.xlane.xlu0 %905
        %v907 = vmul.f32 %v876, %v826
        %v908 = vmul.f32 %v878, %v826
        %v909 = vmul.f32 %v880, %v826
        %v910 = vmul.f32 %v882, %v826
        %v911 = vmul.f32 %v884, %v826
        %v912 = vmul.f32 %v886, %v826
        %v913 = vmul.f32 %v888, %v826
        %v914 = vmul.f32 %v890, %v826
        %v915 = vmul.f32 %v892, %v826
        %v916 = vmul.f32 %v894, %v826
        %v917 = vmul.f32 %v896, %v826
        %v918 = vmul.f32 %v898, %v826
        %v919 = vmul.f32 %v900, %v826
        %v920 = vmul.f32 %v902, %v826
        %v921 = vmul.f32 %v904, %v826
        %v922 = vmul.f32 %v906, %v826
        %v923 = vadd.f32 %v907, 1e-05
        %v924 = vadd.f32 %v908, 1e-05
        %v925 = vadd.f32 %v909, 1e-05
        %v926 = vadd.f32 %v910, 1e-05
        %v927 = vadd.f32 %v911, 1e-05
        %v928 = vadd.f32 %v912, 1e-05
        %v929 = vadd.f32 %v913, 1e-05
        %v930 = vadd.f32 %v914, 1e-05
        %v931 = vadd.f32 %v915, 1e-05
        %v932 = vadd.f32 %v916, 1e-05
        %v933 = vadd.f32 %v917, 1e-05
        %v934 = vadd.f32 %v918, 1e-05
        %v935 = vadd.f32 %v919, 1e-05
        %v936 = vadd.f32 %v920, 1e-05
        %v937 = vadd.f32 %v921, 1e-05
        %v938 = vadd.f32 %v922, 1e-05
        %v939 = vrsqrt.pop %v923
        %v940 = vrsqrt.pop %v924
        %v941 = vrsqrt.pop %v925
        %v942 = vrsqrt.pop %v926
        %v943 = vrsqrt.pop %v927
        %v944 = vrsqrt.pop %v928
        %v945 = vrsqrt.pop %v929
        %v946 = vrsqrt.pop %v930
        %v947 = vrsqrt.pop %v931
        %v948 = vrsqrt.pop %v932
        %v949 = vrsqrt.pop %v933
        %v950 = vrsqrt.pop %v934
        %v951 = vrsqrt.pop %v935
        %v952 = vrsqrt.pop %v936
        %v953 = vrsqrt.pop %v937
        %v954 = vrsqrt.pop %v938
        %v955 = vmul.f32 %v843, %v939
        %v956 = vmul.f32 %v844, %v940
        %v957 = vmul.f32 %v845, %v941
        %v958 = vmul.f32 %v846, %v942
        %v959 = vmul.f32 %v847, %v943
        %v960 = vmul.f32 %v848, %v944
        %v961 = vmul.f32 %v849, %v945
        %v962 = vmul.f32 %v850, %v946
        %v963 = vmul.f32 %v851, %v947
        %v964 = vmul.f32 %v852, %v948
        %v965 = vmul.f32 %v853, %v949
        %v966 = vmul.f32 %v854, %v950
        %v967 = vmul.f32 %v855, %v951
        %v968 = vmul.f32 %v856, %v952
        %v969 = vmul.f32 %v857, %v953
        %v970 = vmul.f32 %v858, %v954
        %v972 = vlaneseq
        %v973 = vshrl.u32 %v972, 7
        %v974 = vsub.s32 0, %v973
        %v975 = vrot.slane %v792, %v974
        %v977 = vmul.f32 %v955, %v975
        %v978 = vmul.f32 %v956, %v975
        %v979 = vmul.f32 %v957, %v975
        %v980 = vmul.f32 %v958, %v975
        %v981 = vmul.f32 %v959, %v975
        %v982 = vmul.f32 %v960, %v975
        %v983 = vmul.f32 %v961, %v975
        %v984 = vmul.f32 %v962, %v975
        %v985 = vmul.f32 %v963, %v975
        %v986 = vmul.f32 %v964, %v975
        %v987 = vmul.f32 %v965, %v975
        %v988 = vmul.f32 %v966, %v975
        %v989 = vmul.f32 %v967, %v975
        %v990 = vmul.f32 %v968, %v975
        %v991 = vmul.f32 %v969, %v975
        %v992 = vmul.f32 %v970, %v975
        %v994 = vlaneseq
        %v995 = vshrl.u32 %v994, 7
        %v996 = vsub.s32 0, %v995
        %v997 = vrot.slane %v793, %v996
        %v999 = vadd.f32 %v977, %v997
        %v1000 = vadd.f32 %v978, %v997
        %v1001 = vadd.f32 %v979, %v997
        %v1002 = vadd.f32 %v980, %v997
        %v1003 = vadd.f32 %v981, %v997
        %v1004 = vadd.f32 %v982, %v997
        %v1005 = vadd.f32 %v983, %v997
        %v1006 = vadd.f32 %v984, %v997
        %v1007 = vadd.f32 %v985, %v997
        %v1008 = vadd.f32 %v986, %v997
        %v1009 = vadd.f32 %v987, %v997
        %v1010 = vadd.f32 %v988, %v997
        %v1011 = vadd.f32 %v989, %v997
        %v1012 = vadd.f32 %v990, %v997
        %v1013 = vadd.f32 %v991, %v997
        %v1014 = vadd.f32 %v992, %v997
        %v1015 = vpack.c.bf16 %v1000, %v999
        %v1016 = vpack.c.bf16 %v1002, %v1001
        %v1017 = vpack.c.bf16 %v1004, %v1003
        %v1018 = vpack.c.bf16 %v1006, %v1005
        %v1019 = vpack.c.bf16 %v1008, %v1007
        %v1020 = vpack.c.bf16 %v1010, %v1009
        %v1021 = vpack.c.bf16 %v1012, %v1011
        %v1022 = vpack.c.bf16 %v1014, %v1013
        %v1023 = vld [vmem:[#allocation7] sm:$0xff]
        %v1024 = vld [vmem:[#allocation7 + $0x8] sm:$0xf]
        %v1025 = vld [vmem:[#allocation7 + $0xc] sm:$0xff]
        %v1026 = vld [vmem:[#allocation7 + $0x14] sm:$0xf]
        %v1027 = vld [vmem:[#allocation7 + $0x18] sm:$0xff]
        %v1028 = vld [vmem:[#allocation7 + $0x20] sm:$0xf]
        %v1029 = vld [vmem:[#allocation7 + $0x24] sm:$0xff]
        %v1030 = vld [vmem:[#allocation7 + $0x2c] sm:$0xf]
        %v1031 = vld [vmem:[#allocation7 + $0x30] sm:$0xff]
        %v1032 = vld [vmem:[#allocation7 + $0x38] sm:$0xf]
        %v1033 = vld [vmem:[#allocation7 + $0x3c] sm:$0xff]
        %v1034 = vld [vmem:[#allocation7 + $0x44] sm:$0xf]
        %v1035 = vld [vmem:[#allocation7 + $0x48] sm:$0xff]
        %v1036 = vld [vmem:[#allocation7 + $0x50] sm:$0xf]
        %v1037 = vld [vmem:[#allocation7 + $0x54] sm:$0xff]
        %v1038 = vld [vmem:[#allocation7 + $0x5c] sm:$0xf]
        %v1039 = vld [vmem:[#allocation7 + $0x60] sm:$0xff]
        %v1040 = vld [vmem:[#allocation7 + $0x68] sm:$0xf]
        %v1041 = vld [vmem:[#allocation7 + $0x6c] sm:$0xff]
        %v1042 = vld [vmem:[#allocation7 + $0x74] sm:$0xf]
        %v1043 = vld [vmem:[#allocation7 + $0x78] sm:$0xff]
        %v1044 = vld [vmem:[#allocation7 + $0x80] sm:$0xf]
        %v1045 = vld [vmem:[#allocation7 + $0x84] sm:$0xff]
        %v1046 = vld [vmem:[#allocation7 + $0x8c] sm:$0xf]
        %v1047 = vld [vmem:[#allocation7 + $0x90] sm:$0xff]
        %v1048 = vld [vmem:[#allocation7 + $0x98] sm:$0xf]
        %v1049 = vld [vmem:[#allocation7 + $0x9c] sm:$0xff]
        %v1050 = vld [vmem:[#allocation7 + $0xa4] sm:$0xf]
        %v1051 = vld [vmem:[#allocation7 + $0xa8] sm:$0xff]
        %v1052 = vld [vmem:[#allocation7 + $0xb0] sm:$0xf]
        %v1053 = vld [vmem:[#allocation7 + $0xb4] sm:$0xff]
        %v1054 = vld [vmem:[#allocation7 + $0xbc] sm:$0xf]
        %v1087 = vunpack.c.l.b16 %v1023
        %v1088 = vunpack.c.h.b16 %v1023
        %v1089 = vunpack.c.l.b16 %v1024
        %v1090 = vunpack.c.l.b16 %v1025
        %v1091 = vunpack.c.h.b16 %v1025
        %v1092 = vunpack.c.l.b16 %v1026
        %v1093 = vunpack.c.l.b16 %v1027
        %v1094 = vunpack.c.h.b16 %v1027
        %v1095 = vunpack.c.l.b16 %v1028
        %v1096 = vunpack.c.l.b16 %v1029
        %v1097 = vunpack.c.h.b16 %v1029
        %v1098 = vunpack.c.l.b16 %v1030
        %v1099 = vunpack.c.l.b16 %v1031
        %v1100 = vunpack.c.h.b16 %v1031
        %v1101 = vunpack.c.l.b16 %v1032
        %v1102 = vunpack.c.l.b16 %v1033
        %v1103 = vunpack.c.h.b16 %v1033
        %v1104 = vunpack.c.l.b16 %v1034
        %v1105 = vunpack.c.l.b16 %v1035
        %v1106 = vunpack.c.h.b16 %v1035
        %v1107 = vunpack.c.l.b16 %v1036
        %v1108 = vunpack.c.l.b16 %v1037
        %v1109 = vunpack.c.h.b16 %v1037
        %v1110 = vunpack.c.l.b16 %v1038
        %v1111 = vunpack.c.l.b16 %v1039
        %v1112 = vunpack.c.h.b16 %v1039
        %v1113 = vunpack.c.l.b16 %v1040
        %v1114 = vunpack.c.l.b16 %v1041
        %v1115 = vunpack.c.h.b16 %v1041
        %v1116 = vunpack.c.l.b16 %v1042
        %v1117 = vunpack.c.l.b16 %v1043
        %v1118 = vunpack.c.h.b16 %v1043
        %v1119 = vunpack.c.l.b16 %v1044
        %v1120 = vunpack.c.l.b16 %v1045
        %v1121 = vunpack.c.h.b16 %v1045
        %v1122 = vunpack.c.l.b16 %v1046
        %v1123 = vunpack.c.l.b16 %v1047
        %v1124 = vunpack.c.h.b16 %v1047
        %v1125 = vunpack.c.l.b16 %v1048
        %v1126 = vunpack.c.l.b16 %v1049
        %v1127 = vunpack.c.h.b16 %v1049
        %v1128 = vunpack.c.l.b16 %v1050
        %v1129 = vunpack.c.l.b16 %v1051
        %v1130 = vunpack.c.h.b16 %v1051
        %v1131 = vunpack.c.l.b16 %v1052
        %v1132 = vunpack.c.l.b16 %v1053
        %v1133 = vunpack.c.h.b16 %v1053
        %v1134 = vunpack.c.l.b16 %v1054
        %v1135 = vpack.c.b16 %v1090, %v1087
        %v1136 = vpack.c.b16 %v1091, %v1088
        %v1137 = vpack.c.b16 %v1092, %v1089
        %v1138 = vpack.c.b16 %v1096, %v1093
        %v1139 = vpack.c.b16 %v1097, %v1094
        %v1140 = vpack.c.b16 %v1098, %v1095
        %v1141 = vpack.c.b16 %v1102, %v1099
        %v1142 = vpack.c.b16 %v1103, %v1100
        %v1143 = vpack.c.b16 %v1104, %v1101
        %v1144 = vpack.c.b16 %v1108, %v1105
        %v1145 = vpack.c.b16 %v1109, %v1106
        %v1146 = vpack.c.b16 %v1110, %v1107
        %v1147 = vpack.c.b16 %v1114, %v1111
        %v1148 = vpack.c.b16 %v1115, %v1112
        %v1149 = vpack.c.b16 %v1116, %v1113
        %v1150 = vpack.c.b16 %v1120, %v1117
        %v1151 = vpack.c.b16 %v1121, %v1118
        %v1152 = vpack.c.b16 %v1122, %v1119
        %v1153 = vpack.c.b16 %v1126, %v1123
        %v1154 = vpack.c.b16 %v1127, %v1124
        %v1155 = vpack.c.b16 %v1128, %v1125
        %v1156 = vpack.c.b16 %v1132, %v1129
        %v1157 = vpack.c.b16 %v1133, %v1130
        %v1158 = vpack.c.b16 %v1134, %v1131
        %1183 = vmatprep.subr.bf16.mxu0 %v1157
        %1184 = vmatpush1.bf16.msra.mxu0 %v1156
        %1185 = vmatprep.subr.bf16.mxu0 %v1154
        %1186 = vmatpush1.bf16.msra.mxu0 %v1153
        %1187 = vmatprep.subr.bf16.mxu0 %v1151
        %1188 = vmatpush1.bf16.msra.mxu0 %v1150
        %1189 = vmatprep.subr.bf16.mxu0 %v1148
        %1190 = vmatpush1.bf16.msra.mxu0 %v1147
        %1191 = vmatprep.subr.bf16.mxu0 %v1145
        %1192 = vmatpush1.bf16.msra.mxu0 %v1144
        %1193 = vmatprep.subr.bf16.mxu0 %v1142
        %1194 = vmatpush1.bf16.msra.mxu0 %v1141
        %1195 = vmatprep.subr.bf16.mxu0 %v1139
        %1196 = vmatpush1.bf16.msra.mxu0 %v1138
        %1197 = vmatprep.subr.bf16.mxu0 %v1136
        %1198 = vmatpush1.bf16.msra.mxu0 %v1135
        %1199 = vmatprep.subr.bf16.mxu0 0
        %1200 = vmatpush2.bf16.msra.mxu0 0
        %1201 = vmatprep.subr.bf16.mxu0 0
        %1202 = vmatpush2.bf16.msra.mxu0 0
        %1203 = vmatprep.subr.bf16.mxu0 0
        %1204 = vmatpush2.bf16.msra.mxu0 0
        %1205 = vmatprep.subr.bf16.mxu0 0
        %1206 = vmatpush2.bf16.msra.mxu0 0
        %1207 = vmatprep.subr.bf16.mxu0 0
        %1208 = vmatpush2.bf16.msra.mxu0 0
        %1209 = vmatprep.subr.bf16.mxu0 0
        %1210 = vmatpush2.bf16.msra.mxu0 0
        %1211 = vmatprep.subr.bf16.mxu0 0
        %1212 = vmatpush2.bf16.msra.mxu0 0
        %1213 = vmatprep.subr.bf16.mxu0 0
        %1214 = vmatpush2.bf16.msra.mxu0 0
        %1215 = vmatprep.mubr.bf16.mxu0 0
        %1216 = vmatmul.mubr.bf16.gmra.mxu0 %v1015
        %v1217 = vpop.f32.mrf.mxu0
        %v1218 = vadd.f32 0.0, %v1217
        %v1219 = vpop.f32.mrf.mxu0
        %v1220 = vadd.f32 0.0, %v1219
        %v1221 = vpop.f32.mrf.mxu0
        %v1222 = vadd.f32 0.0, %v1221
        %v1223 = vpop.f32.mrf.mxu0
        %v1224 = vadd.f32 0.0, %v1223
        %1225 = vmatprep.mubr.bf16.mxu0 0
        %1226 = vmatmul.mubr.bf16.gmra.mxu0 %v1016
        %v1227 = vpop.f32.mrf.mxu0
        %v1228 = vadd.f32 0.0, %v1227
        %v1229 = vpop.f32.mrf.mxu0
        %v1230 = vadd.f32 0.0, %v1229
        %v1231 = vpop.f32.mrf.mxu0
        %v1232 = vadd.f32 0.0, %v1231
        %v1233 = vpop.f32.mrf.mxu0
        %v1234 = vadd.f32 0.0, %v1233
        %1235 = vmatprep.mubr.bf16.mxu0 0
        %1236 = vmatmul.mubr.bf16.gmra.mxu0 %v1017
        %v1237 = vpop.f32.mrf.mxu0
        %v1238 = vadd.f32 0.0, %v1237
        %v1239 = vpop.f32.mrf.mxu0
        %v1240 = vadd.f32 0.0, %v1239
        %v1241 = vpop.f32.mrf.mxu0
        %v1242 = vadd.f32 0.0, %v1241
        %v1243 = vpop.f32.mrf.mxu0
        %v1244 = vadd.f32 0.0, %v1243
        %1245 = vmatprep.mubr.bf16.mxu0 0
        %1246 = vmatmul.mubr.bf16.gmra.mxu0 %v1018
        %v1247 = vpop.f32.mrf.mxu0
        %v1248 = vadd.f32 0.0, %v1247
        %v1249 = vpop.f32.mrf.mxu0
        %v1250 = vadd.f32 0.0, %v1249
        %v1251 = vpop.f32.mrf.mxu0
        %v1252 = vadd.f32 0.0, %v1251
        %v1253 = vpop.f32.mrf.mxu0
        %v1254 = vadd.f32 0.0, %v1253
        %1255 = vmatprep.mubr.bf16.mxu0 0
        %1256 = vmatmul.mubr.bf16.gmra.mxu0 %v1019
        %v1257 = vpop.f32.mrf.mxu0
        %v1258 = vadd.f32 0.0, %v1257
        %v1259 = vpop.f32.mrf.mxu0
        %v1260 = vadd.f32 0.0, %v1259
        %v1261 = vpop.f32.mrf.mxu0
        %v1262 = vadd.f32 0.0, %v1261
        %v1263 = vpop.f32.mrf.mxu0
        %v1264 = vadd.f32 0.0, %v1263
        %1265 = vmatprep.mubr.bf16.mxu0 0
        %1266 = vmatmul.mubr.bf16.gmra.mxu0 %v1020
        %v1267 = vpop.f32.mrf.mxu0
        %v1268 = vadd.f32 0.0, %v1267
        %v1269 = vpop.f32.mrf.mxu0
        %v1270 = vadd.f32 0.0, %v1269
        %v1271 = vpop.f32.mrf.mxu0
        %v1272 = vadd.f32 0.0, %v1271
        %v1273 = vpop.f32.mrf.mxu0
        %v1274 = vadd.f32 0.0, %v1273
        %1275 = vmatprep.mubr.bf16.mxu0 0
        %1276 = vmatmul.mubr.bf16.gmra.mxu0 %v1021
        %v1277 = vpop.f32.mrf.mxu0
        %v1278 = vadd.f32 0.0, %v1277
        %v1279 = vpop.f32.mrf.mxu0
        %v1280 = vadd.f32 0.0, %v1279
        %v1281 = vpop.f32.mrf.mxu0
        %v1282 = vadd.f32 0.0, %v1281
        %v1283 = vpop.f32.mrf.mxu0
        %v1284 = vadd.f32 0.0, %v1283
        %1285 = vmatprep.mubr.bf16.mxu0 0
        %1286 = vmatmul.mubr.bf16.gmra.mxu0 %v1022
        %v1287 = vpop.f32.mrf.mxu0
        %v1288 = vadd.f32 0.0, %v1287
        %v1289 = vpop.f32.mrf.mxu0
        %v1290 = vadd.f32 0.0, %v1289
        %v1291 = vpop.f32.mrf.mxu0
        %v1292 = vadd.f32 0.0, %v1291
        %v1293 = vpop.f32.mrf.mxu0
        %v1294 = vadd.f32 0.0, %v1293
        %1295 = vdwg.mxu0
        %1296 = vmatprep.subr.bf16.mxu0 0
        %1297 = vmatpush1.bf16.msra.mxu0 %v1158
        %1298 = vmatprep.subr.bf16.mxu0 0
        %1299 = vmatpush1.bf16.msra.mxu0 %v1155
        %1300 = vmatprep.subr.bf16.mxu0 0
        %1301 = vmatpush1.bf16.msra.mxu0 %v1152
        %1302 = vmatprep.subr.bf16.mxu0 0
        %1303 = vmatpush1.bf16.msra.mxu0 %v1149
        %1304 = vmatprep.subr.bf16.mxu0 0
        %1305 = vmatpush1.bf16.msra.mxu0 %v1146
        %1306 = vmatprep.subr.bf16.mxu0 0
        %1307 = vmatpush1.bf16.msra.mxu0 %v1143
        %1308 = vmatprep.subr.bf16.mxu0 0
        %1309 = vmatpush1.bf16.msra.mxu0 %v1140
        %1310 = vmatprep.subr.bf16.mxu0 0
        %1311 = vmatpush1.bf16.msra.mxu0 %v1137
        %1312 = vmatprep.subr.bf16.mxu0 0
        %1313 = vmatpush2.bf16.msra.mxu0 0
        %1314 = vmatprep.subr.bf16.mxu0 0
        %1315 = vmatpush2.bf16.msra.mxu0 0
        %1316 = vmatprep.subr.bf16.mxu0 0
        %1317 = vmatpush2.bf16.msra.mxu0 0
        %1318 = vmatprep.subr.bf16.mxu0 0
        %1319 = vmatpush2.bf16.msra.mxu0 0
        %1320 = vmatprep.subr.bf16.mxu0 0
        %1321 = vmatpush2.bf16.msra.mxu0 0
        %1322 = vmatprep.subr.bf16.mxu0 0
        %1323 = vmatpush2.bf16.msra.mxu0 0
        %1324 = vmatprep.subr.bf16.mxu0 0
        %1325 = vmatpush2.bf16.msra.mxu0 0
        %1326 = vmatprep.subr.bf16.mxu0 0
        %1327 = vmatpush2.bf16.msra.mxu0 0
        %1328 = vmatprep.mubr.bf16.mxu0 0
        %1329 = vmatmul.mubr.bf16.gmra.mxu0 %v1015
        %v1330 = vpop.f32.mrf.mxu0
        %v1331 = vadd.f32 0.0, %v1330
        %v1332 = vpop.f32.mrf.mxu0
        %v1333 = vpop.f32.mrf.mxu0
        %v1334 = vadd.f32 0.0, %v1333
        %v1335 = vpop.f32.mrf.mxu0
        %1336 = vmatprep.mubr.bf16.mxu0 0
        %1337 = vmatmul.mubr.bf16.gmra.mxu0 %v1016
        %v1338 = vpop.f32.mrf.mxu0
        %v1339 = vadd.f32 0.0, %v1338
        %v1340 = vpop.f32.mrf.mxu0
        %v1341 = vpop.f32.mrf.mxu0
        %v1342 = vadd.f32 0.0, %v1341
        %v1343 = vpop.f32.mrf.mxu0
        %1344 = vmatprep.mubr.bf16.mxu0 0
        %1345 = vmatmul.mubr.bf16.gmra.mxu0 %v1017
        %v1346 = vpop.f32.mrf.mxu0
        %v1347 = vadd.f32 0.0, %v1346
        %v1348 = vpop.f32.mrf.mxu0
        %v1349 = vpop.f32.mrf.mxu0
        %v1350 = vadd.f32 0.0, %v1349
        %v1351 = vpop.f32.mrf.mxu0
        %1352 = vmatprep.mubr.bf16.mxu0 0
        %1353 = vmatmul.mubr.bf16.gmra.mxu0 %v1018
        %v1354 = vpop.f32.mrf.mxu0
        %v1355 = vadd.f32 0.0, %v1354
        %v1356 = vpop.f32.mrf.mxu0
        %v1357 = vpop.f32.mrf.mxu0
        %v1358 = vadd.f32 0.0, %v1357
        %v1359 = vpop.f32.mrf.mxu0
        %1360 = vmatprep.mubr.bf16.mxu0 0
        %1361 = vmatmul.mubr.bf16.gmra.mxu0 %v1019
        %v1362 = vpop.f32.mrf.mxu0
        %v1363 = vadd.f32 0.0, %v1362
        %v1364 = vpop.f32.mrf.mxu0
        %v1365 = vpop.f32.mrf.mxu0
        %v1366 = vadd.f32 0.0, %v1365
        %v1367 = vpop.f32.mrf.mxu0
        %1368 = vmatprep.mubr.bf16.mxu0 0
        %1369 = vmatmul.mubr.bf16.gmra.mxu0 %v1020
        %v1370 = vpop.f32.mrf.mxu0
        %v1371 = vadd.f32 0.0, %v1370
        %v1372 = vpop.f32.mrf.mxu0
        %v1373 = vpop.f32.mrf.mxu0
        %v1374 = vadd.f32 0.0, %v1373
        %v1375 = vpop.f32.mrf.mxu0
        %1376 = vmatprep.mubr.bf16.mxu0 0
        %1377 = vmatmul.mubr.bf16.gmra.mxu0 %v1021
        %v1378 = vpop.f32.mrf.mxu0
        %v1379 = vadd.f32 0.0, %v1378
        %v1380 = vpop.f32.mrf.mxu0
        %v1381 = vpop.f32.mrf.mxu0
        %v1382 = vadd.f32 0.0, %v1381
        %v1383 = vpop.f32.mrf.mxu0
        %1384 = vmatprep.mubr.bf16.mxu0 0
        %1385 = vmatmul.mubr.bf16.gmra.mxu0 %v1022
        %v1386 = vpop.f32.mrf.mxu0
        %v1387 = vadd.f32 0.0, %v1386
        %v1388 = vpop.f32.mrf.mxu0
        %v1389 = vpop.f32.mrf.mxu0
        %v1390 = vadd.f32 0.0, %v1389
        %v1391 = vpop.f32.mrf.mxu0
        %1392 = vdwg.mxu0
        %v1393 = vpack.c.bf16 %v1222, %v1218
        %v1394 = vpack.c.bf16 %v1232, %v1228
        %v1395 = vpack.c.bf16 %v1242, %v1238
        %v1396 = vpack.c.bf16 %v1252, %v1248
        %v1397 = vpack.c.bf16 %v1262, %v1258
        %v1398 = vpack.c.bf16 %v1272, %v1268
        %v1399 = vpack.c.bf16 %v1282, %v1278
        %v1400 = vpack.c.bf16 %v1292, %v1288
        %v1401 = vpack.c.bf16 %v1224, %v1220
        %v1402 = vpack.c.bf16 %v1234, %v1230
        %v1403 = vpack.c.bf16 %v1244, %v1240
        %v1404 = vpack.c.bf16 %v1254, %v1250
        %v1405 = vpack.c.bf16 %v1264, %v1260
        %v1406 = vpack.c.bf16 %v1274, %v1270
        %v1407 = vpack.c.bf16 %v1284, %v1280
        %v1408 = vpack.c.bf16 %v1294, %v1290
        %v1409 = vpack.c.bf16 %v1334, %v1331
        %v1410 = vpack.c.bf16 %v1342, %v1339
        %v1411 = vpack.c.bf16 %v1350, %v1347
        %v1412 = vpack.c.bf16 %v1358, %v1355
        %v1413 = vpack.c.bf16 %v1366, %v1363
        %v1414 = vpack.c.bf16 %v1374, %v1371
        %v1415 = vpack.c.bf16 %v1382, %v1379
        %v1416 = vpack.c.bf16 %v1390, %v1387
        %vm1417 = vcmask 261120
        %v1419 = vsel %vm1417, %v1393, 0
        %v1422 = vsel %vm1417, %v1394, 0
        %v1425 = vsel %vm1417, %v1401, 0
        %v1428 = vsel %vm1417, %v1402, 0
        %1430 = vmatprep.subr.bf16.mxu0 0
        %1431 = vmatpush1.bf16.xpose.msra.mxu0 0
        %1432 = vmatprep.subr.bf16.mxu0 0
        %1433 = vmatpush1.bf16.xpose.msra.mxu0 0
        %1434 = vmatprep.subr.bf16.mxu0 0
        %1435 = vmatpush1.bf16.xpose.msra.mxu0 0
        %1436 = vmatprep.subr.bf16.mxu0 0
        %1437 = vmatpush1.bf16.xpose.msra.mxu0 0
        %1438 = vmatprep.subr.bf16.mxu0 0
        %1439 = vmatpush1.bf16.xpose.msra.mxu0 0
        %1440 = vmatprep.subr.bf16.mxu0 0
        %1441 = vmatpush1.bf16.xpose.msra.mxu0 0
        %1442 = vmatprep.subr.bf16.mxu0 0
        %1443 = vmatpush1.bf16.xpose.msra.mxu0 %v1428
        %1444 = vmatprep.subr.bf16.mxu0 0
        %1445 = vmatpush1.bf16.xpose.msra.mxu0 %v1425
        %1446 = vmatprep.subr.bf16.mxu0 0
        %1447 = vmatpush2.bf16.xpose.msra.mxu0 0
        %1448 = vmatprep.subr.bf16.mxu0 0
        %1449 = vmatpush2.bf16.xpose.msra.mxu0 0
        %1450 = vmatprep.subr.bf16.mxu0 0
        %1451 = vmatpush2.bf16.xpose.msra.mxu0 0
        %1452 = vmatprep.subr.bf16.mxu0 0
        %1453 = vmatpush2.bf16.xpose.msra.mxu0 0
        %1454 = vmatprep.subr.bf16.mxu0 0
        %1455 = vmatpush2.bf16.xpose.msra.mxu0 0
        %1456 = vmatprep.subr.bf16.mxu0 0
        %1457 = vmatpush2.bf16.xpose.msra.mxu0 0
        %1458 = vmatprep.subr.bf16.mxu0 0
        %1459 = vmatpush2.bf16.xpose.msra.mxu0 0
        %1460 = vmatprep.subr.bf16.mxu0 0
        %1461 = vmatpush2.bf16.xpose.msra.mxu0 0
        %1462 = vmatprep.mubr.bf16.mxu0 0
        %1463 = vmatmul.mubr.bf16.gmra.mxu0 %v1419
        %v1464 = vpop.f32.mrf.mxu0
        %v1465 = vadd.f32 0.0, %v1464
        %v1466 = vpop.f32.mrf.mxu0
        %v1467 = vpop.f32.mrf.mxu0
        %v1468 = vadd.f32 0.0, %v1467
        %v1469 = vpop.f32.mrf.mxu0
        %1470 = vmatprep.mubr.bf16.mxu0 0
        %1471 = vmatmul.mubr.bf16.gmra.mxu0 %v1422
        %v1472 = vpop.f32.mrf.mxu0
        %v1473 = vadd.f32 0.0, %v1472
        %v1474 = vpop.f32.mrf.mxu0
        %v1475 = vpop.f32.mrf.mxu0
        %v1476 = vadd.f32 0.0, %v1475
        %v1477 = vpop.f32.mrf.mxu0
        %1478 = vdwg.mxu0
        %v1480 = vsel %vm1417, %v1395, 0
        %v1483 = vsel %vm1417, %v1396, 0
        %v1486 = vsel %vm1417, %v1403, 0
        %v1489 = vsel %vm1417, %v1404, 0
        %1491 = vmatprep.subr.bf16.mxu0 0
        %1492 = vmatpush1.bf16.xpose.msra.mxu0 0
        %1493 = vmatprep.subr.bf16.mxu0 0
        %1494 = vmatpush1.bf16.xpose.msra.mxu0 0
        %1495 = vmatprep.subr.bf16.mxu0 0
        %1496 = vmatpush1.bf16.xpose.msra.mxu0 0
        %1497 = vmatprep.subr.bf16.mxu0 0
        %1498 = vmatpush1.bf16.xpose.msra.mxu0 0
        %1499 = vmatprep.subr.bf16.mxu0 0
        %1500 = vmatpush1.bf16.xpose.msra.mxu0 0
        %1501 = vmatprep.subr.bf16.mxu0 0
        %1502 = vmatpush1.bf16.xpose.msra.mxu0 0
        %1503 = vmatprep.subr.bf16.mxu0 0
        %1504 = vmatpush1.bf16.xpose.msra.mxu0 %v1489
        %1505 = vmatprep.subr.bf16.mxu0 0
        %1506 = vmatpush1.bf16.xpose.msra.mxu0 %v1486
        %1507 = vmatprep.subr.bf16.mxu0 0
        %1508 = vmatpush2.bf16.xpose.msra.mxu0 0
        %1509 = vmatprep.subr.bf16.mxu0 0
        %1510 = vmatpush2.bf16.xpose.msra.mxu0 0
        %1511 = vmatprep.subr.bf16.mxu0 0
        %1512 = vmatpush2.bf16.xpose.msra.mxu0 0
        %1513 = vmatprep.subr.bf16.mxu0 0
        %1514 = vmatpush2.bf16.xpose.msra.mxu0 0
        %1515 = vmatprep.subr.bf16.mxu0 0
        %1516 = vmatpush2.bf16.xpose.msra.mxu0 0
        %1517 = vmatprep.subr.bf16.mxu0 0
        %1518 = vmatpush2.bf16.xpose.msra.mxu0 0
        %1519 = vmatprep.subr.bf16.mxu0 0
        %1520 = vmatpush2.bf16.xpose.msra.mxu0 0
        %1521 = vmatprep.subr.bf16.mxu0 0
        %1522 = vmatpush2.bf16.xpose.msra.mxu0 0
        %1523 = vmatprep.mubr.bf16.mxu0 0
        %1524 = vmatmul.mubr.bf16.gmra.mxu0 %v1480
        %v1525 = vpop.f32.mrf.mxu0
        %v1526 = vadd.f32 0.0, %v1525
        %v1527 = vpop.f32.mrf.mxu0
        %v1528 = vpop.f32.mrf.mxu0
        %v1529 = vadd.f32 0.0, %v1528
        %v1530 = vpop.f32.mrf.mxu0
        %1531 = vmatprep.mubr.bf16.mxu0 0
        %1532 = vmatmul.mubr.bf16.gmra.mxu0 %v1483
        %v1533 = vpop.f32.mrf.mxu0
        %v1534 = vadd.f32 0.0, %v1533
        %v1535 = vpop.f32.mrf.mxu0
        %v1536 = vpop.f32.mrf.mxu0
        %v1537 = vadd.f32 0.0, %v1536
        %v1538 = vpop.f32.mrf.mxu0
        %1539 = vdwg.mxu0
        %v1541 = vsel %vm1417, %v1397, 0
        %v1544 = vsel %vm1417, %v1398, 0
        %v1547 = vsel %vm1417, %v1405, 0
        %v1550 = vsel %vm1417, %v1406, 0
        %1552 = vmatprep.subr.bf16.mxu0 0
        %1553 = vmatpush1.bf16.xpose.msra.mxu0 0
        %1554 = vmatprep.subr.bf16.mxu0 0
        %1555 = vmatpush1.bf16.xpose.msra.mxu0 0
        %1556 = vmatprep.subr.bf16.mxu0 0
        %1557 = vmatpush1.bf16.xpose.msra.mxu0 0
        %1558 = vmatprep.subr.bf16.mxu0 0
        %1559 = vmatpush1.bf16.xpose.msra.mxu0 0
        %1560 = vmatprep.subr.bf16.mxu0 0
        %1561 = vmatpush1.bf16.xpose.msra.mxu0 0
        %1562 = vmatprep.subr.bf16.mxu0 0
        %1563 = vmatpush1.bf16.xpose.msra.mxu0 0
        %1564 = vmatprep.subr.bf16.mxu0 0
        %1565 = vmatpush1.bf16.xpose.msra.mxu0 %v1550
        %1566 = vmatprep.subr.bf16.mxu0 0
        %1567 = vmatpush1.bf16.xpose.msra.mxu0 %v1547
        %1568 = vmatprep.subr.bf16.mxu0 0
        %1569 = vmatpush2.bf16.xpose.msra.mxu0 0
        %1570 = vmatprep.subr.bf16.mxu0 0
        %1571 = vmatpush2.bf16.xpose.msra.mxu0 0
        %1572 = vmatprep.subr.bf16.mxu0 0
        %1573 = vmatpush2.bf16.xpose.msra.mxu0 0
        %1574 = vmatprep.subr.bf16.mxu0 0
        %1575 = vmatpush2.bf16.xpose.msra.mxu0 0
        %1576 = vmatprep.subr.bf16.mxu0 0
        %1577 = vmatpush2.bf16.xpose.msra.mxu0 0
        %1578 = vmatprep.subr.bf16.mxu0 0
        %1579 = vmatpush2.bf16.xpose.msra.mxu0 0
        %1580 = vmatprep.subr.bf16.mxu0 0
        %1581 = vmatpush2.bf16.xpose.msra.mxu0 0
        %1582 = vmatprep.subr.bf16.mxu0 0
        %1583 = vmatpush2.bf16.xpose.msra.mxu0 0
        %1584 = vmatprep.mubr.bf16.mxu0 0
        %1585 = vmatmul.mubr.bf16.gmra.mxu0 %v1541
        %v1586 = vpop.f32.mrf.mxu0
        %v1587 = vadd.f32 0.0, %v1586
        %v1588 = vpop.f32.mrf.mxu0
        %v1589 = vpop.f32.mrf.mxu0
        %v1590 = vadd.f32 0.0, %v1589
        %v1591 = vpop.f32.mrf.mxu0
        %1592 = vmatprep.mubr.bf16.mxu0 0
        %1593 = vmatmul.mubr.bf16.gmra.mxu0 %v1544
        %v1594 = vpop.f32.mrf.mxu0
        %v1595 = vadd.f32 0.0, %v1594
        %v1596 = vpop.f32.mrf.mxu0
        %v1597 = vpop.f32.mrf.mxu0
        %v1598 = vadd.f32 0.0, %v1597
        %v1599 = vpop.f32.mrf.mxu0
        %1600 = vdwg.mxu0
        %v1602 = vsel %vm1417, %v1399, 0
        %v1605 = vsel %vm1417, %v1400, 0
        %v1608 = vsel %vm1417, %v1407, 0
        %v1611 = vsel %vm1417, %v1408, 0
        %1613 = vmatprep.subr.bf16.mxu0 0
        %1614 = vmatpush1.bf16.xpose.msra.mxu0 0
        %1615 = vmatprep.subr.bf16.mxu0 0
        %1616 = vmatpush1.bf16.xpose.msra.mxu0 0
        %1617 = vmatprep.subr.bf16.mxu0 0
        %1618 = vmatpush1.bf16.xpose.msra.mxu0 0
        %1619 = vmatprep.subr.bf16.mxu0 0
        %1620 = vmatpush1.bf16.xpose.msra.mxu0 0
        %1621 = vmatprep.subr.bf16.mxu0 0
        %1622 = vmatpush1.bf16.xpose.msra.mxu0 0
        %1623 = vmatprep.subr.bf16.mxu0 0
        %1624 = vmatpush1.bf16.xpose.msra.mxu0 0
        %1625 = vmatprep.subr.bf16.mxu0 0
        %1626 = vmatpush1.bf16.xpose.msra.mxu0 %v1611
        %1627 = vmatprep.subr.bf16.mxu0 0
        %1628 = vmatpush1.bf16.xpose.msra.mxu0 %v1608
        %1629 = vmatprep.subr.bf16.mxu0 0
        %1630 = vmatpush2.bf16.xpose.msra.mxu0 0
        %1631 = vmatprep.subr.bf16.mxu0 0
        %1632 = vmatpush2.bf16.xpose.msra.mxu0 0
        %1633 = vmatprep.subr.bf16.mxu0 0
        %1634 = vmatpush2.bf16.xpose.msra.mxu0 0
        %1635 = vmatprep.subr.bf16.mxu0 0
        %1636 = vmatpush2.bf16.xpose.msra.mxu0 0
        %1637 = vmatprep.subr.bf16.mxu0 0
        %1638 = vmatpush2.bf16.xpose.msra.mxu0 0
        %1639 = vmatprep.subr.bf16.mxu0 0
        %1640 = vmatpush2.bf16.xpose.msra.mxu0 0
        %1641 = vmatprep.subr.bf16.mxu0 0
        %1642 = vmatpush2.bf16.xpose.msra.mxu0 0
        %1643 = vmatprep.subr.bf16.mxu0 0
        %1644 = vmatpush2.bf16.xpose.msra.mxu0 0
        %1645 = vmatprep.mubr.bf16.mxu0 0
        %1646 = vmatmul.mubr.bf16.gmra.mxu0 %v1602
        %v1647 = vpop.f32.mrf.mxu0
        %v1648 = vadd.f32 0.0, %v1647
        %v1649 = vpop.f32.mrf.mxu0
        %v1650 = vpop.f32.mrf.mxu0
        %v1651 = vadd.f32 0.0, %v1650
        %v1652 = vpop.f32.mrf.mxu0
        %1653 = vmatprep.mubr.bf16.mxu0 0
        %1654 = vmatmul.mubr.bf16.gmra.mxu0 %v1605
        %v1655 = vpop.f32.mrf.mxu0
        %v1656 = vadd.f32 0.0, %v1655
        %v1657 = vpop.f32.mrf.mxu0
        %v1658 = vpop.f32.mrf.mxu0
        %v1659 = vadd.f32 0.0, %v1658
        %v1660 = vpop.f32.mrf.mxu0
        %1661 = vdwg.mxu0
        %v1662 = vsel %vm1417, %v1465, -inf
        %1663 = vmax.xlane.f32.xlu0 %v1662
        %v1664 = vpop.xlane.xlu0 %1663
        %v1665 = vsel %vm1417, %v1468, -inf
        %1666 = vmax.xlane.f32.xlu0 %v1665
        %v1667 = vpop.xlane.xlu0 %1666
        %v1668 = vsel %vm1417, %v1473, -inf
        %1669 = vmax.xlane.f32.xlu0 %v1668
        %v1670 = vpop.xlane.xlu0 %1669
        %v1671 = vsel %vm1417, %v1476, -inf
        %1672 = vmax.xlane.f32.xlu0 %v1671
        %v1673 = vpop.xlane.xlu0 %1672
        %v1674 = vsel %vm1417, %v1526, -inf
        %1675 = vmax.xlane.f32.xlu0 %v1674
        %v1676 = vpop.xlane.xlu0 %1675
        %v1677 = vsel %vm1417, %v1529, -inf
        %1678 = vmax.xlane.f32.xlu0 %v1677
        %v1679 = vpop.xlane.xlu0 %1678
        %v1680 = vsel %vm1417, %v1534, -inf
        %1681 = vmax.xlane.f32.xlu0 %v1680
        %v1682 = vpop.xlane.xlu0 %1681
        %v1683 = vsel %vm1417, %v1537, -inf
        %1684 = vmax.xlane.f32.xlu0 %v1683
        %v1685 = vpop.xlane.xlu0 %1684
        %v1686 = vsel %vm1417, %v1587, -inf
        %1687 = vmax.xlane.f32.xlu0 %v1686
        %v1688 = vpop.xlane.xlu0 %1687
        %v1689 = vsel %vm1417, %v1590, -inf
        %1690 = vmax.xlane.f32.xlu0 %v1689
        %v1691 = vpop.xlane.xlu0 %1690
        %v1692 = vsel %vm1417, %v1595, -inf
        %1693 = vmax.xlane.f32.xlu0 %v1692
        %v1694 = vpop.xlane.xlu0 %1693
        %v1695 = vsel %vm1417, %v1598, -inf
        %1696 = vmax.xlane.f32.xlu0 %v1695
        %v1697 = vpop.xlane.xlu0 %1696
        %v1698 = vsel %vm1417, %v1648, -inf
        %1699 = vmax.xlane.f32.xlu0 %v1698
        %v1700 = vpop.xlane.xlu0 %1699
        %v1701 = vsel %vm1417, %v1651, -inf
        %1702 = vmax.xlane.f32.xlu0 %v1701
        %v1703 = vpop.xlane.xlu0 %1702
        %v1704 = vsel %vm1417, %v1656, -inf
        %1705 = vmax.xlane.f32.xlu0 %v1704
        %v1706 = vpop.xlane.xlu0 %1705
        %v1707 = vsel %vm1417, %v1659, -inf
        %1708 = vmax.xlane.f32.xlu0 %v1707
        %v1709 = vpop.xlane.xlu0 %1708
        %v1710 = vsub.f32 %v1465, %v1664
        %v1711 = vsub.f32 %v1468, %v1667
        %v1712 = vsub.f32 %v1473, %v1670
        %v1713 = vsub.f32 %v1476, %v1673
        %v1714 = vsub.f32 %v1526, %v1676
        %v1715 = vsub.f32 %v1529, %v1679
        %v1716 = vsub.f32 %v1534, %v1682
        %v1717 = vsub.f32 %v1537, %v1685
        %v1718 = vsub.f32 %v1587, %v1688
        %v1719 = vsub.f32 %v1590, %v1691
        %v1720 = vsub.f32 %v1595, %v1694
        %v1721 = vsub.f32 %v1598, %v1697
        %v1722 = vsub.f32 %v1648, %v1700
        %v1723 = vsub.f32 %v1651, %v1703
        %v1724 = vsub.f32 %v1656, %v1706
        %v1725 = vsub.f32 %v1659, %v1709
        %v1726 = vmul.f32 %v1710, 1.442695
        %v1727 = vpow.pop %v1726
        %v1728 = vmul.f32 %v1711, 1.442695
        %v1729 = vpow.pop %v1728
        %v1730 = vmul.f32 %v1712, 1.442695
        %v1731 = vpow.pop %v1730
        %v1732 = vmul.f32 %v1713, 1.442695
        %v1733 = vpow.pop %v1732
        %v1734 = vmul.f32 %v1714, 1.442695
        %v1735 = vpow.pop %v1734
        %v1736 = vmul.f32 %v1715, 1.442695
        %v1737 = vpow.pop %v1736
        %v1738 = vmul.f32 %v1716, 1.442695
        %v1739 = vpow.pop %v1738
        %v1740 = vmul.f32 %v1717, 1.442695
        %v1741 = vpow.pop %v1740
        %v1742 = vmul.f32 %v1718, 1.442695
        %v1743 = vpow.pop %v1742
        %v1744 = vmul.f32 %v1719, 1.442695
        %v1745 = vpow.pop %v1744
        %v1746 = vmul.f32 %v1720, 1.442695
        %v1747 = vpow.pop %v1746
        %v1748 = vmul.f32 %v1721, 1.442695
        %v1749 = vpow.pop %v1748
        %v1750 = vmul.f32 %v1722, 1.442695
        %v1751 = vpow.pop %v1750
        %v1752 = vmul.f32 %v1723, 1.442695
        %v1753 = vpow.pop %v1752
        %v1754 = vmul.f32 %v1724, 1.442695
        %v1755 = vpow.pop %v1754
        %v1756 = vmul.f32 %v1725, 1.442695
        %v1757 = vpow.pop %v1756
        %v1758 = vsel %vm1417, %v1727, 0.0
        %1759 = vadd.xlane.f32.xlu0 %v1758
        %v1760 = vpop.xlane.xlu0 %1759
        %v1761 = vsel %vm1417, %v1729, 0.0
        %1762 = vadd.xlane.f32.xlu0 %v1761
        %v1763 = vpop.xlane.xlu0 %1762
        %v1764 = vsel %vm1417, %v1731, 0.0
        %1765 = vadd.xlane.f32.xlu0 %v1764
        %v1766 = vpop.xlane.xlu0 %1765
        %v1767 = vsel %vm1417, %v1733, 0.0
        %1768 = vadd.xlane.f32.xlu0 %v1767
        %v1769 = vpop.xlane.xlu0 %1768
        %v1770 = vsel %vm1417, %v1735, 0.0
        %1771 = vadd.xlane.f32.xlu0 %v1770
        %v1772 = vpop.xlane.xlu0 %1771
        %v1773 = vsel %vm1417, %v1737, 0.0
        %1774 = vadd.xlane.f32.xlu0 %v1773
        %v1775 = vpop.xlane.xlu0 %1774
        %v1776 = vsel %vm1417, %v1739, 0.0
        %1777 = vadd.xlane.f32.xlu0 %v1776
        %v1778 = vpop.xlane.xlu0 %1777
        %v1779 = vsel %vm1417, %v1741, 0.0
        %1780 = vadd.xlane.f32.xlu0 %v1779
        %v1781 = vpop.xlane.xlu0 %1780
        %v1782 = vsel %vm1417, %v1743, 0.0
        %1783 = vadd.xlane.f32.xlu0 %v1782
        %v1784 = vpop.xlane.xlu0 %1783
        %v1785 = vsel %vm1417, %v1745, 0.0
        %1786 = vadd.xlane.f32.xlu0 %v1785
        %v1787 = vpop.xlane.xlu0 %1786
        %v1788 = vsel %vm1417, %v1747, 0.0
        %1789 = vadd.xlane.f32.xlu0 %v1788
        %v1790 = vpop.xlane.xlu0 %1789
        %v1791 = vsel %vm1417, %v1749, 0.0
        %1792 = vadd.xlane.f32.xlu0 %v1791
        %v1793 = vpop.xlane.xlu0 %1792
        %v1794 = vsel %vm1417, %v1751, 0.0
        %1795 = vadd.xlane.f32.xlu0 %v1794
        %v1796 = vpop.xlane.xlu0 %1795
        %v1797 = vsel %vm1417, %v1753, 0.0
        %1798 = vadd.xlane.f32.xlu0 %v1797
        %v1799 = vpop.xlane.xlu0 %1798
        %v1800 = vsel %vm1417, %v1755, 0.0
        %1801 = vadd.xlane.f32.xlu0 %v1800
        %v1802 = vpop.xlane.xlu0 %1801
        %v1803 = vsel %vm1417, %v1757, 0.0
        %1804 = vadd.xlane.f32.xlu0 %v1803
        %v1805 = vpop.xlane.xlu0 %1804
        %v1806 = vrcp.pop %v1760
        %v1807 = vrcp.pop %v1763
        %v1808 = vrcp.pop %v1766
        %v1809 = vrcp.pop %v1769
        %v1810 = vrcp.pop %v1772
        %v1811 = vrcp.pop %v1775
        %v1812 = vrcp.pop %v1778
        %v1813 = vrcp.pop %v1781
        %v1814 = vrcp.pop %v1784
        %v1815 = vrcp.pop %v1787
        %v1816 = vrcp.pop %v1790
        %v1817 = vrcp.pop %v1793
        %v1818 = vrcp.pop %v1796
        %v1819 = vrcp.pop %v1799
        %v1820 = vrcp.pop %v1802
        %v1821 = vrcp.pop %v1805
        %v1822 = vmul.f32 %v1727, %v1806
        %v1823 = vmul.f32 %v1729, %v1807
        %v1824 = vmul.f32 %v1731, %v1808
        %v1825 = vmul.f32 %v1733, %v1809
        %v1826 = vmul.f32 %v1735, %v1810
        %v1827 = vmul.f32 %v1737, %v1811
        %v1828 = vmul.f32 %v1739, %v1812
        %v1829 = vmul.f32 %v1741, %v1813
        %v1830 = vmul.f32 %v1743, %v1814
        %v1831 = vmul.f32 %v1745, %v1815
        %v1832 = vmul.f32 %v1747, %v1816
        %v1833 = vmul.f32 %v1749, %v1817
        %v1834 = vmul.f32 %v1751, %v1818
        %v1835 = vmul.f32 %v1753, %v1819
        %v1836 = vmul.f32 %v1755, %v1820
        %v1837 = vmul.f32 %v1757, %v1821
        %v1838 = vpack.c.bf16 %v1823, %v1822
        %v1839 = vpack.c.bf16 %v1825, %v1824
        %v1840 = vpack.c.bf16 %v1827, %v1826
        %v1841 = vpack.c.bf16 %v1829, %v1828
        %v1842 = vpack.c.bf16 %v1831, %v1830
        %v1843 = vpack.c.bf16 %v1833, %v1832
        %v1844 = vpack.c.bf16 %v1835, %v1834
        %v1845 = vpack.c.bf16 %v1837, %v1836
        %v1847 = vsel %vm1417, %v1838, 0
        %v1850 = vsel %vm1417, %v1839, 0
        %1852 = vmatprep.subr.bf16.mxu0 0
        %1853 = vmatpush1.bf16.msra.mxu0 0
        %1854 = vmatprep.subr.bf16.mxu0 0
        %1855 = vmatpush1.bf16.msra.mxu0 0
        %1856 = vmatprep.subr.bf16.mxu0 0
        %1857 = vmatpush1.bf16.msra.mxu0 0
        %1858 = vmatprep.subr.bf16.mxu0 0
        %1859 = vmatpush1.bf16.msra.mxu0 0
        %1860 = vmatprep.subr.bf16.mxu0 0
        %1861 = vmatpush1.bf16.msra.mxu0 0
        %1862 = vmatprep.subr.bf16.mxu0 0
        %1863 = vmatpush1.bf16.msra.mxu0 0
        %1864 = vmatprep.subr.bf16.mxu0 0
        %1865 = vmatpush1.bf16.msra.mxu0 %v1410
        %1866 = vmatprep.subr.bf16.mxu0 0
        %1867 = vmatpush1.bf16.msra.mxu0 %v1409
        %1868 = vmatprep.subr.bf16.mxu0 0
        %1869 = vmatpush2.bf16.msra.mxu0 0
        %1870 = vmatprep.subr.bf16.mxu0 0
        %1871 = vmatpush2.bf16.msra.mxu0 0
        %1872 = vmatprep.subr.bf16.mxu0 0
        %1873 = vmatpush2.bf16.msra.mxu0 0
        %1874 = vmatprep.subr.bf16.mxu0 0
        %1875 = vmatpush2.bf16.msra.mxu0 0
        %1876 = vmatprep.subr.bf16.mxu0 0
        %1877 = vmatpush2.bf16.msra.mxu0 0
        %1878 = vmatprep.subr.bf16.mxu0 0
        %1879 = vmatpush2.bf16.msra.mxu0 0
        %1880 = vmatprep.subr.bf16.mxu0 0
        %1881 = vmatpush2.bf16.msra.mxu0 0
        %1882 = vmatprep.subr.bf16.mxu0 0
        %1883 = vmatpush2.bf16.msra.mxu0 0
        %1884 = vmatprep.mubr.bf16.mxu0 0
        %1885 = vmatmul.mubr.bf16.gmra.mxu0 %v1847
        %v1886 = vpop.f32.mrf.mxu0
        %v1887 = vadd.f32 0.0, %v1886
        %v1888 = vpop.f32.mrf.mxu0
        %v1889 = vpop.f32.mrf.mxu0
        %v1890 = vadd.f32 0.0, %v1889
        %v1891 = vpop.f32.mrf.mxu0
        %1892 = vmatprep.mubr.bf16.mxu0 0
        %1893 = vmatmul.mubr.bf16.gmra.mxu0 %v1850
        %v1894 = vpop.f32.mrf.mxu0
        %v1895 = vadd.f32 0.0, %v1894
        %v1896 = vpop.f32.mrf.mxu0
        %v1897 = vpop.f32.mrf.mxu0
        %v1898 = vadd.f32 0.0, %v1897
        %v1899 = vpop.f32.mrf.mxu0
        %1900 = vdwg.mxu0
        %v1902 = vsel %vm1417, %v1840, 0
        %v1905 = vsel %vm1417, %v1841, 0
        %1907 = vmatprep.subr.bf16.mxu0 0
        %1908 = vmatpush1.bf16.msra.mxu0 0
        %1909 = vmatprep.subr.bf16.mxu0 0
        %1910 = vmatpush1.bf16.msra.mxu0 0
        %1911 = vmatprep.subr.bf16.mxu0 0
        %1912 = vmatpush1.bf16.msra.mxu0 0
        %1913 = vmatprep.subr.bf16.mxu0 0
        %1914 = vmatpush1.bf16.msra.mxu0 0
        %1915 = vmatprep.subr.bf16.mxu0 0
        %1916 = vmatpush1.bf16.msra.mxu0 0
        %1917 = vmatprep.subr.bf16.mxu0 0
        %1918 = vmatpush1.bf16.msra.mxu0 0
        %1919 = vmatprep.subr.bf16.mxu0 0
        %1920 = vmatpush1.bf16.msra.mxu0 %v1412
        %1921 = vmatprep.subr.bf16.mxu0 0
        %1922 = vmatpush1.bf16.msra.mxu0 %v1411
        %1923 = vmatprep.subr.bf16.mxu0 0
        %1924 = vmatpush2.bf16.msra.mxu0 0
        %1925 = vmatprep.subr.bf16.mxu0 0
        %1926 = vmatpush2.bf16.msra.mxu0 0
        %1927 = vmatprep.subr.bf16.mxu0 0
        %1928 = vmatpush2.bf16.msra.mxu0 0
        %1929 = vmatprep.subr.bf16.mxu0 0
        %1930 = vmatpush2.bf16.msra.mxu0 0
        %1931 = vmatprep.subr.bf16.mxu0 0
        %1932 = vmatpush2.bf16.msra.mxu0 0
        %1933 = vmatprep.subr.bf16.mxu0 0
        %1934 = vmatpush2.bf16.msra.mxu0 0
        %1935 = vmatprep.subr.bf16.mxu0 0
        %1936 = vmatpush2.bf16.msra.mxu0 0
        %1937 = vmatprep.subr.bf16.mxu0 0
        %1938 = vmatpush2.bf16.msra.mxu0 0
        %1939 = vmatprep.mubr.bf16.mxu0 0
        %1940 = vmatmul.mubr.bf16.gmra.mxu0 %v1902
        %v1941 = vpop.f32.mrf.mxu0
        %v1942 = vadd.f32 0.0, %v1941
        %v1943 = vpop.f32.mrf.mxu0
        %v1944 = vpop.f32.mrf.mxu0
        %v1945 = vadd.f32 0.0, %v1944
        %v1946 = vpop.f32.mrf.mxu0
        %1947 = vmatprep.mubr.bf16.mxu0 0
        %1948 = vmatmul.mubr.bf16.gmra.mxu0 %v1905
        %v1949 = vpop.f32.mrf.mxu0
        %v1950 = vadd.f32 0.0, %v1949
        %v1951 = vpop.f32.mrf.mxu0
        %v1952 = vpop.f32.mrf.mxu0
        %v1953 = vadd.f32 0.0, %v1952
        %v1954 = vpop.f32.mrf.mxu0
        %1955 = vdwg.mxu0
        %v1957 = vsel %vm1417, %v1842, 0
        %v1960 = vsel %vm1417, %v1843, 0
        %1962 = vmatprep.subr.bf16.mxu0 0
        %1963 = vmatpush1.bf16.msra.mxu0 0
        %1964 = vmatprep.subr.bf16.mxu0 0
        %1965 = vmatpush1.bf16.msra.mxu0 0
        %1966 = vmatprep.subr.bf16.mxu0 0
        %1967 = vmatpush1.bf16.msra.mxu0 0
        %1968 = vmatprep.subr.bf16.mxu0 0
        %1969 = vmatpush1.bf16.msra.mxu0 0
        %1970 = vmatprep.subr.bf16.mxu0 0
        %1971 = vmatpush1.bf16.msra.mxu0 0
        %1972 = vmatprep.subr.bf16.mxu0 0
        %1973 = vmatpush1.bf16.msra.mxu0 0
        %1974 = vmatprep.subr.bf16.mxu0 0
        %1975 = vmatpush1.bf16.msra.mxu0 %v1414
        %1976 = vmatprep.subr.bf16.mxu0 0
        %1977 = vmatpush1.bf16.msra.mxu0 %v1413
        %1978 = vmatprep.subr.bf16.mxu0 0
        %1979 = vmatpush2.bf16.msra.mxu0 0
        %1980 = vmatprep.subr.bf16.mxu0 0
        %1981 = vmatpush2.bf16.msra.mxu0 0
        %1982 = vmatprep.subr.bf16.mxu0 0
        %1983 = vmatpush2.bf16.msra.mxu0 0
        %1984 = vmatprep.subr.bf16.mxu0 0
        %1985 = vmatpush2.bf16.msra.mxu0 0
        %1986 = vmatprep.subr.bf16.mxu0 0
        %1987 = vmatpush2.bf16.msra.mxu0 0
        %1988 = vmatprep.subr.bf16.mxu0 0
        %1989 = vmatpush2.bf16.msra.mxu0 0
        %1990 = vmatprep.subr.bf16.mxu0 0
        %1991 = vmatpush2.bf16.msra.mxu0 0
        %1992 = vmatprep.subr.bf16.mxu0 0
        %1993 = vmatpush2.bf16.msra.mxu0 0
        %1994 = vmatprep.mubr.bf16.mxu0 0
        %1995 = vmatmul.mubr.bf16.gmra.mxu0 %v1957
        %v1996 = vpop.f32.mrf.mxu0
        %v1997 = vadd.f32 0.0, %v1996
        %v1998 = vpop.f32.mrf.mxu0
        %v1999 = vpop.f32.mrf.mxu0
        %v2000 = vadd.f32 0.0, %v1999
        %v2001 = vpop.f32.mrf.mxu0
        %2002 = vmatprep.mubr.bf16.mxu0 0
        %2003 = vmatmul.mubr.bf16.gmra.mxu0 %v1960
        %v2004 = vpop.f32.mrf.mxu0
        %v2005 = vadd.f32 0.0, %v2004
        %v2006 = vpop.f32.mrf.mxu0
        %v2007 = vpop.f32.mrf.mxu0
        %v2008 = vadd.f32 0.0, %v2007
        %v2009 = vpop.f32.mrf.mxu0
        %2010 = vdwg.mxu0
        %v2012 = vsel %vm1417, %v1844, 0
        %v2015 = vsel %vm1417, %v1845, 0
        %2017 = vmatprep.subr.bf16.mxu0 0
        %2018 = vmatpush1.bf16.msra.mxu0 0
        %2019 = vmatprep.subr.bf16.mxu0 0
        %2020 = vmatpush1.bf16.msra.mxu0 0
        %2021 = vmatprep.subr.bf16.mxu0 0
        %2022 = vmatpush1.bf16.msra.mxu0 0
        %2023 = vmatprep.subr.bf16.mxu0 0
        %2024 = vmatpush1.bf16.msra.mxu0 0
        %2025 = vmatprep.subr.bf16.mxu0 0
        %2026 = vmatpush1.bf16.msra.mxu0 0
        %2027 = vmatprep.subr.bf16.mxu0 0
        %2028 = vmatpush1.bf16.msra.mxu0 0
        %2029 = vmatprep.subr.bf16.mxu0 0
        %2030 = vmatpush1.bf16.msra.mxu0 %v1416
        %2031 = vmatprep.subr.bf16.mxu0 0
        %2032 = vmatpush1.bf16.msra.mxu0 %v1415
        %2033 = vmatprep.subr.bf16.mxu0 0
        %2034 = vmatpush2.bf16.msra.mxu0 0
        %2035 = vmatprep.subr.bf16.mxu0 0
        %2036 = vmatpush2.bf16.msra.mxu0 0
        %2037 = vmatprep.subr.bf16.mxu0 0
        %2038 = vmatpush2.bf16.msra.mxu0 0
        %2039 = vmatprep.subr.bf16.mxu0 0
        %2040 = vmatpush2.bf16.msra.mxu0 0
        %2041 = vmatprep.subr.bf16.mxu0 0
        %2042 = vmatpush2.bf16.msra.mxu0 0
        %2043 = vmatprep.subr.bf16.mxu0 0
        %2044 = vmatpush2.bf16.msra.mxu0 0
        %2045 = vmatprep.subr.bf16.mxu0 0
        %2046 = vmatpush2.bf16.msra.mxu0 0
        %2047 = vmatprep.subr.bf16.mxu0 0
        %2048 = vmatpush2.bf16.msra.mxu0 0
        %2049 = vmatprep.mubr.bf16.mxu0 0
        %2050 = vmatmul.mubr.bf16.gmra.mxu0 %v2012
        %v2051 = vpop.f32.mrf.mxu0
        %v2052 = vadd.f32 0.0, %v2051
        %v2053 = vpop.f32.mrf.mxu0
        %v2054 = vpop.f32.mrf.mxu0
        %v2055 = vadd.f32 0.0, %v2054
        %v2056 = vpop.f32.mrf.mxu0
        %2057 = vmatprep.mubr.bf16.mxu0 0
        %2058 = vmatmul.mubr.bf16.gmra.mxu0 %v2015
        %v2059 = vpop.f32.mrf.mxu0
        %v2060 = vadd.f32 0.0, %v2059
        %v2061 = vpop.f32.mrf.mxu0
        %v2062 = vpop.f32.mrf.mxu0
        %v2063 = vadd.f32 0.0, %v2062
        %v2064 = vpop.f32.mrf.mxu0
        %2065 = vdwg.mxu0
        %2068 = vrot.lane.b32.xlu0 %v1393, 96
        %v2069 = vpop.permute.xlu0 %2068
        %2070 = vrot.lane.b32.xlu0 %v1394, 96
        %v2071 = vpop.permute.xlu0 %2070
        %2074 = vrot.lane.b32.xlu0 %v1401, 96
        %v2075 = vpop.permute.xlu0 %2074
        %2076 = vrot.lane.b32.xlu0 %v1402, 96
        %v2077 = vpop.permute.xlu0 %2076
        %v2079 = vsel %vm1417, %v2069, 0
        %v2082 = vsel %vm1417, %v2071, 0
        %v2085 = vsel %vm1417, %v2075, 0
        %v2088 = vsel %vm1417, %v2077, 0
        %2090 = vmatprep.subr.bf16.mxu0 0
        %2091 = vmatpush1.bf16.xpose.msra.mxu0 0
        %2092 = vmatprep.subr.bf16.mxu0 0
        %2093 = vmatpush1.bf16.xpose.msra.mxu0 0
        %2094 = vmatprep.subr.bf16.mxu0 0
        %2095 = vmatpush1.bf16.xpose.msra.mxu0 0
        %2096 = vmatprep.subr.bf16.mxu0 0
        %2097 = vmatpush1.bf16.xpose.msra.mxu0 0
        %2098 = vmatprep.subr.bf16.mxu0 0
        %2099 = vmatpush1.bf16.xpose.msra.mxu0 0
        %2100 = vmatprep.subr.bf16.mxu0 0
        %2101 = vmatpush1.bf16.xpose.msra.mxu0 0
        %2102 = vmatprep.subr.bf16.mxu0 0
        %2103 = vmatpush1.bf16.xpose.msra.mxu0 %v2088
        %2104 = vmatprep.subr.bf16.mxu0 0
        %2105 = vmatpush1.bf16.xpose.msra.mxu0 %v2085
        %2106 = vmatprep.subr.bf16.mxu0 0
        %2107 = vmatpush2.bf16.xpose.msra.mxu0 0
        %2108 = vmatprep.subr.bf16.mxu0 0
        %2109 = vmatpush2.bf16.xpose.msra.mxu0 0
        %2110 = vmatprep.subr.bf16.mxu0 0
        %2111 = vmatpush2.bf16.xpose.msra.mxu0 0
        %2112 = vmatprep.subr.bf16.mxu0 0
        %2113 = vmatpush2.bf16.xpose.msra.mxu0 0
        %2114 = vmatprep.subr.bf16.mxu0 0
        %2115 = vmatpush2.bf16.xpose.msra.mxu0 0
        %2116 = vmatprep.subr.bf16.mxu0 0
        %2117 = vmatpush2.bf16.xpose.msra.mxu0 0
        %2118 = vmatprep.subr.bf16.mxu0 0
        %2119 = vmatpush2.bf16.xpose.msra.mxu0 0
        %2120 = vmatprep.subr.bf16.mxu0 0
        %2121 = vmatpush2.bf16.xpose.msra.mxu0 0
        %2122 = vmatprep.mubr.bf16.mxu0 0
        %2123 = vmatmul.mubr.bf16.gmra.mxu0 %v2079
        %v2124 = vpop.f32.mrf.mxu0
        %v2125 = vadd.f32 0.0, %v2124
        %v2126 = vpop.f32.mrf.mxu0
        %v2127 = vpop.f32.mrf.mxu0
        %v2128 = vadd.f32 0.0, %v2127
        %v2129 = vpop.f32.mrf.mxu0
        %2130 = vmatprep.mubr.bf16.mxu0 0
        %2131 = vmatmul.mubr.bf16.gmra.mxu0 %v2082
        %v2132 = vpop.f32.mrf.mxu0
        %v2133 = vadd.f32 0.0, %v2132
        %v2134 = vpop.f32.mrf.mxu0
        %v2135 = vpop.f32.mrf.mxu0
        %v2136 = vadd.f32 0.0, %v2135
        %v2137 = vpop.f32.mrf.mxu0
        %2138 = vdwg.mxu0
        %2141 = vrot.lane.b32.xlu0 %v1395, 96
        %v2142 = vpop.permute.xlu0 %2141
        %2143 = vrot.lane.b32.xlu0 %v1396, 96
        %v2144 = vpop.permute.xlu0 %2143
        %2147 = vrot.lane.b32.xlu0 %v1403, 96
        %v2148 = vpop.permute.xlu0 %2147
        %2149 = vrot.lane.b32.xlu0 %v1404, 96
        %v2150 = vpop.permute.xlu0 %2149
        %v2152 = vsel %vm1417, %v2142, 0
        %v2155 = vsel %vm1417, %v2144, 0
        %v2158 = vsel %vm1417, %v2148, 0
        %v2161 = vsel %vm1417, %v2150, 0
        %2163 = vmatprep.subr.bf16.mxu0 0
        %2164 = vmatpush1.bf16.xpose.msra.mxu0 0
        %2165 = vmatprep.subr.bf16.mxu0 0
        %2166 = vmatpush1.bf16.xpose.msra.mxu0 0
        %2167 = vmatprep.subr.bf16.mxu0 0
        %2168 = vmatpush1.bf16.xpose.msra.mxu0 0
        %2169 = vmatprep.subr.bf16.mxu0 0
        %2170 = vmatpush1.bf16.xpose.msra.mxu0 0
        %2171 = vmatprep.subr.bf16.mxu0 0
        %2172 = vmatpush1.bf16.xpose.msra.mxu0 0
        %2173 = vmatprep.subr.bf16.mxu0 0
        %2174 = vmatpush1.bf16.xpose.msra.mxu0 0
        %2175 = vmatprep.subr.bf16.mxu0 0
        %2176 = vmatpush1.bf16.xpose.msra.mxu0 %v2161
        %2177 = vmatprep.subr.bf16.mxu0 0
        %2178 = vmatpush1.bf16.xpose.msra.mxu0 %v2158
        %2179 = vmatprep.subr.bf16.mxu0 0
        %2180 = vmatpush2.bf16.xpose.msra.mxu0 0
        %2181 = vmatprep.subr.bf16.mxu0 0
        %2182 = vmatpush2.bf16.xpose.msra.mxu0 0
        %2183 = vmatprep.subr.bf16.mxu0 0
        %2184 = vmatpush2.bf16.xpose.msra.mxu0 0
        %2185 = vmatprep.subr.bf16.mxu0 0
        %2186 = vmatpush2.bf16.xpose.msra.mxu0 0
        %2187 = vmatprep.subr.bf16.mxu0 0
        %2188 = vmatpush2.bf16.xpose.msra.mxu0 0
        %2189 = vmatprep.subr.bf16.mxu0 0
        %2190 = vmatpush2.bf16.xpose.msra.mxu0 0
        %2191 = vmatprep.subr.bf16.mxu0 0
        %2192 = vmatpush2.bf16.xpose.msra.mxu0 0
        %2193 = vmatprep.subr.bf16.mxu0 0
        %2194 = vmatpush2.bf16.xpose.msra.mxu0 0
        %2195 = vmatprep.mubr.bf16.mxu0 0
        %2196 = vmatmul.mubr.bf16.gmra.mxu0 %v2152
        %v2197 = vpop.f32.mrf.mxu0
        %v2198 = vadd.f32 0.0, %v2197
        %v2199 = vpop.f32.mrf.mxu0
        %v2200 = vpop.f32.mrf.mxu0
        %v2201 = vadd.f32 0.0, %v2200
        %v2202 = vpop.f32.mrf.mxu0
        %2203 = vmatprep.mubr.bf16.mxu0 0
        %2204 = vmatmul.mubr.bf16.gmra.mxu0 %v2155
        %v2205 = vpop.f32.mrf.mxu0
        %v2206 = vadd.f32 0.0, %v2205
        %v2207 = vpop.f32.mrf.mxu0
        %v2208 = vpop.f32.mrf.mxu0
        %v2209 = vadd.f32 0.0, %v2208
        %v2210 = vpop.f32.mrf.mxu0
        %2211 = vdwg.mxu0
        %2214 = vrot.lane.b32.xlu0 %v1397, 96
        %v2215 = vpop.permute.xlu0 %2214
        %2216 = vrot.lane.b32.xlu0 %v1398, 96
        %v2217 = vpop.permute.xlu0 %2216
        %2220 = vrot.lane.b32.xlu0 %v1405, 96
        %v2221 = vpop.permute.xlu0 %2220
        %2222 = vrot.lane.b32.xlu0 %v1406, 96
        %v2223 = vpop.permute.xlu0 %2222
        %v2225 = vsel %vm1417, %v2215, 0
        %v2228 = vsel %vm1417, %v2217, 0
        %v2231 = vsel %vm1417, %v2221, 0
        %v2234 = vsel %vm1417, %v2223, 0
        %2236 = vmatprep.subr.bf16.mxu0 0
        %2237 = vmatpush1.bf16.xpose.msra.mxu0 0
        %2238 = vmatprep.subr.bf16.mxu0 0
        %2239 = vmatpush1.bf16.xpose.msra.mxu0 0
        %2240 = vmatprep.subr.bf16.mxu0 0
        %2241 = vmatpush1.bf16.xpose.msra.mxu0 0
        %2242 = vmatprep.subr.bf16.mxu0 0
        %2243 = vmatpush1.bf16.xpose.msra.mxu0 0
        %2244 = vmatprep.subr.bf16.mxu0 0
        %2245 = vmatpush1.bf16.xpose.msra.mxu0 0
        %2246 = vmatprep.subr.bf16.mxu0 0
        %2247 = vmatpush1.bf16.xpose.msra.mxu0 0
        %2248 = vmatprep.subr.bf16.mxu0 0
        %2249 = vmatpush1.bf16.xpose.msra.mxu0 %v2234
        %2250 = vmatprep.subr.bf16.mxu0 0
        %2251 = vmatpush1.bf16.xpose.msra.mxu0 %v2231
        %2252 = vmatprep.subr.bf16.mxu0 0
        %2253 = vmatpush2.bf16.xpose.msra.mxu0 0
        %2254 = vmatprep.subr.bf16.mxu0 0
        %2255 = vmatpush2.bf16.xpose.msra.mxu0 0
        %2256 = vmatprep.subr.bf16.mxu0 0
        %2257 = vmatpush2.bf16.xpose.msra.mxu0 0
        %2258 = vmatprep.subr.bf16.mxu0 0
        %2259 = vmatpush2.bf16.xpose.msra.mxu0 0
        %2260 = vmatprep.subr.bf16.mxu0 0
        %2261 = vmatpush2.bf16.xpose.msra.mxu0 0
        %2262 = vmatprep.subr.bf16.mxu0 0
        %2263 = vmatpush2.bf16.xpose.msra.mxu0 0
        %2264 = vmatprep.subr.bf16.mxu0 0
        %2265 = vmatpush2.bf16.xpose.msra.mxu0 0
        %2266 = vmatprep.subr.bf16.mxu0 0
        %2267 = vmatpush2.bf16.xpose.msra.mxu0 0
        %2268 = vmatprep.mubr.bf16.mxu0 0
        %2269 = vmatmul.mubr.bf16.gmra.mxu0 %v2225
        %v2270 = vpop.f32.mrf.mxu0
        %v2271 = vadd.f32 0.0, %v2270
        %v2272 = vpop.f32.mrf.mxu0
        %v2273 = vpop.f32.mrf.mxu0
        %v2274 = vadd.f32 0.0, %v2273
        %v2275 = vpop.f32.mrf.mxu0
        %2276 = vmatprep.mubr.bf16.mxu0 0
        %2277 = vmatmul.mubr.bf16.gmra.mxu0 %v2228
        %v2278 = vpop.f32.mrf.mxu0
        %v2279 = vadd.f32 0.0, %v2278
        %v2280 = vpop.f32.mrf.mxu0
        %v2281 = vpop.f32.mrf.mxu0
        %v2282 = vadd.f32 0.0, %v2281
        %v2283 = vpop.f32.mrf.mxu0
        %2284 = vdwg.mxu0
        %2287 = vrot.lane.b32.xlu0 %v1399, 96
        %v2288 = vpop.permute.xlu0 %2287
        %2289 = vrot.lane.b32.xlu0 %v1400, 96
        %v2290 = vpop.permute.xlu0 %2289
        %2293 = vrot.lane.b32.xlu0 %v1407, 96
        %v2294 = vpop.permute.xlu0 %2293
        %2295 = vrot.lane.b32.xlu0 %v1408, 96
        %v2296 = vpop.permute.xlu0 %2295
        %v2298 = vsel %vm1417, %v2288, 0
        %v2301 = vsel %vm1417, %v2290, 0
        %v2304 = vsel %vm1417, %v2294, 0
        %v2307 = vsel %vm1417, %v2296, 0
        %2309 = vmatprep.subr.bf16.mxu0 0
        %2310 = vmatpush1.bf16.xpose.msra.mxu0 0
        %2311 = vmatprep.subr.bf16.mxu0 0
        %2312 = vmatpush1.bf16.xpose.msra.mxu0 0
        %2313 = vmatprep.subr.bf16.mxu0 0
        %2314 = vmatpush1.bf16.xpose.msra.mxu0 0
        %2315 = vmatprep.subr.bf16.mxu0 0
        %2316 = vmatpush1.bf16.xpose.msra.mxu0 0
        %2317 = vmatprep.subr.bf16.mxu0 0
        %2318 = vmatpush1.bf16.xpose.msra.mxu0 0
        %2319 = vmatprep.subr.bf16.mxu0 0
        %2320 = vmatpush1.bf16.xpose.msra.mxu0 0
        %2321 = vmatprep.subr.bf16.mxu0 0
        %2322 = vmatpush1.bf16.xpose.msra.mxu0 %v2307
        %2323 = vmatprep.subr.bf16.mxu0 0
        %2324 = vmatpush1.bf16.xpose.msra.mxu0 %v2304
        %2325 = vmatprep.subr.bf16.mxu0 0
        %2326 = vmatpush2.bf16.xpose.msra.mxu0 0
        %2327 = vmatprep.subr.bf16.mxu0 0
        %2328 = vmatpush2.bf16.xpose.msra.mxu0 0
        %2329 = vmatprep.subr.bf16.mxu0 0
        %2330 = vmatpush2.bf16.xpose.msra.mxu0 0
        %2331 = vmatprep.subr.bf16.mxu0 0
        %2332 = vmatpush2.bf16.xpose.msra.mxu0 0
        %2333 = vmatprep.subr.bf16.mxu0 0
        %2334 = vmatpush2.bf16.xpose.msra.mxu0 0
        %2335 = vmatprep.subr.bf16.mxu0 0
        %2336 = vmatpush2.bf16.xpose.msra.mxu0 0
        %2337 = vmatprep.subr.bf16.mxu0 0
        %2338 = vmatpush2.bf16.xpose.msra.mxu0 0
        %2339 = vmatprep.subr.bf16.mxu0 0
        %2340 = vmatpush2.bf16.xpose.msra.mxu0 0
        %2341 = vmatprep.mubr.bf16.mxu0 0
        %2342 = vmatmul.mubr.bf16.gmra.mxu0 %v2298
        %v2343 = vpop.f32.mrf.mxu0
        %v2344 = vadd.f32 0.0, %v2343
        %v2345 = vpop.f32.mrf.mxu0
        %v2346 = vpop.f32.mrf.mxu0
        %v2347 = vadd.f32 0.0, %v2346
        %v2348 = vpop.f32.mrf.mxu0
        %2349 = vmatprep.mubr.bf16.mxu0 0
        %2350 = vmatmul.mubr.bf16.gmra.mxu0 %v2301
        %v2351 = vpop.f32.mrf.mxu0
        %v2352 = vadd.f32 0.0, %v2351
        %v2353 = vpop.f32.mrf.mxu0
        %v2354 = vpop.f32.mrf.mxu0
        %v2355 = vadd.f32 0.0, %v2354
        %v2356 = vpop.f32.mrf.mxu0
        %2357 = vdwg.mxu0
        %v2358 = vsel %vm1417, %v2125, -inf
        %2359 = vmax.xlane.f32.xlu0 %v2358
        %v2360 = vpop.xlane.xlu0 %2359
        %v2361 = vsel %vm1417, %v2128, -inf
        %2362 = vmax.xlane.f32.xlu0 %v2361
        %v2363 = vpop.xlane.xlu0 %2362
        %v2364 = vsel %vm1417, %v2133, -inf
        %2365 = vmax.xlane.f32.xlu0 %v2364
        %v2366 = vpop.xlane.xlu0 %2365
        %v2367 = vsel %vm1417, %v2136, -inf
        %2368 = vmax.xlane.f32.xlu0 %v2367
        %v2369 = vpop.xlane.xlu0 %2368
        %v2370 = vsel %vm1417, %v2198, -inf
        %2371 = vmax.xlane.f32.xlu0 %v2370
        %v2372 = vpop.xlane.xlu0 %2371
        %v2373 = vsel %vm1417, %v2201, -inf
        %2374 = vmax.xlane.f32.xlu0 %v2373
        %v2375 = vpop.xlane.xlu0 %2374
        %v2376 = vsel %vm1417, %v2206, -inf
        %2377 = vmax.xlane.f32.xlu0 %v2376
        %v2378 = vpop.xlane.xlu0 %2377
        %v2379 = vsel %vm1417, %v2209, -inf
        %2380 = vmax.xlane.f32.xlu0 %v2379
        %v2381 = vpop.xlane.xlu0 %2380
        %v2382 = vsel %vm1417, %v2271, -inf
        %2383 = vmax.xlane.f32.xlu0 %v2382
        %v2384 = vpop.xlane.xlu0 %2383
        %v2385 = vsel %vm1417, %v2274, -inf
        %2386 = vmax.xlane.f32.xlu0 %v2385
        %v2387 = vpop.xlane.xlu0 %2386
        %v2388 = vsel %vm1417, %v2279, -inf
        %2389 = vmax.xlane.f32.xlu0 %v2388
        %v2390 = vpop.xlane.xlu0 %2389
        %v2391 = vsel %vm1417, %v2282, -inf
        %2392 = vmax.xlane.f32.xlu0 %v2391
        %v2393 = vpop.xlane.xlu0 %2392
        %v2394 = vsel %vm1417, %v2344, -inf
        %2395 = vmax.xlane.f32.xlu0 %v2394
        %v2396 = vpop.xlane.xlu0 %2395
        %v2397 = vsel %vm1417, %v2347, -inf
        %2398 = vmax.xlane.f32.xlu0 %v2397
        %v2399 = vpop.xlane.xlu0 %2398
        %v2400 = vsel %vm1417, %v2352, -inf
        %2401 = vmax.xlane.f32.xlu0 %v2400
        %v2402 = vpop.xlane.xlu0 %2401
        %v2403 = vsel %vm1417, %v2355, -inf
        %2404 = vmax.xlane.f32.xlu0 %v2403
        %v2405 = vpop.xlane.xlu0 %2404
        %v2406 = vsub.f32 %v2125, %v2360
        %v2407 = vsub.f32 %v2128, %v2363
        %v2408 = vsub.f32 %v2133, %v2366
        %v2409 = vsub.f32 %v2136, %v2369
        %v2410 = vsub.f32 %v2198, %v2372
        %v2411 = vsub.f32 %v2201, %v2375
        %v2412 = vsub.f32 %v2206, %v2378
        %v2413 = vsub.f32 %v2209, %v2381
        %v2414 = vsub.f32 %v2271, %v2384
        %v2415 = vsub.f32 %v2274, %v2387
        %v2416 = vsub.f32 %v2279, %v2390
        %v2417 = vsub.f32 %v2282, %v2393
        %v2418 = vsub.f32 %v2344, %v2396
        %v2419 = vsub.f32 %v2347, %v2399
        %v2420 = vsub.f32 %v2352, %v2402
        %v2421 = vsub.f32 %v2355, %v2405
        %v2422 = vmul.f32 %v2406, 1.442695
        %v2423 = vpow.pop %v2422
        %v2424 = vmul.f32 %v2407, 1.442695
        %v2425 = vpow.pop %v2424
        %v2426 = vmul.f32 %v2408, 1.442695
        %v2427 = vpow.pop %v2426
        %v2428 = vmul.f32 %v2409, 1.442695
        %v2429 = vpow.pop %v2428
        %v2430 = vmul.f32 %v2410, 1.442695
        %v2431 = vpow.pop %v2430
        %v2432 = vmul.f32 %v2411, 1.442695
        %v2433 = vpow.pop %v2432
        %v2434 = vmul.f32 %v2412, 1.442695
        %v2435 = vpow.pop %v2434
        %v2436 = vmul.f32 %v2413, 1.442695
        %v2437 = vpow.pop %v2436
        %v2438 = vmul.f32 %v2414, 1.442695
        %v2439 = vpow.pop %v2438
        %v2440 = vmul.f32 %v2415, 1.442695
        %v2441 = vpow.pop %v2440
        %v2442 = vmul.f32 %v2416, 1.442695
        %v2443 = vpow.pop %v2442
        %v2444 = vmul.f32 %v2417, 1.442695
        %v2445 = vpow.pop %v2444
        %v2446 = vmul.f32 %v2418, 1.442695
        %v2447 = vpow.pop %v2446
        %v2448 = vmul.f32 %v2419, 1.442695
        %v2449 = vpow.pop %v2448
        %v2450 = vmul.f32 %v2420, 1.442695
        %v2451 = vpow.pop %v2450
        %v2452 = vmul.f32 %v2421, 1.442695
        %v2453 = vpow.pop %v2452
        %v2454 = vsel %vm1417, %v2423, 0.0
        %2455 = vadd.xlane.f32.xlu0 %v2454
        %v2456 = vpop.xlane.xlu0 %2455
        %v2457 = vsel %vm1417, %v2425, 0.0
        %2458 = vadd.xlane.f32.xlu0 %v2457
        %v2459 = vpop.xlane.xlu0 %2458
        %v2460 = vsel %vm1417, %v2427, 0.0
        %2461 = vadd.xlane.f32.xlu0 %v2460
        %v2462 = vpop.xlane.xlu0 %2461
        %v2463 = vsel %vm1417, %v2429, 0.0
        %2464 = vadd.xlane.f32.xlu0 %v2463
        %v2465 = vpop.xlane.xlu0 %2464
        %v2466 = vsel %vm1417, %v2431, 0.0
        %2467 = vadd.xlane.f32.xlu0 %v2466
        %v2468 = vpop.xlane.xlu0 %2467
        %v2469 = vsel %vm1417, %v2433, 0.0
        %2470 = vadd.xlane.f32.xlu0 %v2469
        %v2471 = vpop.xlane.xlu0 %2470
        %v2472 = vsel %vm1417, %v2435, 0.0
        %2473 = vadd.xlane.f32.xlu0 %v2472
        %v2474 = vpop.xlane.xlu0 %2473
        %v2475 = vsel %vm1417, %v2437, 0.0
        %2476 = vadd.xlane.f32.xlu0 %v2475
        %v2477 = vpop.xlane.xlu0 %2476
        %v2478 = vsel %vm1417, %v2439, 0.0
        %2479 = vadd.xlane.f32.xlu0 %v2478
        %v2480 = vpop.xlane.xlu0 %2479
        %v2481 = vsel %vm1417, %v2441, 0.0
        %2482 = vadd.xlane.f32.xlu0 %v2481
        %v2483 = vpop.xlane.xlu0 %2482
        %v2484 = vsel %vm1417, %v2443, 0.0
        %2485 = vadd.xlane.f32.xlu0 %v2484
        %v2486 = vpop.xlane.xlu0 %2485
        %v2487 = vsel %vm1417, %v2445, 0.0
        %2488 = vadd.xlane.f32.xlu0 %v2487
        %v2489 = vpop.xlane.xlu0 %2488
        %v2490 = vsel %vm1417, %v2447, 0.0
        %2491 = vadd.xlane.f32.xlu0 %v2490
        %v2492 = vpop.xlane.xlu0 %2491
        %v2493 = vsel %vm1417, %v2449, 0.0
        %2494 = vadd.xlane.f32.xlu0 %v2493
        %v2495 = vpop.xlane.xlu0 %2494
        %v2496 = vsel %vm1417, %v2451, 0.0
        %2497 = vadd.xlane.f32.xlu0 %v2496
        %v2498 = vpop.xlane.xlu0 %2497
        %v2499 = vsel %vm1417, %v2453, 0.0
        %2500 = vadd.xlane.f32.xlu0 %v2499
        %v2501 = vpop.xlane.xlu0 %2500
        %v2502 = vrcp.pop %v2456
        %v2503 = vrcp.pop %v2459
        %v2504 = vrcp.pop %v2462
        %v2505 = vrcp.pop %v2465
        %v2506 = vrcp.pop %v2468
        %v2507 = vrcp.pop %v2471
        %v2508 = vrcp.pop %v2474
        %v2509 = vrcp.pop %v2477
        %v2510 = vrcp.pop %v2480
        %v2511 = vrcp.pop %v2483
        %v2512 = vrcp.pop %v2486
        %v2513 = vrcp.pop %v2489
        %v2514 = vrcp.pop %v2492
        %v2515 = vrcp.pop %v2495
        %v2516 = vrcp.pop %v2498
        %v2517 = vrcp.pop %v2501
        %v2518 = vmul.f32 %v2423, %v2502
        %v2519 = vmul.f32 %v2425, %v2503
        %v2520 = vmul.f32 %v2427, %v2504
        %v2521 = vmul.f32 %v2429, %v2505
        %v2522 = vmul.f32 %v2431, %v2506
        %v2523 = vmul.f32 %v2433, %v2507
        %v2524 = vmul.f32 %v2435, %v2508
        %v2525 = vmul.f32 %v2437, %v2509
        %v2526 = vmul.f32 %v2439, %v2510
        %v2527 = vmul.f32 %v2441, %v2511
        %v2528 = vmul.f32 %v2443, %v2512
        %v2529 = vmul.f32 %v2445, %v2513
        %v2530 = vmul.f32 %v2447, %v2514
        %v2531 = vmul.f32 %v2449, %v2515
        %v2532 = vmul.f32 %v2451, %v2516
        %v2533 = vmul.f32 %v2453, %v2517
        %v2534 = vpack.c.bf16 %v2519, %v2518
        %v2535 = vpack.c.bf16 %v2521, %v2520
        %v2536 = vpack.c.bf16 %v2523, %v2522
        %v2537 = vpack.c.bf16 %v2525, %v2524
        %v2538 = vpack.c.bf16 %v2527, %v2526
        %v2539 = vpack.c.bf16 %v2529, %v2528
        %v2540 = vpack.c.bf16 %v2531, %v2530
        %v2541 = vpack.c.bf16 %v2533, %v2532
        %2544 = vrot.lane.b32.xlu0 %v1409, 96
        %v2545 = vpop.permute.xlu0 %2544
        %2546 = vrot.lane.b32.xlu0 %v1410, 96
        %v2547 = vpop.permute.xlu0 %2546
        %v2551 = vsel %vm1417, %v2534, 0
        %v2554 = vsel %vm1417, %v2535, 0
        %2556 = vmatprep.subr.bf16.mxu0 0
        %2557 = vmatpush1.bf16.msra.mxu0 0
        %2558 = vmatprep.subr.bf16.mxu0 0
        %2559 = vmatpush1.bf16.msra.mxu0 0
        %2560 = vmatprep.subr.bf16.mxu0 0
        %2561 = vmatpush1.bf16.msra.mxu0 0
        %2562 = vmatprep.subr.bf16.mxu0 0
        %2563 = vmatpush1.bf16.msra.mxu0 0
        %2564 = vmatprep.subr.bf16.mxu0 0
        %2565 = vmatpush1.bf16.msra.mxu0 0
        %2566 = vmatprep.subr.bf16.mxu0 0
        %2567 = vmatpush1.bf16.msra.mxu0 0
        %2568 = vmatprep.subr.bf16.mxu0 0
        %2569 = vmatpush1.bf16.msra.mxu0 %v2547
        %2570 = vmatprep.subr.bf16.mxu0 0
        %2571 = vmatpush1.bf16.msra.mxu0 %v2545
        %2572 = vmatprep.subr.bf16.mxu0 0
        %2573 = vmatpush2.bf16.msra.mxu0 0
        %2574 = vmatprep.subr.bf16.mxu0 0
        %2575 = vmatpush2.bf16.msra.mxu0 0
        %2576 = vmatprep.subr.bf16.mxu0 0
        %2577 = vmatpush2.bf16.msra.mxu0 0
        %2578 = vmatprep.subr.bf16.mxu0 0
        %2579 = vmatpush2.bf16.msra.mxu0 0
        %2580 = vmatprep.subr.bf16.mxu0 0
        %2581 = vmatpush2.bf16.msra.mxu0 0
        %2582 = vmatprep.subr.bf16.mxu0 0
        %2583 = vmatpush2.bf16.msra.mxu0 0
        %2584 = vmatprep.subr.bf16.mxu0 0
        %2585 = vmatpush2.bf16.msra.mxu0 0
        %2586 = vmatprep.subr.bf16.mxu0 0
        %2587 = vmatpush2.bf16.msra.mxu0 0
        %2588 = vmatprep.mubr.bf16.mxu0 0
        %2589 = vmatmul.mubr.bf16.gmra.mxu0 %v2551
        %v2590 = vpop.f32.mrf.mxu0
        %v2591 = vadd.f32 0.0, %v2590
        %v2592 = vpop.f32.mrf.mxu0
        %v2593 = vpop.f32.mrf.mxu0
        %v2594 = vadd.f32 0.0, %v2593
        %v2595 = vpop.f32.mrf.mxu0
        %2596 = vmatprep.mubr.bf16.mxu0 0
        %2597 = vmatmul.mubr.bf16.gmra.mxu0 %v2554
        %v2598 = vpop.f32.mrf.mxu0
        %v2599 = vadd.f32 0.0, %v2598
        %v2600 = vpop.f32.mrf.mxu0
        %v2601 = vpop.f32.mrf.mxu0
        %v2602 = vadd.f32 0.0, %v2601
        %v2603 = vpop.f32.mrf.mxu0
        %2604 = vdwg.mxu0
        %2607 = vrot.lane.b32.xlu0 %v1411, 96
        %v2608 = vpop.permute.xlu0 %2607
        %2609 = vrot.lane.b32.xlu0 %v1412, 96
        %v2610 = vpop.permute.xlu0 %2609
        %v2614 = vsel %vm1417, %v2536, 0
        %v2617 = vsel %vm1417, %v2537, 0
        %2619 = vmatprep.subr.bf16.mxu0 0
        %2620 = vmatpush1.bf16.msra.mxu0 0
        %2621 = vmatprep.subr.bf16.mxu0 0
        %2622 = vmatpush1.bf16.msra.mxu0 0
        %2623 = vmatprep.subr.bf16.mxu0 0
        %2624 = vmatpush1.bf16.msra.mxu0 0
        %2625 = vmatprep.subr.bf16.mxu0 0
        %2626 = vmatpush1.bf16.msra.mxu0 0
        %2627 = vmatprep.subr.bf16.mxu0 0
        %2628 = vmatpush1.bf16.msra.mxu0 0
        %2629 = vmatprep.subr.bf16.mxu0 0
        %2630 = vmatpush1.bf16.msra.mxu0 0
        %2631 = vmatprep.subr.bf16.mxu0 0
        %2632 = vmatpush1.bf16.msra.mxu0 %v2610
        %2633 = vmatprep.subr.bf16.mxu0 0
        %2634 = vmatpush1.bf16.msra.mxu0 %v2608
        %2635 = vmatprep.subr.bf16.mxu0 0
        %2636 = vmatpush2.bf16.msra.mxu0 0
        %2637 = vmatprep.subr.bf16.mxu0 0
        %2638 = vmatpush2.bf16.msra.mxu0 0
        %2639 = vmatprep.subr.bf16.mxu0 0
        %2640 = vmatpush2.bf16.msra.mxu0 0
        %2641 = vmatprep.subr.bf16.mxu0 0
        %2642 = vmatpush2.bf16.msra.mxu0 0
        %2643 = vmatprep.subr.bf16.mxu0 0
        %2644 = vmatpush2.bf16.msra.mxu0 0
        %2645 = vmatprep.subr.bf16.mxu0 0
        %2646 = vmatpush2.bf16.msra.mxu0 0
        %2647 = vmatprep.subr.bf16.mxu0 0
        %2648 = vmatpush2.bf16.msra.mxu0 0
        %2649 = vmatprep.subr.bf16.mxu0 0
        %2650 = vmatpush2.bf16.msra.mxu0 0
        %2651 = vmatprep.mubr.bf16.mxu0 0
        %2652 = vmatmul.mubr.bf16.gmra.mxu0 %v2614
        %v2653 = vpop.f32.mrf.mxu0
        %v2654 = vadd.f32 0.0, %v2653
        %v2655 = vpop.f32.mrf.mxu0
        %v2656 = vpop.f32.mrf.mxu0
        %v2657 = vadd.f32 0.0, %v2656
        %v2658 = vpop.f32.mrf.mxu0
        %2659 = vmatprep.mubr.bf16.mxu0 0
        %2660 = vmatmul.mubr.bf16.gmra.mxu0 %v2617
        %v2661 = vpop.f32.mrf.mxu0
        %v2662 = vadd.f32 0.0, %v2661
        %v2663 = vpop.f32.mrf.mxu0
        %v2664 = vpop.f32.mrf.mxu0
        %v2665 = vadd.f32 0.0, %v2664
        %v2666 = vpop.f32.mrf.mxu0
        %2667 = vdwg.mxu0
        %2670 = vrot.lane.b32.xlu0 %v1413, 96
        %v2671 = vpop.permute.xlu0 %2670
        %2672 = vrot.lane.b32.xlu0 %v1414, 96
        %v2673 = vpop.permute.xlu0 %2672
        %v2677 = vsel %vm1417, %v2538, 0
        %v2680 = vsel %vm1417, %v2539, 0
        %2682 = vmatprep.subr.bf16.mxu0 0
        %2683 = vmatpush1.bf16.msra.mxu0 0
        %2684 = vmatprep.subr.bf16.mxu0 0
        %2685 = vmatpush1.bf16.msra.mxu0 0
        %2686 = vmatprep.subr.bf16.mxu0 0
        %2687 = vmatpush1.bf16.msra.mxu0 0
        %2688 = vmatprep.subr.bf16.mxu0 0
        %2689 = vmatpush1.bf16.msra.mxu0 0
        %2690 = vmatprep.subr.bf16.mxu0 0
        %2691 = vmatpush1.bf16.msra.mxu0 0
        %2692 = vmatprep.subr.bf16.mxu0 0
        %2693 = vmatpush1.bf16.msra.mxu0 0
        %2694 = vmatprep.subr.bf16.mxu0 0
        %2695 = vmatpush1.bf16.msra.mxu0 %v2673
        %2696 = vmatprep.subr.bf16.mxu0 0
        %2697 = vmatpush1.bf16.msra.mxu0 %v2671
        %2698 = vmatprep.subr.bf16.mxu0 0
        %2699 = vmatpush2.bf16.msra.mxu0 0
        %2700 = vmatprep.subr.bf16.mxu0 0
        %2701 = vmatpush2.bf16.msra.mxu0 0
        %2702 = vmatprep.subr.bf16.mxu0 0
        %2703 = vmatpush2.bf16.msra.mxu0 0
        %2704 = vmatprep.subr.bf16.mxu0 0
        %2705 = vmatpush2.bf16.msra.mxu0 0
        %2706 = vmatprep.subr.bf16.mxu0 0
        %2707 = vmatpush2.bf16.msra.mxu0 0
        %2708 = vmatprep.subr.bf16.mxu0 0
        %2709 = vmatpush2.bf16.msra.mxu0 0
        %2710 = vmatprep.subr.bf16.mxu0 0
        %2711 = vmatpush2.bf16.msra.mxu0 0
        %2712 = vmatprep.subr.bf16.mxu0 0
        %2713 = vmatpush2.bf16.msra.mxu0 0
        %2714 = vmatprep.mubr.bf16.mxu0 0
        %2715 = vmatmul.mubr.bf16.gmra.mxu0 %v2677
        %v2716 = vpop.f32.mrf.mxu0
        %v2717 = vadd.f32 0.0, %v2716
        %v2718 = vpop.f32.mrf.mxu0
        %v2719 = vpop.f32.mrf.mxu0
        %v2720 = vadd.f32 0.0, %v2719
        %v2721 = vpop.f32.mrf.mxu0
        %2722 = vmatprep.mubr.bf16.mxu0 0
        %2723 = vmatmul.mubr.bf16.gmra.mxu0 %v2680
        %v2724 = vpop.f32.mrf.mxu0
        %v2725 = vadd.f32 0.0, %v2724
        %v2726 = vpop.f32.mrf.mxu0
        %v2727 = vpop.f32.mrf.mxu0
        %v2728 = vadd.f32 0.0, %v2727
        %v2729 = vpop.f32.mrf.mxu0
        %2730 = vdwg.mxu0
        %2733 = vrot.lane.b32.xlu0 %v1415, 96
        %v2734 = vpop.permute.xlu0 %2733
        %2735 = vrot.lane.b32.xlu0 %v1416, 96
        %v2736 = vpop.permute.xlu0 %2735
        %v2740 = vsel %vm1417, %v2540, 0
        %v2743 = vsel %vm1417, %v2541, 0
        %2745 = vmatprep.subr.bf16.mxu0 0
        %2746 = vmatpush1.bf16.msra.mxu0 0
        %2747 = vmatprep.subr.bf16.mxu0 0
        %2748 = vmatpush1.bf16.msra.mxu0 0
        %2749 = vmatprep.subr.bf16.mxu0 0
        %2750 = vmatpush1.bf16.msra.mxu0 0
        %2751 = vmatprep.subr.bf16.mxu0 0
        %2752 = vmatpush1.bf16.msra.mxu0 0
        %2753 = vmatprep.subr.bf16.mxu0 0
        %2754 = vmatpush1.bf16.msra.mxu0 0
        %2755 = vmatprep.subr.bf16.mxu0 0
        %2756 = vmatpush1.bf16.msra.mxu0 0
        %2757 = vmatprep.subr.bf16.mxu0 0
        %2758 = vmatpush1.bf16.msra.mxu0 %v2736
        %2759 = vmatprep.subr.bf16.mxu0 0
        %2760 = vmatpush1.bf16.msra.mxu0 %v2734
        %2761 = vmatprep.subr.bf16.mxu0 0
        %2762 = vmatpush2.bf16.msra.mxu0 0
        %2763 = vmatprep.subr.bf16.mxu0 0
        %2764 = vmatpush2.bf16.msra.mxu0 0
        %2765 = vmatprep.subr.bf16.mxu0 0
        %2766 = vmatpush2.bf16.msra.mxu0 0
        %2767 = vmatprep.subr.bf16.mxu0 0
        %2768 = vmatpush2.bf16.msra.mxu0 0
        %2769 = vmatprep.subr.bf16.mxu0 0
        %2770 = vmatpush2.bf16.msra.mxu0 0
        %2771 = vmatprep.subr.bf16.mxu0 0
        %2772 = vmatpush2.bf16.msra.mxu0 0
        %2773 = vmatprep.subr.bf16.mxu0 0
        %2774 = vmatpush2.bf16.msra.mxu0 0
        %2775 = vmatprep.subr.bf16.mxu0 0
        %2776 = vmatpush2.bf16.msra.mxu0 0
        %2777 = vmatprep.mubr.bf16.mxu0 0
        %2778 = vmatmul.mubr.bf16.gmra.mxu0 %v2740
        %v2779 = vpop.f32.mrf.mxu0
        %v2780 = vadd.f32 0.0, %v2779
        %v2781 = vpop.f32.mrf.mxu0
        %v2782 = vpop.f32.mrf.mxu0
        %v2783 = vadd.f32 0.0, %v2782
        %v2784 = vpop.f32.mrf.mxu0
        %2785 = vmatprep.mubr.bf16.mxu0 0
        %2786 = vmatmul.mubr.bf16.gmra.mxu0 %v2743
        %v2787 = vpop.f32.mrf.mxu0
        %v2788 = vadd.f32 0.0, %v2787
        %v2789 = vpop.f32.mrf.mxu0
        %v2790 = vpop.f32.mrf.mxu0
        %v2791 = vadd.f32 0.0, %v2790
        %v2792 = vpop.f32.mrf.mxu0
        %2793 = vdwg.mxu0
        %2794 = vrot.lane.b32.xlu0 %v1393, 64
        %v2795 = vpop.permute.xlu0 %2794
        %2796 = vrot.lane.b32.xlu0 %v1394, 64
        %v2797 = vpop.permute.xlu0 %2796
        %2798 = vrot.lane.b32.xlu0 %v1401, 64
        %v2799 = vpop.permute.xlu0 %2798
        %2800 = vrot.lane.b32.xlu0 %v1402, 64
        %v2801 = vpop.permute.xlu0 %2800
        %v2803 = vsel %vm1417, %v2795, 0
        %v2806 = vsel %vm1417, %v2797, 0
        %v2809 = vsel %vm1417, %v2799, 0
        %v2812 = vsel %vm1417, %v2801, 0
        %2814 = vmatprep.subr.bf16.mxu0 0
        %2815 = vmatpush1.bf16.xpose.msra.mxu0 0
        %2816 = vmatprep.subr.bf16.mxu0 0
        %2817 = vmatpush1.bf16.xpose.msra.mxu0 0
        %2818 = vmatprep.subr.bf16.mxu0 0
        %2819 = vmatpush1.bf16.xpose.msra.mxu0 0
        %2820 = vmatprep.subr.bf16.mxu0 0
        %2821 = vmatpush1.bf16.xpose.msra.mxu0 0
        %2822 = vmatprep.subr.bf16.mxu0 0
        %2823 = vmatpush1.bf16.xpose.msra.mxu0 0
        %2824 = vmatprep.subr.bf16.mxu0 0
        %2825 = vmatpush1.bf16.xpose.msra.mxu0 0
        %2826 = vmatprep.subr.bf16.mxu0 0
        %2827 = vmatpush1.bf16.xpose.msra.mxu0 %v2812
        %2828 = vmatprep.subr.bf16.mxu0 0
        %2829 = vmatpush1.bf16.xpose.msra.mxu0 %v2809
        %2830 = vmatprep.subr.bf16.mxu0 0
        %2831 = vmatpush2.bf16.xpose.msra.mxu0 0
        %2832 = vmatprep.subr.bf16.mxu0 0
        %2833 = vmatpush2.bf16.xpose.msra.mxu0 0
        %2834 = vmatprep.subr.bf16.mxu0 0
        %2835 = vmatpush2.bf16.xpose.msra.mxu0 0
        %2836 = vmatprep.subr.bf16.mxu0 0
        %2837 = vmatpush2.bf16.xpose.msra.mxu0 0
        %2838 = vmatprep.subr.bf16.mxu0 0
        %2839 = vmatpush2.bf16.xpose.msra.mxu0 0
        %2840 = vmatprep.subr.bf16.mxu0 0
        %2841 = vmatpush2.bf16.xpose.msra.mxu0 0
        %2842 = vmatprep.subr.bf16.mxu0 0
        %2843 = vmatpush2.bf16.xpose.msra.mxu0 0
        %2844 = vmatprep.subr.bf16.mxu0 0
        %2845 = vmatpush2.bf16.xpose.msra.mxu0 0
        %2846 = vmatprep.mubr.bf16.mxu0 0
        %2847 = vmatmul.mubr.bf16.gmra.mxu0 %v2803
        %v2848 = vpop.f32.mrf.mxu0
        %v2849 = vadd.f32 0.0, %v2848
        %v2850 = vpop.f32.mrf.mxu0
        %v2851 = vpop.f32.mrf.mxu0
        %v2852 = vadd.f32 0.0, %v2851
        %v2853 = vpop.f32.mrf.mxu0
        %2854 = vmatprep.mubr.bf16.mxu0 0
        %2855 = vmatmul.mubr.bf16.gmra.mxu0 %v2806
        %v2856 = vpop.f32.mrf.mxu0
        %v2857 = vadd.f32 0.0, %v2856
        %v2858 = vpop.f32.mrf.mxu0
        %v2859 = vpop.f32.mrf.mxu0
        %v2860 = vadd.f32 0.0, %v2859
        %v2861 = vpop.f32.mrf.mxu0
        %2862 = vdwg.mxu0
        %2863 = vrot.lane.b32.xlu0 %v1395, 64
        %v2864 = vpop.permute.xlu0 %2863
        %2865 = vrot.lane.b32.xlu0 %v1396, 64
        %v2866 = vpop.permute.xlu0 %2865
        %2867 = vrot.lane.b32.xlu0 %v1403, 64
        %v2868 = vpop.permute.xlu0 %2867
        %2869 = vrot.lane.b32.xlu0 %v1404, 64
        %v2870 = vpop.permute.xlu0 %2869
        %v2872 = vsel %vm1417, %v2864, 0
        %v2875 = vsel %vm1417, %v2866, 0
        %v2878 = vsel %vm1417, %v2868, 0
        %v2881 = vsel %vm1417, %v2870, 0
        %2883 = vmatprep.subr.bf16.mxu0 0
        %2884 = vmatpush1.bf16.xpose.msra.mxu0 0
        %2885 = vmatprep.subr.bf16.mxu0 0
        %2886 = vmatpush1.bf16.xpose.msra.mxu0 0
        %2887 = vmatprep.subr.bf16.mxu0 0
        %2888 = vmatpush1.bf16.xpose.msra.mxu0 0
        %2889 = vmatprep.subr.bf16.mxu0 0
        %2890 = vmatpush1.bf16.xpose.msra.mxu0 0
        %2891 = vmatprep.subr.bf16.mxu0 0
        %2892 = vmatpush1.bf16.xpose.msra.mxu0 0
        %2893 = vmatprep.subr.bf16.mxu0 0
        %2894 = vmatpush1.bf16.xpose.msra.mxu0 0
        %2895 = vmatprep.subr.bf16.mxu0 0
        %2896 = vmatpush1.bf16.xpose.msra.mxu0 %v2881
        %2897 = vmatprep.subr.bf16.mxu0 0
        %2898 = vmatpush1.bf16.xpose.msra.mxu0 %v2878
        %2899 = vmatprep.subr.bf16.mxu0 0
        %2900 = vmatpush2.bf16.xpose.msra.mxu0 0
        %2901 = vmatprep.subr.bf16.mxu0 0
        %2902 = vmatpush2.bf16.xpose.msra.mxu0 0
        %2903 = vmatprep.subr.bf16.mxu0 0
        %2904 = vmatpush2.bf16.xpose.msra.mxu0 0
        %2905 = vmatprep.subr.bf16.mxu0 0
        %2906 = vmatpush2.bf16.xpose.msra.mxu0 0
        %2907 = vmatprep.subr.bf16.mxu0 0
        %2908 = vmatpush2.bf16.xpose.msra.mxu0 0
        %2909 = vmatprep.subr.bf16.mxu0 0
        %2910 = vmatpush2.bf16.xpose.msra.mxu0 0
        %2911 = vmatprep.subr.bf16.mxu0 0
        %2912 = vmatpush2.bf16.xpose.msra.mxu0 0
        %2913 = vmatprep.subr.bf16.mxu0 0
        %2914 = vmatpush2.bf16.xpose.msra.mxu0 0
        %2915 = vmatprep.mubr.bf16.mxu0 0
        %2916 = vmatmul.mubr.bf16.gmra.mxu0 %v2872
        %v2917 = vpop.f32.mrf.mxu0
        %v2918 = vadd.f32 0.0, %v2917
        %v2919 = vpop.f32.mrf.mxu0
        %v2920 = vpop.f32.mrf.mxu0
        %v2921 = vadd.f32 0.0, %v2920
        %v2922 = vpop.f32.mrf.mxu0
        %2923 = vmatprep.mubr.bf16.mxu0 0
        %2924 = vmatmul.mubr.bf16.gmra.mxu0 %v2875
        %v2925 = vpop.f32.mrf.mxu0
        %v2926 = vadd.f32 0.0, %v2925
        %v2927 = vpop.f32.mrf.mxu0
        %v2928 = vpop.f32.mrf.mxu0
        %v2929 = vadd.f32 0.0, %v2928
        %v2930 = vpop.f32.mrf.mxu0
        %2931 = vdwg.mxu0
        %2932 = vrot.lane.b32.xlu0 %v1397, 64
        %v2933 = vpop.permute.xlu0 %2932
        %2934 = vrot.lane.b32.xlu0 %v1398, 64
        %v2935 = vpop.permute.xlu0 %2934
        %2936 = vrot.lane.b32.xlu0 %v1405, 64
        %v2937 = vpop.permute.xlu0 %2936
        %2938 = vrot.lane.b32.xlu0 %v1406, 64
        %v2939 = vpop.permute.xlu0 %2938
        %v2941 = vsel %vm1417, %v2933, 0
        %v2944 = vsel %vm1417, %v2935, 0
        %v2947 = vsel %vm1417, %v2937, 0
        %v2950 = vsel %vm1417, %v2939, 0
        %2952 = vmatprep.subr.bf16.mxu0 0
        %2953 = vmatpush1.bf16.xpose.msra.mxu0 0
        %2954 = vmatprep.subr.bf16.mxu0 0
        %2955 = vmatpush1.bf16.xpose.msra.mxu0 0
        %2956 = vmatprep.subr.bf16.mxu0 0
        %2957 = vmatpush1.bf16.xpose.msra.mxu0 0
        %2958 = vmatprep.subr.bf16.mxu0 0
        %2959 = vmatpush1.bf16.xpose.msra.mxu0 0
        %2960 = vmatprep.subr.bf16.mxu0 0
        %2961 = vmatpush1.bf16.xpose.msra.mxu0 0
        %2962 = vmatprep.subr.bf16.mxu0 0
        %2963 = vmatpush1.bf16.xpose.msra.mxu0 0
        %2964 = vmatprep.subr.bf16.mxu0 0
        %2965 = vmatpush1.bf16.xpose.msra.mxu0 %v2950
        %2966 = vmatprep.subr.bf16.mxu0 0
        %2967 = vmatpush1.bf16.xpose.msra.mxu0 %v2947
        %2968 = vmatprep.subr.bf16.mxu0 0
        %2969 = vmatpush2.bf16.xpose.msra.mxu0 0
        %2970 = vmatprep.subr.bf16.mxu0 0
        %2971 = vmatpush2.bf16.xpose.msra.mxu0 0
        %2972 = vmatprep.subr.bf16.mxu0 0
        %2973 = vmatpush2.bf16.xpose.msra.mxu0 0
        %2974 = vmatprep.subr.bf16.mxu0 0
        %2975 = vmatpush2.bf16.xpose.msra.mxu0 0
        %2976 = vmatprep.subr.bf16.mxu0 0
        %2977 = vmatpush2.bf16.xpose.msra.mxu0 0
        %2978 = vmatprep.subr.bf16.mxu0 0
        %2979 = vmatpush2.bf16.xpose.msra.mxu0 0
        %2980 = vmatprep.subr.bf16.mxu0 0
        %2981 = vmatpush2.bf16.xpose.msra.mxu0 0
        %2982 = vmatprep.subr.bf16.mxu0 0
        %2983 = vmatpush2.bf16.xpose.msra.mxu0 0
        %2984 = vmatprep.mubr.bf16.mxu0 0
        %2985 = vmatmul.mubr.bf16.gmra.mxu0 %v2941
        %v2986 = vpop.f32.mrf.mxu0
        %v2987 = vadd.f32 0.0, %v2986
        %v2988 = vpop.f32.mrf.mxu0
        %v2989 = vpop.f32.mrf.mxu0
        %v2990 = vadd.f32 0.0, %v2989
        %v2991 = vpop.f32.mrf.mxu0
        %2992 = vmatprep.mubr.bf16.mxu0 0
        %2993 = vmatmul.mubr.bf16.gmra.mxu0 %v2944
        %v2994 = vpop.f32.mrf.mxu0
        %v2995 = vadd.f32 0.0, %v2994
        %v2996 = vpop.f32.mrf.mxu0
        %v2997 = vpop.f32.mrf.mxu0
        %v2998 = vadd.f32 0.0, %v2997
        %v2999 = vpop.f32.mrf.mxu0
        %3000 = vdwg.mxu0
        %3001 = vrot.lane.b32.xlu0 %v1399, 64
        %v3002 = vpop.permute.xlu0 %3001
        %3003 = vrot.lane.b32.xlu0 %v1400, 64
        %v3004 = vpop.permute.xlu0 %3003
        %3005 = vrot.lane.b32.xlu0 %v1407, 64
        %v3006 = vpop.permute.xlu0 %3005
        %3007 = vrot.lane.b32.xlu0 %v1408, 64
        %v3008 = vpop.permute.xlu0 %3007
        %v3010 = vsel %vm1417, %v3002, 0
        %v3013 = vsel %vm1417, %v3004, 0
        %v3016 = vsel %vm1417, %v3006, 0
        %v3019 = vsel %vm1417, %v3008, 0
        %3021 = vmatprep.subr.bf16.mxu0 0
        %3022 = vmatpush1.bf16.xpose.msra.mxu0 0
        %3023 = vmatprep.subr.bf16.mxu0 0
        %3024 = vmatpush1.bf16.xpose.msra.mxu0 0
        %3025 = vmatprep.subr.bf16.mxu0 0
        %3026 = vmatpush1.bf16.xpose.msra.mxu0 0
        %3027 = vmatprep.subr.bf16.mxu0 0
        %3028 = vmatpush1.bf16.xpose.msra.mxu0 0
        %3029 = vmatprep.subr.bf16.mxu0 0
        %3030 = vmatpush1.bf16.xpose.msra.mxu0 0
        %3031 = vmatprep.subr.bf16.mxu0 0
        %3032 = vmatpush1.bf16.xpose.msra.mxu0 0
        %3033 = vmatprep.subr.bf16.mxu0 0
        %3034 = vmatpush1.bf16.xpose.msra.mxu0 %v3019
        %3035 = vmatprep.subr.bf16.mxu0 0
        %3036 = vmatpush1.bf16.xpose.msra.mxu0 %v3016
        %3037 = vmatprep.subr.bf16.mxu0 0
        %3038 = vmatpush2.bf16.xpose.msra.mxu0 0
        %3039 = vmatprep.subr.bf16.mxu0 0
        %3040 = vmatpush2.bf16.xpose.msra.mxu0 0
        %3041 = vmatprep.subr.bf16.mxu0 0
        %3042 = vmatpush2.bf16.xpose.msra.mxu0 0
        %3043 = vmatprep.subr.bf16.mxu0 0
        %3044 = vmatpush2.bf16.xpose.msra.mxu0 0
        %3045 = vmatprep.subr.bf16.mxu0 0
        %3046 = vmatpush2.bf16.xpose.msra.mxu0 0
        %3047 = vmatprep.subr.bf16.mxu0 0
        %3048 = vmatpush2.bf16.xpose.msra.mxu0 0
        %3049 = vmatprep.subr.bf16.mxu0 0
        %3050 = vmatpush2.bf16.xpose.msra.mxu0 0
        %3051 = vmatprep.subr.bf16.mxu0 0
        %3052 = vmatpush2.bf16.xpose.msra.mxu0 0
        %3053 = vmatprep.mubr.bf16.mxu0 0
        %3054 = vmatmul.mubr.bf16.gmra.mxu0 %v3010
        %v3055 = vpop.f32.mrf.mxu0
        %v3056 = vadd.f32 0.0, %v3055
        %v3057 = vpop.f32.mrf.mxu0
        %v3058 = vpop.f32.mrf.mxu0
        %v3059 = vadd.f32 0.0, %v3058
        %v3060 = vpop.f32.mrf.mxu0
        %3061 = vmatprep.mubr.bf16.mxu0 0
        %3062 = vmatmul.mubr.bf16.gmra.mxu0 %v3013
        %v3063 = vpop.f32.mrf.mxu0
        %v3064 = vadd.f32 0.0, %v3063
        %v3065 = vpop.f32.mrf.mxu0
        %v3066 = vpop.f32.mrf.mxu0
        %v3067 = vadd.f32 0.0, %v3066
        %v3068 = vpop.f32.mrf.mxu0
        %3069 = vdwg.mxu0
        %v3070 = vsel %vm1417, %v2849, -inf
        %3071 = vmax.xlane.f32.xlu0 %v3070
        %v3072 = vpop.xlane.xlu0 %3071
        %v3073 = vsel %vm1417, %v2852, -inf
        %3074 = vmax.xlane.f32.xlu0 %v3073
        %v3075 = vpop.xlane.xlu0 %3074
        %v3076 = vsel %vm1417, %v2857, -inf
        %3077 = vmax.xlane.f32.xlu0 %v3076
        %v3078 = vpop.xlane.xlu0 %3077
        %v3079 = vsel %vm1417, %v2860, -inf
        %3080 = vmax.xlane.f32.xlu0 %v3079
        %v3081 = vpop.xlane.xlu0 %3080
        %v3082 = vsel %vm1417, %v2918, -inf
        %3083 = vmax.xlane.f32.xlu0 %v3082
        %v3084 = vpop.xlane.xlu0 %3083
        %v3085 = vsel %vm1417, %v2921, -inf
        %3086 = vmax.xlane.f32.xlu0 %v3085
        %v3087 = vpop.xlane.xlu0 %3086
        %v3088 = vsel %vm1417, %v2926, -inf
        %3089 = vmax.xlane.f32.xlu0 %v3088
        %v3090 = vpop.xlane.xlu0 %3089
        %v3091 = vsel %vm1417, %v2929, -inf
        %3092 = vmax.xlane.f32.xlu0 %v3091
        %v3093 = vpop.xlane.xlu0 %3092
        %v3094 = vsel %vm1417, %v2987, -inf
        %3095 = vmax.xlane.f32.xlu0 %v3094
        %v3096 = vpop.xlane.xlu0 %3095
        %v3097 = vsel %vm1417, %v2990, -inf
        %3098 = vmax.xlane.f32.xlu0 %v3097
        %v3099 = vpop.xlane.xlu0 %3098
        %v3100 = vsel %vm1417, %v2995, -inf
        %3101 = vmax.xlane.f32.xlu0 %v3100
        %v3102 = vpop.xlane.xlu0 %3101
        %v3103 = vsel %vm1417, %v2998, -inf
        %3104 = vmax.xlane.f32.xlu0 %v3103
        %v3105 = vpop.xlane.xlu0 %3104
        %v3106 = vsel %vm1417, %v3056, -inf
        %3107 = vmax.xlane.f32.xlu0 %v3106
        %v3108 = vpop.xlane.xlu0 %3107
        %v3109 = vsel %vm1417, %v3059, -inf
        %3110 = vmax.xlane.f32.xlu0 %v3109
        %v3111 = vpop.xlane.xlu0 %3110
        %v3112 = vsel %vm1417, %v3064, -inf
        %3113 = vmax.xlane.f32.xlu0 %v3112
        %v3114 = vpop.xlane.xlu0 %3113
        %v3115 = vsel %vm1417, %v3067, -inf
        %3116 = vmax.xlane.f32.xlu0 %v3115
        %v3117 = vpop.xlane.xlu0 %3116
        %v3118 = vsub.f32 %v2849, %v3072
        %v3119 = vsub.f32 %v2852, %v3075
        %v3120 = vsub.f32 %v2857, %v3078
        %v3121 = vsub.f32 %v2860, %v3081
        %v3122 = vsub.f32 %v2918, %v3084
        %v3123 = vsub.f32 %v2921, %v3087
        %v3124 = vsub.f32 %v2926, %v3090
        %v3125 = vsub.f32 %v2929, %v3093
        %v3126 = vsub.f32 %v2987, %v3096
        %v3127 = vsub.f32 %v2990, %v3099
        %v3128 = vsub.f32 %v2995, %v3102
        %v3129 = vsub.f32 %v2998, %v3105
        %v3130 = vsub.f32 %v3056, %v3108
        %v3131 = vsub.f32 %v3059, %v3111
        %v3132 = vsub.f32 %v3064, %v3114
        %v3133 = vsub.f32 %v3067, %v3117
        %v3134 = vmul.f32 %v3118, 1.442695
        %v3135 = vpow.pop %v3134
        %v3136 = vmul.f32 %v3119, 1.442695
        %v3137 = vpow.pop %v3136
        %v3138 = vmul.f32 %v3120, 1.442695
        %v3139 = vpow.pop %v3138
        %v3140 = vmul.f32 %v3121, 1.442695
        %v3141 = vpow.pop %v3140
        %v3142 = vmul.f32 %v3122, 1.442695
        %v3143 = vpow.pop %v3142
        %v3144 = vmul.f32 %v3123, 1.442695
        %v3145 = vpow.pop %v3144
        %v3146 = vmul.f32 %v3124, 1.442695
        %v3147 = vpow.pop %v3146
        %v3148 = vmul.f32 %v3125, 1.442695
        %v3149 = vpow.pop %v3148
        %v3150 = vmul.f32 %v3126, 1.442695
        %v3151 = vpow.pop %v3150
        %v3152 = vmul.f32 %v3127, 1.442695
        %v3153 = vpow.pop %v3152
        %v3154 = vmul.f32 %v3128, 1.442695
        %v3155 = vpow.pop %v3154
        %v3156 = vmul.f32 %v3129, 1.442695
        %v3157 = vpow.pop %v3156
        %v3158 = vmul.f32 %v3130, 1.442695
        %v3159 = vpow.pop %v3158
        %v3160 = vmul.f32 %v3131, 1.442695
        %v3161 = vpow.pop %v3160
        %v3162 = vmul.f32 %v3132, 1.442695
        %v3163 = vpow.pop %v3162
        %v3164 = vmul.f32 %v3133, 1.442695
        %v3165 = vpow.pop %v3164
        %v3166 = vsel %vm1417, %v3135, 0.0
        %3167 = vadd.xlane.f32.xlu0 %v3166
        %v3168 = vpop.xlane.xlu0 %3167
        %v3169 = vsel %vm1417, %v3137, 0.0
        %3170 = vadd.xlane.f32.xlu0 %v3169
        %v3171 = vpop.xlane.xlu0 %3170
        %v3172 = vsel %vm1417, %v3139, 0.0
        %3173 = vadd.xlane.f32.xlu0 %v3172
        %v3174 = vpop.xlane.xlu0 %3173
        %v3175 = vsel %vm1417, %v3141, 0.0
        %3176 = vadd.xlane.f32.xlu0 %v3175
        %v3177 = vpop.xlane.xlu0 %3176
        %v3178 = vsel %vm1417, %v3143, 0.0
        %3179 = vadd.xlane.f32.xlu0 %v3178
        %v3180 = vpop.xlane.xlu0 %3179
        %v3181 = vsel %vm1417, %v3145, 0.0
        %3182 = vadd.xlane.f32.xlu0 %v3181
        %v3183 = vpop.xlane.xlu0 %3182
        %v3184 = vsel %vm1417, %v3147, 0.0
        %3185 = vadd.xlane.f32.xlu0 %v3184
        %v3186 = vpop.xlane.xlu0 %3185
        %v3187 = vsel %vm1417, %v3149, 0.0
        %3188 = vadd.xlane.f32.xlu0 %v3187
        %v3189 = vpop.xlane.xlu0 %3188
        %v3190 = vsel %vm1417, %v3151, 0.0
        %3191 = vadd.xlane.f32.xlu0 %v3190
        %v3192 = vpop.xlane.xlu0 %3191
        %v3193 = vsel %vm1417, %v3153, 0.0
        %3194 = vadd.xlane.f32.xlu0 %v3193
        %v3195 = vpop.xlane.xlu0 %3194
        %v3196 = vsel %vm1417, %v3155, 0.0
        %3197 = vadd.xlane.f32.xlu0 %v3196
        %v3198 = vpop.xlane.xlu0 %3197
        %v3199 = vsel %vm1417, %v3157, 0.0
        %3200 = vadd.xlane.f32.xlu0 %v3199
        %v3201 = vpop.xlane.xlu0 %3200
        %v3202 = vsel %vm1417, %v3159, 0.0
        %3203 = vadd.xlane.f32.xlu0 %v3202
        %v3204 = vpop.xlane.xlu0 %3203
        %v3205 = vsel %vm1417, %v3161, 0.0
        %3206 = vadd.xlane.f32.xlu0 %v3205
        %v3207 = vpop.xlane.xlu0 %3206
        %v3208 = vsel %vm1417, %v3163, 0.0
        %3209 = vadd.xlane.f32.xlu0 %v3208
        %v3210 = vpop.xlane.xlu0 %3209
        %v3211 = vsel %vm1417, %v3165, 0.0
        %3212 = vadd.xlane.f32.xlu0 %v3211
        %v3213 = vpop.xlane.xlu0 %3212
        %v3214 = vrcp.pop %v3168
        %v3215 = vrcp.pop %v3171
        %v3216 = vrcp.pop %v3174
        %v3217 = vrcp.pop %v3177
        %v3218 = vrcp.pop %v3180
        %v3219 = vrcp.pop %v3183
        %v3220 = vrcp.pop %v3186
        %v3221 = vrcp.pop %v3189
        %v3222 = vrcp.pop %v3192
        %v3223 = vrcp.pop %v3195
        %v3224 = vrcp.pop %v3198
        %v3225 = vrcp.pop %v3201
        %v3226 = vrcp.pop %v3204
        %v3227 = vrcp.pop %v3207
        %v3228 = vrcp.pop %v3210
        %v3229 = vrcp.pop %v3213
        %v3230 = vmul.f32 %v3135, %v3214
        %v3231 = vmul.f32 %v3137, %v3215
        %v3232 = vmul.f32 %v3139, %v3216
        %v3233 = vmul.f32 %v3141, %v3217
        %v3234 = vmul.f32 %v3143, %v3218
        %v3235 = vmul.f32 %v3145, %v3219
        %v3236 = vmul.f32 %v3147, %v3220
        %v3237 = vmul.f32 %v3149, %v3221
        %v3238 = vmul.f32 %v3151, %v3222
        %v3239 = vmul.f32 %v3153, %v3223
        %v3240 = vmul.f32 %v3155, %v3224
        %v3241 = vmul.f32 %v3157, %v3225
        %v3242 = vmul.f32 %v3159, %v3226
        %v3243 = vmul.f32 %v3161, %v3227
        %v3244 = vmul.f32 %v3163, %v3228
        %v3245 = vmul.f32 %v3165, %v3229
        %v3246 = vpack.c.bf16 %v3231, %v3230
        %v3247 = vpack.c.bf16 %v3233, %v3232
        %v3248 = vpack.c.bf16 %v3235, %v3234
        %v3249 = vpack.c.bf16 %v3237, %v3236
        %v3250 = vpack.c.bf16 %v3239, %v3238
        %v3251 = vpack.c.bf16 %v3241, %v3240
        %v3252 = vpack.c.bf16 %v3243, %v3242
        %v3253 = vpack.c.bf16 %v3245, %v3244
        %3254 = vrot.lane.b32.xlu0 %v1409, 64
        %v3255 = vpop.permute.xlu0 %3254
        %3256 = vrot.lane.b32.xlu0 %v1410, 64
        %v3257 = vpop.permute.xlu0 %3256
        %v3261 = vsel %vm1417, %v3246, 0
        %v3264 = vsel %vm1417, %v3247, 0
        %3266 = vmatprep.subr.bf16.mxu0 0
        %3267 = vmatpush1.bf16.msra.mxu0 0
        %3268 = vmatprep.subr.bf16.mxu0 0
        %3269 = vmatpush1.bf16.msra.mxu0 0
        %3270 = vmatprep.subr.bf16.mxu0 0
        %3271 = vmatpush1.bf16.msra.mxu0 0
        %3272 = vmatprep.subr.bf16.mxu0 0
        %3273 = vmatpush1.bf16.msra.mxu0 0
        %3274 = vmatprep.subr.bf16.mxu0 0
        %3275 = vmatpush1.bf16.msra.mxu0 0
        %3276 = vmatprep.subr.bf16.mxu0 0
        %3277 = vmatpush1.bf16.msra.mxu0 0
        %3278 = vmatprep.subr.bf16.mxu0 0
        %3279 = vmatpush1.bf16.msra.mxu0 %v3257
        %3280 = vmatprep.subr.bf16.mxu0 0
        %3281 = vmatpush1.bf16.msra.mxu0 %v3255
        %3282 = vmatprep.subr.bf16.mxu0 0
        %3283 = vmatpush2.bf16.msra.mxu0 0
        %3284 = vmatprep.subr.bf16.mxu0 0
        %3285 = vmatpush2.bf16.msra.mxu0 0
        %3286 = vmatprep.subr.bf16.mxu0 0
        %3287 = vmatpush2.bf16.msra.mxu0 0
        %3288 = vmatprep.subr.bf16.mxu0 0
        %3289 = vmatpush2.bf16.msra.mxu0 0
        %3290 = vmatprep.subr.bf16.mxu0 0
        %3291 = vmatpush2.bf16.msra.mxu0 0
        %3292 = vmatprep.subr.bf16.mxu0 0
        %3293 = vmatpush2.bf16.msra.mxu0 0
        %3294 = vmatprep.subr.bf16.mxu0 0
        %3295 = vmatpush2.bf16.msra.mxu0 0
        %3296 = vmatprep.subr.bf16.mxu0 0
        %3297 = vmatpush2.bf16.msra.mxu0 0
        %3298 = vmatprep.mubr.bf16.mxu0 0
        %3299 = vmatmul.mubr.bf16.gmra.mxu0 %v3261
        %v3300 = vpop.f32.mrf.mxu0
        %v3301 = vadd.f32 0.0, %v3300
        %v3302 = vpop.f32.mrf.mxu0
        %v3303 = vpop.f32.mrf.mxu0
        %v3304 = vadd.f32 0.0, %v3303
        %v3305 = vpop.f32.mrf.mxu0
        %3306 = vmatprep.mubr.bf16.mxu0 0
        %3307 = vmatmul.mubr.bf16.gmra.mxu0 %v3264
        %v3308 = vpop.f32.mrf.mxu0
        %v3309 = vadd.f32 0.0, %v3308
        %v3310 = vpop.f32.mrf.mxu0
        %v3311 = vpop.f32.mrf.mxu0
        %v3312 = vadd.f32 0.0, %v3311
        %v3313 = vpop.f32.mrf.mxu0
        %3314 = vdwg.mxu0
        %3315 = vrot.lane.b32.xlu0 %v1411, 64
        %v3316 = vpop.permute.xlu0 %3315
        %3317 = vrot.lane.b32.xlu0 %v1412, 64
        %v3318 = vpop.permute.xlu0 %3317
        %v3322 = vsel %vm1417, %v3248, 0
        %v3325 = vsel %vm1417, %v3249, 0
        %3327 = vmatprep.subr.bf16.mxu0 0
        %3328 = vmatpush1.bf16.msra.mxu0 0
        %3329 = vmatprep.subr.bf16.mxu0 0
        %3330 = vmatpush1.bf16.msra.mxu0 0
        %3331 = vmatprep.subr.bf16.mxu0 0
        %3332 = vmatpush1.bf16.msra.mxu0 0
        %3333 = vmatprep.subr.bf16.mxu0 0
        %3334 = vmatpush1.bf16.msra.mxu0 0
        %3335 = vmatprep.subr.bf16.mxu0 0
        %3336 = vmatpush1.bf16.msra.mxu0 0
        %3337 = vmatprep.subr.bf16.mxu0 0
        %3338 = vmatpush1.bf16.msra.mxu0 0
        %3339 = vmatprep.subr.bf16.mxu0 0
        %3340 = vmatpush1.bf16.msra.mxu0 %v3318
        %3341 = vmatprep.subr.bf16.mxu0 0
        %3342 = vmatpush1.bf16.msra.mxu0 %v3316
        %3343 = vmatprep.subr.bf16.mxu0 0
        %3344 = vmatpush2.bf16.msra.mxu0 0
        %3345 = vmatprep.subr.bf16.mxu0 0
        %3346 = vmatpush2.bf16.msra.mxu0 0
        %3347 = vmatprep.subr.bf16.mxu0 0
        %3348 = vmatpush2.bf16.msra.mxu0 0
        %3349 = vmatprep.subr.bf16.mxu0 0
        %3350 = vmatpush2.bf16.msra.mxu0 0
        %3351 = vmatprep.subr.bf16.mxu0 0
        %3352 = vmatpush2.bf16.msra.mxu0 0
        %3353 = vmatprep.subr.bf16.mxu0 0
        %3354 = vmatpush2.bf16.msra.mxu0 0
        %3355 = vmatprep.subr.bf16.mxu0 0
        %3356 = vmatpush2.bf16.msra.mxu0 0
        %3357 = vmatprep.subr.bf16.mxu0 0
        %3358 = vmatpush2.bf16.msra.mxu0 0
        %3359 = vmatprep.mubr.bf16.mxu0 0
        %3360 = vmatmul.mubr.bf16.gmra.mxu0 %v3322
        %v3361 = vpop.f32.mrf.mxu0
        %v3362 = vadd.f32 0.0, %v3361
        %v3363 = vpop.f32.mrf.mxu0
        %v3364 = vpop.f32.mrf.mxu0
        %v3365 = vadd.f32 0.0, %v3364
        %v3366 = vpop.f32.mrf.mxu0
        %3367 = vmatprep.mubr.bf16.mxu0 0
        %3368 = vmatmul.mubr.bf16.gmra.mxu0 %v3325
        %v3369 = vpop.f32.mrf.mxu0
        %v3370 = vadd.f32 0.0, %v3369
        %v3371 = vpop.f32.mrf.mxu0
        %v3372 = vpop.f32.mrf.mxu0
        %v3373 = vadd.f32 0.0, %v3372
        %v3374 = vpop.f32.mrf.mxu0
        %3375 = vdwg.mxu0
        %3376 = vrot.lane.b32.xlu0 %v1413, 64
        %v3377 = vpop.permute.xlu0 %3376
        %3378 = vrot.lane.b32.xlu0 %v1414, 64
        %v3379 = vpop.permute.xlu0 %3378
        %v3383 = vsel %vm1417, %v3250, 0
        %v3386 = vsel %vm1417, %v3251, 0
        %3388 = vmatprep.subr.bf16.mxu0 0
        %3389 = vmatpush1.bf16.msra.mxu0 0
        %3390 = vmatprep.subr.bf16.mxu0 0
        %3391 = vmatpush1.bf16.msra.mxu0 0
        %3392 = vmatprep.subr.bf16.mxu0 0
        %3393 = vmatpush1.bf16.msra.mxu0 0
        %3394 = vmatprep.subr.bf16.mxu0 0
        %3395 = vmatpush1.bf16.msra.mxu0 0
        %3396 = vmatprep.subr.bf16.mxu0 0
        %3397 = vmatpush1.bf16.msra.mxu0 0
        %3398 = vmatprep.subr.bf16.mxu0 0
        %3399 = vmatpush1.bf16.msra.mxu0 0
        %3400 = vmatprep.subr.bf16.mxu0 0
        %3401 = vmatpush1.bf16.msra.mxu0 %v3379
        %3402 = vmatprep.subr.bf16.mxu0 0
        %3403 = vmatpush1.bf16.msra.mxu0 %v3377
        %3404 = vmatprep.subr.bf16.mxu0 0
        %3405 = vmatpush2.bf16.msra.mxu0 0
        %3406 = vmatprep.subr.bf16.mxu0 0
        %3407 = vmatpush2.bf16.msra.mxu0 0
        %3408 = vmatprep.subr.bf16.mxu0 0
        %3409 = vmatpush2.bf16.msra.mxu0 0
        %3410 = vmatprep.subr.bf16.mxu0 0
        %3411 = vmatpush2.bf16.msra.mxu0 0
        %3412 = vmatprep.subr.bf16.mxu0 0
        %3413 = vmatpush2.bf16.msra.mxu0 0
        %3414 = vmatprep.subr.bf16.mxu0 0
        %3415 = vmatpush2.bf16.msra.mxu0 0
        %3416 = vmatprep.subr.bf16.mxu0 0
        %3417 = vmatpush2.bf16.msra.mxu0 0
        %3418 = vmatprep.subr.bf16.mxu0 0
        %3419 = vmatpush2.bf16.msra.mxu0 0
        %3420 = vmatprep.mubr.bf16.mxu0 0
        %3421 = vmatmul.mubr.bf16.gmra.mxu0 %v3383
        %v3422 = vpop.f32.mrf.mxu0
        %v3423 = vadd.f32 0.0, %v3422
        %v3424 = vpop.f32.mrf.mxu0
        %v3425 = vpop.f32.mrf.mxu0
        %v3426 = vadd.f32 0.0, %v3425
        %v3427 = vpop.f32.mrf.mxu0
        %3428 = vmatprep.mubr.bf16.mxu0 0
        %3429 = vmatmul.mubr.bf16.gmra.mxu0 %v3386
        %v3430 = vpop.f32.mrf.mxu0
        %v3431 = vadd.f32 0.0, %v3430
        %v3432 = vpop.f32.mrf.mxu0
        %v3433 = vpop.f32.mrf.mxu0
        %v3434 = vadd.f32 0.0, %v3433
        %v3435 = vpop.f32.mrf.mxu0
        %3436 = vdwg.mxu0
        %3437 = vrot.lane.b32.xlu0 %v1415, 64
        %v3438 = vpop.permute.xlu0 %3437
        %3439 = vrot.lane.b32.xlu0 %v1416, 64
        %v3440 = vpop.permute.xlu0 %3439
        %v3444 = vsel %vm1417, %v3252, 0
        %v3447 = vsel %vm1417, %v3253, 0
        %3449 = vmatprep.subr.bf16.mxu0 0
        %3450 = vmatpush1.bf16.msra.mxu0 0
        %3451 = vmatprep.subr.bf16.mxu0 0
        %3452 = vmatpush1.bf16.msra.mxu0 0
        %3453 = vmatprep.subr.bf16.mxu0 0
        %3454 = vmatpush1.bf16.msra.mxu0 0
        %3455 = vmatprep.subr.bf16.mxu0 0
        %3456 = vmatpush1.bf16.msra.mxu0 0
        %3457 = vmatprep.subr.bf16.mxu0 0
        %3458 = vmatpush1.bf16.msra.mxu0 0
        %3459 = vmatprep.subr.bf16.mxu0 0
        %3460 = vmatpush1.bf16.msra.mxu0 0
        %3461 = vmatprep.subr.bf16.mxu0 0
        %3462 = vmatpush1.bf16.msra.mxu0 %v3440
        %3463 = vmatprep.subr.bf16.mxu0 0
        %3464 = vmatpush1.bf16.msra.mxu0 %v3438
        %3465 = vmatprep.subr.bf16.mxu0 0
        %3466 = vmatpush2.bf16.msra.mxu0 0
        %3467 = vmatprep.subr.bf16.mxu0 0
        %3468 = vmatpush2.bf16.msra.mxu0 0
        %3469 = vmatprep.subr.bf16.mxu0 0
        %3470 = vmatpush2.bf16.msra.mxu0 0
        %3471 = vmatprep.subr.bf16.mxu0 0
        %3472 = vmatpush2.bf16.msra.mxu0 0
        %3473 = vmatprep.subr.bf16.mxu0 0
        %3474 = vmatpush2.bf16.msra.mxu0 0
        %3475 = vmatprep.subr.bf16.mxu0 0
        %3476 = vmatpush2.bf16.msra.mxu0 0
        %3477 = vmatprep.subr.bf16.mxu0 0
        %3478 = vmatpush2.bf16.msra.mxu0 0
        %3479 = vmatprep.subr.bf16.mxu0 0
        %3480 = vmatpush2.bf16.msra.mxu0 0
        %3481 = vmatprep.mubr.bf16.mxu0 0
        %3482 = vmatmul.mubr.bf16.gmra.mxu0 %v3444
        %v3483 = vpop.f32.mrf.mxu0
        %v3484 = vadd.f32 0.0, %v3483
        %v3485 = vpop.f32.mrf.mxu0
        %v3486 = vpop.f32.mrf.mxu0
        %v3487 = vadd.f32 0.0, %v3486
        %v3488 = vpop.f32.mrf.mxu0
        %3489 = vmatprep.mubr.bf16.mxu0 0
        %3490 = vmatmul.mubr.bf16.gmra.mxu0 %v3447
        %v3491 = vpop.f32.mrf.mxu0
        %v3492 = vadd.f32 0.0, %v3491
        %v3493 = vpop.f32.mrf.mxu0
        %v3494 = vpop.f32.mrf.mxu0
        %v3495 = vadd.f32 0.0, %v3494
        %v3496 = vpop.f32.mrf.mxu0
        %3497 = vdwg.mxu0
        %3498 = vrot.lane.b32.xlu0 %v1393, 32
        %v3499 = vpop.permute.xlu0 %3498
        %3500 = vrot.lane.b32.xlu0 %v1394, 32
        %v3501 = vpop.permute.xlu0 %3500
        %3502 = vrot.lane.b32.xlu0 %v1401, 32
        %v3503 = vpop.permute.xlu0 %3502
        %3504 = vrot.lane.b32.xlu0 %v1402, 32
        %v3505 = vpop.permute.xlu0 %3504
        %v3507 = vsel %vm1417, %v3499, 0
        %v3510 = vsel %vm1417, %v3501, 0
        %v3513 = vsel %vm1417, %v3503, 0
        %v3516 = vsel %vm1417, %v3505, 0
        %3518 = vmatprep.subr.bf16.mxu0 0
        %3519 = vmatpush1.bf16.xpose.msra.mxu0 0
        %3520 = vmatprep.subr.bf16.mxu0 0
        %3521 = vmatpush1.bf16.xpose.msra.mxu0 0
        %3522 = vmatprep.subr.bf16.mxu0 0
        %3523 = vmatpush1.bf16.xpose.msra.mxu0 0
        %3524 = vmatprep.subr.bf16.mxu0 0
        %3525 = vmatpush1.bf16.xpose.msra.mxu0 0
        %3526 = vmatprep.subr.bf16.mxu0 0
        %3527 = vmatpush1.bf16.xpose.msra.mxu0 0
        %3528 = vmatprep.subr.bf16.mxu0 0
        %3529 = vmatpush1.bf16.xpose.msra.mxu0 0
        %3530 = vmatprep.subr.bf16.mxu0 0
        %3531 = vmatpush1.bf16.xpose.msra.mxu0 %v3516
        %3532 = vmatprep.subr.bf16.mxu0 0
        %3533 = vmatpush1.bf16.xpose.msra.mxu0 %v3513
        %3534 = vmatprep.subr.bf16.mxu0 0
        %3535 = vmatpush2.bf16.xpose.msra.mxu0 0
        %3536 = vmatprep.subr.bf16.mxu0 0
        %3537 = vmatpush2.bf16.xpose.msra.mxu0 0
        %3538 = vmatprep.subr.bf16.mxu0 0
        %3539 = vmatpush2.bf16.xpose.msra.mxu0 0
        %3540 = vmatprep.subr.bf16.mxu0 0
        %3541 = vmatpush2.bf16.xpose.msra.mxu0 0
        %3542 = vmatprep.subr.bf16.mxu0 0
        %3543 = vmatpush2.bf16.xpose.msra.mxu0 0
        %3544 = vmatprep.subr.bf16.mxu0 0
        %3545 = vmatpush2.bf16.xpose.msra.mxu0 0
        %3546 = vmatprep.subr.bf16.mxu0 0
        %3547 = vmatpush2.bf16.xpose.msra.mxu0 0
        %3548 = vmatprep.subr.bf16.mxu0 0
        %3549 = vmatpush2.bf16.xpose.msra.mxu0 0
        %3550 = vmatprep.mubr.bf16.mxu0 0
        %3551 = vmatmul.mubr.bf16.gmra.mxu0 %v3507
        %v3552 = vpop.f32.mrf.mxu0
        %v3553 = vadd.f32 0.0, %v3552
        %v3554 = vpop.f32.mrf.mxu0
        %v3555 = vpop.f32.mrf.mxu0
        %v3556 = vadd.f32 0.0, %v3555
        %v3557 = vpop.f32.mrf.mxu0
        %3558 = vmatprep.mubr.bf16.mxu0 0
        %3559 = vmatmul.mubr.bf16.gmra.mxu0 %v3510
        %v3560 = vpop.f32.mrf.mxu0
        %v3561 = vadd.f32 0.0, %v3560
        %v3562 = vpop.f32.mrf.mxu0
        %v3563 = vpop.f32.mrf.mxu0
        %v3564 = vadd.f32 0.0, %v3563
        %v3565 = vpop.f32.mrf.mxu0
        %3566 = vdwg.mxu0
        %3567 = vrot.lane.b32.xlu0 %v1395, 32
        %v3568 = vpop.permute.xlu0 %3567
        %3569 = vrot.lane.b32.xlu0 %v1396, 32
        %v3570 = vpop.permute.xlu0 %3569
        %3571 = vrot.lane.b32.xlu0 %v1403, 32
        %v3572 = vpop.permute.xlu0 %3571
        %3573 = vrot.lane.b32.xlu0 %v1404, 32
        %v3574 = vpop.permute.xlu0 %3573
        %v3576 = vsel %vm1417, %v3568, 0
        %v3579 = vsel %vm1417, %v3570, 0
        %v3582 = vsel %vm1417, %v3572, 0
        %v3585 = vsel %vm1417, %v3574, 0
        %3587 = vmatprep.subr.bf16.mxu0 0
        %3588 = vmatpush1.bf16.xpose.msra.mxu0 0
        %3589 = vmatprep.subr.bf16.mxu0 0
        %3590 = vmatpush1.bf16.xpose.msra.mxu0 0
        %3591 = vmatprep.subr.bf16.mxu0 0
        %3592 = vmatpush1.bf16.xpose.msra.mxu0 0
        %3593 = vmatprep.subr.bf16.mxu0 0
        %3594 = vmatpush1.bf16.xpose.msra.mxu0 0
        %3595 = vmatprep.subr.bf16.mxu0 0
        %3596 = vmatpush1.bf16.xpose.msra.mxu0 0
        %3597 = vmatprep.subr.bf16.mxu0 0
        %3598 = vmatpush1.bf16.xpose.msra.mxu0 0
        %3599 = vmatprep.subr.bf16.mxu0 0
        %3600 = vmatpush1.bf16.xpose.msra.mxu0 %v3585
        %3601 = vmatprep.subr.bf16.mxu0 0
        %3602 = vmatpush1.bf16.xpose.msra.mxu0 %v3582
        %3603 = vmatprep.subr.bf16.mxu0 0
        %3604 = vmatpush2.bf16.xpose.msra.mxu0 0
        %3605 = vmatprep.subr.bf16.mxu0 0
        %3606 = vmatpush2.bf16.xpose.msra.mxu0 0
        %3607 = vmatprep.subr.bf16.mxu0 0
        %3608 = vmatpush2.bf16.xpose.msra.mxu0 0
        %3609 = vmatprep.subr.bf16.mxu0 0
        %3610 = vmatpush2.bf16.xpose.msra.mxu0 0
        %3611 = vmatprep.subr.bf16.mxu0 0
        %3612 = vmatpush2.bf16.xpose.msra.mxu0 0
        %3613 = vmatprep.subr.bf16.mxu0 0
        %3614 = vmatpush2.bf16.xpose.msra.mxu0 0
        %3615 = vmatprep.subr.bf16.mxu0 0
        %3616 = vmatpush2.bf16.xpose.msra.mxu0 0
        %3617 = vmatprep.subr.bf16.mxu0 0
        %3618 = vmatpush2.bf16.xpose.msra.mxu0 0
        %3619 = vmatprep.mubr.bf16.mxu0 0
        %3620 = vmatmul.mubr.bf16.gmra.mxu0 %v3576
        %v3621 = vpop.f32.mrf.mxu0
        %v3622 = vadd.f32 0.0, %v3621
        %v3623 = vpop.f32.mrf.mxu0
        %v3624 = vpop.f32.mrf.mxu0
        %v3625 = vadd.f32 0.0, %v3624
        %v3626 = vpop.f32.mrf.mxu0
        %3627 = vmatprep.mubr.bf16.mxu0 0
        %3628 = vmatmul.mubr.bf16.gmra.mxu0 %v3579
        %v3629 = vpop.f32.mrf.mxu0
        %v3630 = vadd.f32 0.0, %v3629
        %v3631 = vpop.f32.mrf.mxu0
        %v3632 = vpop.f32.mrf.mxu0
        %v3633 = vadd.f32 0.0, %v3632
        %v3634 = vpop.f32.mrf.mxu0
        %3635 = vdwg.mxu0
        %3636 = vrot.lane.b32.xlu0 %v1397, 32
        %v3637 = vpop.permute.xlu0 %3636
        %3638 = vrot.lane.b32.xlu0 %v1398, 32
        %v3639 = vpop.permute.xlu0 %3638
        %3640 = vrot.lane.b32.xlu0 %v1405, 32
        %v3641 = vpop.permute.xlu0 %3640
        %3642 = vrot.lane.b32.xlu0 %v1406, 32
        %v3643 = vpop.permute.xlu0 %3642
        %v3645 = vsel %vm1417, %v3637, 0
        %v3648 = vsel %vm1417, %v3639, 0
        %v3651 = vsel %vm1417, %v3641, 0
        %v3654 = vsel %vm1417, %v3643, 0
        %3656 = vmatprep.subr.bf16.mxu0 0
        %3657 = vmatpush1.bf16.xpose.msra.mxu0 0
        %3658 = vmatprep.subr.bf16.mxu0 0
        %3659 = vmatpush1.bf16.xpose.msra.mxu0 0
        %3660 = vmatprep.subr.bf16.mxu0 0
        %3661 = vmatpush1.bf16.xpose.msra.mxu0 0
        %3662 = vmatprep.subr.bf16.mxu0 0
        %3663 = vmatpush1.bf16.xpose.msra.mxu0 0
        %3664 = vmatprep.subr.bf16.mxu0 0
        %3665 = vmatpush1.bf16.xpose.msra.mxu0 0
        %3666 = vmatprep.subr.bf16.mxu0 0
        %3667 = vmatpush1.bf16.xpose.msra.mxu0 0
        %3668 = vmatprep.subr.bf16.mxu0 0
        %3669 = vmatpush1.bf16.xpose.msra.mxu0 %v3654
        %3670 = vmatprep.subr.bf16.mxu0 0
        %3671 = vmatpush1.bf16.xpose.msra.mxu0 %v3651
        %3672 = vmatprep.subr.bf16.mxu0 0
        %3673 = vmatpush2.bf16.xpose.msra.mxu0 0
        %3674 = vmatprep.subr.bf16.mxu0 0
        %3675 = vmatpush2.bf16.xpose.msra.mxu0 0
        %3676 = vmatprep.subr.bf16.mxu0 0
        %3677 = vmatpush2.bf16.xpose.msra.mxu0 0
        %3678 = vmatprep.subr.bf16.mxu0 0
        %3679 = vmatpush2.bf16.xpose.msra.mxu0 0
        %3680 = vmatprep.subr.bf16.mxu0 0
        %3681 = vmatpush2.bf16.xpose.msra.mxu0 0
        %3682 = vmatprep.subr.bf16.mxu0 0
        %3683 = vmatpush2.bf16.xpose.msra.mxu0 0
        %3684 = vmatprep.subr.bf16.mxu0 0
        %3685 = vmatpush2.bf16.xpose.msra.mxu0 0
        %3686 = vmatprep.subr.bf16.mxu0 0
        %3687 = vmatpush2.bf16.xpose.msra.mxu0 0
        %3688 = vmatprep.mubr.bf16.mxu0 0
        %3689 = vmatmul.mubr.bf16.gmra.mxu0 %v3645
        %v3690 = vpop.f32.mrf.mxu0
        %v3691 = vadd.f32 0.0, %v3690
        %v3692 = vpop.f32.mrf.mxu0
        %v3693 = vpop.f32.mrf.mxu0
        %v3694 = vadd.f32 0.0, %v3693
        %v3695 = vpop.f32.mrf.mxu0
        %3696 = vmatprep.mubr.bf16.mxu0 0
        %3697 = vmatmul.mubr.bf16.gmra.mxu0 %v3648
        %v3698 = vpop.f32.mrf.mxu0
        %v3699 = vadd.f32 0.0, %v3698
        %v3700 = vpop.f32.mrf.mxu0
        %v3701 = vpop.f32.mrf.mxu0
        %v3702 = vadd.f32 0.0, %v3701
        %v3703 = vpop.f32.mrf.mxu0
        %3704 = vdwg.mxu0
        %3705 = vrot.lane.b32.xlu0 %v1399, 32
        %v3706 = vpop.permute.xlu0 %3705
        %3707 = vrot.lane.b32.xlu0 %v1400, 32
        %v3708 = vpop.permute.xlu0 %3707
        %3709 = vrot.lane.b32.xlu0 %v1407, 32
        %v3710 = vpop.permute.xlu0 %3709
        %3711 = vrot.lane.b32.xlu0 %v1408, 32
        %v3712 = vpop.permute.xlu0 %3711
        %v3714 = vsel %vm1417, %v3706, 0
        %v3717 = vsel %vm1417, %v3708, 0
        %v3720 = vsel %vm1417, %v3710, 0
        %v3723 = vsel %vm1417, %v3712, 0
        %3725 = vmatprep.subr.bf16.mxu0 0
        %3726 = vmatpush1.bf16.xpose.msra.mxu0 0
        %3727 = vmatprep.subr.bf16.mxu0 0
        %3728 = vmatpush1.bf16.xpose.msra.mxu0 0
        %3729 = vmatprep.subr.bf16.mxu0 0
        %3730 = vmatpush1.bf16.xpose.msra.mxu0 0
        %3731 = vmatprep.subr.bf16.mxu0 0
        %3732 = vmatpush1.bf16.xpose.msra.mxu0 0
        %3733 = vmatprep.subr.bf16.mxu0 0
        %3734 = vmatpush1.bf16.xpose.msra.mxu0 0
        %3735 = vmatprep.subr.bf16.mxu0 0
        %3736 = vmatpush1.bf16.xpose.msra.mxu0 0
        %3737 = vmatprep.subr.bf16.mxu0 0
        %3738 = vmatpush1.bf16.xpose.msra.mxu0 %v3723
        %3739 = vmatprep.subr.bf16.mxu0 0
        %3740 = vmatpush1.bf16.xpose.msra.mxu0 %v3720
        %3741 = vmatprep.subr.bf16.mxu0 0
        %3742 = vmatpush2.bf16.xpose.msra.mxu0 0
        %3743 = vmatprep.subr.bf16.mxu0 0
        %3744 = vmatpush2.bf16.xpose.msra.mxu0 0
        %3745 = vmatprep.subr.bf16.mxu0 0
        %3746 = vmatpush2.bf16.xpose.msra.mxu0 0
        %3747 = vmatprep.subr.bf16.mxu0 0
        %3748 = vmatpush2.bf16.xpose.msra.mxu0 0
        %3749 = vmatprep.subr.bf16.mxu0 0
        %3750 = vmatpush2.bf16.xpose.msra.mxu0 0
        %3751 = vmatprep.subr.bf16.mxu0 0
        %3752 = vmatpush2.bf16.xpose.msra.mxu0 0
        %3753 = vmatprep.subr.bf16.mxu0 0
        %3754 = vmatpush2.bf16.xpose.msra.mxu0 0
        %3755 = vmatprep.subr.bf16.mxu0 0
        %3756 = vmatpush2.bf16.xpose.msra.mxu0 0
        %3757 = vmatprep.mubr.bf16.mxu0 0
        %3758 = vmatmul.mubr.bf16.gmra.mxu0 %v3714
        %v3759 = vpop.f32.mrf.mxu0
        %v3760 = vadd.f32 0.0, %v3759
        %v3761 = vpop.f32.mrf.mxu0
        %v3762 = vpop.f32.mrf.mxu0
        %v3763 = vadd.f32 0.0, %v3762
        %v3764 = vpop.f32.mrf.mxu0
        %3765 = vmatprep.mubr.bf16.mxu0 0
        %3766 = vmatmul.mubr.bf16.gmra.mxu0 %v3717
        %v3767 = vpop.f32.mrf.mxu0
        %v3768 = vadd.f32 0.0, %v3767
        %v3769 = vpop.f32.mrf.mxu0
        %v3770 = vpop.f32.mrf.mxu0
        %v3771 = vadd.f32 0.0, %v3770
        %v3772 = vpop.f32.mrf.mxu0
        %3773 = vdwg.mxu0
        %v3774 = vsel %vm1417, %v3553, -inf
        %3775 = vmax.xlane.f32.xlu0 %v3774
        %v3776 = vpop.xlane.xlu0 %3775
        %v3777 = vsel %vm1417, %v3556, -inf
        %3778 = vmax.xlane.f32.xlu0 %v3777
        %v3779 = vpop.xlane.xlu0 %3778
        %v3780 = vsel %vm1417, %v3561, -inf
        %3781 = vmax.xlane.f32.xlu0 %v3780
        %v3782 = vpop.xlane.xlu0 %3781
        %v3783 = vsel %vm1417, %v3564, -inf
        %3784 = vmax.xlane.f32.xlu0 %v3783
        %v3785 = vpop.xlane.xlu0 %3784
        %v3786 = vsel %vm1417, %v3622, -inf
        %3787 = vmax.xlane.f32.xlu0 %v3786
        %v3788 = vpop.xlane.xlu0 %3787
        %v3789 = vsel %vm1417, %v3625, -inf
        %3790 = vmax.xlane.f32.xlu0 %v3789
        %v3791 = vpop.xlane.xlu0 %3790
        %v3792 = vsel %vm1417, %v3630, -inf
        %3793 = vmax.xlane.f32.xlu0 %v3792
        %v3794 = vpop.xlane.xlu0 %3793
        %v3795 = vsel %vm1417, %v3633, -inf
        %3796 = vmax.xlane.f32.xlu0 %v3795
        %v3797 = vpop.xlane.xlu0 %3796
        %v3798 = vsel %vm1417, %v3691, -inf
        %3799 = vmax.xlane.f32.xlu0 %v3798
        %v3800 = vpop.xlane.xlu0 %3799
        %v3801 = vsel %vm1417, %v3694, -inf
        %3802 = vmax.xlane.f32.xlu0 %v3801
        %v3803 = vpop.xlane.xlu0 %3802
        %v3804 = vsel %vm1417, %v3699, -inf
        %3805 = vmax.xlane.f32.xlu0 %v3804
        %v3806 = vpop.xlane.xlu0 %3805
        %v3807 = vsel %vm1417, %v3702, -inf
        %3808 = vmax.xlane.f32.xlu0 %v3807
        %v3809 = vpop.xlane.xlu0 %3808
        %v3810 = vsel %vm1417, %v3760, -inf
        %3811 = vmax.xlane.f32.xlu0 %v3810
        %v3812 = vpop.xlane.xlu0 %3811
        %v3813 = vsel %vm1417, %v3763, -inf
        %3814 = vmax.xlane.f32.xlu0 %v3813
        %v3815 = vpop.xlane.xlu0 %3814
        %v3816 = vsel %vm1417, %v3768, -inf
        %3817 = vmax.xlane.f32.xlu0 %v3816
        %v3818 = vpop.xlane.xlu0 %3817
        %v3819 = vsel %vm1417, %v3771, -inf
        %3820 = vmax.xlane.f32.xlu0 %v3819
        %v3821 = vpop.xlane.xlu0 %3820
        %v3822 = vsub.f32 %v3553, %v3776
        %v3823 = vsub.f32 %v3556, %v3779
        %v3824 = vsub.f32 %v3561, %v3782
        %v3825 = vsub.f32 %v3564, %v3785
        %v3826 = vsub.f32 %v3622, %v3788
        %v3827 = vsub.f32 %v3625, %v3791
        %v3828 = vsub.f32 %v3630, %v3794
        %v3829 = vsub.f32 %v3633, %v3797
        %v3830 = vsub.f32 %v3691, %v3800
        %v3831 = vsub.f32 %v3694, %v3803
        %v3832 = vsub.f32 %v3699, %v3806
        %v3833 = vsub.f32 %v3702, %v3809
        %v3834 = vsub.f32 %v3760, %v3812
        %v3835 = vsub.f32 %v3763, %v3815
        %v3836 = vsub.f32 %v3768, %v3818
        %v3837 = vsub.f32 %v3771, %v3821
        %v3838 = vmul.f32 %v3822, 1.442695
        %v3839 = vpow.pop %v3838
        %v3840 = vmul.f32 %v3823, 1.442695
        %v3841 = vpow.pop %v3840
        %v3842 = vmul.f32 %v3824, 1.442695
        %v3843 = vpow.pop %v3842
        %v3844 = vmul.f32 %v3825, 1.442695
        %v3845 = vpow.pop %v3844
        %v3846 = vmul.f32 %v3826, 1.442695
        %v3847 = vpow.pop %v3846
        %v3848 = vmul.f32 %v3827, 1.442695
        %v3849 = vpow.pop %v3848
        %v3850 = vmul.f32 %v3828, 1.442695
        %v3851 = vpow.pop %v3850
        %v3852 = vmul.f32 %v3829, 1.442695
        %v3853 = vpow.pop %v3852
        %v3854 = vmul.f32 %v3830, 1.442695
        %v3855 = vpow.pop %v3854
        %v3856 = vmul.f32 %v3831, 1.442695
        %v3857 = vpow.pop %v3856
        %v3858 = vmul.f32 %v3832, 1.442695
        %v3859 = vpow.pop %v3858
        %v3860 = vmul.f32 %v3833, 1.442695
        %v3861 = vpow.pop %v3860
        %v3862 = vmul.f32 %v3834, 1.442695
        %v3863 = vpow.pop %v3862
        %v3864 = vmul.f32 %v3835, 1.442695
        %v3865 = vpow.pop %v3864
        %v3866 = vmul.f32 %v3836, 1.442695
        %v3867 = vpow.pop %v3866
        %v3868 = vmul.f32 %v3837, 1.442695
        %v3869 = vpow.pop %v3868
        %v3870 = vsel %vm1417, %v3839, 0.0
        %3871 = vadd.xlane.f32.xlu0 %v3870
        %v3872 = vpop.xlane.xlu0 %3871
        %v3873 = vsel %vm1417, %v3841, 0.0
        %3874 = vadd.xlane.f32.xlu0 %v3873
        %v3875 = vpop.xlane.xlu0 %3874
        %v3876 = vsel %vm1417, %v3843, 0.0
        %3877 = vadd.xlane.f32.xlu0 %v3876
        %v3878 = vpop.xlane.xlu0 %3877
        %v3879 = vsel %vm1417, %v3845, 0.0
        %3880 = vadd.xlane.f32.xlu0 %v3879
        %v3881 = vpop.xlane.xlu0 %3880
        %v3882 = vsel %vm1417, %v3847, 0.0
        %3883 = vadd.xlane.f32.xlu0 %v3882
        %v3884 = vpop.xlane.xlu0 %3883
        %v3885 = vsel %vm1417, %v3849, 0.0
        %3886 = vadd.xlane.f32.xlu0 %v3885
        %v3887 = vpop.xlane.xlu0 %3886
        %v3888 = vsel %vm1417, %v3851, 0.0
        %3889 = vadd.xlane.f32.xlu0 %v3888
        %v3890 = vpop.xlane.xlu0 %3889
        %v3891 = vsel %vm1417, %v3853, 0.0
        %3892 = vadd.xlane.f32.xlu0 %v3891
        %v3893 = vpop.xlane.xlu0 %3892
        %v3894 = vsel %vm1417, %v3855, 0.0
        %3895 = vadd.xlane.f32.xlu0 %v3894
        %v3896 = vpop.xlane.xlu0 %3895
        %v3897 = vsel %vm1417, %v3857, 0.0
        %3898 = vadd.xlane.f32.xlu0 %v3897
        %v3899 = vpop.xlane.xlu0 %3898
        %v3900 = vsel %vm1417, %v3859, 0.0
        %3901 = vadd.xlane.f32.xlu0 %v3900
        %v3902 = vpop.xlane.xlu0 %3901
        %v3903 = vsel %vm1417, %v3861, 0.0
        %3904 = vadd.xlane.f32.xlu0 %v3903
        %v3905 = vpop.xlane.xlu0 %3904
        %v3906 = vsel %vm1417, %v3863, 0.0
        %3907 = vadd.xlane.f32.xlu0 %v3906
        %v3908 = vpop.xlane.xlu0 %3907
        %v3909 = vsel %vm1417, %v3865, 0.0
        %3910 = vadd.xlane.f32.xlu0 %v3909
        %v3911 = vpop.xlane.xlu0 %3910
        %v3912 = vsel %vm1417, %v3867, 0.0
        %3913 = vadd.xlane.f32.xlu0 %v3912
        %v3914 = vpop.xlane.xlu0 %3913
        %v3915 = vsel %vm1417, %v3869, 0.0
        %3916 = vadd.xlane.f32.xlu0 %v3915
        %v3917 = vpop.xlane.xlu0 %3916
        %v3918 = vrcp.pop %v3872
        %v3919 = vrcp.pop %v3875
        %v3920 = vrcp.pop %v3878
        %v3921 = vrcp.pop %v3881
        %v3922 = vrcp.pop %v3884
        %v3923 = vrcp.pop %v3887
        %v3924 = vrcp.pop %v3890
        %v3925 = vrcp.pop %v3893
        %v3926 = vrcp.pop %v3896
        %v3927 = vrcp.pop %v3899
        %v3928 = vrcp.pop %v3902
        %v3929 = vrcp.pop %v3905
        %v3930 = vrcp.pop %v3908
        %v3931 = vrcp.pop %v3911
        %v3932 = vrcp.pop %v3914
        %v3933 = vrcp.pop %v3917
        %v3934 = vmul.f32 %v3839, %v3918
        %v3935 = vmul.f32 %v3841, %v3919
        %v3936 = vmul.f32 %v3843, %v3920
        %v3937 = vmul.f32 %v3845, %v3921
        %v3938 = vmul.f32 %v3847, %v3922
        %v3939 = vmul.f32 %v3849, %v3923
        %v3940 = vmul.f32 %v3851, %v3924
        %v3941 = vmul.f32 %v3853, %v3925
        %v3942 = vmul.f32 %v3855, %v3926
        %v3943 = vmul.f32 %v3857, %v3927
        %v3944 = vmul.f32 %v3859, %v3928
        %v3945 = vmul.f32 %v3861, %v3929
        %v3946 = vmul.f32 %v3863, %v3930
        %v3947 = vmul.f32 %v3865, %v3931
        %v3948 = vmul.f32 %v3867, %v3932
        %v3949 = vmul.f32 %v3869, %v3933
        %v3950 = vpack.c.bf16 %v3935, %v3934
        %v3951 = vpack.c.bf16 %v3937, %v3936
        %v3952 = vpack.c.bf16 %v3939, %v3938
        %v3953 = vpack.c.bf16 %v3941, %v3940
        %v3954 = vpack.c.bf16 %v3943, %v3942
        %v3955 = vpack.c.bf16 %v3945, %v3944
        %v3956 = vpack.c.bf16 %v3947, %v3946
        %v3957 = vpack.c.bf16 %v3949, %v3948
        %3958 = vrot.lane.b32.xlu0 %v1409, 32
        %v3959 = vpop.permute.xlu0 %3958
        %3960 = vrot.lane.b32.xlu0 %v1410, 32
        %v3961 = vpop.permute.xlu0 %3960
        %v3965 = vsel %vm1417, %v3950, 0
        %v3968 = vsel %vm1417, %v3951, 0
        %3970 = vmatprep.subr.bf16.mxu0 0
        %3971 = vmatpush1.bf16.msra.mxu0 0
        %3972 = vmatprep.subr.bf16.mxu0 0
        %3973 = vmatpush1.bf16.msra.mxu0 0
        %3974 = vmatprep.subr.bf16.mxu0 0
        %3975 = vmatpush1.bf16.msra.mxu0 0
        %3976 = vmatprep.subr.bf16.mxu0 0
        %3977 = vmatpush1.bf16.msra.mxu0 0
        %3978 = vmatprep.subr.bf16.mxu0 0
        %3979 = vmatpush1.bf16.msra.mxu0 0
        %3980 = vmatprep.subr.bf16.mxu0 0
        %3981 = vmatpush1.bf16.msra.mxu0 0
        %3982 = vmatprep.subr.bf16.mxu0 0
        %3983 = vmatpush1.bf16.msra.mxu0 %v3961
        %3984 = vmatprep.subr.bf16.mxu0 0
        %3985 = vmatpush1.bf16.msra.mxu0 %v3959
        %3986 = vmatprep.subr.bf16.mxu0 0
        %3987 = vmatpush2.bf16.msra.mxu0 0
        %3988 = vmatprep.subr.bf16.mxu0 0
        %3989 = vmatpush2.bf16.msra.mxu0 0
        %3990 = vmatprep.subr.bf16.mxu0 0
        %3991 = vmatpush2.bf16.msra.mxu0 0
        %3992 = vmatprep.subr.bf16.mxu0 0
        %3993 = vmatpush2.bf16.msra.mxu0 0
        %3994 = vmatprep.subr.bf16.mxu0 0
        %3995 = vmatpush2.bf16.msra.mxu0 0
        %3996 = vmatprep.subr.bf16.mxu0 0
        %3997 = vmatpush2.bf16.msra.mxu0 0
        %3998 = vmatprep.subr.bf16.mxu0 0
        %3999 = vmatpush2.bf16.msra.mxu0 0
        %4000 = vmatprep.subr.bf16.mxu0 0
        %4001 = vmatpush2.bf16.msra.mxu0 0
        %4002 = vmatprep.mubr.bf16.mxu0 0
        %4003 = vmatmul.mubr.bf16.gmra.mxu0 %v3965
        %v4004 = vpop.f32.mrf.mxu0
        %v4005 = vadd.f32 0.0, %v4004
        %v4006 = vpop.f32.mrf.mxu0
        %v4007 = vpop.f32.mrf.mxu0
        %v4008 = vadd.f32 0.0, %v4007
        %v4009 = vpop.f32.mrf.mxu0
        %4010 = vmatprep.mubr.bf16.mxu0 0
        %4011 = vmatmul.mubr.bf16.gmra.mxu0 %v3968
        %v4012 = vpop.f32.mrf.mxu0
        %v4013 = vadd.f32 0.0, %v4012
        %v4014 = vpop.f32.mrf.mxu0
        %v4015 = vpop.f32.mrf.mxu0
        %v4016 = vadd.f32 0.0, %v4015
        %v4017 = vpop.f32.mrf.mxu0
        %4018 = vdwg.mxu0
        %4019 = vrot.lane.b32.xlu0 %v1411, 32
        %v4020 = vpop.permute.xlu0 %4019
        %4021 = vrot.lane.b32.xlu0 %v1412, 32
        %v4022 = vpop.permute.xlu0 %4021
        %v4026 = vsel %vm1417, %v3952, 0
        %v4029 = vsel %vm1417, %v3953, 0
        %4031 = vmatprep.subr.bf16.mxu0 0
        %4032 = vmatpush1.bf16.msra.mxu0 0
        %4033 = vmatprep.subr.bf16.mxu0 0
        %4034 = vmatpush1.bf16.msra.mxu0 0
        %4035 = vmatprep.subr.bf16.mxu0 0
        %4036 = vmatpush1.bf16.msra.mxu0 0
        %4037 = vmatprep.subr.bf16.mxu0 0
        %4038 = vmatpush1.bf16.msra.mxu0 0
        %4039 = vmatprep.subr.bf16.mxu0 0
        %4040 = vmatpush1.bf16.msra.mxu0 0
        %4041 = vmatprep.subr.bf16.mxu0 0
        %4042 = vmatpush1.bf16.msra.mxu0 0
        %4043 = vmatprep.subr.bf16.mxu0 0
        %4044 = vmatpush1.bf16.msra.mxu0 %v4022
        %4045 = vmatprep.subr.bf16.mxu0 0
        %4046 = vmatpush1.bf16.msra.mxu0 %v4020
        %4047 = vmatprep.subr.bf16.mxu0 0
        %4048 = vmatpush2.bf16.msra.mxu0 0
        %4049 = vmatprep.subr.bf16.mxu0 0
        %4050 = vmatpush2.bf16.msra.mxu0 0
        %4051 = vmatprep.subr.bf16.mxu0 0
        %4052 = vmatpush2.bf16.msra.mxu0 0
        %4053 = vmatprep.subr.bf16.mxu0 0
        %4054 = vmatpush2.bf16.msra.mxu0 0
        %4055 = vmatprep.subr.bf16.mxu0 0
        %4056 = vmatpush2.bf16.msra.mxu0 0
        %4057 = vmatprep.subr.bf16.mxu0 0
        %4058 = vmatpush2.bf16.msra.mxu0 0
        %4059 = vmatprep.subr.bf16.mxu0 0
        %4060 = vmatpush2.bf16.msra.mxu0 0
        %4061 = vmatprep.subr.bf16.mxu0 0
        %4062 = vmatpush2.bf16.msra.mxu0 0
        %4063 = vmatprep.mubr.bf16.mxu0 0
        %4064 = vmatmul.mubr.bf16.gmra.mxu0 %v4026
        %v4065 = vpop.f32.mrf.mxu0
        %v4066 = vadd.f32 0.0, %v4065
        %v4067 = vpop.f32.mrf.mxu0
        %v4068 = vpop.f32.mrf.mxu0
        %v4069 = vadd.f32 0.0, %v4068
        %v4070 = vpop.f32.mrf.mxu0
        %4071 = vmatprep.mubr.bf16.mxu0 0
        %4072 = vmatmul.mubr.bf16.gmra.mxu0 %v4029
        %v4073 = vpop.f32.mrf.mxu0
        %v4074 = vadd.f32 0.0, %v4073
        %v4075 = vpop.f32.mrf.mxu0
        %v4076 = vpop.f32.mrf.mxu0
        %v4077 = vadd.f32 0.0, %v4076
        %v4078 = vpop.f32.mrf.mxu0
        %4079 = vdwg.mxu0
        %4080 = vrot.lane.b32.xlu0 %v1413, 32
        %v4081 = vpop.permute.xlu0 %4080
        %4082 = vrot.lane.b32.xlu0 %v1414, 32
        %v4083 = vpop.permute.xlu0 %4082
        %v4087 = vsel %vm1417, %v3954, 0
        %v4090 = vsel %vm1417, %v3955, 0
        %4092 = vmatprep.subr.bf16.mxu0 0
        %4093 = vmatpush1.bf16.msra.mxu0 0
        %4094 = vmatprep.subr.bf16.mxu0 0
        %4095 = vmatpush1.bf16.msra.mxu0 0
        %4096 = vmatprep.subr.bf16.mxu0 0
        %4097 = vmatpush1.bf16.msra.mxu0 0
        %4098 = vmatprep.subr.bf16.mxu0 0
        %4099 = vmatpush1.bf16.msra.mxu0 0
        %4100 = vmatprep.subr.bf16.mxu0 0
        %4101 = vmatpush1.bf16.msra.mxu0 0
        %4102 = vmatprep.subr.bf16.mxu0 0
        %4103 = vmatpush1.bf16.msra.mxu0 0
        %4104 = vmatprep.subr.bf16.mxu0 0
        %4105 = vmatpush1.bf16.msra.mxu0 %v4083
        %4106 = vmatprep.subr.bf16.mxu0 0
        %4107 = vmatpush1.bf16.msra.mxu0 %v4081
        %4108 = vmatprep.subr.bf16.mxu0 0
        %4109 = vmatpush2.bf16.msra.mxu0 0
        %4110 = vmatprep.subr.bf16.mxu0 0
        %4111 = vmatpush2.bf16.msra.mxu0 0
        %4112 = vmatprep.subr.bf16.mxu0 0
        %4113 = vmatpush2.bf16.msra.mxu0 0
        %4114 = vmatprep.subr.bf16.mxu0 0
        %4115 = vmatpush2.bf16.msra.mxu0 0
        %4116 = vmatprep.subr.bf16.mxu0 0
        %4117 = vmatpush2.bf16.msra.mxu0 0
        %4118 = vmatprep.subr.bf16.mxu0 0
        %4119 = vmatpush2.bf16.msra.mxu0 0
        %4120 = vmatprep.subr.bf16.mxu0 0
        %4121 = vmatpush2.bf16.msra.mxu0 0
        %4122 = vmatprep.subr.bf16.mxu0 0
        %4123 = vmatpush2.bf16.msra.mxu0 0
        %4124 = vmatprep.mubr.bf16.mxu0 0
        %4125 = vmatmul.mubr.bf16.gmra.mxu0 %v4087
        %v4126 = vpop.f32.mrf.mxu0
        %v4127 = vadd.f32 0.0, %v4126
        %v4128 = vpop.f32.mrf.mxu0
        %v4129 = vpop.f32.mrf.mxu0
        %v4130 = vadd.f32 0.0, %v4129
        %v4131 = vpop.f32.mrf.mxu0
        %4132 = vmatprep.mubr.bf16.mxu0 0
        %4133 = vmatmul.mubr.bf16.gmra.mxu0 %v4090
        %v4134 = vpop.f32.mrf.mxu0
        %v4135 = vadd.f32 0.0, %v4134
        %v4136 = vpop.f32.mrf.mxu0
        %v4137 = vpop.f32.mrf.mxu0
        %v4138 = vadd.f32 0.0, %v4137
        %v4139 = vpop.f32.mrf.mxu0
        %4140 = vdwg.mxu0
        %4141 = vrot.lane.b32.xlu0 %v1415, 32
        %v4142 = vpop.permute.xlu0 %4141
        %4143 = vrot.lane.b32.xlu0 %v1416, 32
        %v4144 = vpop.permute.xlu0 %4143
        %v4148 = vsel %vm1417, %v3956, 0
        %v4151 = vsel %vm1417, %v3957, 0
        %4153 = vmatprep.subr.bf16.mxu0 0
        %4154 = vmatpush1.bf16.msra.mxu0 0
        %4155 = vmatprep.subr.bf16.mxu0 0
        %4156 = vmatpush1.bf16.msra.mxu0 0
        %4157 = vmatprep.subr.bf16.mxu0 0
        %4158 = vmatpush1.bf16.msra.mxu0 0
        %4159 = vmatprep.subr.bf16.mxu0 0
        %4160 = vmatpush1.bf16.msra.mxu0 0
        %4161 = vmatprep.subr.bf16.mxu0 0
        %4162 = vmatpush1.bf16.msra.mxu0 0
        %4163 = vmatprep.subr.bf16.mxu0 0
        %4164 = vmatpush1.bf16.msra.mxu0 0
        %4165 = vmatprep.subr.bf16.mxu0 0
        %4166 = vmatpush1.bf16.msra.mxu0 %v4144
        %4167 = vmatprep.subr.bf16.mxu0 0
        %4168 = vmatpush1.bf16.msra.mxu0 %v4142
        %4169 = vmatprep.subr.bf16.mxu0 0
        %4170 = vmatpush2.bf16.msra.mxu0 0
        %4171 = vmatprep.subr.bf16.mxu0 0
        %4172 = vmatpush2.bf16.msra.mxu0 0
        %4173 = vmatprep.subr.bf16.mxu0 0
        %4174 = vmatpush2.bf16.msra.mxu0 0
        %4175 = vmatprep.subr.bf16.mxu0 0
        %4176 = vmatpush2.bf16.msra.mxu0 0
        %4177 = vmatprep.subr.bf16.mxu0 0
        %4178 = vmatpush2.bf16.msra.mxu0 0
        %4179 = vmatprep.subr.bf16.mxu0 0
        %4180 = vmatpush2.bf16.msra.mxu0 0
        %4181 = vmatprep.subr.bf16.mxu0 0
        %4182 = vmatpush2.bf16.msra.mxu0 0
        %4183 = vmatprep.subr.bf16.mxu0 0
        %4184 = vmatpush2.bf16.msra.mxu0 0
        %4185 = vmatprep.mubr.bf16.mxu0 0
        %4186 = vmatmul.mubr.bf16.gmra.mxu0 %v4148
        %v4187 = vpop.f32.mrf.mxu0
        %v4188 = vadd.f32 0.0, %v4187
        %v4189 = vpop.f32.mrf.mxu0
        %v4190 = vpop.f32.mrf.mxu0
        %v4191 = vadd.f32 0.0, %v4190
        %v4192 = vpop.f32.mrf.mxu0
        %4193 = vmatprep.mubr.bf16.mxu0 0
        %4194 = vmatmul.mubr.bf16.gmra.mxu0 %v4151
        %v4195 = vpop.f32.mrf.mxu0
        %v4196 = vadd.f32 0.0, %v4195
        %v4197 = vpop.f32.mrf.mxu0
        %v4198 = vpop.f32.mrf.mxu0
        %v4199 = vadd.f32 0.0, %v4198
        %v4200 = vpop.f32.mrf.mxu0
        %4201 = vdwg.mxu0
        %4218 = vrot.lane.b32.xlu0 %v2591, 32
        %v4219 = vpop.permute.xlu0 %4218
        %4220 = vrot.lane.b32.xlu0 %v2594, 32
        %v4221 = vpop.permute.xlu0 %4220
        %4222 = vrot.lane.b32.xlu0 %v2599, 32
        %v4223 = vpop.permute.xlu0 %4222
        %4224 = vrot.lane.b32.xlu0 %v2602, 32
        %v4225 = vpop.permute.xlu0 %4224
        %4226 = vrot.lane.b32.xlu0 %v2654, 32
        %v4227 = vpop.permute.xlu0 %4226
        %4228 = vrot.lane.b32.xlu0 %v2657, 32
        %v4229 = vpop.permute.xlu0 %4228
        %4230 = vrot.lane.b32.xlu0 %v2662, 32
        %v4231 = vpop.permute.xlu0 %4230
        %4232 = vrot.lane.b32.xlu0 %v2665, 32
        %v4233 = vpop.permute.xlu0 %4232
        %4234 = vrot.lane.b32.xlu0 %v2717, 32
        %v4235 = vpop.permute.xlu0 %4234
        %4236 = vrot.lane.b32.xlu0 %v2720, 32
        %v4237 = vpop.permute.xlu0 %4236
        %4238 = vrot.lane.b32.xlu0 %v2725, 32
        %v4239 = vpop.permute.xlu0 %4238
        %4240 = vrot.lane.b32.xlu0 %v2728, 32
        %v4241 = vpop.permute.xlu0 %4240
        %4242 = vrot.lane.b32.xlu0 %v2780, 32
        %v4243 = vpop.permute.xlu0 %4242
        %4244 = vrot.lane.b32.xlu0 %v2783, 32
        %v4245 = vpop.permute.xlu0 %4244
        %4246 = vrot.lane.b32.xlu0 %v2788, 32
        %v4247 = vpop.permute.xlu0 %4246
        %4248 = vrot.lane.b32.xlu0 %v2791, 32
        %v4249 = vpop.permute.xlu0 %4248
        %4282 = vrot.lane.b32.xlu0 %v3301, 64
        %v4283 = vpop.permute.xlu0 %4282
        %4284 = vrot.lane.b32.xlu0 %v3304, 64
        %v4285 = vpop.permute.xlu0 %4284
        %4286 = vrot.lane.b32.xlu0 %v3309, 64
        %v4287 = vpop.permute.xlu0 %4286
        %4288 = vrot.lane.b32.xlu0 %v3312, 64
        %v4289 = vpop.permute.xlu0 %4288
        %4290 = vrot.lane.b32.xlu0 %v3362, 64
        %v4291 = vpop.permute.xlu0 %4290
        %4292 = vrot.lane.b32.xlu0 %v3365, 64
        %v4293 = vpop.permute.xlu0 %4292
        %4294 = vrot.lane.b32.xlu0 %v3370, 64
        %v4295 = vpop.permute.xlu0 %4294
        %4296 = vrot.lane.b32.xlu0 %v3373, 64
        %v4297 = vpop.permute.xlu0 %4296
        %4298 = vrot.lane.b32.xlu0 %v3423, 64
        %v4299 = vpop.permute.xlu0 %4298
        %4300 = vrot.lane.b32.xlu0 %v3426, 64
        %v4301 = vpop.permute.xlu0 %4300
        %4302 = vrot.lane.b32.xlu0 %v3431, 64
        %v4303 = vpop.permute.xlu0 %4302
        %4304 = vrot.lane.b32.xlu0 %v3434, 64
        %v4305 = vpop.permute.xlu0 %4304
        %4306 = vrot.lane.b32.xlu0 %v3484, 64
        %v4307 = vpop.permute.xlu0 %4306
        %4308 = vrot.lane.b32.xlu0 %v3487, 64
        %v4309 = vpop.permute.xlu0 %4308
        %4310 = vrot.lane.b32.xlu0 %v3492, 64
        %v4311 = vpop.permute.xlu0 %4310
        %4312 = vrot.lane.b32.xlu0 %v3495, 64
        %v4313 = vpop.permute.xlu0 %4312
        %4346 = vrot.lane.b32.xlu0 %v4005, 96
        %v4347 = vpop.permute.xlu0 %4346
        %4348 = vrot.lane.b32.xlu0 %v4008, 96
        %v4349 = vpop.permute.xlu0 %4348
        %4350 = vrot.lane.b32.xlu0 %v4013, 96
        %v4351 = vpop.permute.xlu0 %4350
        %4352 = vrot.lane.b32.xlu0 %v4016, 96
        %v4353 = vpop.permute.xlu0 %4352
        %4354 = vrot.lane.b32.xlu0 %v4066, 96
        %v4355 = vpop.permute.xlu0 %4354
        %4356 = vrot.lane.b32.xlu0 %v4069, 96
        %v4357 = vpop.permute.xlu0 %4356
        %4358 = vrot.lane.b32.xlu0 %v4074, 96
        %v4359 = vpop.permute.xlu0 %4358
        %4360 = vrot.lane.b32.xlu0 %v4077, 96
        %v4361 = vpop.permute.xlu0 %4360
        %4362 = vrot.lane.b32.xlu0 %v4127, 96
        %v4363 = vpop.permute.xlu0 %4362
        %4364 = vrot.lane.b32.xlu0 %v4130, 96
        %v4365 = vpop.permute.xlu0 %4364
        %4366 = vrot.lane.b32.xlu0 %v4135, 96
        %v4367 = vpop.permute.xlu0 %4366
        %4368 = vrot.lane.b32.xlu0 %v4138, 96
        %v4369 = vpop.permute.xlu0 %4368
        %4370 = vrot.lane.b32.xlu0 %v4188, 96
        %v4371 = vpop.permute.xlu0 %4370
        %4372 = vrot.lane.b32.xlu0 %v4191, 96
        %v4373 = vpop.permute.xlu0 %4372
        %4374 = vrot.lane.b32.xlu0 %v4196, 96
        %v4375 = vpop.permute.xlu0 %4374
        %4376 = vrot.lane.b32.xlu0 %v4199, 96
        %v4377 = vpop.permute.xlu0 %4376
        %v4394 = vsel %vm1417, %v1887, %v4219
        %v4395 = vsel %vm1417, %v1890, %v4221
        %v4396 = vsel %vm1417, %v1895, %v4223
        %v4397 = vsel %vm1417, %v1898, %v4225
        %v4398 = vsel %vm1417, %v1942, %v4227
        %v4399 = vsel %vm1417, %v1945, %v4229
        %v4400 = vsel %vm1417, %v1950, %v4231
        %v4401 = vsel %vm1417, %v1953, %v4233
        %v4402 = vsel %vm1417, %v1997, %v4235
        %v4403 = vsel %vm1417, %v2000, %v4237
        %v4404 = vsel %vm1417, %v2005, %v4239
        %v4405 = vsel %vm1417, %v2008, %v4241
        %v4406 = vsel %vm1417, %v2052, %v4243
        %v4407 = vsel %vm1417, %v2055, %v4245
        %v4408 = vsel %vm1417, %v2060, %v4247
        %v4409 = vsel %vm1417, %v2063, %v4249
        %vm4410 = vcmask 523264
        %v4411 = vsel %vm4410, %v4394, %v4283
        %v4412 = vsel %vm4410, %v4395, %v4285
        %v4413 = vsel %vm4410, %v4396, %v4287
        %v4414 = vsel %vm4410, %v4397, %v4289
        %v4415 = vsel %vm4410, %v4398, %v4291
        %v4416 = vsel %vm4410, %v4399, %v4293
        %v4417 = vsel %vm4410, %v4400, %v4295
        %v4418 = vsel %vm4410, %v4401, %v4297
        %v4419 = vsel %vm4410, %v4402, %v4299
        %v4420 = vsel %vm4410, %v4403, %v4301
        %v4421 = vsel %vm4410, %v4404, %v4303
        %v4422 = vsel %vm4410, %v4405, %v4305
        %v4423 = vsel %vm4410, %v4406, %v4307
        %v4424 = vsel %vm4410, %v4407, %v4309
        %v4425 = vsel %vm4410, %v4408, %v4311
        %v4426 = vsel %vm4410, %v4409, %v4313
        %vm4427 = vcmask 785408
        %v4428 = vsel %vm4427, %v4411, %v4347
        %v4429 = vsel %vm4427, %v4412, %v4349
        %v4430 = vsel %vm4427, %v4413, %v4351
        %v4431 = vsel %vm4427, %v4414, %v4353
        %v4432 = vsel %vm4427, %v4415, %v4355
        %v4433 = vsel %vm4427, %v4416, %v4357
        %v4434 = vsel %vm4427, %v4417, %v4359
        %v4435 = vsel %vm4427, %v4418, %v4361
        %v4436 = vsel %vm4427, %v4419, %v4363
        %v4437 = vsel %vm4427, %v4420, %v4365
        %v4438 = vsel %vm4427, %v4421, %v4367
        %v4439 = vsel %vm4427, %v4422, %v4369
        %v4440 = vsel %vm4427, %v4423, %v4371
        %v4441 = vsel %vm4427, %v4424, %v4373
        %v4442 = vsel %vm4427, %v4425, %v4375
        %v4443 = vsel %vm4427, %v4426, %v4377
        %v4444 = vpack.c.bf16 %v4429, %v4428
        %v4445 = vpack.c.bf16 %v4431, %v4430
        %v4446 = vpack.c.bf16 %v4433, %v4432
        %v4447 = vpack.c.bf16 %v4435, %v4434
        %v4448 = vpack.c.bf16 %v4437, %v4436
        %v4449 = vpack.c.bf16 %v4439, %v4438
        %v4450 = vpack.c.bf16 %v4441, %v4440
        %v4451 = vpack.c.bf16 %v4443, %v4442
        %v4452 = vld [vmem:[#allocation8] sm:$0xf]
        %v4453 = vld [vmem:[#allocation8 + $0x4] sm:$0xf]
        %v4454 = vld [vmem:[#allocation8 + $0x8] sm:$0xf]
        %v4455 = vld [vmem:[#allocation8 + $0xc] sm:$0xf]
        %v4456 = vld [vmem:[#allocation8 + $0x10] sm:$0xf]
        %v4457 = vld [vmem:[#allocation8 + $0x14] sm:$0xf]
        %v4458 = vld [vmem:[#allocation8 + $0x18] sm:$0xf]
        %v4459 = vld [vmem:[#allocation8 + $0x1c] sm:$0xf]
        %v4460 = vld [vmem:[#allocation8 + $0x20] sm:$0xf]
        %v4461 = vld [vmem:[#allocation8 + $0x24] sm:$0xf]
        %v4462 = vld [vmem:[#allocation8 + $0x28] sm:$0xf]
        %v4463 = vld [vmem:[#allocation8 + $0x2c] sm:$0xf]
        %v4464 = vld [vmem:[#allocation8 + $0x30] sm:$0xf]
        %v4465 = vld [vmem:[#allocation8 + $0x34] sm:$0xf]
        %v4466 = vld [vmem:[#allocation8 + $0x38] sm:$0xf]
        %v4467 = vld [vmem:[#allocation8 + $0x3c] sm:$0xf]
        %v4484 = vunpack.c.l.b16 %v4452
        %v4485 = vunpack.c.l.b16 %v4453
        %v4486 = vunpack.c.l.b16 %v4454
        %v4487 = vunpack.c.l.b16 %v4455
        %v4488 = vunpack.c.l.b16 %v4456
        %v4489 = vunpack.c.l.b16 %v4457
        %v4490 = vunpack.c.l.b16 %v4458
        %v4491 = vunpack.c.l.b16 %v4459
        %v4492 = vunpack.c.l.b16 %v4460
        %v4493 = vunpack.c.l.b16 %v4461
        %v4494 = vunpack.c.l.b16 %v4462
        %v4495 = vunpack.c.l.b16 %v4463
        %v4496 = vunpack.c.l.b16 %v4464
        %v4497 = vunpack.c.l.b16 %v4465
        %v4498 = vunpack.c.l.b16 %v4466
        %v4499 = vunpack.c.l.b16 %v4467
        %v4500 = vpack.c.b16 %v4485, %v4484
        %v4501 = vpack.c.b16 %v4487, %v4486
        %v4502 = vpack.c.b16 %v4489, %v4488
        %v4503 = vpack.c.b16 %v4491, %v4490
        %v4504 = vpack.c.b16 %v4493, %v4492
        %v4505 = vpack.c.b16 %v4495, %v4494
        %v4506 = vpack.c.b16 %v4497, %v4496
        %v4507 = vpack.c.b16 %v4499, %v4498
        %4516 = vmatprep.subr.bf16.mxu0 0
        %4517 = vmatpush1.bf16.msra.mxu0 %v4507
        %4518 = vmatprep.subr.bf16.mxu0 0
        %4519 = vmatpush1.bf16.msra.mxu0 %v4506
        %4520 = vmatprep.subr.bf16.mxu0 0
        %4521 = vmatpush1.bf16.msra.mxu0 %v4505
        %4522 = vmatprep.subr.bf16.mxu0 0
        %4523 = vmatpush1.bf16.msra.mxu0 %v4504
        %4524 = vmatprep.subr.bf16.mxu0 0
        %4525 = vmatpush1.bf16.msra.mxu0 %v4503
        %4526 = vmatprep.subr.bf16.mxu0 0
        %4527 = vmatpush1.bf16.msra.mxu0 %v4502
        %4528 = vmatprep.subr.bf16.mxu0 0
        %4529 = vmatpush1.bf16.msra.mxu0 %v4501
        %4530 = vmatprep.subr.bf16.mxu0 0
        %4531 = vmatpush1.bf16.msra.mxu0 %v4500
        %4532 = vmatprep.subr.bf16.mxu0 0
        %4533 = vmatpush2.bf16.msra.mxu0 0
        %4534 = vmatprep.subr.bf16.mxu0 0
        %4535 = vmatpush2.bf16.msra.mxu0 0
        %4536 = vmatprep.subr.bf16.mxu0 0
        %4537 = vmatpush2.bf16.msra.mxu0 0
        %4538 = vmatprep.subr.bf16.mxu0 0
        %4539 = vmatpush2.bf16.msra.mxu0 0
        %4540 = vmatprep.subr.bf16.mxu0 0
        %4541 = vmatpush2.bf16.msra.mxu0 0
        %4542 = vmatprep.subr.bf16.mxu0 0
        %4543 = vmatpush2.bf16.msra.mxu0 0
        %4544 = vmatprep.subr.bf16.mxu0 0
        %4545 = vmatpush2.bf16.msra.mxu0 0
        %4546 = vmatprep.subr.bf16.mxu0 0
        %4547 = vmatpush2.bf16.msra.mxu0 0
        %4548 = vmatprep.mubr.bf16.mxu0 0
        %4549 = vmatmul.mubr.bf16.gmra.mxu0 %v4444
        %v4550 = vpop.f32.mrf.mxu0
        %v4551 = vadd.f32 0.0, %v4550
        %v4552 = vpop.f32.mrf.mxu0
        %v4553 = vpop.f32.mrf.mxu0
        %v4554 = vadd.f32 0.0, %v4553
        %v4555 = vpop.f32.mrf.mxu0
        %4556 = vmatprep.mubr.bf16.mxu0 0
        %4557 = vmatmul.mubr.bf16.gmra.mxu0 %v4445
        %v4558 = vpop.f32.mrf.mxu0
        %v4559 = vadd.f32 0.0, %v4558
        %v4560 = vpop.f32.mrf.mxu0
        %v4561 = vpop.f32.mrf.mxu0
        %v4562 = vadd.f32 0.0, %v4561
        %v4563 = vpop.f32.mrf.mxu0
        %4564 = vmatprep.mubr.bf16.mxu0 0
        %4565 = vmatmul.mubr.bf16.gmra.mxu0 %v4446
        %v4566 = vpop.f32.mrf.mxu0
        %v4567 = vadd.f32 0.0, %v4566
        %v4568 = vpop.f32.mrf.mxu0
        %v4569 = vpop.f32.mrf.mxu0
        %v4570 = vadd.f32 0.0, %v4569
        %v4571 = vpop.f32.mrf.mxu0
        %4572 = vmatprep.mubr.bf16.mxu0 0
        %4573 = vmatmul.mubr.bf16.gmra.mxu0 %v4447
        %v4574 = vpop.f32.mrf.mxu0
        %v4575 = vadd.f32 0.0, %v4574
        %v4576 = vpop.f32.mrf.mxu0
        %v4577 = vpop.f32.mrf.mxu0
        %v4578 = vadd.f32 0.0, %v4577
        %v4579 = vpop.f32.mrf.mxu0
        %4580 = vmatprep.mubr.bf16.mxu0 0
        %4581 = vmatmul.mubr.bf16.gmra.mxu0 %v4448
        %v4582 = vpop.f32.mrf.mxu0
        %v4583 = vadd.f32 0.0, %v4582
        %v4584 = vpop.f32.mrf.mxu0
        %v4585 = vpop.f32.mrf.mxu0
        %v4586 = vadd.f32 0.0, %v4585
        %v4587 = vpop.f32.mrf.mxu0
        %4588 = vmatprep.mubr.bf16.mxu0 0
        %4589 = vmatmul.mubr.bf16.gmra.mxu0 %v4449
        %v4590 = vpop.f32.mrf.mxu0
        %v4591 = vadd.f32 0.0, %v4590
        %v4592 = vpop.f32.mrf.mxu0
        %v4593 = vpop.f32.mrf.mxu0
        %v4594 = vadd.f32 0.0, %v4593
        %v4595 = vpop.f32.mrf.mxu0
        %4596 = vmatprep.mubr.bf16.mxu0 0
        %4597 = vmatmul.mubr.bf16.gmra.mxu0 %v4450
        %v4598 = vpop.f32.mrf.mxu0
        %v4599 = vadd.f32 0.0, %v4598
        %v4600 = vpop.f32.mrf.mxu0
        %v4601 = vpop.f32.mrf.mxu0
        %v4602 = vadd.f32 0.0, %v4601
        %v4603 = vpop.f32.mrf.mxu0
        %4604 = vmatprep.mubr.bf16.mxu0 0
        %4605 = vmatmul.mubr.bf16.gmra.mxu0 %v4451
        %v4606 = vpop.f32.mrf.mxu0
        %v4607 = vadd.f32 0.0, %v4606
        %v4608 = vpop.f32.mrf.mxu0
        %v4609 = vpop.f32.mrf.mxu0
        %v4610 = vadd.f32 0.0, %v4609
        %v4611 = vpop.f32.mrf.mxu0
        %4612 = vdwg.mxu0
        %v4613 = vadd.f32 %v768, %v4551
        %v4614 = vadd.f32 %v769, %v4554
        %v4615 = vadd.f32 %v770, %v4559
        %v4616 = vadd.f32 %v771, %v4562
        %v4617 = vadd.f32 %v772, %v4567
        %v4618 = vadd.f32 %v773, %v4570
        %v4619 = vadd.f32 %v774, %v4575
        %v4620 = vadd.f32 %v775, %v4578
        %v4621 = vadd.f32 %v776, %v4583
        %v4622 = vadd.f32 %v777, %v4586
        %v4623 = vadd.f32 %v778, %v4591
        %v4624 = vadd.f32 %v779, %v4594
        %v4625 = vadd.f32 %v780, %v4599
        %v4626 = vadd.f32 %v781, %v4602
        %v4627 = vadd.f32 %v782, %v4607
        %v4628 = vadd.f32 %v783, %v4610
        %v4629 = vld [vmem:[%s6] sm:$0x1]
        %v4631 = vlaneseq
        %v4632 = vshrl.u32 %v4631, 7
        %v4633 = vsub.s32 0, %v4632
        %v4634 = vrot.slane %v4629, %v4633
        %v4636 = vadd.f32 %v4613, %v4634
        %v4637 = vadd.f32 %v4614, %v4634
        %v4638 = vadd.f32 %v4615, %v4634
        %v4639 = vadd.f32 %v4616, %v4634
        %v4640 = vadd.f32 %v4617, %v4634
        %v4641 = vadd.f32 %v4618, %v4634
        %v4642 = vadd.f32 %v4619, %v4634
        %v4643 = vadd.f32 %v4620, %v4634
        %v4644 = vadd.f32 %v4621, %v4634
        %v4645 = vadd.f32 %v4622, %v4634
        %v4646 = vadd.f32 %v4623, %v4634
        %v4647 = vadd.f32 %v4624, %v4634
        %v4648 = vadd.f32 %v4625, %v4634
        %v4649 = vadd.f32 %v4626, %v4634
        %v4650 = vadd.f32 %v4627, %v4634
        %v4651 = vadd.f32 %v4628, %v4634
        %v4652 = vld [vmem:[%s7] sm:$0x1]
        %v4653 = vld [vmem:[%s8] sm:$0x1]
        %4654 = vadd.xlane.f32.xlu0 %v4636
        %v4655 = vpop.xlane.xlu0 %4654
        %4656 = vadd.xlane.f32.xlu0 %v4637
        %v4657 = vpop.xlane.xlu0 %4656
        %4658 = vadd.xlane.f32.xlu0 %v4638
        %v4659 = vpop.xlane.xlu0 %4658
        %4660 = vadd.xlane.f32.xlu0 %v4639
        %v4661 = vpop.xlane.xlu0 %4660
        %4662 = vadd.xlane.f32.xlu0 %v4640
        %v4663 = vpop.xlane.xlu0 %4662
        %4664 = vadd.xlane.f32.xlu0 %v4641
        %v4665 = vpop.xlane.xlu0 %4664
        %4666 = vadd.xlane.f32.xlu0 %v4642
        %v4667 = vpop.xlane.xlu0 %4666
        %4668 = vadd.xlane.f32.xlu0 %v4643
        %v4669 = vpop.xlane.xlu0 %4668
        %4670 = vadd.xlane.f32.xlu0 %v4644
        %v4671 = vpop.xlane.xlu0 %4670
        %4672 = vadd.xlane.f32.xlu0 %v4645
        %v4673 = vpop.xlane.xlu0 %4672
        %4674 = vadd.xlane.f32.xlu0 %v4646
        %v4675 = vpop.xlane.xlu0 %4674
        %4676 = vadd.xlane.f32.xlu0 %v4647
        %v4677 = vpop.xlane.xlu0 %4676
        %4678 = vadd.xlane.f32.xlu0 %v4648
        %v4679 = vpop.xlane.xlu0 %4678
        %4680 = vadd.xlane.f32.xlu0 %v4649
        %v4681 = vpop.xlane.xlu0 %4680
        %4682 = vadd.xlane.f32.xlu0 %v4650
        %v4683 = vpop.xlane.xlu0 %4682
        %4684 = vadd.xlane.f32.xlu0 %v4651
        %v4685 = vpop.xlane.xlu0 %4684
        %v4686 = vmul.f32 %v4655, %v826
        %v4687 = vmul.f32 %v4657, %v826
        %v4688 = vmul.f32 %v4659, %v826
        %v4689 = vmul.f32 %v4661, %v826
        %v4690 = vmul.f32 %v4663, %v826
        %v4691 = vmul.f32 %v4665, %v826
        %v4692 = vmul.f32 %v4667, %v826
        %v4693 = vmul.f32 %v4669, %v826
        %v4694 = vmul.f32 %v4671, %v826
        %v4695 = vmul.f32 %v4673, %v826
        %v4696 = vmul.f32 %v4675, %v826
        %v4697 = vmul.f32 %v4677, %v826
        %v4698 = vmul.f32 %v4679, %v826
        %v4699 = vmul.f32 %v4681, %v826
        %v4700 = vmul.f32 %v4683, %v826
        %v4701 = vmul.f32 %v4685, %v826
        %v4702 = vsub.f32 %v4636, %v4686
        %v4703 = vsub.f32 %v4637, %v4687
        %v4704 = vsub.f32 %v4638, %v4688
        %v4705 = vsub.f32 %v4639, %v4689
        %v4706 = vsub.f32 %v4640, %v4690
        %v4707 = vsub.f32 %v4641, %v4691
        %v4708 = vsub.f32 %v4642, %v4692
        %v4709 = vsub.f32 %v4643, %v4693
        %v4710 = vsub.f32 %v4644, %v4694
        %v4711 = vsub.f32 %v4645, %v4695
        %v4712 = vsub.f32 %v4646, %v4696
        %v4713 = vsub.f32 %v4647, %v4697
        %v4714 = vsub.f32 %v4648, %v4698
        %v4715 = vsub.f32 %v4649, %v4699
        %v4716 = vsub.f32 %v4650, %v4700
        %v4717 = vsub.f32 %v4651, %v4701
        %v4718 = vmul.f32 %v4702, %v4702
        %v4719 = vmul.f32 %v4703, %v4703
        %v4720 = vmul.f32 %v4704, %v4704
        %v4721 = vmul.f32 %v4705, %v4705
        %v4722 = vmul.f32 %v4706, %v4706
        %v4723 = vmul.f32 %v4707, %v4707
        %v4724 = vmul.f32 %v4708, %v4708
        %v4725 = vmul.f32 %v4709, %v4709
        %v4726 = vmul.f32 %v4710, %v4710
        %v4727 = vmul.f32 %v4711, %v4711
        %v4728 = vmul.f32 %v4712, %v4712
        %v4729 = vmul.f32 %v4713, %v4713
        %v4730 = vmul.f32 %v4714, %v4714
        %v4731 = vmul.f32 %v4715, %v4715
        %v4732 = vmul.f32 %v4716, %v4716
        %v4733 = vmul.f32 %v4717, %v4717
        %4734 = vadd.xlane.f32.xlu0 %v4718
        %v4735 = vpop.xlane.xlu0 %4734
        %4736 = vadd.xlane.f32.xlu0 %v4719
        %v4737 = vpop.xlane.xlu0 %4736
        %4738 = vadd.xlane.f32.xlu0 %v4720
        %v4739 = vpop.xlane.xlu0 %4738
        %4740 = vadd.xlane.f32.xlu0 %v4721
        %v4741 = vpop.xlane.xlu0 %4740
        %4742 = vadd.xlane.f32.xlu0 %v4722
        %v4743 = vpop.xlane.xlu0 %4742
        %4744 = vadd.xlane.f32.xlu0 %v4723
        %v4745 = vpop.xlane.xlu0 %4744
        %4746 = vadd.xlane.f32.xlu0 %v4724
        %v4747 = vpop.xlane.xlu0 %4746
        %4748 = vadd.xlane.f32.xlu0 %v4725
        %v4749 = vpop.xlane.xlu0 %4748
        %4750 = vadd.xlane.f32.xlu0 %v4726
        %v4751 = vpop.xlane.xlu0 %4750
        %4752 = vadd.xlane.f32.xlu0 %v4727
        %v4753 = vpop.xlane.xlu0 %4752
        %4754 = vadd.xlane.f32.xlu0 %v4728
        %v4755 = vpop.xlane.xlu0 %4754
        %4756 = vadd.xlane.f32.xlu0 %v4729
        %v4757 = vpop.xlane.xlu0 %4756
        %4758 = vadd.xlane.f32.xlu0 %v4730
        %v4759 = vpop.xlane.xlu0 %4758
        %4760 = vadd.xlane.f32.xlu0 %v4731
        %v4761 = vpop.xlane.xlu0 %4760
        %4762 = vadd.xlane.f32.xlu0 %v4732
        %v4763 = vpop.xlane.xlu0 %4762
        %4764 = vadd.xlane.f32.xlu0 %v4733
        %v4765 = vpop.xlane.xlu0 %4764
        %v4766 = vmul.f32 %v4735, %v826
        %v4767 = vmul.f32 %v4737, %v826
        %v4768 = vmul.f32 %v4739, %v826
        %v4769 = vmul.f32 %v4741, %v826
        %v4770 = vmul.f32 %v4743, %v826
        %v4771 = vmul.f32 %v4745, %v826
        %v4772 = vmul.f32 %v4747, %v826
        %v4773 = vmul.f32 %v4749, %v826
        %v4774 = vmul.f32 %v4751, %v826
        %v4775 = vmul.f32 %v4753, %v826
        %v4776 = vmul.f32 %v4755, %v826
        %v4777 = vmul.f32 %v4757, %v826
        %v4778 = vmul.f32 %v4759, %v826
        %v4779 = vmul.f32 %v4761, %v826
        %v4780 = vmul.f32 %v4763, %v826
        %v4781 = vmul.f32 %v4765, %v826
        %v4782 = vadd.f32 %v4766, 1e-05
        %v4783 = vadd.f32 %v4767, 1e-05
        %v4784 = vadd.f32 %v4768, 1e-05
        %v4785 = vadd.f32 %v4769, 1e-05
        %v4786 = vadd.f32 %v4770, 1e-05
        %v4787 = vadd.f32 %v4771, 1e-05
        %v4788 = vadd.f32 %v4772, 1e-05
        %v4789 = vadd.f32 %v4773, 1e-05
        %v4790 = vadd.f32 %v4774, 1e-05
        %v4791 = vadd.f32 %v4775, 1e-05
        %v4792 = vadd.f32 %v4776, 1e-05
        %v4793 = vadd.f32 %v4777, 1e-05
        %v4794 = vadd.f32 %v4778, 1e-05
        %v4795 = vadd.f32 %v4779, 1e-05
        %v4796 = vadd.f32 %v4780, 1e-05
        %v4797 = vadd.f32 %v4781, 1e-05
        %v4798 = vrsqrt.pop %v4782
        %v4799 = vrsqrt.pop %v4783
        %v4800 = vrsqrt.pop %v4784
        %v4801 = vrsqrt.pop %v4785
        %v4802 = vrsqrt.pop %v4786
        %v4803 = vrsqrt.pop %v4787
        %v4804 = vrsqrt.pop %v4788
        %v4805 = vrsqrt.pop %v4789
        %v4806 = vrsqrt.pop %v4790
        %v4807 = vrsqrt.pop %v4791
        %v4808 = vrsqrt.pop %v4792
        %v4809 = vrsqrt.pop %v4793
        %v4810 = vrsqrt.pop %v4794
        %v4811 = vrsqrt.pop %v4795
        %v4812 = vrsqrt.pop %v4796
        %v4813 = vrsqrt.pop %v4797
        %v4814 = vmul.f32 %v4702, %v4798
        %v4815 = vmul.f32 %v4703, %v4799
        %v4816 = vmul.f32 %v4704, %v4800
        %v4817 = vmul.f32 %v4705, %v4801
        %v4818 = vmul.f32 %v4706, %v4802
        %v4819 = vmul.f32 %v4707, %v4803
        %v4820 = vmul.f32 %v4708, %v4804
        %v4821 = vmul.f32 %v4709, %v4805
        %v4822 = vmul.f32 %v4710, %v4806
        %v4823 = vmul.f32 %v4711, %v4807
        %v4824 = vmul.f32 %v4712, %v4808
        %v4825 = vmul.f32 %v4713, %v4809
        %v4826 = vmul.f32 %v4714, %v4810
        %v4827 = vmul.f32 %v4715, %v4811
        %v4828 = vmul.f32 %v4716, %v4812
        %v4829 = vmul.f32 %v4717, %v4813
        %v4831 = vlaneseq
        %v4832 = vshrl.u32 %v4831, 7
        %v4833 = vsub.s32 0, %v4832
        %v4834 = vrot.slane %v4652, %v4833
        %v4836 = vmul.f32 %v4814, %v4834
        %v4837 = vmul.f32 %v4815, %v4834
        %v4838 = vmul.f32 %v4816, %v4834
        %v4839 = vmul.f32 %v4817, %v4834
        %v4840 = vmul.f32 %v4818, %v4834
        %v4841 = vmul.f32 %v4819, %v4834
        %v4842 = vmul.f32 %v4820, %v4834
        %v4843 = vmul.f32 %v4821, %v4834
        %v4844 = vmul.f32 %v4822, %v4834
        %v4845 = vmul.f32 %v4823, %v4834
        %v4846 = vmul.f32 %v4824, %v4834
        %v4847 = vmul.f32 %v4825, %v4834
        %v4848 = vmul.f32 %v4826, %v4834
        %v4849 = vmul.f32 %v4827, %v4834
        %v4850 = vmul.f32 %v4828, %v4834
        %v4851 = vmul.f32 %v4829, %v4834
        %v4853 = vlaneseq
        %v4854 = vshrl.u32 %v4853, 7
        %v4855 = vsub.s32 0, %v4854
        %v4856 = vrot.slane %v4653, %v4855
        %v4858 = vadd.f32 %v4836, %v4856
        %v4859 = vadd.f32 %v4837, %v4856
        %v4860 = vadd.f32 %v4838, %v4856
        %v4861 = vadd.f32 %v4839, %v4856
        %v4862 = vadd.f32 %v4840, %v4856
        %v4863 = vadd.f32 %v4841, %v4856
        %v4864 = vadd.f32 %v4842, %v4856
        %v4865 = vadd.f32 %v4843, %v4856
        %v4866 = vadd.f32 %v4844, %v4856
        %v4867 = vadd.f32 %v4845, %v4856
        %v4868 = vadd.f32 %v4846, %v4856
        %v4869 = vadd.f32 %v4847, %v4856
        %v4870 = vadd.f32 %v4848, %v4856
        %v4871 = vadd.f32 %v4849, %v4856
        %v4872 = vadd.f32 %v4850, %v4856
        %v4873 = vadd.f32 %v4851, %v4856
        %v4874 = vpack.c.bf16 %v4859, %v4858
        %v4875 = vpack.c.bf16 %v4861, %v4860
        %v4876 = vpack.c.bf16 %v4863, %v4862
        %v4877 = vpack.c.bf16 %v4865, %v4864
        %v4878 = vpack.c.bf16 %v4867, %v4866
        %v4879 = vpack.c.bf16 %v4869, %v4868
        %v4880 = vpack.c.bf16 %v4871, %v4870
        %v4881 = vpack.c.bf16 %v4873, %v4872
        %v4882 = vld [vmem:[#allocation10] sm:$0xf]
        %v4883 = vld [vmem:[#allocation10 + $0x4] sm:$0xf]
        %v4884 = vld [vmem:[#allocation10 + $0x8] sm:$0xf]
        %v4885 = vld [vmem:[#allocation10 + $0xc] sm:$0xf]
        %v4886 = vld [vmem:[#allocation10 + $0x10] sm:$0xf]
        %v4887 = vld [vmem:[#allocation10 + $0x14] sm:$0xf]
        %v4888 = vld [vmem:[#allocation10 + $0x18] sm:$0xf]
        %v4889 = vld [vmem:[#allocation10 + $0x1c] sm:$0xf]
        %v4890 = vld [vmem:[#allocation10 + $0x20] sm:$0xf]
        %v4891 = vld [vmem:[#allocation10 + $0x24] sm:$0xf]
        %v4892 = vld [vmem:[#allocation10 + $0x28] sm:$0xf]
        %v4893 = vld [vmem:[#allocation10 + $0x2c] sm:$0xf]
        %v4894 = vld [vmem:[#allocation10 + $0x30] sm:$0xf]
        %v4895 = vld [vmem:[#allocation10 + $0x34] sm:$0xf]
        %v4896 = vld [vmem:[#allocation10 + $0x38] sm:$0xf]
        %v4897 = vld [vmem:[#allocation10 + $0x3c] sm:$0xf]
        %v4914 = vunpack.c.l.b16 %v4882
        %v4915 = vunpack.c.l.b16 %v4883
        %v4916 = vunpack.c.l.b16 %v4884
        %v4917 = vunpack.c.l.b16 %v4885
        %v4918 = vunpack.c.l.b16 %v4886
        %v4919 = vunpack.c.l.b16 %v4887
        %v4920 = vunpack.c.l.b16 %v4888
        %v4921 = vunpack.c.l.b16 %v4889
        %v4922 = vunpack.c.l.b16 %v4890
        %v4923 = vunpack.c.l.b16 %v4891
        %v4924 = vunpack.c.l.b16 %v4892
        %v4925 = vunpack.c.l.b16 %v4893
        %v4926 = vunpack.c.l.b16 %v4894
        %v4927 = vunpack.c.l.b16 %v4895
        %v4928 = vunpack.c.l.b16 %v4896
        %v4929 = vunpack.c.l.b16 %v4897
        %v4930 = vpack.c.b16 %v4915, %v4914
        %v4931 = vpack.c.b16 %v4917, %v4916
        %v4932 = vpack.c.b16 %v4919, %v4918
        %v4933 = vpack.c.b16 %v4921, %v4920
        %v4934 = vpack.c.b16 %v4923, %v4922
        %v4935 = vpack.c.b16 %v4925, %v4924
        %v4936 = vpack.c.b16 %v4927, %v4926
        %v4937 = vpack.c.b16 %v4929, %v4928
        %4946 = vmatprep.subr.bf16.mxu0 0
        %4947 = vmatpush1.bf16.msra.mxu0 %v4937
        %4948 = vmatprep.subr.bf16.mxu0 0
        %4949 = vmatpush1.bf16.msra.mxu0 %v4936
        %4950 = vmatprep.subr.bf16.mxu0 0
        %4951 = vmatpush1.bf16.msra.mxu0 %v4935
        %4952 = vmatprep.subr.bf16.mxu0 0
        %4953 = vmatpush1.bf16.msra.mxu0 %v4934
        %4954 = vmatprep.subr.bf16.mxu0 0
        %4955 = vmatpush1.bf16.msra.mxu0 %v4933
        %4956 = vmatprep.subr.bf16.mxu0 0
        %4957 = vmatpush1.bf16.msra.mxu0 %v4932
        %4958 = vmatprep.subr.bf16.mxu0 0
        %4959 = vmatpush1.bf16.msra.mxu0 %v4931
        %4960 = vmatprep.subr.bf16.mxu0 0
        %4961 = vmatpush1.bf16.msra.mxu0 %v4930
        %4962 = vmatprep.subr.bf16.mxu0 0
        %4963 = vmatpush2.bf16.msra.mxu0 0
        %4964 = vmatprep.subr.bf16.mxu0 0
        %4965 = vmatpush2.bf16.msra.mxu0 0
        %4966 = vmatprep.subr.bf16.mxu0 0
        %4967 = vmatpush2.bf16.msra.mxu0 0
        %4968 = vmatprep.subr.bf16.mxu0 0
        %4969 = vmatpush2.bf16.msra.mxu0 0
        %4970 = vmatprep.subr.bf16.mxu0 0
        %4971 = vmatpush2.bf16.msra.mxu0 0
        %4972 = vmatprep.subr.bf16.mxu0 0
        %4973 = vmatpush2.bf16.msra.mxu0 0
        %4974 = vmatprep.subr.bf16.mxu0 0
        %4975 = vmatpush2.bf16.msra.mxu0 0
        %4976 = vmatprep.subr.bf16.mxu0 0
        %4977 = vmatpush2.bf16.msra.mxu0 0
        %4978 = vmatprep.mubr.bf16.mxu0 0
        %4979 = vmatmul.mubr.bf16.gmra.mxu0 %v4874
        %v4980 = vpop.f32.mrf.mxu0
        %v4981 = vadd.f32 0.0, %v4980
        %v4982 = vpop.f32.mrf.mxu0
        %v4983 = vpop.f32.mrf.mxu0
        %v4984 = vadd.f32 0.0, %v4983
        %v4985 = vpop.f32.mrf.mxu0
        %4986 = vmatprep.mubr.bf16.mxu0 0
        %4987 = vmatmul.mubr.bf16.gmra.mxu0 %v4875
        %v4988 = vpop.f32.mrf.mxu0
        %v4989 = vadd.f32 0.0, %v4988
        %v4990 = vpop.f32.mrf.mxu0
        %v4991 = vpop.f32.mrf.mxu0
        %v4992 = vadd.f32 0.0, %v4991
        %v4993 = vpop.f32.mrf.mxu0
        %4994 = vmatprep.mubr.bf16.mxu0 0
        %4995 = vmatmul.mubr.bf16.gmra.mxu0 %v4876
        %v4996 = vpop.f32.mrf.mxu0
        %v4997 = vadd.f32 0.0, %v4996
        %v4998 = vpop.f32.mrf.mxu0
        %v4999 = vpop.f32.mrf.mxu0
        %v5000 = vadd.f32 0.0, %v4999
        %v5001 = vpop.f32.mrf.mxu0
        %5002 = vmatprep.mubr.bf16.mxu0 0
        %5003 = vmatmul.mubr.bf16.gmra.mxu0 %v4877
        %v5004 = vpop.f32.mrf.mxu0
        %v5005 = vadd.f32 0.0, %v5004
        %v5006 = vpop.f32.mrf.mxu0
        %v5007 = vpop.f32.mrf.mxu0
        %v5008 = vadd.f32 0.0, %v5007
        %v5009 = vpop.f32.mrf.mxu0
        %5010 = vmatprep.mubr.bf16.mxu0 0
        %5011 = vmatmul.mubr.bf16.gmra.mxu0 %v4878
        %v5012 = vpop.f32.mrf.mxu0
        %v5013 = vadd.f32 0.0, %v5012
        %v5014 = vpop.f32.mrf.mxu0
        %v5015 = vpop.f32.mrf.mxu0
        %v5016 = vadd.f32 0.0, %v5015
        %v5017 = vpop.f32.mrf.mxu0
        %5018 = vmatprep.mubr.bf16.mxu0 0
        %5019 = vmatmul.mubr.bf16.gmra.mxu0 %v4879
        %v5020 = vpop.f32.mrf.mxu0
        %v5021 = vadd.f32 0.0, %v5020
        %v5022 = vpop.f32.mrf.mxu0
        %v5023 = vpop.f32.mrf.mxu0
        %v5024 = vadd.f32 0.0, %v5023
        %v5025 = vpop.f32.mrf.mxu0
        %5026 = vmatprep.mubr.bf16.mxu0 0
        %5027 = vmatmul.mubr.bf16.gmra.mxu0 %v4880
        %v5028 = vpop.f32.mrf.mxu0
        %v5029 = vadd.f32 0.0, %v5028
        %v5030 = vpop.f32.mrf.mxu0
        %v5031 = vpop.f32.mrf.mxu0
        %v5032 = vadd.f32 0.0, %v5031
        %v5033 = vpop.f32.mrf.mxu0
        %5034 = vmatprep.mubr.bf16.mxu0 0
        %5035 = vmatmul.mubr.bf16.gmra.mxu0 %v4881
        %v5036 = vpop.f32.mrf.mxu0
        %v5037 = vadd.f32 0.0, %v5036
        %v5038 = vpop.f32.mrf.mxu0
        %v5039 = vpop.f32.mrf.mxu0
        %v5040 = vadd.f32 0.0, %v5039
        %v5041 = vpop.f32.mrf.mxu0
        %5042 = vdwg.mxu0
        %v5043 = vpack.c.bf16 %v785, %v784
        %v5044 = vpack.c.bf16 %v787, %v786
        %v5045 = vpack.c.bf16 %v789, %v788
        %v5046 = vpack.c.bf16 %v791, %v790
        %v5047 = vld [vmem:[#allocation11] sm:$0xff]
        %v5048 = vld [vmem:[#allocation11 + $0x8] sm:$0xff]
        %v5049 = vld [vmem:[#allocation11 + $0x10] sm:$0xff]
        %v5050 = vld [vmem:[#allocation11 + $0x18] sm:$0xff]
        %v5051 = vld [vmem:[#allocation11 + $0x20] sm:$0xff]
        %v5052 = vld [vmem:[#allocation11 + $0x28] sm:$0xff]
        %v5053 = vld [vmem:[#allocation11 + $0x30] sm:$0xff]
        %v5054 = vld [vmem:[#allocation11 + $0x38] sm:$0xff]
        %v5063 = vunpack.c.l.b16 %v5047
        %v5064 = vunpack.c.h.b16 %v5047
        %v5065 = vunpack.c.l.b16 %v5048
        %v5066 = vunpack.c.h.b16 %v5048
        %v5067 = vunpack.c.l.b16 %v5049
        %v5068 = vunpack.c.h.b16 %v5049
        %v5069 = vunpack.c.l.b16 %v5050
        %v5070 = vunpack.c.h.b16 %v5050
        %v5071 = vunpack.c.l.b16 %v5051
        %v5072 = vunpack.c.h.b16 %v5051
        %v5073 = vunpack.c.l.b16 %v5052
        %v5074 = vunpack.c.h.b16 %v5052
        %v5075 = vunpack.c.l.b16 %v5053
        %v5076 = vunpack.c.h.b16 %v5053
        %v5077 = vunpack.c.l.b16 %v5054
        %v5078 = vunpack.c.h.b16 %v5054
        %v5079 = vpack.c.b16 %v5065, %v5063
        %v5080 = vpack.c.b16 %v5066, %v5064
        %v5081 = vpack.c.b16 %v5069, %v5067
        %v5082 = vpack.c.b16 %v5070, %v5068
        %v5083 = vpack.c.b16 %v5073, %v5071
        %v5084 = vpack.c.b16 %v5074, %v5072
        %v5085 = vpack.c.b16 %v5077, %v5075
        %v5086 = vpack.c.b16 %v5078, %v5076
        %v5096 = vsel %vm4410, %v5043, 0
        %v5099 = vsel %vm4410, %v5044, 0
        %v5102 = vsel %vm4410, %v5045, 0
        %v5105 = vsel %vm4410, %v5046, 0
        %5107 = vmatprep.subr.bf16.mxu0 0
        %5108 = vmatpush1.bf16.msra.mxu0 0
        %5109 = vmatprep.subr.bf16.mxu0 0
        %5110 = vmatpush1.bf16.msra.mxu0 0
        %5111 = vmatprep.subr.bf16.mxu0 0
        %5112 = vmatpush1.bf16.msra.mxu0 0
        %5113 = vmatprep.subr.bf16.mxu0 0
        %5114 = vmatpush1.bf16.msra.mxu0 0
        %5115 = vmatprep.subr.bf16.mxu0 %v5086
        %5116 = vmatpush1.bf16.msra.mxu0 %v5085
        %5117 = vmatprep.subr.bf16.mxu0 %v5084
        %5118 = vmatpush1.bf16.msra.mxu0 %v5083
        %5119 = vmatprep.subr.bf16.mxu0 %v5082
        %5120 = vmatpush1.bf16.msra.mxu0 %v5081
        %5121 = vmatprep.subr.bf16.mxu0 %v5080
        %5122 = vmatpush1.bf16.msra.mxu0 %v5079
        %5123 = vmatprep.subr.bf16.mxu0 0
        %5124 = vmatpush2.bf16.msra.mxu0 0
        %5125 = vmatprep.subr.bf16.mxu0 0
        %5126 = vmatpush2.bf16.msra.mxu0 0
        %5127 = vmatprep.subr.bf16.mxu0 0
        %5128 = vmatpush2.bf16.msra.mxu0 0
        %5129 = vmatprep.subr.bf16.mxu0 0
        %5130 = vmatpush2.bf16.msra.mxu0 0
        %5131 = vmatprep.subr.bf16.mxu0 0
        %5132 = vmatpush2.bf16.msra.mxu0 0
        %5133 = vmatprep.subr.bf16.mxu0 0
        %5134 = vmatpush2.bf16.msra.mxu0 0
        %5135 = vmatprep.subr.bf16.mxu0 0
        %5136 = vmatpush2.bf16.msra.mxu0 0
        %5137 = vmatprep.subr.bf16.mxu0 0
        %5138 = vmatpush2.bf16.msra.mxu0 0
        %5139 = vmatprep.mubr.bf16.mxu0 0
        %5140 = vmatmul.mubr.bf16.gmra.mxu0 %v5096
        %v5141 = vpop.f32.mrf.mxu0
        %v5142 = vadd.f32 0.0, %v5141
        %v5143 = vpop.f32.mrf.mxu0
        %v5144 = vadd.f32 0.0, %v5143
        %v5145 = vpop.f32.mrf.mxu0
        %v5146 = vadd.f32 0.0, %v5145
        %v5147 = vpop.f32.mrf.mxu0
        %v5148 = vadd.f32 0.0, %v5147
        %5149 = vmatprep.mubr.bf16.mxu0 0
        %5150 = vmatmul.mubr.bf16.gmra.mxu0 %v5099
        %v5151 = vpop.f32.mrf.mxu0
        %v5152 = vadd.f32 0.0, %v5151
        %v5153 = vpop.f32.mrf.mxu0
        %v5154 = vadd.f32 0.0, %v5153
        %v5155 = vpop.f32.mrf.mxu0
        %v5156 = vadd.f32 0.0, %v5155
        %v5157 = vpop.f32.mrf.mxu0
        %v5158 = vadd.f32 0.0, %v5157
        %5159 = vmatprep.mubr.bf16.mxu0 0
        %5160 = vmatmul.mubr.bf16.gmra.mxu0 %v5102
        %v5161 = vpop.f32.mrf.mxu0
        %v5162 = vadd.f32 0.0, %v5161
        %v5163 = vpop.f32.mrf.mxu0
        %v5164 = vadd.f32 0.0, %v5163
        %v5165 = vpop.f32.mrf.mxu0
        %v5166 = vadd.f32 0.0, %v5165
        %v5167 = vpop.f32.mrf.mxu0
        %v5168 = vadd.f32 0.0, %v5167
        %5169 = vmatprep.mubr.bf16.mxu0 0
        %5170 = vmatmul.mubr.bf16.gmra.mxu0 %v5105
        %v5171 = vpop.f32.mrf.mxu0
        %v5172 = vadd.f32 0.0, %v5171
        %v5173 = vpop.f32.mrf.mxu0
        %v5174 = vadd.f32 0.0, %v5173
        %v5175 = vpop.f32.mrf.mxu0
        %v5176 = vadd.f32 0.0, %v5175
        %v5177 = vpop.f32.mrf.mxu0
        %v5178 = vadd.f32 0.0, %v5177
        %5179 = vdwg.mxu0
        %v5180 = vpack.c.bf16 %v4984, %v4981
        %v5181 = vpack.c.bf16 %v4992, %v4989
        %v5182 = vpack.c.bf16 %v5000, %v4997
        %v5183 = vpack.c.bf16 %v5008, %v5005
        %v5184 = vpack.c.bf16 %v5016, %v5013
        %v5185 = vpack.c.bf16 %v5024, %v5021
        %v5186 = vpack.c.bf16 %v5032, %v5029
        %v5187 = vpack.c.bf16 %v5040, %v5037
        %v5188 = vpack.c.bf16 %v5146, %v5142
        %v5189 = vpack.c.bf16 %v5156, %v5152
        %v5190 = vpack.c.bf16 %v5166, %v5162
        %v5191 = vpack.c.bf16 %v5176, %v5172
        %v5192 = vpack.c.bf16 %v5148, %v5144
        %v5193 = vpack.c.bf16 %v5158, %v5154
        %v5194 = vpack.c.bf16 %v5168, %v5164
        %v5195 = vpack.c.bf16 %v5178, %v5174
        %v5197 = vsel %vm1417, %v5180, 0
        %v5200 = vsel %vm1417, %v5181, 0
        %v5203 = vsel %vm1417, %v5188, 0
        %5205 = vmatprep.subr.bf16.mxu0 0
        %5206 = vmatpush1.bf16.xpose.msra.mxu0 0
        %5207 = vmatprep.subr.bf16.mxu0 0
        %5208 = vmatpush1.bf16.xpose.msra.mxu0 0
        %5209 = vmatprep.subr.bf16.mxu0 0
        %5210 = vmatpush1.bf16.xpose.msra.mxu0 0
        %5211 = vmatprep.subr.bf16.mxu0 0
        %5212 = vmatpush1.bf16.xpose.msra.mxu0 0
        %5213 = vmatprep.subr.bf16.mxu0 0
        %5214 = vmatpush1.bf16.xpose.msra.mxu0 0
        %5215 = vmatprep.subr.bf16.mxu0 0
        %5216 = vmatpush1.bf16.xpose.msra.mxu0 0
        %5217 = vmatprep.subr.bf16.mxu0 0
        %5218 = vmatpush1.bf16.xpose.msra.mxu0 0
        %5219 = vmatprep.subr.bf16.mxu0 0
        %5220 = vmatpush1.bf16.xpose.msra.mxu0 %v5203
        %5221 = vmatprep.subr.bf16.mxu0 0
        %5222 = vmatpush2.bf16.xpose.msra.mxu0 0
        %5223 = vmatprep.subr.bf16.mxu0 0
        %5224 = vmatpush2.bf16.xpose.msra.mxu0 0
        %5225 = vmatprep.subr.bf16.mxu0 0
        %5226 = vmatpush2.bf16.xpose.msra.mxu0 0
        %5227 = vmatprep.subr.bf16.mxu0 0
        %5228 = vmatpush2.bf16.xpose.msra.mxu0 0
        %5229 = vmatprep.subr.bf16.mxu0 0
        %5230 = vmatpush2.bf16.xpose.msra.mxu0 0
        %5231 = vmatprep.subr.bf16.mxu0 0
        %5232 = vmatpush2.bf16.xpose.msra.mxu0 0
        %5233 = vmatprep.subr.bf16.mxu0 0
        %5234 = vmatpush2.bf16.xpose.msra.mxu0 0
        %5235 = vmatprep.subr.bf16.mxu0 0
        %5236 = vmatpush2.bf16.xpose.msra.mxu0 0
        %5237 = vmatprep.mubr.bf16.mxu0 0
        %5238 = vmatmul.mubr.bf16.gmra.mxu0 %v5197
        %v5239 = vpop.f32.mrf.mxu0
        %v5240 = vadd.f32 0.0, %v5239
        %v5241 = vpop.f32.mrf.mxu0
        %v5242 = vpop.f32.mrf.mxu0
        %v5243 = vadd.f32 0.0, %v5242
        %v5244 = vpop.f32.mrf.mxu0
        %5245 = vmatprep.mubr.bf16.mxu0 0
        %5246 = vmatmul.mubr.bf16.gmra.mxu0 %v5200
        %v5247 = vpop.f32.mrf.mxu0
        %v5248 = vadd.f32 0.0, %v5247
        %v5249 = vpop.f32.mrf.mxu0
        %v5250 = vpop.f32.mrf.mxu0
        %v5251 = vadd.f32 0.0, %v5250
        %v5252 = vpop.f32.mrf.mxu0
        %5253 = vdwg.mxu0
        %v5255 = vsel %vm1417, %v5182, 0
        %v5258 = vsel %vm1417, %v5183, 0
        %v5261 = vsel %vm1417, %v5189, 0
        %5263 = vmatprep.subr.bf16.mxu0 0
        %5264 = vmatpush1.bf16.xpose.msra.mxu0 0
        %5265 = vmatprep.subr.bf16.mxu0 0
        %5266 = vmatpush1.bf16.xpose.msra.mxu0 0
        %5267 = vmatprep.subr.bf16.mxu0 0
        %5268 = vmatpush1.bf16.xpose.msra.mxu0 0
        %5269 = vmatprep.subr.bf16.mxu0 0
        %5270 = vmatpush1.bf16.xpose.msra.mxu0 0
        %5271 = vmatprep.subr.bf16.mxu0 0
        %5272 = vmatpush1.bf16.xpose.msra.mxu0 0
        %5273 = vmatprep.subr.bf16.mxu0 0
        %5274 = vmatpush1.bf16.xpose.msra.mxu0 0
        %5275 = vmatprep.subr.bf16.mxu0 0
        %5276 = vmatpush1.bf16.xpose.msra.mxu0 0
        %5277 = vmatprep.subr.bf16.mxu0 0
        %5278 = vmatpush1.bf16.xpose.msra.mxu0 %v5261
        %5279 = vmatprep.subr.bf16.mxu0 0
        %5280 = vmatpush2.bf16.xpose.msra.mxu0 0
        %5281 = vmatprep.subr.bf16.mxu0 0
        %5282 = vmatpush2.bf16.xpose.msra.mxu0 0
        %5283 = vmatprep.subr.bf16.mxu0 0
        %5284 = vmatpush2.bf16.xpose.msra.mxu0 0
        %5285 = vmatprep.subr.bf16.mxu0 0
        %5286 = vmatpush2.bf16.xpose.msra.mxu0 0
        %5287 = vmatprep.subr.bf16.mxu0 0
        %5288 = vmatpush2.bf16.xpose.msra.mxu0 0
        %5289 = vmatprep.subr.bf16.mxu0 0
        %5290 = vmatpush2.bf16.xpose.msra.mxu0 0
        %5291 = vmatprep.subr.bf16.mxu0 0
        %5292 = vmatpush2.bf16.xpose.msra.mxu0 0
        %5293 = vmatprep.subr.bf16.mxu0 0
        %5294 = vmatpush2.bf16.xpose.msra.mxu0 0
        %5295 = vmatprep.mubr.bf16.mxu0 0
        %5296 = vmatmul.mubr.bf16.gmra.mxu0 %v5255
        %v5297 = vpop.f32.mrf.mxu0
        %v5298 = vadd.f32 0.0, %v5297
        %v5299 = vpop.f32.mrf.mxu0
        %v5300 = vpop.f32.mrf.mxu0
        %v5301 = vadd.f32 0.0, %v5300
        %v5302 = vpop.f32.mrf.mxu0
        %5303 = vmatprep.mubr.bf16.mxu0 0
        %5304 = vmatmul.mubr.bf16.gmra.mxu0 %v5258
        %v5305 = vpop.f32.mrf.mxu0
        %v5306 = vadd.f32 0.0, %v5305
        %v5307 = vpop.f32.mrf.mxu0
        %v5308 = vpop.f32.mrf.mxu0
        %v5309 = vadd.f32 0.0, %v5308
        %v5310 = vpop.f32.mrf.mxu0
        %5311 = vdwg.mxu0
        %v5313 = vsel %vm1417, %v5184, 0
        %v5316 = vsel %vm1417, %v5185, 0
        %v5319 = vsel %vm1417, %v5190, 0
        %5321 = vmatprep.subr.bf16.mxu0 0
        %5322 = vmatpush1.bf16.xpose.msra.mxu0 0
        %5323 = vmatprep.subr.bf16.mxu0 0
        %5324 = vmatpush1.bf16.xpose.msra.mxu0 0
        %5325 = vmatprep.subr.bf16.mxu0 0
        %5326 = vmatpush1.bf16.xpose.msra.mxu0 0
        %5327 = vmatprep.subr.bf16.mxu0 0
        %5328 = vmatpush1.bf16.xpose.msra.mxu0 0
        %5329 = vmatprep.subr.bf16.mxu0 0
        %5330 = vmatpush1.bf16.xpose.msra.mxu0 0
        %5331 = vmatprep.subr.bf16.mxu0 0
        %5332 = vmatpush1.bf16.xpose.msra.mxu0 0
        %5333 = vmatprep.subr.bf16.mxu0 0
        %5334 = vmatpush1.bf16.xpose.msra.mxu0 0
        %5335 = vmatprep.subr.bf16.mxu0 0
        %5336 = vmatpush1.bf16.xpose.msra.mxu0 %v5319
        %5337 = vmatprep.subr.bf16.mxu0 0
        %5338 = vmatpush2.bf16.xpose.msra.mxu0 0
        %5339 = vmatprep.subr.bf16.mxu0 0
        %5340 = vmatpush2.bf16.xpose.msra.mxu0 0
        %5341 = vmatprep.subr.bf16.mxu0 0
        %5342 = vmatpush2.bf16.xpose.msra.mxu0 0
        %5343 = vmatprep.subr.bf16.mxu0 0
        %5344 = vmatpush2.bf16.xpose.msra.mxu0 0
        %5345 = vmatprep.subr.bf16.mxu0 0
        %5346 = vmatpush2.bf16.xpose.msra.mxu0 0
        %5347 = vmatprep.subr.bf16.mxu0 0
        %5348 = vmatpush2.bf16.xpose.msra.mxu0 0
        %5349 = vmatprep.subr.bf16.mxu0 0
        %5350 = vmatpush2.bf16.xpose.msra.mxu0 0
        %5351 = vmatprep.subr.bf16.mxu0 0
        %5352 = vmatpush2.bf16.xpose.msra.mxu0 0
        %5353 = vmatprep.mubr.bf16.mxu0 0
        %5354 = vmatmul.mubr.bf16.gmra.mxu0 %v5313
        %v5355 = vpop.f32.mrf.mxu0
        %v5356 = vadd.f32 0.0, %v5355
        %v5357 = vpop.f32.mrf.mxu0
        %v5358 = vpop.f32.mrf.mxu0
        %v5359 = vadd.f32 0.0, %v5358
        %v5360 = vpop.f32.mrf.mxu0
        %5361 = vmatprep.mubr.bf16.mxu0 0
        %5362 = vmatmul.mubr.bf16.gmra.mxu0 %v5316
        %v5363 = vpop.f32.mrf.mxu0
        %v5364 = vadd.f32 0.0, %v5363
        %v5365 = vpop.f32.mrf.mxu0
        %v5366 = vpop.f32.mrf.mxu0
        %v5367 = vadd.f32 0.0, %v5366
        %v5368 = vpop.f32.mrf.mxu0
        %5369 = vdwg.mxu0
        %v5371 = vsel %vm1417, %v5186, 0
        %v5374 = vsel %vm1417, %v5187, 0
        %v5377 = vsel %vm1417, %v5191, 0
        %5379 = vmatprep.subr.bf16.mxu0 0
        %5380 = vmatpush1.bf16.xpose.msra.mxu0 0
        %5381 = vmatprep.subr.bf16.mxu0 0
        %5382 = vmatpush1.bf16.xpose.msra.mxu0 0
        %5383 = vmatprep.subr.bf16.mxu0 0
        %5384 = vmatpush1.bf16.xpose.msra.mxu0 0
        %5385 = vmatprep.subr.bf16.mxu0 0
        %5386 = vmatpush1.bf16.xpose.msra.mxu0 0
        %5387 = vmatprep.subr.bf16.mxu0 0
        %5388 = vmatpush1.bf16.xpose.msra.mxu0 0
        %5389 = vmatprep.subr.bf16.mxu0 0
        %5390 = vmatpush1.bf16.xpose.msra.mxu0 0
        %5391 = vmatprep.subr.bf16.mxu0 0
        %5392 = vmatpush1.bf16.xpose.msra.mxu0 0
        %5393 = vmatprep.subr.bf16.mxu0 0
        %5394 = vmatpush1.bf16.xpose.msra.mxu0 %v5377
        %5395 = vmatprep.subr.bf16.mxu0 0
        %5396 = vmatpush2.bf16.xpose.msra.mxu0 0
        %5397 = vmatprep.subr.bf16.mxu0 0
        %5398 = vmatpush2.bf16.xpose.msra.mxu0 0
        %5399 = vmatprep.subr.bf16.mxu0 0
        %5400 = vmatpush2.bf16.xpose.msra.mxu0 0
        %5401 = vmatprep.subr.bf16.mxu0 0
        %5402 = vmatpush2.bf16.xpose.msra.mxu0 0
        %5403 = vmatprep.subr.bf16.mxu0 0
        %5404 = vmatpush2.bf16.xpose.msra.mxu0 0
        %5405 = vmatprep.subr.bf16.mxu0 0
        %5406 = vmatpush2.bf16.xpose.msra.mxu0 0
        %5407 = vmatprep.subr.bf16.mxu0 0
        %5408 = vmatpush2.bf16.xpose.msra.mxu0 0
        %5409 = vmatprep.subr.bf16.mxu0 0
        %5410 = vmatpush2.bf16.xpose.msra.mxu0 0
        %5411 = vmatprep.mubr.bf16.mxu0 0
        %5412 = vmatmul.mubr.bf16.gmra.mxu0 %v5371
        %v5413 = vpop.f32.mrf.mxu0
        %v5414 = vadd.f32 0.0, %v5413
        %v5415 = vpop.f32.mrf.mxu0
        %v5416 = vpop.f32.mrf.mxu0
        %v5417 = vadd.f32 0.0, %v5416
        %v5418 = vpop.f32.mrf.mxu0
        %5419 = vmatprep.mubr.bf16.mxu0 0
        %5420 = vmatmul.mubr.bf16.gmra.mxu0 %v5374
        %v5421 = vpop.f32.mrf.mxu0
        %v5422 = vadd.f32 0.0, %v5421
        %v5423 = vpop.f32.mrf.mxu0
        %v5424 = vpop.f32.mrf.mxu0
        %v5425 = vadd.f32 0.0, %v5424
        %v5426 = vpop.f32.mrf.mxu0
        %5427 = vdwg.mxu0
        %vm5428 = vcmask 130048
        %v5429 = vsel %vm5428, %v5240, -inf
        %5430 = vmax.xlane.f32.xlu0 %v5429
        %v5431 = vpop.xlane.xlu0 %5430
        %v5432 = vsel %vm5428, %v5243, -inf
        %5433 = vmax.xlane.f32.xlu0 %v5432
        %v5434 = vpop.xlane.xlu0 %5433
        %v5435 = vsel %vm5428, %v5248, -inf
        %5436 = vmax.xlane.f32.xlu0 %v5435
        %v5437 = vpop.xlane.xlu0 %5436
        %v5438 = vsel %vm5428, %v5251, -inf
        %5439 = vmax.xlane.f32.xlu0 %v5438
        %v5440 = vpop.xlane.xlu0 %5439
        %v5441 = vsel %vm5428, %v5298, -inf
        %5442 = vmax.xlane.f32.xlu0 %v5441
        %v5443 = vpop.xlane.xlu0 %5442
        %v5444 = vsel %vm5428, %v5301, -inf
        %5445 = vmax.xlane.f32.xlu0 %v5444
        %v5446 = vpop.xlane.xlu0 %5445
        %v5447 = vsel %vm5428, %v5306, -inf
        %5448 = vmax.xlane.f32.xlu0 %v5447
        %v5449 = vpop.xlane.xlu0 %5448
        %v5450 = vsel %vm5428, %v5309, -inf
        %5451 = vmax.xlane.f32.xlu0 %v5450
        %v5452 = vpop.xlane.xlu0 %5451
        %v5453 = vsel %vm5428, %v5356, -inf
        %5454 = vmax.xlane.f32.xlu0 %v5453
        %v5455 = vpop.xlane.xlu0 %5454
        %v5456 = vsel %vm5428, %v5359, -inf
        %5457 = vmax.xlane.f32.xlu0 %v5456
        %v5458 = vpop.xlane.xlu0 %5457
        %v5459 = vsel %vm5428, %v5364, -inf
        %5460 = vmax.xlane.f32.xlu0 %v5459
        %v5461 = vpop.xlane.xlu0 %5460
        %v5462 = vsel %vm5428, %v5367, -inf
        %5463 = vmax.xlane.f32.xlu0 %v5462
        %v5464 = vpop.xlane.xlu0 %5463
        %v5465 = vsel %vm5428, %v5414, -inf
        %5466 = vmax.xlane.f32.xlu0 %v5465
        %v5467 = vpop.xlane.xlu0 %5466
        %v5468 = vsel %vm5428, %v5417, -inf
        %5469 = vmax.xlane.f32.xlu0 %v5468
        %v5470 = vpop.xlane.xlu0 %5469
        %v5471 = vsel %vm5428, %v5422, -inf
        %5472 = vmax.xlane.f32.xlu0 %v5471
        %v5473 = vpop.xlane.xlu0 %5472
        %v5474 = vsel %vm5428, %v5425, -inf
        %5475 = vmax.xlane.f32.xlu0 %v5474
        %v5476 = vpop.xlane.xlu0 %5475
        %v5477 = vsub.f32 %v5240, %v5431
        %v5478 = vsub.f32 %v5243, %v5434
        %v5479 = vsub.f32 %v5248, %v5437
        %v5480 = vsub.f32 %v5251, %v5440
        %v5481 = vsub.f32 %v5298, %v5443
        %v5482 = vsub.f32 %v5301, %v5446
        %v5483 = vsub.f32 %v5306, %v5449
        %v5484 = vsub.f32 %v5309, %v5452
        %v5485 = vsub.f32 %v5356, %v5455
        %v5486 = vsub.f32 %v5359, %v5458
        %v5487 = vsub.f32 %v5364, %v5461
        %v5488 = vsub.f32 %v5367, %v5464
        %v5489 = vsub.f32 %v5414, %v5467
        %v5490 = vsub.f32 %v5417, %v5470
        %v5491 = vsub.f32 %v5422, %v5473
        %v5492 = vsub.f32 %v5425, %v5476
        %v5493 = vmul.f32 %v5477, 1.442695
        %v5494 = vpow.pop %v5493
        %v5495 = vmul.f32 %v5478, 1.442695
        %v5496 = vpow.pop %v5495
        %v5497 = vmul.f32 %v5479, 1.442695
        %v5498 = vpow.pop %v5497
        %v5499 = vmul.f32 %v5480, 1.442695
        %v5500 = vpow.pop %v5499
        %v5501 = vmul.f32 %v5481, 1.442695
        %v5502 = vpow.pop %v5501
        %v5503 = vmul.f32 %v5482, 1.442695
        %v5504 = vpow.pop %v5503
        %v5505 = vmul.f32 %v5483, 1.442695
        %v5506 = vpow.pop %v5505
        %v5507 = vmul.f32 %v5484, 1.442695
        %v5508 = vpow.pop %v5507
        %v5509 = vmul.f32 %v5485, 1.442695
        %v5510 = vpow.pop %v5509
        %v5511 = vmul.f32 %v5486, 1.442695
        %v5512 = vpow.pop %v5511
        %v5513 = vmul.f32 %v5487, 1.442695
        %v5514 = vpow.pop %v5513
        %v5515 = vmul.f32 %v5488, 1.442695
        %v5516 = vpow.pop %v5515
        %v5517 = vmul.f32 %v5489, 1.442695
        %v5518 = vpow.pop %v5517
        %v5519 = vmul.f32 %v5490, 1.442695
        %v5520 = vpow.pop %v5519
        %v5521 = vmul.f32 %v5491, 1.442695
        %v5522 = vpow.pop %v5521
        %v5523 = vmul.f32 %v5492, 1.442695
        %v5524 = vpow.pop %v5523
        %v5525 = vsel %vm5428, %v5494, 0.0
        %5526 = vadd.xlane.f32.xlu0 %v5525
        %v5527 = vpop.xlane.xlu0 %5526
        %v5528 = vsel %vm5428, %v5496, 0.0
        %5529 = vadd.xlane.f32.xlu0 %v5528
        %v5530 = vpop.xlane.xlu0 %5529
        %v5531 = vsel %vm5428, %v5498, 0.0
        %5532 = vadd.xlane.f32.xlu0 %v5531
        %v5533 = vpop.xlane.xlu0 %5532
        %v5534 = vsel %vm5428, %v5500, 0.0
        %5535 = vadd.xlane.f32.xlu0 %v5534
        %v5536 = vpop.xlane.xlu0 %5535
        %v5537 = vsel %vm5428, %v5502, 0.0
        %5538 = vadd.xlane.f32.xlu0 %v5537
        %v5539 = vpop.xlane.xlu0 %5538
        %v5540 = vsel %vm5428, %v5504, 0.0
        %5541 = vadd.xlane.f32.xlu0 %v5540
        %v5542 = vpop.xlane.xlu0 %5541
        %v5543 = vsel %vm5428, %v5506, 0.0
        %5544 = vadd.xlane.f32.xlu0 %v5543
        %v5545 = vpop.xlane.xlu0 %5544
        %v5546 = vsel %vm5428, %v5508, 0.0
        %5547 = vadd.xlane.f32.xlu0 %v5546
        %v5548 = vpop.xlane.xlu0 %5547
        %v5549 = vsel %vm5428, %v5510, 0.0
        %5550 = vadd.xlane.f32.xlu0 %v5549
        %v5551 = vpop.xlane.xlu0 %5550
        %v5552 = vsel %vm5428, %v5512, 0.0
        %5553 = vadd.xlane.f32.xlu0 %v5552
        %v5554 = vpop.xlane.xlu0 %5553
        %v5555 = vsel %vm5428, %v5514, 0.0
        %5556 = vadd.xlane.f32.xlu0 %v5555
        %v5557 = vpop.xlane.xlu0 %5556
        %v5558 = vsel %vm5428, %v5516, 0.0
        %5559 = vadd.xlane.f32.xlu0 %v5558
        %v5560 = vpop.xlane.xlu0 %5559
        %v5561 = vsel %vm5428, %v5518, 0.0
        %5562 = vadd.xlane.f32.xlu0 %v5561
        %v5563 = vpop.xlane.xlu0 %5562
        %v5564 = vsel %vm5428, %v5520, 0.0
        %5565 = vadd.xlane.f32.xlu0 %v5564
        %v5566 = vpop.xlane.xlu0 %5565
        %v5567 = vsel %vm5428, %v5522, 0.0
        %5568 = vadd.xlane.f32.xlu0 %v5567
        %v5569 = vpop.xlane.xlu0 %5568
        %v5570 = vsel %vm5428, %v5524, 0.0
        %5571 = vadd.xlane.f32.xlu0 %v5570
        %v5572 = vpop.xlane.xlu0 %5571
        %v5573 = vrcp.pop %v5527
        %v5574 = vrcp.pop %v5530
        %v5575 = vrcp.pop %v5533
        %v5576 = vrcp.pop %v5536
        %v5577 = vrcp.pop %v5539
        %v5578 = vrcp.pop %v5542
        %v5579 = vrcp.pop %v5545
        %v5580 = vrcp.pop %v5548
        %v5581 = vrcp.pop %v5551
        %v5582 = vrcp.pop %v5554
        %v5583 = vrcp.pop %v5557
        %v5584 = vrcp.pop %v5560
        %v5585 = vrcp.pop %v5563
        %v5586 = vrcp.pop %v5566
        %v5587 = vrcp.pop %v5569
        %v5588 = vrcp.pop %v5572
        %v5589 = vmul.f32 %v5494, %v5573
        %v5590 = vmul.f32 %v5496, %v5574
        %v5591 = vmul.f32 %v5498, %v5575
        %v5592 = vmul.f32 %v5500, %v5576
        %v5593 = vmul.f32 %v5502, %v5577
        %v5594 = vmul.f32 %v5504, %v5578
        %v5595 = vmul.f32 %v5506, %v5579
        %v5596 = vmul.f32 %v5508, %v5580
        %v5597 = vmul.f32 %v5510, %v5581
        %v5598 = vmul.f32 %v5512, %v5582
        %v5599 = vmul.f32 %v5514, %v5583
        %v5600 = vmul.f32 %v5516, %v5584
        %v5601 = vmul.f32 %v5518, %v5585
        %v5602 = vmul.f32 %v5520, %v5586
        %v5603 = vmul.f32 %v5522, %v5587
        %v5604 = vmul.f32 %v5524, %v5588
        %v5605 = vpack.c.bf16 %v5590, %v5589
        %v5606 = vpack.c.bf16 %v5592, %v5591
        %v5607 = vpack.c.bf16 %v5594, %v5593
        %v5608 = vpack.c.bf16 %v5596, %v5595
        %v5609 = vpack.c.bf16 %v5598, %v5597
        %v5610 = vpack.c.bf16 %v5600, %v5599
        %v5611 = vpack.c.bf16 %v5602, %v5601
        %v5612 = vpack.c.bf16 %v5604, %v5603
        %v5614 = vsel %vm5428, %v5605, 0
        %v5617 = vsel %vm5428, %v5606, 0
        %5619 = vmatprep.subr.bf16.mxu0 0
        %5620 = vmatpush1.bf16.msra.mxu0 0
        %5621 = vmatprep.subr.bf16.mxu0 0
        %5622 = vmatpush1.bf16.msra.mxu0 0
        %5623 = vmatprep.subr.bf16.mxu0 0
        %5624 = vmatpush1.bf16.msra.mxu0 0
        %5625 = vmatprep.subr.bf16.mxu0 0
        %5626 = vmatpush1.bf16.msra.mxu0 0
        %5627 = vmatprep.subr.bf16.mxu0 0
        %5628 = vmatpush1.bf16.msra.mxu0 0
        %5629 = vmatprep.subr.bf16.mxu0 0
        %5630 = vmatpush1.bf16.msra.mxu0 0
        %5631 = vmatprep.subr.bf16.mxu0 0
        %5632 = vmatpush1.bf16.msra.mxu0 0
        %5633 = vmatprep.subr.bf16.mxu0 0
        %5634 = vmatpush1.bf16.msra.mxu0 %v5192
        %5635 = vmatprep.subr.bf16.mxu0 0
        %5636 = vmatpush2.bf16.msra.mxu0 0
        %5637 = vmatprep.subr.bf16.mxu0 0
        %5638 = vmatpush2.bf16.msra.mxu0 0
        %5639 = vmatprep.subr.bf16.mxu0 0
        %5640 = vmatpush2.bf16.msra.mxu0 0
        %5641 = vmatprep.subr.bf16.mxu0 0
        %5642 = vmatpush2.bf16.msra.mxu0 0
        %5643 = vmatprep.subr.bf16.mxu0 0
        %5644 = vmatpush2.bf16.msra.mxu0 0
        %5645 = vmatprep.subr.bf16.mxu0 0
        %5646 = vmatpush2.bf16.msra.mxu0 0
        %5647 = vmatprep.subr.bf16.mxu0 0
        %5648 = vmatpush2.bf16.msra.mxu0 0
        %5649 = vmatprep.subr.bf16.mxu0 0
        %5650 = vmatpush2.bf16.msra.mxu0 0
        %5651 = vmatprep.mubr.bf16.mxu0 0
        %5652 = vmatmul.mubr.bf16.gmra.mxu0 %v5614
        %v5653 = vpop.f32.mrf.mxu0
        %v5654 = vadd.f32 0.0, %v5653
        %v5655 = vpop.f32.mrf.mxu0
        %v5656 = vpop.f32.mrf.mxu0
        %v5657 = vadd.f32 0.0, %v5656
        %v5658 = vpop.f32.mrf.mxu0
        %5659 = vmatprep.mubr.bf16.mxu0 0
        %5660 = vmatmul.mubr.bf16.gmra.mxu0 %v5617
        %v5661 = vpop.f32.mrf.mxu0
        %v5662 = vadd.f32 0.0, %v5661
        %v5663 = vpop.f32.mrf.mxu0
        %v5664 = vpop.f32.mrf.mxu0
        %v5665 = vadd.f32 0.0, %v5664
        %v5666 = vpop.f32.mrf.mxu0
        %5667 = vdwg.mxu0
        %v5669 = vsel %vm5428, %v5607, 0
        %v5672 = vsel %vm5428, %v5608, 0
        %5674 = vmatprep.subr.bf16.mxu0 0
        %5675 = vmatpush1.bf16.msra.mxu0 0
        %5676 = vmatprep.subr.bf16.mxu0 0
        %5677 = vmatpush1.bf16.msra.mxu0 0
        %5678 = vmatprep.subr.bf16.mxu0 0
        %5679 = vmatpush1.bf16.msra.mxu0 0
        %5680 = vmatprep.subr.bf16.mxu0 0
        %5681 = vmatpush1.bf16.msra.mxu0 0
        %5682 = vmatprep.subr.bf16.mxu0 0
        %5683 = vmatpush1.bf16.msra.mxu0 0
        %5684 = vmatprep.subr.bf16.mxu0 0
        %5685 = vmatpush1.bf16.msra.mxu0 0
        %5686 = vmatprep.subr.bf16.mxu0 0
        %5687 = vmatpush1.bf16.msra.mxu0 0
        %5688 = vmatprep.subr.bf16.mxu0 0
        %5689 = vmatpush1.bf16.msra.mxu0 %v5193
        %5690 = vmatprep.subr.bf16.mxu0 0
        %5691 = vmatpush2.bf16.msra.mxu0 0
        %5692 = vmatprep.subr.bf16.mxu0 0
        %5693 = vmatpush2.bf16.msra.mxu0 0
        %5694 = vmatprep.subr.bf16.mxu0 0
        %5695 = vmatpush2.bf16.msra.mxu0 0
        %5696 = vmatprep.subr.bf16.mxu0 0
        %5697 = vmatpush2.bf16.msra.mxu0 0
        %5698 = vmatprep.subr.bf16.mxu0 0
        %5699 = vmatpush2.bf16.msra.mxu0 0
        %5700 = vmatprep.subr.bf16.mxu0 0
        %5701 = vmatpush2.bf16.msra.mxu0 0
        %5702 = vmatprep.subr.bf16.mxu0 0
        %5703 = vmatpush2.bf16.msra.mxu0 0
        %5704 = vmatprep.subr.bf16.mxu0 0
        %5705 = vmatpush2.bf16.msra.mxu0 0
        %5706 = vmatprep.mubr.bf16.mxu0 0
        %5707 = vmatmul.mubr.bf16.gmra.mxu0 %v5669
        %v5708 = vpop.f32.mrf.mxu0
        %v5709 = vadd.f32 0.0, %v5708
        %v5710 = vpop.f32.mrf.mxu0
        %v5711 = vpop.f32.mrf.mxu0
        %v5712 = vadd.f32 0.0, %v5711
        %v5713 = vpop.f32.mrf.mxu0
        %5714 = vmatprep.mubr.bf16.mxu0 0
        %5715 = vmatmul.mubr.bf16.gmra.mxu0 %v5672
        %v5716 = vpop.f32.mrf.mxu0
        %v5717 = vadd.f32 0.0, %v5716
        %v5718 = vpop.f32.mrf.mxu0
        %v5719 = vpop.f32.mrf.mxu0
        %v5720 = vadd.f32 0.0, %v5719
        %v5721 = vpop.f32.mrf.mxu0
        %5722 = vdwg.mxu0
        %v5724 = vsel %vm5428, %v5609, 0
        %v5727 = vsel %vm5428, %v5610, 0
        %5729 = vmatprep.subr.bf16.mxu0 0
        %5730 = vmatpush1.bf16.msra.mxu0 0
        %5731 = vmatprep.subr.bf16.mxu0 0
        %5732 = vmatpush1.bf16.msra.mxu0 0
        %5733 = vmatprep.subr.bf16.mxu0 0
        %5734 = vmatpush1.bf16.msra.mxu0 0
        %5735 = vmatprep.subr.bf16.mxu0 0
        %5736 = vmatpush1.bf16.msra.mxu0 0
        %5737 = vmatprep.subr.bf16.mxu0 0
        %5738 = vmatpush1.bf16.msra.mxu0 0
        %5739 = vmatprep.subr.bf16.mxu0 0
        %5740 = vmatpush1.bf16.msra.mxu0 0
        %5741 = vmatprep.subr.bf16.mxu0 0
        %5742 = vmatpush1.bf16.msra.mxu0 0
        %5743 = vmatprep.subr.bf16.mxu0 0
        %5744 = vmatpush1.bf16.msra.mxu0 %v5194
        %5745 = vmatprep.subr.bf16.mxu0 0
        %5746 = vmatpush2.bf16.msra.mxu0 0
        %5747 = vmatprep.subr.bf16.mxu0 0
        %5748 = vmatpush2.bf16.msra.mxu0 0
        %5749 = vmatprep.subr.bf16.mxu0 0
        %5750 = vmatpush2.bf16.msra.mxu0 0
        %5751 = vmatprep.subr.bf16.mxu0 0
        %5752 = vmatpush2.bf16.msra.mxu0 0
        %5753 = vmatprep.subr.bf16.mxu0 0
        %5754 = vmatpush2.bf16.msra.mxu0 0
        %5755 = vmatprep.subr.bf16.mxu0 0
        %5756 = vmatpush2.bf16.msra.mxu0 0
        %5757 = vmatprep.subr.bf16.mxu0 0
        %5758 = vmatpush2.bf16.msra.mxu0 0
        %5759 = vmatprep.subr.bf16.mxu0 0
        %5760 = vmatpush2.bf16.msra.mxu0 0
        %5761 = vmatprep.mubr.bf16.mxu0 0
        %5762 = vmatmul.mubr.bf16.gmra.mxu0 %v5724
        %v5763 = vpop.f32.mrf.mxu0
        %v5764 = vadd.f32 0.0, %v5763
        %v5765 = vpop.f32.mrf.mxu0
        %v5766 = vpop.f32.mrf.mxu0
        %v5767 = vadd.f32 0.0, %v5766
        %v5768 = vpop.f32.mrf.mxu0
        %5769 = vmatprep.mubr.bf16.mxu0 0
        %5770 = vmatmul.mubr.bf16.gmra.mxu0 %v5727
        %v5771 = vpop.f32.mrf.mxu0
        %v5772 = vadd.f32 0.0, %v5771
        %v5773 = vpop.f32.mrf.mxu0
        %v5774 = vpop.f32.mrf.mxu0
        %v5775 = vadd.f32 0.0, %v5774
        %v5776 = vpop.f32.mrf.mxu0
        %5777 = vdwg.mxu0
        %v5779 = vsel %vm5428, %v5611, 0
        %v5782 = vsel %vm5428, %v5612, 0
        %5784 = vmatprep.subr.bf16.mxu0 0
        %5785 = vmatpush1.bf16.msra.mxu0 0
        %5786 = vmatprep.subr.bf16.mxu0 0
        %5787 = vmatpush1.bf16.msra.mxu0 0
        %5788 = vmatprep.subr.bf16.mxu0 0
        %5789 = vmatpush1.bf16.msra.mxu0 0
        %5790 = vmatprep.subr.bf16.mxu0 0
        %5791 = vmatpush1.bf16.msra.mxu0 0
        %5792 = vmatprep.subr.bf16.mxu0 0
        %5793 = vmatpush1.bf16.msra.mxu0 0
        %5794 = vmatprep.subr.bf16.mxu0 0
        %5795 = vmatpush1.bf16.msra.mxu0 0
        %5796 = vmatprep.subr.bf16.mxu0 0
        %5797 = vmatpush1.bf16.msra.mxu0 0
        %5798 = vmatprep.subr.bf16.mxu0 0
        %5799 = vmatpush1.bf16.msra.mxu0 %v5195
        %5800 = vmatprep.subr.bf16.mxu0 0
        %5801 = vmatpush2.bf16.msra.mxu0 0
        %5802 = vmatprep.subr.bf16.mxu0 0
        %5803 = vmatpush2.bf16.msra.mxu0 0
        %5804 = vmatprep.subr.bf16.mxu0 0
        %5805 = vmatpush2.bf16.msra.mxu0 0
        %5806 = vmatprep.subr.bf16.mxu0 0
        %5807 = vmatpush2.bf16.msra.mxu0 0
        %5808 = vmatprep.subr.bf16.mxu0 0
        %5809 = vmatpush2.bf16.msra.mxu0 0
        %5810 = vmatprep.subr.bf16.mxu0 0
        %5811 = vmatpush2.bf16.msra.mxu0 0
        %5812 = vmatprep.subr.bf16.mxu0 0
        %5813 = vmatpush2.bf16.msra.mxu0 0
        %5814 = vmatprep.subr.bf16.mxu0 0
        %5815 = vmatpush2.bf16.msra.mxu0 0
        %5816 = vmatprep.mubr.bf16.mxu0 0
        %5817 = vmatmul.mubr.bf16.gmra.mxu0 %v5779
        %v5818 = vpop.f32.mrf.mxu0
        %v5819 = vadd.f32 0.0, %v5818
        %v5820 = vpop.f32.mrf.mxu0
        %v5821 = vpop.f32.mrf.mxu0
        %v5822 = vadd.f32 0.0, %v5821
        %v5823 = vpop.f32.mrf.mxu0
        %5824 = vmatprep.mubr.bf16.mxu0 0
        %5825 = vmatmul.mubr.bf16.gmra.mxu0 %v5782
        %v5826 = vpop.f32.mrf.mxu0
        %v5827 = vadd.f32 0.0, %v5826
        %v5828 = vpop.f32.mrf.mxu0
        %v5829 = vpop.f32.mrf.mxu0
        %v5830 = vadd.f32 0.0, %v5829
        %v5831 = vpop.f32.mrf.mxu0
        %5832 = vdwg.mxu0
        %5835 = vrot.lane.b32.xlu0 %v5180, 96
        %v5836 = vpop.permute.xlu0 %5835
        %5837 = vrot.lane.b32.xlu0 %v5181, 96
        %v5838 = vpop.permute.xlu0 %5837
        %5840 = vrot.lane.b32.xlu0 %v5188, 96
        %v5841 = vpop.permute.xlu0 %5840
        %v5843 = vsel %vm1417, %v5836, 0
        %v5846 = vsel %vm1417, %v5838, 0
        %v5849 = vsel %vm1417, %v5841, 0
        %5851 = vmatprep.subr.bf16.mxu0 0
        %5852 = vmatpush1.bf16.xpose.msra.mxu0 0
        %5853 = vmatprep.subr.bf16.mxu0 0
        %5854 = vmatpush1.bf16.xpose.msra.mxu0 0
        %5855 = vmatprep.subr.bf16.mxu0 0
        %5856 = vmatpush1.bf16.xpose.msra.mxu0 0
        %5857 = vmatprep.subr.bf16.mxu0 0
        %5858 = vmatpush1.bf16.xpose.msra.mxu0 0
        %5859 = vmatprep.subr.bf16.mxu0 0
        %5860 = vmatpush1.bf16.xpose.msra.mxu0 0
        %5861 = vmatprep.subr.bf16.mxu0 0
        %5862 = vmatpush1.bf16.xpose.msra.mxu0 0
        %5863 = vmatprep.subr.bf16.mxu0 0
        %5864 = vmatpush1.bf16.xpose.msra.mxu0 0
        %5865 = vmatprep.subr.bf16.mxu0 0
        %5866 = vmatpush1.bf16.xpose.msra.mxu0 %v5849
        %5867 = vmatprep.subr.bf16.mxu0 0
        %5868 = vmatpush2.bf16.xpose.msra.mxu0 0
        %5869 = vmatprep.subr.bf16.mxu0 0
        %5870 = vmatpush2.bf16.xpose.msra.mxu0 0
        %5871 = vmatprep.subr.bf16.mxu0 0
        %5872 = vmatpush2.bf16.xpose.msra.mxu0 0
        %5873 = vmatprep.subr.bf16.mxu0 0
        %5874 = vmatpush2.bf16.xpose.msra.mxu0 0
        %5875 = vmatprep.subr.bf16.mxu0 0
        %5876 = vmatpush2.bf16.xpose.msra.mxu0 0
        %5877 = vmatprep.subr.bf16.mxu0 0
        %5878 = vmatpush2.bf16.xpose.msra.mxu0 0
        %5879 = vmatprep.subr.bf16.mxu0 0
        %5880 = vmatpush2.bf16.xpose.msra.mxu0 0
        %5881 = vmatprep.subr.bf16.mxu0 0
        %5882 = vmatpush2.bf16.xpose.msra.mxu0 0
        %5883 = vmatprep.mubr.bf16.mxu0 0
        %5884 = vmatmul.mubr.bf16.gmra.mxu0 %v5843
        %v5885 = vpop.f32.mrf.mxu0
        %v5886 = vadd.f32 0.0, %v5885
        %v5887 = vpop.f32.mrf.mxu0
        %v5888 = vpop.f32.mrf.mxu0
        %v5889 = vadd.f32 0.0, %v5888
        %v5890 = vpop.f32.mrf.mxu0
        %5891 = vmatprep.mubr.bf16.mxu0 0
        %5892 = vmatmul.mubr.bf16.gmra.mxu0 %v5846
        %v5893 = vpop.f32.mrf.mxu0
        %v5894 = vadd.f32 0.0, %v5893
        %v5895 = vpop.f32.mrf.mxu0
        %v5896 = vpop.f32.mrf.mxu0
        %v5897 = vadd.f32 0.0, %v5896
        %v5898 = vpop.f32.mrf.mxu0
        %5899 = vdwg.mxu0
        %5902 = vrot.lane.b32.xlu0 %v5182, 96
        %v5903 = vpop.permute.xlu0 %5902
        %5904 = vrot.lane.b32.xlu0 %v5183, 96
        %v5905 = vpop.permute.xlu0 %5904
        %5907 = vrot.lane.b32.xlu0 %v5189, 96
        %v5908 = vpop.permute.xlu0 %5907
        %v5910 = vsel %vm1417, %v5903, 0
        %v5913 = vsel %vm1417, %v5905, 0
        %v5916 = vsel %vm1417, %v5908, 0
        %5918 = vmatprep.subr.bf16.mxu0 0
        %5919 = vmatpush1.bf16.xpose.msra.mxu0 0
        %5920 = vmatprep.subr.bf16.mxu0 0
        %5921 = vmatpush1.bf16.xpose.msra.mxu0 0
        %5922 = vmatprep.subr.bf16.mxu0 0
        %5923 = vmatpush1.bf16.xpose.msra.mxu0 0
        %5924 = vmatprep.subr.bf16.mxu0 0
        %5925 = vmatpush1.bf16.xpose.msra.mxu0 0
        %5926 = vmatprep.subr.bf16.mxu0 0
        %5927 = vmatpush1.bf16.xpose.msra.mxu0 0
        %5928 = vmatprep.subr.bf16.mxu0 0
        %5929 = vmatpush1.bf16.xpose.msra.mxu0 0
        %5930 = vmatprep.subr.bf16.mxu0 0
        %5931 = vmatpush1.bf16.xpose.msra.mxu0 0
        %5932 = vmatprep.subr.bf16.mxu0 0
        %5933 = vmatpush1.bf16.xpose.msra.mxu0 %v5916
        %5934 = vmatprep.subr.bf16.mxu0 0
        %5935 = vmatpush2.bf16.xpose.msra.mxu0 0
        %5936 = vmatprep.subr.bf16.mxu0 0
        %5937 = vmatpush2.bf16.xpose.msra.mxu0 0
        %5938 = vmatprep.subr.bf16.mxu0 0
        %5939 = vmatpush2.bf16.xpose.msra.mxu0 0
        %5940 = vmatprep.subr.bf16.mxu0 0
        %5941 = vmatpush2.bf16.xpose.msra.mxu0 0
        %5942 = vmatprep.subr.bf16.mxu0 0
        %5943 = vmatpush2.bf16.xpose.msra.mxu0 0
        %5944 = vmatprep.subr.bf16.mxu0 0
        %5945 = vmatpush2.bf16.xpose.msra.mxu0 0
        %5946 = vmatprep.subr.bf16.mxu0 0
        %5947 = vmatpush2.bf16.xpose.msra.mxu0 0
        %5948 = vmatprep.subr.bf16.mxu0 0
        %5949 = vmatpush2.bf16.xpose.msra.mxu0 0
        %5950 = vmatprep.mubr.bf16.mxu0 0
        %5951 = vmatmul.mubr.bf16.gmra.mxu0 %v5910
        %v5952 = vpop.f32.mrf.mxu0
        %v5953 = vadd.f32 0.0, %v5952
        %v5954 = vpop.f32.mrf.mxu0
        %v5955 = vpop.f32.mrf.mxu0
        %v5956 = vadd.f32 0.0, %v5955
        %v5957 = vpop.f32.mrf.mxu0
        %5958 = vmatprep.mubr.bf16.mxu0 0
        %5959 = vmatmul.mubr.bf16.gmra.mxu0 %v5913
        %v5960 = vpop.f32.mrf.mxu0
        %v5961 = vadd.f32 0.0, %v5960
        %v5962 = vpop.f32.mrf.mxu0
        %v5963 = vpop.f32.mrf.mxu0
        %v5964 = vadd.f32 0.0, %v5963
        %v5965 = vpop.f32.mrf.mxu0
        %5966 = vdwg.mxu0
        %5969 = vrot.lane.b32.xlu0 %v5184, 96
        %v5970 = vpop.permute.xlu0 %5969
        %5971 = vrot.lane.b32.xlu0 %v5185, 96
        %v5972 = vpop.permute.xlu0 %5971
        %5974 = vrot.lane.b32.xlu0 %v5190, 96
        %v5975 = vpop.permute.xlu0 %5974
        %v5977 = vsel %vm1417, %v5970, 0
        %v5980 = vsel %vm1417, %v5972, 0
        %v5983 = vsel %vm1417, %v5975, 0
        %5985 = vmatprep.subr.bf16.mxu0 0
        %5986 = vmatpush1.bf16.xpose.msra.mxu0 0
        %5987 = vmatprep.subr.bf16.mxu0 0
        %5988 = vmatpush1.bf16.xpose.msra.mxu0 0
        %5989 = vmatprep.subr.bf16.mxu0 0
        %5990 = vmatpush1.bf16.xpose.msra.mxu0 0
        %5991 = vmatprep.subr.bf16.mxu0 0
        %5992 = vmatpush1.bf16.xpose.msra.mxu0 0
        %5993 = vmatprep.subr.bf16.mxu0 0
        %5994 = vmatpush1.bf16.xpose.msra.mxu0 0
        %5995 = vmatprep.subr.bf16.mxu0 0
        %5996 = vmatpush1.bf16.xpose.msra.mxu0 0
        %5997 = vmatprep.subr.bf16.mxu0 0
        %5998 = vmatpush1.bf16.xpose.msra.mxu0 0
        %5999 = vmatprep.subr.bf16.mxu0 0
        %6000 = vmatpush1.bf16.xpose.msra.mxu0 %v5983
        %6001 = vmatprep.subr.bf16.mxu0 0
        %6002 = vmatpush2.bf16.xpose.msra.mxu0 0
        %6003 = vmatprep.subr.bf16.mxu0 0
        %6004 = vmatpush2.bf16.xpose.msra.mxu0 0
        %6005 = vmatprep.subr.bf16.mxu0 0
        %6006 = vmatpush2.bf16.xpose.msra.mxu0 0
        %6007 = vmatprep.subr.bf16.mxu0 0
        %6008 = vmatpush2.bf16.xpose.msra.mxu0 0
        %6009 = vmatprep.subr.bf16.mxu0 0
        %6010 = vmatpush2.bf16.xpose.msra.mxu0 0
        %6011 = vmatprep.subr.bf16.mxu0 0
        %6012 = vmatpush2.bf16.xpose.msra.mxu0 0
        %6013 = vmatprep.subr.bf16.mxu0 0
        %6014 = vmatpush2.bf16.xpose.msra.mxu0 0
        %6015 = vmatprep.subr.bf16.mxu0 0
        %6016 = vmatpush2.bf16.xpose.msra.mxu0 0
        %6017 = vmatprep.mubr.bf16.mxu0 0
        %6018 = vmatmul.mubr.bf16.gmra.mxu0 %v5977
        %v6019 = vpop.f32.mrf.mxu0
        %v6020 = vadd.f32 0.0, %v6019
        %v6021 = vpop.f32.mrf.mxu0
        %v6022 = vpop.f32.mrf.mxu0
        %v6023 = vadd.f32 0.0, %v6022
        %v6024 = vpop.f32.mrf.mxu0
        %6025 = vmatprep.mubr.bf16.mxu0 0
        %6026 = vmatmul.mubr.bf16.gmra.mxu0 %v5980
        %v6027 = vpop.f32.mrf.mxu0
        %v6028 = vadd.f32 0.0, %v6027
        %v6029 = vpop.f32.mrf.mxu0
        %v6030 = vpop.f32.mrf.mxu0
        %v6031 = vadd.f32 0.0, %v6030
        %v6032 = vpop.f32.mrf.mxu0
        %6033 = vdwg.mxu0
        %6036 = vrot.lane.b32.xlu0 %v5186, 96
        %v6037 = vpop.permute.xlu0 %6036
        %6038 = vrot.lane.b32.xlu0 %v5187, 96
        %v6039 = vpop.permute.xlu0 %6038
        %6041 = vrot.lane.b32.xlu0 %v5191, 96
        %v6042 = vpop.permute.xlu0 %6041
        %v6044 = vsel %vm1417, %v6037, 0
        %v6047 = vsel %vm1417, %v6039, 0
        %v6050 = vsel %vm1417, %v6042, 0
        %6052 = vmatprep.subr.bf16.mxu0 0
        %6053 = vmatpush1.bf16.xpose.msra.mxu0 0
        %6054 = vmatprep.subr.bf16.mxu0 0
        %6055 = vmatpush1.bf16.xpose.msra.mxu0 0
        %6056 = vmatprep.subr.bf16.mxu0 0
        %6057 = vmatpush1.bf16.xpose.msra.mxu0 0
        %6058 = vmatprep.subr.bf16.mxu0 0
        %6059 = vmatpush1.bf16.xpose.msra.mxu0 0
        %6060 = vmatprep.subr.bf16.mxu0 0
        %6061 = vmatpush1.bf16.xpose.msra.mxu0 0
        %6062 = vmatprep.subr.bf16.mxu0 0
        %6063 = vmatpush1.bf16.xpose.msra.mxu0 0
        %6064 = vmatprep.subr.bf16.mxu0 0
        %6065 = vmatpush1.bf16.xpose.msra.mxu0 0
        %6066 = vmatprep.subr.bf16.mxu0 0
        %6067 = vmatpush1.bf16.xpose.msra.mxu0 %v6050
        %6068 = vmatprep.subr.bf16.mxu0 0
        %6069 = vmatpush2.bf16.xpose.msra.mxu0 0
        %6070 = vmatprep.subr.bf16.mxu0 0
        %6071 = vmatpush2.bf16.xpose.msra.mxu0 0
        %6072 = vmatprep.subr.bf16.mxu0 0
        %6073 = vmatpush2.bf16.xpose.msra.mxu0 0
        %6074 = vmatprep.subr.bf16.mxu0 0
        %6075 = vmatpush2.bf16.xpose.msra.mxu0 0
        %6076 = vmatprep.subr.bf16.mxu0 0
        %6077 = vmatpush2.bf16.xpose.msra.mxu0 0
        %6078 = vmatprep.subr.bf16.mxu0 0
        %6079 = vmatpush2.bf16.xpose.msra.mxu0 0
        %6080 = vmatprep.subr.bf16.mxu0 0
        %6081 = vmatpush2.bf16.xpose.msra.mxu0 0
        %6082 = vmatprep.subr.bf16.mxu0 0
        %6083 = vmatpush2.bf16.xpose.msra.mxu0 0
        %6084 = vmatprep.mubr.bf16.mxu0 0
        %6085 = vmatmul.mubr.bf16.gmra.mxu0 %v6044
        %v6086 = vpop.f32.mrf.mxu0
        %v6087 = vadd.f32 0.0, %v6086
        %v6088 = vpop.f32.mrf.mxu0
        %v6089 = vpop.f32.mrf.mxu0
        %v6090 = vadd.f32 0.0, %v6089
        %v6091 = vpop.f32.mrf.mxu0
        %6092 = vmatprep.mubr.bf16.mxu0 0
        %6093 = vmatmul.mubr.bf16.gmra.mxu0 %v6047
        %v6094 = vpop.f32.mrf.mxu0
        %v6095 = vadd.f32 0.0, %v6094
        %v6096 = vpop.f32.mrf.mxu0
        %v6097 = vpop.f32.mrf.mxu0
        %v6098 = vadd.f32 0.0, %v6097
        %v6099 = vpop.f32.mrf.mxu0
        %6100 = vdwg.mxu0
        %v6101 = vsel %vm5428, %v5886, -inf
        %6102 = vmax.xlane.f32.xlu0 %v6101
        %v6103 = vpop.xlane.xlu0 %6102
        %v6104 = vsel %vm5428, %v5889, -inf
        %6105 = vmax.xlane.f32.xlu0 %v6104
        %v6106 = vpop.xlane.xlu0 %6105
        %v6107 = vsel %vm5428, %v5894, -inf
        %6108 = vmax.xlane.f32.xlu0 %v6107
        %v6109 = vpop.xlane.xlu0 %6108
        %v6110 = vsel %vm5428, %v5897, -inf
        %6111 = vmax.xlane.f32.xlu0 %v6110
        %v6112 = vpop.xlane.xlu0 %6111
        %v6113 = vsel %vm5428, %v5953, -inf
        %6114 = vmax.xlane.f32.xlu0 %v6113
        %v6115 = vpop.xlane.xlu0 %6114
        %v6116 = vsel %vm5428, %v5956, -inf
        %6117 = vmax.xlane.f32.xlu0 %v6116
        %v6118 = vpop.xlane.xlu0 %6117
        %v6119 = vsel %vm5428, %v5961, -inf
        %6120 = vmax.xlane.f32.xlu0 %v6119
        %v6121 = vpop.xlane.xlu0 %6120
        %v6122 = vsel %vm5428, %v5964, -inf
        %6123 = vmax.xlane.f32.xlu0 %v6122
        %v6124 = vpop.xlane.xlu0 %6123
        %v6125 = vsel %vm5428, %v6020, -inf
        %6126 = vmax.xlane.f32.xlu0 %v6125
        %v6127 = vpop.xlane.xlu0 %6126
        %v6128 = vsel %vm5428, %v6023, -inf
        %6129 = vmax.xlane.f32.xlu0 %v6128
        %v6130 = vpop.xlane.xlu0 %6129
        %v6131 = vsel %vm5428, %v6028, -inf
        %6132 = vmax.xlane.f32.xlu0 %v6131
        %v6133 = vpop.xlane.xlu0 %6132
        %v6134 = vsel %vm5428, %v6031, -inf
        %6135 = vmax.xlane.f32.xlu0 %v6134
        %v6136 = vpop.xlane.xlu0 %6135
        %v6137 = vsel %vm5428, %v6087, -inf
        %6138 = vmax.xlane.f32.xlu0 %v6137
        %v6139 = vpop.xlane.xlu0 %6138
        %v6140 = vsel %vm5428, %v6090, -inf
        %6141 = vmax.xlane.f32.xlu0 %v6140
        %v6142 = vpop.xlane.xlu0 %6141
        %v6143 = vsel %vm5428, %v6095, -inf
        %6144 = vmax.xlane.f32.xlu0 %v6143
        %v6145 = vpop.xlane.xlu0 %6144
        %v6146 = vsel %vm5428, %v6098, -inf
        %6147 = vmax.xlane.f32.xlu0 %v6146
        %v6148 = vpop.xlane.xlu0 %6147
        %v6149 = vsub.f32 %v5886, %v6103
        %v6150 = vsub.f32 %v5889, %v6106
        %v6151 = vsub.f32 %v5894, %v6109
        %v6152 = vsub.f32 %v5897, %v6112
        %v6153 = vsub.f32 %v5953, %v6115
        %v6154 = vsub.f32 %v5956, %v6118
        %v6155 = vsub.f32 %v5961, %v6121
        %v6156 = vsub.f32 %v5964, %v6124
        %v6157 = vsub.f32 %v6020, %v6127
        %v6158 = vsub.f32 %v6023, %v6130
        %v6159 = vsub.f32 %v6028, %v6133
        %v6160 = vsub.f32 %v6031, %v6136
        %v6161 = vsub.f32 %v6087, %v6139
        %v6162 = vsub.f32 %v6090, %v6142
        %v6163 = vsub.f32 %v6095, %v6145
        %v6164 = vsub.f32 %v6098, %v6148
        %v6165 = vmul.f32 %v6149, 1.442695
        %v6166 = vpow.pop %v6165
        %v6167 = vmul.f32 %v6150, 1.442695
        %v6168 = vpow.pop %v6167
        %v6169 = vmul.f32 %v6151, 1.442695
        %v6170 = vpow.pop %v6169
        %v6171 = vmul.f32 %v6152, 1.442695
        %v6172 = vpow.pop %v6171
        %v6173 = vmul.f32 %v6153, 1.442695
        %v6174 = vpow.pop %v6173
        %v6175 = vmul.f32 %v6154, 1.442695
        %v6176 = vpow.pop %v6175
        %v6177 = vmul.f32 %v6155, 1.442695
        %v6178 = vpow.pop %v6177
        %v6179 = vmul.f32 %v6156, 1.442695
        %v6180 = vpow.pop %v6179
        %v6181 = vmul.f32 %v6157, 1.442695
        %v6182 = vpow.pop %v6181
        %v6183 = vmul.f32 %v6158, 1.442695
        %v6184 = vpow.pop %v6183
        %v6185 = vmul.f32 %v6159, 1.442695
        %v6186 = vpow.pop %v6185
        %v6187 = vmul.f32 %v6160, 1.442695
        %v6188 = vpow.pop %v6187
        %v6189 = vmul.f32 %v6161, 1.442695
        %v6190 = vpow.pop %v6189
        %v6191 = vmul.f32 %v6162, 1.442695
        %v6192 = vpow.pop %v6191
        %v6193 = vmul.f32 %v6163, 1.442695
        %v6194 = vpow.pop %v6193
        %v6195 = vmul.f32 %v6164, 1.442695
        %v6196 = vpow.pop %v6195
        %v6197 = vsel %vm5428, %v6166, 0.0
        %6198 = vadd.xlane.f32.xlu0 %v6197
        %v6199 = vpop.xlane.xlu0 %6198
        %v6200 = vsel %vm5428, %v6168, 0.0
        %6201 = vadd.xlane.f32.xlu0 %v6200
        %v6202 = vpop.xlane.xlu0 %6201
        %v6203 = vsel %vm5428, %v6170, 0.0
        %6204 = vadd.xlane.f32.xlu0 %v6203
        %v6205 = vpop.xlane.xlu0 %6204
        %v6206 = vsel %vm5428, %v6172, 0.0
        %6207 = vadd.xlane.f32.xlu0 %v6206
        %v6208 = vpop.xlane.xlu0 %6207
        %v6209 = vsel %vm5428, %v6174, 0.0
        %6210 = vadd.xlane.f32.xlu0 %v6209
        %v6211 = vpop.xlane.xlu0 %6210
        %v6212 = vsel %vm5428, %v6176, 0.0
        %6213 = vadd.xlane.f32.xlu0 %v6212
        %v6214 = vpop.xlane.xlu0 %6213
        %v6215 = vsel %vm5428, %v6178, 0.0
        %6216 = vadd.xlane.f32.xlu0 %v6215
        %v6217 = vpop.xlane.xlu0 %6216
        %v6218 = vsel %vm5428, %v6180, 0.0
        %6219 = vadd.xlane.f32.xlu0 %v6218
        %v6220 = vpop.xlane.xlu0 %6219
        %v6221 = vsel %vm5428, %v6182, 0.0
        %6222 = vadd.xlane.f32.xlu0 %v6221
        %v6223 = vpop.xlane.xlu0 %6222
        %v6224 = vsel %vm5428, %v6184, 0.0
        %6225 = vadd.xlane.f32.xlu0 %v6224
        %v6226 = vpop.xlane.xlu0 %6225
        %v6227 = vsel %vm5428, %v6186, 0.0
        %6228 = vadd.xlane.f32.xlu0 %v6227
        %v6229 = vpop.xlane.xlu0 %6228
        %v6230 = vsel %vm5428, %v6188, 0.0
        %6231 = vadd.xlane.f32.xlu0 %v6230
        %v6232 = vpop.xlane.xlu0 %6231
        %v6233 = vsel %vm5428, %v6190, 0.0
        %6234 = vadd.xlane.f32.xlu0 %v6233
        %v6235 = vpop.xlane.xlu0 %6234
        %v6236 = vsel %vm5428, %v6192, 0.0
        %6237 = vadd.xlane.f32.xlu0 %v6236
        %v6238 = vpop.xlane.xlu0 %6237
        %v6239 = vsel %vm5428, %v6194, 0.0
        %6240 = vadd.xlane.f32.xlu0 %v6239
        %v6241 = vpop.xlane.xlu0 %6240
        %v6242 = vsel %vm5428, %v6196, 0.0
        %6243 = vadd.xlane.f32.xlu0 %v6242
        %v6244 = vpop.xlane.xlu0 %6243
        %v6245 = vrcp.pop %v6199
        %v6246 = vrcp.pop %v6202
        %v6247 = vrcp.pop %v6205
        %v6248 = vrcp.pop %v6208
        %v6249 = vrcp.pop %v6211
        %v6250 = vrcp.pop %v6214
        %v6251 = vrcp.pop %v6217
        %v6252 = vrcp.pop %v6220
        %v6253 = vrcp.pop %v6223
        %v6254 = vrcp.pop %v6226
        %v6255 = vrcp.pop %v6229
        %v6256 = vrcp.pop %v6232
        %v6257 = vrcp.pop %v6235
        %v6258 = vrcp.pop %v6238
        %v6259 = vrcp.pop %v6241
        %v6260 = vrcp.pop %v6244
        %v6261 = vmul.f32 %v6166, %v6245
        %v6262 = vmul.f32 %v6168, %v6246
        %v6263 = vmul.f32 %v6170, %v6247
        %v6264 = vmul.f32 %v6172, %v6248
        %v6265 = vmul.f32 %v6174, %v6249
        %v6266 = vmul.f32 %v6176, %v6250
        %v6267 = vmul.f32 %v6178, %v6251
        %v6268 = vmul.f32 %v6180, %v6252
        %v6269 = vmul.f32 %v6182, %v6253
        %v6270 = vmul.f32 %v6184, %v6254
        %v6271 = vmul.f32 %v6186, %v6255
        %v6272 = vmul.f32 %v6188, %v6256
        %v6273 = vmul.f32 %v6190, %v6257
        %v6274 = vmul.f32 %v6192, %v6258
        %v6275 = vmul.f32 %v6194, %v6259
        %v6276 = vmul.f32 %v6196, %v6260
        %v6277 = vpack.c.bf16 %v6262, %v6261
        %v6278 = vpack.c.bf16 %v6264, %v6263
        %v6279 = vpack.c.bf16 %v6266, %v6265
        %v6280 = vpack.c.bf16 %v6268, %v6267
        %v6281 = vpack.c.bf16 %v6270, %v6269
        %v6282 = vpack.c.bf16 %v6272, %v6271
        %v6283 = vpack.c.bf16 %v6274, %v6273
        %v6284 = vpack.c.bf16 %v6276, %v6275
        %6286 = vrot.lane.b32.xlu0 %v5192, 96
        %v6287 = vpop.permute.xlu0 %6286
        %v6290 = vsel %vm5428, %v6277, 0
        %v6293 = vsel %vm5428, %v6278, 0
        %6295 = vmatprep.subr.bf16.mxu0 0
        %6296 = vmatpush1.bf16.msra.mxu0 0
        %6297 = vmatprep.subr.bf16.mxu0 0
        %6298 = vmatpush1.bf16.msra.mxu0 0
        %6299 = vmatprep.subr.bf16.mxu0 0
        %6300 = vmatpush1.bf16.msra.mxu0 0
        %6301 = vmatprep.subr.bf16.mxu0 0
        %6302 = vmatpush1.bf16.msra.mxu0 0
        %6303 = vmatprep.subr.bf16.mxu0 0
        %6304 = vmatpush1.bf16.msra.mxu0 0
        %6305 = vmatprep.subr.bf16.mxu0 0
        %6306 = vmatpush1.bf16.msra.mxu0 0
        %6307 = vmatprep.subr.bf16.mxu0 0
        %6308 = vmatpush1.bf16.msra.mxu0 0
        %6309 = vmatprep.subr.bf16.mxu0 0
        %6310 = vmatpush1.bf16.msra.mxu0 %v6287
        %6311 = vmatprep.subr.bf16.mxu0 0
        %6312 = vmatpush2.bf16.msra.mxu0 0
        %6313 = vmatprep.subr.bf16.mxu0 0
        %6314 = vmatpush2.bf16.msra.mxu0 0
        %6315 = vmatprep.subr.bf16.mxu0 0
        %6316 = vmatpush2.bf16.msra.mxu0 0
        %6317 = vmatprep.subr.bf16.mxu0 0
        %6318 = vmatpush2.bf16.msra.mxu0 0
        %6319 = vmatprep.subr.bf16.mxu0 0
        %6320 = vmatpush2.bf16.msra.mxu0 0
        %6321 = vmatprep.subr.bf16.mxu0 0
        %6322 = vmatpush2.bf16.msra.mxu0 0
        %6323 = vmatprep.subr.bf16.mxu0 0
        %6324 = vmatpush2.bf16.msra.mxu0 0
        %6325 = vmatprep.subr.bf16.mxu0 0
        %6326 = vmatpush2.bf16.msra.mxu0 0
        %6327 = vmatprep.mubr.bf16.mxu0 0
        %6328 = vmatmul.mubr.bf16.gmra.mxu0 %v6290
        %v6329 = vpop.f32.mrf.mxu0
        %v6330 = vadd.f32 0.0, %v6329
        %v6331 = vpop.f32.mrf.mxu0
        %v6332 = vpop.f32.mrf.mxu0
        %v6333 = vadd.f32 0.0, %v6332
        %v6334 = vpop.f32.mrf.mxu0
        %6335 = vmatprep.mubr.bf16.mxu0 0
        %6336 = vmatmul.mubr.bf16.gmra.mxu0 %v6293
        %v6337 = vpop.f32.mrf.mxu0
        %v6338 = vadd.f32 0.0, %v6337
        %v6339 = vpop.f32.mrf.mxu0
        %v6340 = vpop.f32.mrf.mxu0
        %v6341 = vadd.f32 0.0, %v6340
        %v6342 = vpop.f32.mrf.mxu0
        %6343 = vdwg.mxu0
        %6345 = vrot.lane.b32.xlu0 %v5193, 96
        %v6346 = vpop.permute.xlu0 %6345
        %v6349 = vsel %vm5428, %v6279, 0
        %v6352 = vsel %vm5428, %v6280, 0
        %6354 = vmatprep.subr.bf16.mxu0 0
        %6355 = vmatpush1.bf16.msra.mxu0 0
        %6356 = vmatprep.subr.bf16.mxu0 0
        %6357 = vmatpush1.bf16.msra.mxu0 0
        %6358 = vmatprep.subr.bf16.mxu0 0
        %6359 = vmatpush1.bf16.msra.mxu0 0
        %6360 = vmatprep.subr.bf16.mxu0 0
        %6361 = vmatpush1.bf16.msra.mxu0 0
        %6362 = vmatprep.subr.bf16.mxu0 0
        %6363 = vmatpush1.bf16.msra.mxu0 0
        %6364 = vmatprep.subr.bf16.mxu0 0
        %6365 = vmatpush1.bf16.msra.mxu0 0
        %6366 = vmatprep.subr.bf16.mxu0 0
        %6367 = vmatpush1.bf16.msra.mxu0 0
        %6368 = vmatprep.subr.bf16.mxu0 0
        %6369 = vmatpush1.bf16.msra.mxu0 %v6346
        %6370 = vmatprep.subr.bf16.mxu0 0
        %6371 = vmatpush2.bf16.msra.mxu0 0
        %6372 = vmatprep.subr.bf16.mxu0 0
        %6373 = vmatpush2.bf16.msra.mxu0 0
        %6374 = vmatprep.subr.bf16.mxu0 0
        %6375 = vmatpush2.bf16.msra.mxu0 0
        %6376 = vmatprep.subr.bf16.mxu0 0
        %6377 = vmatpush2.bf16.msra.mxu0 0
        %6378 = vmatprep.subr.bf16.mxu0 0
        %6379 = vmatpush2.bf16.msra.mxu0 0
        %6380 = vmatprep.subr.bf16.mxu0 0
        %6381 = vmatpush2.bf16.msra.mxu0 0
        %6382 = vmatprep.subr.bf16.mxu0 0
        %6383 = vmatpush2.bf16.msra.mxu0 0
        %6384 = vmatprep.subr.bf16.mxu0 0
        %6385 = vmatpush2.bf16.msra.mxu0 0
        %6386 = vmatprep.mubr.bf16.mxu0 0
        %6387 = vmatmul.mubr.bf16.gmra.mxu0 %v6349
        %v6388 = vpop.f32.mrf.mxu0
        %v6389 = vadd.f32 0.0, %v6388
        %v6390 = vpop.f32.mrf.mxu0
        %v6391 = vpop.f32.mrf.mxu0
        %v6392 = vadd.f32 0.0, %v6391
        %v6393 = vpop.f32.mrf.mxu0
        %6394 = vmatprep.mubr.bf16.mxu0 0
        %6395 = vmatmul.mubr.bf16.gmra.mxu0 %v6352
        %v6396 = vpop.f32.mrf.mxu0
        %v6397 = vadd.f32 0.0, %v6396
        %v6398 = vpop.f32.mrf.mxu0
        %v6399 = vpop.f32.mrf.mxu0
        %v6400 = vadd.f32 0.0, %v6399
        %v6401 = vpop.f32.mrf.mxu0
        %6402 = vdwg.mxu0
        %6404 = vrot.lane.b32.xlu0 %v5194, 96
        %v6405 = vpop.permute.xlu0 %6404
        %v6408 = vsel %vm5428, %v6281, 0
        %v6411 = vsel %vm5428, %v6282, 0
        %6413 = vmatprep.subr.bf16.mxu0 0
        %6414 = vmatpush1.bf16.msra.mxu0 0
        %6415 = vmatprep.subr.bf16.mxu0 0
        %6416 = vmatpush1.bf16.msra.mxu0 0
        %6417 = vmatprep.subr.bf16.mxu0 0
        %6418 = vmatpush1.bf16.msra.mxu0 0
        %6419 = vmatprep.subr.bf16.mxu0 0
        %6420 = vmatpush1.bf16.msra.mxu0 0
        %6421 = vmatprep.subr.bf16.mxu0 0
        %6422 = vmatpush1.bf16.msra.mxu0 0
        %6423 = vmatprep.subr.bf16.mxu0 0
        %6424 = vmatpush1.bf16.msra.mxu0 0
        %6425 = vmatprep.subr.bf16.mxu0 0
        %6426 = vmatpush1.bf16.msra.mxu0 0
        %6427 = vmatprep.subr.bf16.mxu0 0
        %6428 = vmatpush1.bf16.msra.mxu0 %v6405
        %6429 = vmatprep.subr.bf16.mxu0 0
        %6430 = vmatpush2.bf16.msra.mxu0 0
        %6431 = vmatprep.subr.bf16.mxu0 0
        %6432 = vmatpush2.bf16.msra.mxu0 0
        %6433 = vmatprep.subr.bf16.mxu0 0
        %6434 = vmatpush2.bf16.msra.mxu0 0
        %6435 = vmatprep.subr.bf16.mxu0 0
        %6436 = vmatpush2.bf16.msra.mxu0 0
        %6437 = vmatprep.subr.bf16.mxu0 0
        %6438 = vmatpush2.bf16.msra.mxu0 0
        %6439 = vmatprep.subr.bf16.mxu0 0
        %6440 = vmatpush2.bf16.msra.mxu0 0
        %6441 = vmatprep.subr.bf16.mxu0 0
        %6442 = vmatpush2.bf16.msra.mxu0 0
        %6443 = vmatprep.subr.bf16.mxu0 0
        %6444 = vmatpush2.bf16.msra.mxu0 0
        %6445 = vmatprep.mubr.bf16.mxu0 0
        %6446 = vmatmul.mubr.bf16.gmra.mxu0 %v6408
        %v6447 = vpop.f32.mrf.mxu0
        %v6448 = vadd.f32 0.0, %v6447
        %v6449 = vpop.f32.mrf.mxu0
        %v6450 = vpop.f32.mrf.mxu0
        %v6451 = vadd.f32 0.0, %v6450
        %v6452 = vpop.f32.mrf.mxu0
        %6453 = vmatprep.mubr.bf16.mxu0 0
        %6454 = vmatmul.mubr.bf16.gmra.mxu0 %v6411
        %v6455 = vpop.f32.mrf.mxu0
        %v6456 = vadd.f32 0.0, %v6455
        %v6457 = vpop.f32.mrf.mxu0
        %v6458 = vpop.f32.mrf.mxu0
        %v6459 = vadd.f32 0.0, %v6458
        %v6460 = vpop.f32.mrf.mxu0
        %6461 = vdwg.mxu0
        %6463 = vrot.lane.b32.xlu0 %v5195, 96
        %v6464 = vpop.permute.xlu0 %6463
        %v6467 = vsel %vm5428, %v6283, 0
        %v6470 = vsel %vm5428, %v6284, 0
        %6472 = vmatprep.subr.bf16.mxu0 0
        %6473 = vmatpush1.bf16.msra.mxu0 0
        %6474 = vmatprep.subr.bf16.mxu0 0
        %6475 = vmatpush1.bf16.msra.mxu0 0
        %6476 = vmatprep.subr.bf16.mxu0 0
        %6477 = vmatpush1.bf16.msra.mxu0 0
        %6478 = vmatprep.subr.bf16.mxu0 0
        %6479 = vmatpush1.bf16.msra.mxu0 0
        %6480 = vmatprep.subr.bf16.mxu0 0
        %6481 = vmatpush1.bf16.msra.mxu0 0
        %6482 = vmatprep.subr.bf16.mxu0 0
        %6483 = vmatpush1.bf16.msra.mxu0 0
        %6484 = vmatprep.subr.bf16.mxu0 0
        %6485 = vmatpush1.bf16.msra.mxu0 0
        %6486 = vmatprep.subr.bf16.mxu0 0
        %6487 = vmatpush1.bf16.msra.mxu0 %v6464
        %6488 = vmatprep.subr.bf16.mxu0 0
        %6489 = vmatpush2.bf16.msra.mxu0 0
        %6490 = vmatprep.subr.bf16.mxu0 0
        %6491 = vmatpush2.bf16.msra.mxu0 0
        %6492 = vmatprep.subr.bf16.mxu0 0
        %6493 = vmatpush2.bf16.msra.mxu0 0
        %6494 = vmatprep.subr.bf16.mxu0 0
        %6495 = vmatpush2.bf16.msra.mxu0 0
        %6496 = vmatprep.subr.bf16.mxu0 0
        %6497 = vmatpush2.bf16.msra.mxu0 0
        %6498 = vmatprep.subr.bf16.mxu0 0
        %6499 = vmatpush2.bf16.msra.mxu0 0
        %6500 = vmatprep.subr.bf16.mxu0 0
        %6501 = vmatpush2.bf16.msra.mxu0 0
        %6502 = vmatprep.subr.bf16.mxu0 0
        %6503 = vmatpush2.bf16.msra.mxu0 0
        %6504 = vmatprep.mubr.bf16.mxu0 0
        %6505 = vmatmul.mubr.bf16.gmra.mxu0 %v6467
        %v6506 = vpop.f32.mrf.mxu0
        %v6507 = vadd.f32 0.0, %v6506
        %v6508 = vpop.f32.mrf.mxu0
        %v6509 = vpop.f32.mrf.mxu0
        %v6510 = vadd.f32 0.0, %v6509
        %v6511 = vpop.f32.mrf.mxu0
        %6512 = vmatprep.mubr.bf16.mxu0 0
        %6513 = vmatmul.mubr.bf16.gmra.mxu0 %v6470
        %v6514 = vpop.f32.mrf.mxu0
        %v6515 = vadd.f32 0.0, %v6514
        %v6516 = vpop.f32.mrf.mxu0
        %v6517 = vpop.f32.mrf.mxu0
        %v6518 = vadd.f32 0.0, %v6517
        %v6519 = vpop.f32.mrf.mxu0
        %6520 = vdwg.mxu0
        %6521 = vrot.lane.b32.xlu0 %v5180, 64
        %v6522 = vpop.permute.xlu0 %6521
        %6523 = vrot.lane.b32.xlu0 %v5181, 64
        %v6524 = vpop.permute.xlu0 %6523
        %6525 = vrot.lane.b32.xlu0 %v5188, 64
        %v6526 = vpop.permute.xlu0 %6525
        %v6528 = vsel %vm1417, %v6522, 0
        %v6531 = vsel %vm1417, %v6524, 0
        %v6534 = vsel %vm1417, %v6526, 0
        %6536 = vmatprep.subr.bf16.mxu0 0
        %6537 = vmatpush1.bf16.xpose.msra.mxu0 0
        %6538 = vmatprep.subr.bf16.mxu0 0
        %6539 = vmatpush1.bf16.xpose.msra.mxu0 0
        %6540 = vmatprep.subr.bf16.mxu0 0
        %6541 = vmatpush1.bf16.xpose.msra.mxu0 0
        %6542 = vmatprep.subr.bf16.mxu0 0
        %6543 = vmatpush1.bf16.xpose.msra.mxu0 0
        %6544 = vmatprep.subr.bf16.mxu0 0
        %6545 = vmatpush1.bf16.xpose.msra.mxu0 0
        %6546 = vmatprep.subr.bf16.mxu0 0
        %6547 = vmatpush1.bf16.xpose.msra.mxu0 0
        %6548 = vmatprep.subr.bf16.mxu0 0
        %6549 = vmatpush1.bf16.xpose.msra.mxu0 0
        %6550 = vmatprep.subr.bf16.mxu0 0
        %6551 = vmatpush1.bf16.xpose.msra.mxu0 %v6534
        %6552 = vmatprep.subr.bf16.mxu0 0
        %6553 = vmatpush2.bf16.xpose.msra.mxu0 0
        %6554 = vmatprep.subr.bf16.mxu0 0
        %6555 = vmatpush2.bf16.xpose.msra.mxu0 0
        %6556 = vmatprep.subr.bf16.mxu0 0
        %6557 = vmatpush2.bf16.xpose.msra.mxu0 0
        %6558 = vmatprep.subr.bf16.mxu0 0
        %6559 = vmatpush2.bf16.xpose.msra.mxu0 0
        %6560 = vmatprep.subr.bf16.mxu0 0
        %6561 = vmatpush2.bf16.xpose.msra.mxu0 0
        %6562 = vmatprep.subr.bf16.mxu0 0
        %6563 = vmatpush2.bf16.xpose.msra.mxu0 0
        %6564 = vmatprep.subr.bf16.mxu0 0
        %6565 = vmatpush2.bf16.xpose.msra.mxu0 0
        %6566 = vmatprep.subr.bf16.mxu0 0
        %6567 = vmatpush2.bf16.xpose.msra.mxu0 0
        %6568 = vmatprep.mubr.bf16.mxu0 0
        %6569 = vmatmul.mubr.bf16.gmra.mxu0 %v6528
        %v6570 = vpop.f32.mrf.mxu0
        %v6571 = vadd.f32 0.0, %v6570
        %v6572 = vpop.f32.mrf.mxu0
        %v6573 = vpop.f32.mrf.mxu0
        %v6574 = vadd.f32 0.0, %v6573
        %v6575 = vpop.f32.mrf.mxu0
        %6576 = vmatprep.mubr.bf16.mxu0 0
        %6577 = vmatmul.mubr.bf16.gmra.mxu0 %v6531
        %v6578 = vpop.f32.mrf.mxu0
        %v6579 = vadd.f32 0.0, %v6578
        %v6580 = vpop.f32.mrf.mxu0
        %v6581 = vpop.f32.mrf.mxu0
        %v6582 = vadd.f32 0.0, %v6581
        %v6583 = vpop.f32.mrf.mxu0
        %6584 = vdwg.mxu0
        %6585 = vrot.lane.b32.xlu0 %v5182, 64
        %v6586 = vpop.permute.xlu0 %6585
        %6587 = vrot.lane.b32.xlu0 %v5183, 64
        %v6588 = vpop.permute.xlu0 %6587
        %6589 = vrot.lane.b32.xlu0 %v5189, 64
        %v6590 = vpop.permute.xlu0 %6589
        %v6592 = vsel %vm1417, %v6586, 0
        %v6595 = vsel %vm1417, %v6588, 0
        %v6598 = vsel %vm1417, %v6590, 0
        %6600 = vmatprep.subr.bf16.mxu0 0
        %6601 = vmatpush1.bf16.xpose.msra.mxu0 0
        %6602 = vmatprep.subr.bf16.mxu0 0
        %6603 = vmatpush1.bf16.xpose.msra.mxu0 0
        %6604 = vmatprep.subr.bf16.mxu0 0
        %6605 = vmatpush1.bf16.xpose.msra.mxu0 0
        %6606 = vmatprep.subr.bf16.mxu0 0
        %6607 = vmatpush1.bf16.xpose.msra.mxu0 0
        %6608 = vmatprep.subr.bf16.mxu0 0
        %6609 = vmatpush1.bf16.xpose.msra.mxu0 0
        %6610 = vmatprep.subr.bf16.mxu0 0
        %6611 = vmatpush1.bf16.xpose.msra.mxu0 0
        %6612 = vmatprep.subr.bf16.mxu0 0
        %6613 = vmatpush1.bf16.xpose.msra.mxu0 0
        %6614 = vmatprep.subr.bf16.mxu0 0
        %6615 = vmatpush1.bf16.xpose.msra.mxu0 %v6598
        %6616 = vmatprep.subr.bf16.mxu0 0
        %6617 = vmatpush2.bf16.xpose.msra.mxu0 0
        %6618 = vmatprep.subr.bf16.mxu0 0
        %6619 = vmatpush2.bf16.xpose.msra.mxu0 0
        %6620 = vmatprep.subr.bf16.mxu0 0
        %6621 = vmatpush2.bf16.xpose.msra.mxu0 0
        %6622 = vmatprep.subr.bf16.mxu0 0
        %6623 = vmatpush2.bf16.xpose.msra.mxu0 0
        %6624 = vmatprep.subr.bf16.mxu0 0
        %6625 = vmatpush2.bf16.xpose.msra.mxu0 0
        %6626 = vmatprep.subr.bf16.mxu0 0
        %6627 = vmatpush2.bf16.xpose.msra.mxu0 0
        %6628 = vmatprep.subr.bf16.mxu0 0
        %6629 = vmatpush2.bf16.xpose.msra.mxu0 0
        %6630 = vmatprep.subr.bf16.mxu0 0
        %6631 = vmatpush2.bf16.xpose.msra.mxu0 0
        %6632 = vmatprep.mubr.bf16.mxu0 0
        %6633 = vmatmul.mubr.bf16.gmra.mxu0 %v6592
        %v6634 = vpop.f32.mrf.mxu0
        %v6635 = vadd.f32 0.0, %v6634
        %v6636 = vpop.f32.mrf.mxu0
        %v6637 = vpop.f32.mrf.mxu0
        %v6638 = vadd.f32 0.0, %v6637
        %v6639 = vpop.f32.mrf.mxu0
        %6640 = vmatprep.mubr.bf16.mxu0 0
        %6641 = vmatmul.mubr.bf16.gmra.mxu0 %v6595
        %v6642 = vpop.f32.mrf.mxu0
        %v6643 = vadd.f32 0.0, %v6642
        %v6644 = vpop.f32.mrf.mxu0
        %v6645 = vpop.f32.mrf.mxu0
        %v6646 = vadd.f32 0.0, %v6645
        %v6647 = vpop.f32.mrf.mxu0
        %6648 = vdwg.mxu0
        %6649 = vrot.lane.b32.xlu0 %v5184, 64
        %v6650 = vpop.permute.xlu0 %6649
        %6651 = vrot.lane.b32.xlu0 %v5185, 64
        %v6652 = vpop.permute.xlu0 %6651
        %6653 = vrot.lane.b32.xlu0 %v5190, 64
        %v6654 = vpop.permute.xlu0 %6653
        %v6656 = vsel %vm1417, %v6650, 0
        %v6659 = vsel %vm1417, %v6652, 0
        %v6662 = vsel %vm1417, %v6654, 0
        %6664 = vmatprep.subr.bf16.mxu0 0
        %6665 = vmatpush1.bf16.xpose.msra.mxu0 0
        %6666 = vmatprep.subr.bf16.mxu0 0
        %6667 = vmatpush1.bf16.xpose.msra.mxu0 0
        %6668 = vmatprep.subr.bf16.mxu0 0
        %6669 = vmatpush1.bf16.xpose.msra.mxu0 0
        %6670 = vmatprep.subr.bf16.mxu0 0
        %6671 = vmatpush1.bf16.xpose.msra.mxu0 0
        %6672 = vmatprep.subr.bf16.mxu0 0
        %6673 = vmatpush1.bf16.xpose.msra.mxu0 0
        %6674 = vmatprep.subr.bf16.mxu0 0
        %6675 = vmatpush1.bf16.xpose.msra.mxu0 0
        %6676 = vmatprep.subr.bf16.mxu0 0
        %6677 = vmatpush1.bf16.xpose.msra.mxu0 0
        %6678 = vmatprep.subr.bf16.mxu0 0
        %6679 = vmatpush1.bf16.xpose.msra.mxu0 %v6662
        %6680 = vmatprep.subr.bf16.mxu0 0
        %6681 = vmatpush2.bf16.xpose.msra.mxu0 0
        %6682 = vmatprep.subr.bf16.mxu0 0
        %6683 = vmatpush2.bf16.xpose.msra.mxu0 0
        %6684 = vmatprep.subr.bf16.mxu0 0
        %6685 = vmatpush2.bf16.xpose.msra.mxu0 0
        %6686 = vmatprep.subr.bf16.mxu0 0
        %6687 = vmatpush2.bf16.xpose.msra.mxu0 0
        %6688 = vmatprep.subr.bf16.mxu0 0
        %6689 = vmatpush2.bf16.xpose.msra.mxu0 0
        %6690 = vmatprep.subr.bf16.mxu0 0
        %6691 = vmatpush2.bf16.xpose.msra.mxu0 0
        %6692 = vmatprep.subr.bf16.mxu0 0
        %6693 = vmatpush2.bf16.xpose.msra.mxu0 0
        %6694 = vmatprep.subr.bf16.mxu0 0
        %6695 = vmatpush2.bf16.xpose.msra.mxu0 0
        %6696 = vmatprep.mubr.bf16.mxu0 0
        %6697 = vmatmul.mubr.bf16.gmra.mxu0 %v6656
        %v6698 = vpop.f32.mrf.mxu0
        %v6699 = vadd.f32 0.0, %v6698
        %v6700 = vpop.f32.mrf.mxu0
        %v6701 = vpop.f32.mrf.mxu0
        %v6702 = vadd.f32 0.0, %v6701
        %v6703 = vpop.f32.mrf.mxu0
        %6704 = vmatprep.mubr.bf16.mxu0 0
        %6705 = vmatmul.mubr.bf16.gmra.mxu0 %v6659
        %v6706 = vpop.f32.mrf.mxu0
        %v6707 = vadd.f32 0.0, %v6706
        %v6708 = vpop.f32.mrf.mxu0
        %v6709 = vpop.f32.mrf.mxu0
        %v6710 = vadd.f32 0.0, %v6709
        %v6711 = vpop.f32.mrf.mxu0
        %6712 = vdwg.mxu0
        %6713 = vrot.lane.b32.xlu0 %v5186, 64
        %v6714 = vpop.permute.xlu0 %6713
        %6715 = vrot.lane.b32.xlu0 %v5187, 64
        %v6716 = vpop.permute.xlu0 %6715
        %6717 = vrot.lane.b32.xlu0 %v5191, 64
        %v6718 = vpop.permute.xlu0 %6717
        %v6720 = vsel %vm1417, %v6714, 0
        %v6723 = vsel %vm1417, %v6716, 0
        %v6726 = vsel %vm1417, %v6718, 0
        %6728 = vmatprep.subr.bf16.mxu0 0
        %6729 = vmatpush1.bf16.xpose.msra.mxu0 0
        %6730 = vmatprep.subr.bf16.mxu0 0
        %6731 = vmatpush1.bf16.xpose.msra.mxu0 0
        %6732 = vmatprep.subr.bf16.mxu0 0
        %6733 = vmatpush1.bf16.xpose.msra.mxu0 0
        %6734 = vmatprep.subr.bf16.mxu0 0
        %6735 = vmatpush1.bf16.xpose.msra.mxu0 0
        %6736 = vmatprep.subr.bf16.mxu0 0
        %6737 = vmatpush1.bf16.xpose.msra.mxu0 0
        %6738 = vmatprep.subr.bf16.mxu0 0
        %6739 = vmatpush1.bf16.xpose.msra.mxu0 0
        %6740 = vmatprep.subr.bf16.mxu0 0
        %6741 = vmatpush1.bf16.xpose.msra.mxu0 0
        %6742 = vmatprep.subr.bf16.mxu0 0
        %6743 = vmatpush1.bf16.xpose.msra.mxu0 %v6726
        %6744 = vmatprep.subr.bf16.mxu0 0
        %6745 = vmatpush2.bf16.xpose.msra.mxu0 0
        %6746 = vmatprep.subr.bf16.mxu0 0
        %6747 = vmatpush2.bf16.xpose.msra.mxu0 0
        %6748 = vmatprep.subr.bf16.mxu0 0
        %6749 = vmatpush2.bf16.xpose.msra.mxu0 0
        %6750 = vmatprep.subr.bf16.mxu0 0
        %6751 = vmatpush2.bf16.xpose.msra.mxu0 0
        %6752 = vmatprep.subr.bf16.mxu0 0
        %6753 = vmatpush2.bf16.xpose.msra.mxu0 0
        %6754 = vmatprep.subr.bf16.mxu0 0
        %6755 = vmatpush2.bf16.xpose.msra.mxu0 0
        %6756 = vmatprep.subr.bf16.mxu0 0
        %6757 = vmatpush2.bf16.xpose.msra.mxu0 0
        %6758 = vmatprep.subr.bf16.mxu0 0
        %6759 = vmatpush2.bf16.xpose.msra.mxu0 0
        %6760 = vmatprep.mubr.bf16.mxu0 0
        %6761 = vmatmul.mubr.bf16.gmra.mxu0 %v6720
        %v6762 = vpop.f32.mrf.mxu0
        %v6763 = vadd.f32 0.0, %v6762
        %v6764 = vpop.f32.mrf.mxu0
        %v6765 = vpop.f32.mrf.mxu0
        %v6766 = vadd.f32 0.0, %v6765
        %v6767 = vpop.f32.mrf.mxu0
        %6768 = vmatprep.mubr.bf16.mxu0 0
        %6769 = vmatmul.mubr.bf16.gmra.mxu0 %v6723
        %v6770 = vpop.f32.mrf.mxu0
        %v6771 = vadd.f32 0.0, %v6770
        %v6772 = vpop.f32.mrf.mxu0
        %v6773 = vpop.f32.mrf.mxu0
        %v6774 = vadd.f32 0.0, %v6773
        %v6775 = vpop.f32.mrf.mxu0
        %6776 = vdwg.mxu0
        %v6777 = vsel %vm5428, %v6571, -inf
        %6778 = vmax.xlane.f32.xlu0 %v6777
        %v6779 = vpop.xlane.xlu0 %6778
        %v6780 = vsel %vm5428, %v6574, -inf
        %6781 = vmax.xlane.f32.xlu0 %v6780
        %v6782 = vpop.xlane.xlu0 %6781
        %v6783 = vsel %vm5428, %v6579, -inf
        %6784 = vmax.xlane.f32.xlu0 %v6783
        %v6785 = vpop.xlane.xlu0 %6784
        %v6786 = vsel %vm5428, %v6582, -inf
        %6787 = vmax.xlane.f32.xlu0 %v6786
        %v6788 = vpop.xlane.xlu0 %6787
        %v6789 = vsel %vm5428, %v6635, -inf
        %6790 = vmax.xlane.f32.xlu0 %v6789
        %v6791 = vpop.xlane.xlu0 %6790
        %v6792 = vsel %vm5428, %v6638, -inf
        %6793 = vmax.xlane.f32.xlu0 %v6792
        %v6794 = vpop.xlane.xlu0 %6793
        %v6795 = vsel %vm5428, %v6643, -inf
        %6796 = vmax.xlane.f32.xlu0 %v6795
        %v6797 = vpop.xlane.xlu0 %6796
        %v6798 = vsel %vm5428, %v6646, -inf
        %6799 = vmax.xlane.f32.xlu0 %v6798
        %v6800 = vpop.xlane.xlu0 %6799
        %v6801 = vsel %vm5428, %v6699, -inf
        %6802 = vmax.xlane.f32.xlu0 %v6801
        %v6803 = vpop.xlane.xlu0 %6802
        %v6804 = vsel %vm5428, %v6702, -inf
        %6805 = vmax.xlane.f32.xlu0 %v6804
        %v6806 = vpop.xlane.xlu0 %6805
        %v6807 = vsel %vm5428, %v6707, -inf
        %6808 = vmax.xlane.f32.xlu0 %v6807
        %v6809 = vpop.xlane.xlu0 %6808
        %v6810 = vsel %vm5428, %v6710, -inf
        %6811 = vmax.xlane.f32.xlu0 %v6810
        %v6812 = vpop.xlane.xlu0 %6811
        %v6813 = vsel %vm5428, %v6763, -inf
        %6814 = vmax.xlane.f32.xlu0 %v6813
        %v6815 = vpop.xlane.xlu0 %6814
        %v6816 = vsel %vm5428, %v6766, -inf
        %6817 = vmax.xlane.f32.xlu0 %v6816
        %v6818 = vpop.xlane.xlu0 %6817
        %v6819 = vsel %vm5428, %v6771, -inf
        %6820 = vmax.xlane.f32.xlu0 %v6819
        %v6821 = vpop.xlane.xlu0 %6820
        %v6822 = vsel %vm5428, %v6774, -inf
        %6823 = vmax.xlane.f32.xlu0 %v6822
        %v6824 = vpop.xlane.xlu0 %6823
        %v6825 = vsub.f32 %v6571, %v6779
        %v6826 = vsub.f32 %v6574, %v6782
        %v6827 = vsub.f32 %v6579, %v6785
        %v6828 = vsub.f32 %v6582, %v6788
        %v6829 = vsub.f32 %v6635, %v6791
        %v6830 = vsub.f32 %v6638, %v6794
        %v6831 = vsub.f32 %v6643, %v6797
        %v6832 = vsub.f32 %v6646, %v6800
        %v6833 = vsub.f32 %v6699, %v6803
        %v6834 = vsub.f32 %v6702, %v6806
        %v6835 = vsub.f32 %v6707, %v6809
        %v6836 = vsub.f32 %v6710, %v6812
        %v6837 = vsub.f32 %v6763, %v6815
        %v6838 = vsub.f32 %v6766, %v6818
        %v6839 = vsub.f32 %v6771, %v6821
        %v6840 = vsub.f32 %v6774, %v6824
        %v6841 = vmul.f32 %v6825, 1.442695
        %v6842 = vpow.pop %v6841
        %v6843 = vmul.f32 %v6826, 1.442695
        %v6844 = vpow.pop %v6843
        %v6845 = vmul.f32 %v6827, 1.442695
        %v6846 = vpow.pop %v6845
        %v6847 = vmul.f32 %v6828, 1.442695
        %v6848 = vpow.pop %v6847
        %v6849 = vmul.f32 %v6829, 1.442695
        %v6850 = vpow.pop %v6849
        %v6851 = vmul.f32 %v6830, 1.442695
        %v6852 = vpow.pop %v6851
        %v6853 = vmul.f32 %v6831, 1.442695
        %v6854 = vpow.pop %v6853
        %v6855 = vmul.f32 %v6832, 1.442695
        %v6856 = vpow.pop %v6855
        %v6857 = vmul.f32 %v6833, 1.442695
        %v6858 = vpow.pop %v6857
        %v6859 = vmul.f32 %v6834, 1.442695
        %v6860 = vpow.pop %v6859
        %v6861 = vmul.f32 %v6835, 1.442695
        %v6862 = vpow.pop %v6861
        %v6863 = vmul.f32 %v6836, 1.442695
        %v6864 = vpow.pop %v6863
        %v6865 = vmul.f32 %v6837, 1.442695
        %v6866 = vpow.pop %v6865
        %v6867 = vmul.f32 %v6838, 1.442695
        %v6868 = vpow.pop %v6867
        %v6869 = vmul.f32 %v6839, 1.442695
        %v6870 = vpow.pop %v6869
        %v6871 = vmul.f32 %v6840, 1.442695
        %v6872 = vpow.pop %v6871
        %v6873 = vsel %vm5428, %v6842, 0.0
        %6874 = vadd.xlane.f32.xlu0 %v6873
        %v6875 = vpop.xlane.xlu0 %6874
        %v6876 = vsel %vm5428, %v6844, 0.0
        %6877 = vadd.xlane.f32.xlu0 %v6876
        %v6878 = vpop.xlane.xlu0 %6877
        %v6879 = vsel %vm5428, %v6846, 0.0
        %6880 = vadd.xlane.f32.xlu0 %v6879
        %v6881 = vpop.xlane.xlu0 %6880
        %v6882 = vsel %vm5428, %v6848, 0.0
        %6883 = vadd.xlane.f32.xlu0 %v6882
        %v6884 = vpop.xlane.xlu0 %6883
        %v6885 = vsel %vm5428, %v6850, 0.0
        %6886 = vadd.xlane.f32.xlu0 %v6885
        %v6887 = vpop.xlane.xlu0 %6886
        %v6888 = vsel %vm5428, %v6852, 0.0
        %6889 = vadd.xlane.f32.xlu0 %v6888
        %v6890 = vpop.xlane.xlu0 %6889
        %v6891 = vsel %vm5428, %v6854, 0.0
        %6892 = vadd.xlane.f32.xlu0 %v6891
        %v6893 = vpop.xlane.xlu0 %6892
        %v6894 = vsel %vm5428, %v6856, 0.0
        %6895 = vadd.xlane.f32.xlu0 %v6894
        %v6896 = vpop.xlane.xlu0 %6895
        %v6897 = vsel %vm5428, %v6858, 0.0
        %6898 = vadd.xlane.f32.xlu0 %v6897
        %v6899 = vpop.xlane.xlu0 %6898
        %v6900 = vsel %vm5428, %v6860, 0.0
        %6901 = vadd.xlane.f32.xlu0 %v6900
        %v6902 = vpop.xlane.xlu0 %6901
        %v6903 = vsel %vm5428, %v6862, 0.0
        %6904 = vadd.xlane.f32.xlu0 %v6903
        %v6905 = vpop.xlane.xlu0 %6904
        %v6906 = vsel %vm5428, %v6864, 0.0
        %6907 = vadd.xlane.f32.xlu0 %v6906
        %v6908 = vpop.xlane.xlu0 %6907
        %v6909 = vsel %vm5428, %v6866, 0.0
        %6910 = vadd.xlane.f32.xlu0 %v6909
        %v6911 = vpop.xlane.xlu0 %6910
        %v6912 = vsel %vm5428, %v6868, 0.0
        %6913 = vadd.xlane.f32.xlu0 %v6912
        %v6914 = vpop.xlane.xlu0 %6913
        %v6915 = vsel %vm5428, %v6870, 0.0
        %6916 = vadd.xlane.f32.xlu0 %v6915
        %v6917 = vpop.xlane.xlu0 %6916
        %v6918 = vsel %vm5428, %v6872, 0.0
        %6919 = vadd.xlane.f32.xlu0 %v6918
        %v6920 = vpop.xlane.xlu0 %6919
        %v6921 = vrcp.pop %v6875
        %v6922 = vrcp.pop %v6878
        %v6923 = vrcp.pop %v6881
        %v6924 = vrcp.pop %v6884
        %v6925 = vrcp.pop %v6887
        %v6926 = vrcp.pop %v6890
        %v6927 = vrcp.pop %v6893
        %v6928 = vrcp.pop %v6896
        %v6929 = vrcp.pop %v6899
        %v6930 = vrcp.pop %v6902
        %v6931 = vrcp.pop %v6905
        %v6932 = vrcp.pop %v6908
        %v6933 = vrcp.pop %v6911
        %v6934 = vrcp.pop %v6914
        %v6935 = vrcp.pop %v6917
        %v6936 = vrcp.pop %v6920
        %v6937 = vmul.f32 %v6842, %v6921
        %v6938 = vmul.f32 %v6844, %v6922
        %v6939 = vmul.f32 %v6846, %v6923
        %v6940 = vmul.f32 %v6848, %v6924
        %v6941 = vmul.f32 %v6850, %v6925
        %v6942 = vmul.f32 %v6852, %v6926
        %v6943 = vmul.f32 %v6854, %v6927
        %v6944 = vmul.f32 %v6856, %v6928
        %v6945 = vmul.f32 %v6858, %v6929
        %v6946 = vmul.f32 %v6860, %v6930
        %v6947 = vmul.f32 %v6862, %v6931
        %v6948 = vmul.f32 %v6864, %v6932
        %v6949 = vmul.f32 %v6866, %v6933
        %v6950 = vmul.f32 %v6868, %v6934
        %v6951 = vmul.f32 %v6870, %v6935
        %v6952 = vmul.f32 %v6872, %v6936
        %v6953 = vpack.c.bf16 %v6938, %v6937
        %v6954 = vpack.c.bf16 %v6940, %v6939
        %v6955 = vpack.c.bf16 %v6942, %v6941
        %v6956 = vpack.c.bf16 %v6944, %v6943
        %v6957 = vpack.c.bf16 %v6946, %v6945
        %v6958 = vpack.c.bf16 %v6948, %v6947
        %v6959 = vpack.c.bf16 %v6950, %v6949
        %v6960 = vpack.c.bf16 %v6952, %v6951
        %6961 = vrot.lane.b32.xlu0 %v5192, 64
        %v6962 = vpop.permute.xlu0 %6961
        %v6965 = vsel %vm5428, %v6953, 0
        %v6968 = vsel %vm5428, %v6954, 0
        %6970 = vmatprep.subr.bf16.mxu0 0
        %6971 = vmatpush1.bf16.msra.mxu0 0
        %6972 = vmatprep.subr.bf16.mxu0 0
        %6973 = vmatpush1.bf16.msra.mxu0 0
        %6974 = vmatprep.subr.bf16.mxu0 0
        %6975 = vmatpush1.bf16.msra.mxu0 0
        %6976 = vmatprep.subr.bf16.mxu0 0
        %6977 = vmatpush1.bf16.msra.mxu0 0
        %6978 = vmatprep.subr.bf16.mxu0 0
        %6979 = vmatpush1.bf16.msra.mxu0 0
        %6980 = vmatprep.subr.bf16.mxu0 0
        %6981 = vmatpush1.bf16.msra.mxu0 0
        %6982 = vmatprep.subr.bf16.mxu0 0
        %6983 = vmatpush1.bf16.msra.mxu0 0
        %6984 = vmatprep.subr.bf16.mxu0 0
        %6985 = vmatpush1.bf16.msra.mxu0 %v6962
        %6986 = vmatprep.subr.bf16.mxu0 0
        %6987 = vmatpush2.bf16.msra.mxu0 0
        %6988 = vmatprep.subr.bf16.mxu0 0
        %6989 = vmatpush2.bf16.msra.mxu0 0
        %6990 = vmatprep.subr.bf16.mxu0 0
        %6991 = vmatpush2.bf16.msra.mxu0 0
        %6992 = vmatprep.subr.bf16.mxu0 0
        %6993 = vmatpush2.bf16.msra.mxu0 0
        %6994 = vmatprep.subr.bf16.mxu0 0
        %6995 = vmatpush2.bf16.msra.mxu0 0
        %6996 = vmatprep.subr.bf16.mxu0 0
        %6997 = vmatpush2.bf16.msra.mxu0 0
        %6998 = vmatprep.subr.bf16.mxu0 0
        %6999 = vmatpush2.bf16.msra.mxu0 0
        %7000 = vmatprep.subr.bf16.mxu0 0
        %7001 = vmatpush2.bf16.msra.mxu0 0
        %7002 = vmatprep.mubr.bf16.mxu0 0
        %7003 = vmatmul.mubr.bf16.gmra.mxu0 %v6965
        %v7004 = vpop.f32.mrf.mxu0
        %v7005 = vadd.f32 0.0, %v7004
        %v7006 = vpop.f32.mrf.mxu0
        %v7007 = vpop.f32.mrf.mxu0
        %v7008 = vadd.f32 0.0, %v7007
        %v7009 = vpop.f32.mrf.mxu0
        %7010 = vmatprep.mubr.bf16.mxu0 0
        %7011 = vmatmul.mubr.bf16.gmra.mxu0 %v6968
        %v7012 = vpop.f32.mrf.mxu0
        %v7013 = vadd.f32 0.0, %v7012
        %v7014 = vpop.f32.mrf.mxu0
        %v7015 = vpop.f32.mrf.mxu0
        %v7016 = vadd.f32 0.0, %v7015
        %v7017 = vpop.f32.mrf.mxu0
        %7018 = vdwg.mxu0
        %7019 = vrot.lane.b32.xlu0 %v5193, 64
        %v7020 = vpop.permute.xlu0 %7019
        %v7023 = vsel %vm5428, %v6955, 0
        %v7026 = vsel %vm5428, %v6956, 0
        %7028 = vmatprep.subr.bf16.mxu0 0
        %7029 = vmatpush1.bf16.msra.mxu0 0
        %7030 = vmatprep.subr.bf16.mxu0 0
        %7031 = vmatpush1.bf16.msra.mxu0 0
        %7032 = vmatprep.subr.bf16.mxu0 0
        %7033 = vmatpush1.bf16.msra.mxu0 0
        %7034 = vmatprep.subr.bf16.mxu0 0
        %7035 = vmatpush1.bf16.msra.mxu0 0
        %7036 = vmatprep.subr.bf16.mxu0 0
        %7037 = vmatpush1.bf16.msra.mxu0 0
        %7038 = vmatprep.subr.bf16.mxu0 0
        %7039 = vmatpush1.bf16.msra.mxu0 0
        %7040 = vmatprep.subr.bf16.mxu0 0
        %7041 = vmatpush1.bf16.msra.mxu0 0
        %7042 = vmatprep.subr.bf16.mxu0 0
        %7043 = vmatpush1.bf16.msra.mxu0 %v7020
        %7044 = vmatprep.subr.bf16.mxu0 0
        %7045 = vmatpush2.bf16.msra.mxu0 0
        %7046 = vmatprep.subr.bf16.mxu0 0
        %7047 = vmatpush2.bf16.msra.mxu0 0
        %7048 = vmatprep.subr.bf16.mxu0 0
        %7049 = vmatpush2.bf16.msra.mxu0 0
        %7050 = vmatprep.subr.bf16.mxu0 0
        %7051 = vmatpush2.bf16.msra.mxu0 0
        %7052 = vmatprep.subr.bf16.mxu0 0
        %7053 = vmatpush2.bf16.msra.mxu0 0
        %7054 = vmatprep.subr.bf16.mxu0 0
        %7055 = vmatpush2.bf16.msra.mxu0 0
        %7056 = vmatprep.subr.bf16.mxu0 0
        %7057 = vmatpush2.bf16.msra.mxu0 0
        %7058 = vmatprep.subr.bf16.mxu0 0
        %7059 = vmatpush2.bf16.msra.mxu0 0
        %7060 = vmatprep.mubr.bf16.mxu0 0
        %7061 = vmatmul.mubr.bf16.gmra.mxu0 %v7023
        %v7062 = vpop.f32.mrf.mxu0
        %v7063 = vadd.f32 0.0, %v7062
        %v7064 = vpop.f32.mrf.mxu0
        %v7065 = vpop.f32.mrf.mxu0
        %v7066 = vadd.f32 0.0, %v7065
        %v7067 = vpop.f32.mrf.mxu0
        %7068 = vmatprep.mubr.bf16.mxu0 0
        %7069 = vmatmul.mubr.bf16.gmra.mxu0 %v7026
        %v7070 = vpop.f32.mrf.mxu0
        %v7071 = vadd.f32 0.0, %v7070
        %v7072 = vpop.f32.mrf.mxu0
        %v7073 = vpop.f32.mrf.mxu0
        %v7074 = vadd.f32 0.0, %v7073
        %v7075 = vpop.f32.mrf.mxu0
        %7076 = vdwg.mxu0
        %7077 = vrot.lane.b32.xlu0 %v5194, 64
        %v7078 = vpop.permute.xlu0 %7077
        %v7081 = vsel %vm5428, %v6957, 0
        %v7084 = vsel %vm5428, %v6958, 0
        %7086 = vmatprep.subr.bf16.mxu0 0
        %7087 = vmatpush1.bf16.msra.mxu0 0
        %7088 = vmatprep.subr.bf16.mxu0 0
        %7089 = vmatpush1.bf16.msra.mxu0 0
        %7090 = vmatprep.subr.bf16.mxu0 0
        %7091 = vmatpush1.bf16.msra.mxu0 0
        %7092 = vmatprep.subr.bf16.mxu0 0
        %7093 = vmatpush1.bf16.msra.mxu0 0
        %7094 = vmatprep.subr.bf16.mxu0 0
        %7095 = vmatpush1.bf16.msra.mxu0 0
        %7096 = vmatprep.subr.bf16.mxu0 0
        %7097 = vmatpush1.bf16.msra.mxu0 0
        %7098 = vmatprep.subr.bf16.mxu0 0
        %7099 = vmatpush1.bf16.msra.mxu0 0
        %7100 = vmatprep.subr.bf16.mxu0 0
        %7101 = vmatpush1.bf16.msra.mxu0 %v7078
        %7102 = vmatprep.subr.bf16.mxu0 0
        %7103 = vmatpush2.bf16.msra.mxu0 0
        %7104 = vmatprep.subr.bf16.mxu0 0
        %7105 = vmatpush2.bf16.msra.mxu0 0
        %7106 = vmatprep.subr.bf16.mxu0 0
        %7107 = vmatpush2.bf16.msra.mxu0 0
        %7108 = vmatprep.subr.bf16.mxu0 0
        %7109 = vmatpush2.bf16.msra.mxu0 0
        %7110 = vmatprep.subr.bf16.mxu0 0
        %7111 = vmatpush2.bf16.msra.mxu0 0
        %7112 = vmatprep.subr.bf16.mxu0 0
        %7113 = vmatpush2.bf16.msra.mxu0 0
        %7114 = vmatprep.subr.bf16.mxu0 0
        %7115 = vmatpush2.bf16.msra.mxu0 0
        %7116 = vmatprep.subr.bf16.mxu0 0
        %7117 = vmatpush2.bf16.msra.mxu0 0
        %7118 = vmatprep.mubr.bf16.mxu0 0
        %7119 = vmatmul.mubr.bf16.gmra.mxu0 %v7081
        %v7120 = vpop.f32.mrf.mxu0
        %v7121 = vadd.f32 0.0, %v7120
        %v7122 = vpop.f32.mrf.mxu0
        %v7123 = vpop.f32.mrf.mxu0
        %v7124 = vadd.f32 0.0, %v7123
        %v7125 = vpop.f32.mrf.mxu0
        %7126 = vmatprep.mubr.bf16.mxu0 0
        %7127 = vmatmul.mubr.bf16.gmra.mxu0 %v7084
        %v7128 = vpop.f32.mrf.mxu0
        %v7129 = vadd.f32 0.0, %v7128
        %v7130 = vpop.f32.mrf.mxu0
        %v7131 = vpop.f32.mrf.mxu0
        %v7132 = vadd.f32 0.0, %v7131
        %v7133 = vpop.f32.mrf.mxu0
        %7134 = vdwg.mxu0
        %7135 = vrot.lane.b32.xlu0 %v5195, 64
        %v7136 = vpop.permute.xlu0 %7135
        %v7139 = vsel %vm5428, %v6959, 0
        %v7142 = vsel %vm5428, %v6960, 0
        %7144 = vmatprep.subr.bf16.mxu0 0
        %7145 = vmatpush1.bf16.msra.mxu0 0
        %7146 = vmatprep.subr.bf16.mxu0 0
        %7147 = vmatpush1.bf16.msra.mxu0 0
        %7148 = vmatprep.subr.bf16.mxu0 0
        %7149 = vmatpush1.bf16.msra.mxu0 0
        %7150 = vmatprep.subr.bf16.mxu0 0
        %7151 = vmatpush1.bf16.msra.mxu0 0
        %7152 = vmatprep.subr.bf16.mxu0 0
        %7153 = vmatpush1.bf16.msra.mxu0 0
        %7154 = vmatprep.subr.bf16.mxu0 0
        %7155 = vmatpush1.bf16.msra.mxu0 0
        %7156 = vmatprep.subr.bf16.mxu0 0
        %7157 = vmatpush1.bf16.msra.mxu0 0
        %7158 = vmatprep.subr.bf16.mxu0 0
        %7159 = vmatpush1.bf16.msra.mxu0 %v7136
        %7160 = vmatprep.subr.bf16.mxu0 0
        %7161 = vmatpush2.bf16.msra.mxu0 0
        %7162 = vmatprep.subr.bf16.mxu0 0
        %7163 = vmatpush2.bf16.msra.mxu0 0
        %7164 = vmatprep.subr.bf16.mxu0 0
        %7165 = vmatpush2.bf16.msra.mxu0 0
        %7166 = vmatprep.subr.bf16.mxu0 0
        %7167 = vmatpush2.bf16.msra.mxu0 0
        %7168 = vmatprep.subr.bf16.mxu0 0
        %7169 = vmatpush2.bf16.msra.mxu0 0
        %7170 = vmatprep.subr.bf16.mxu0 0
        %7171 = vmatpush2.bf16.msra.mxu0 0
        %7172 = vmatprep.subr.bf16.mxu0 0
        %7173 = vmatpush2.bf16.msra.mxu0 0
        %7174 = vmatprep.subr.bf16.mxu0 0
        %7175 = vmatpush2.bf16.msra.mxu0 0
        %7176 = vmatprep.mubr.bf16.mxu0 0
        %7177 = vmatmul.mubr.bf16.gmra.mxu0 %v7139
        %v7178 = vpop.f32.mrf.mxu0
        %v7179 = vadd.f32 0.0, %v7178
        %v7180 = vpop.f32.mrf.mxu0
        %v7181 = vpop.f32.mrf.mxu0
        %v7182 = vadd.f32 0.0, %v7181
        %v7183 = vpop.f32.mrf.mxu0
        %7184 = vmatprep.mubr.bf16.mxu0 0
        %7185 = vmatmul.mubr.bf16.gmra.mxu0 %v7142
        %v7186 = vpop.f32.mrf.mxu0
        %v7187 = vadd.f32 0.0, %v7186
        %v7188 = vpop.f32.mrf.mxu0
        %v7189 = vpop.f32.mrf.mxu0
        %v7190 = vadd.f32 0.0, %v7189
        %v7191 = vpop.f32.mrf.mxu0
        %7192 = vdwg.mxu0
        %7193 = vrot.lane.b32.xlu0 %v5180, 32
        %v7194 = vpop.permute.xlu0 %7193
        %7195 = vrot.lane.b32.xlu0 %v5181, 32
        %v7196 = vpop.permute.xlu0 %7195
        %7197 = vrot.lane.b32.xlu0 %v5188, 32
        %v7198 = vpop.permute.xlu0 %7197
        %v7200 = vsel %vm1417, %v7194, 0
        %v7203 = vsel %vm1417, %v7196, 0
        %v7206 = vsel %vm1417, %v7198, 0
        %7208 = vmatprep.subr.bf16.mxu0 0
        %7209 = vmatpush1.bf16.xpose.msra.mxu0 0
        %7210 = vmatprep.subr.bf16.mxu0 0
        %7211 = vmatpush1.bf16.xpose.msra.mxu0 0
        %7212 = vmatprep.subr.bf16.mxu0 0
        %7213 = vmatpush1.bf16.xpose.msra.mxu0 0
        %7214 = vmatprep.subr.bf16.mxu0 0
        %7215 = vmatpush1.bf16.xpose.msra.mxu0 0
        %7216 = vmatprep.subr.bf16.mxu0 0
        %7217 = vmatpush1.bf16.xpose.msra.mxu0 0
        %7218 = vmatprep.subr.bf16.mxu0 0
        %7219 = vmatpush1.bf16.xpose.msra.mxu0 0
        %7220 = vmatprep.subr.bf16.mxu0 0
        %7221 = vmatpush1.bf16.xpose.msra.mxu0 0
        %7222 = vmatprep.subr.bf16.mxu0 0
        %7223 = vmatpush1.bf16.xpose.msra.mxu0 %v7206
        %7224 = vmatprep.subr.bf16.mxu0 0
        %7225 = vmatpush2.bf16.xpose.msra.mxu0 0
        %7226 = vmatprep.subr.bf16.mxu0 0
        %7227 = vmatpush2.bf16.xpose.msra.mxu0 0
        %7228 = vmatprep.subr.bf16.mxu0 0
        %7229 = vmatpush2.bf16.xpose.msra.mxu0 0
        %7230 = vmatprep.subr.bf16.mxu0 0
        %7231 = vmatpush2.bf16.xpose.msra.mxu0 0
        %7232 = vmatprep.subr.bf16.mxu0 0
        %7233 = vmatpush2.bf16.xpose.msra.mxu0 0
        %7234 = vmatprep.subr.bf16.mxu0 0
        %7235 = vmatpush2.bf16.xpose.msra.mxu0 0
        %7236 = vmatprep.subr.bf16.mxu0 0
        %7237 = vmatpush2.bf16.xpose.msra.mxu0 0
        %7238 = vmatprep.subr.bf16.mxu0 0
        %7239 = vmatpush2.bf16.xpose.msra.mxu0 0
        %7240 = vmatprep.mubr.bf16.mxu0 0
        %7241 = vmatmul.mubr.bf16.gmra.mxu0 %v7200
        %v7242 = vpop.f32.mrf.mxu0
        %v7243 = vadd.f32 0.0, %v7242
        %v7244 = vpop.f32.mrf.mxu0
        %v7245 = vpop.f32.mrf.mxu0
        %v7246 = vadd.f32 0.0, %v7245
        %v7247 = vpop.f32.mrf.mxu0
        %7248 = vmatprep.mubr.bf16.mxu0 0
        %7249 = vmatmul.mubr.bf16.gmra.mxu0 %v7203
        %v7250 = vpop.f32.mrf.mxu0
        %v7251 = vadd.f32 0.0, %v7250
        %v7252 = vpop.f32.mrf.mxu0
        %v7253 = vpop.f32.mrf.mxu0
        %v7254 = vadd.f32 0.0, %v7253
        %v7255 = vpop.f32.mrf.mxu0
        %7256 = vdwg.mxu0
        %7257 = vrot.lane.b32.xlu0 %v5182, 32
        %v7258 = vpop.permute.xlu0 %7257
        %7259 = vrot.lane.b32.xlu0 %v5183, 32
        %v7260 = vpop.permute.xlu0 %7259
        %7261 = vrot.lane.b32.xlu0 %v5189, 32
        %v7262 = vpop.permute.xlu0 %7261
        %v7264 = vsel %vm1417, %v7258, 0
        %v7267 = vsel %vm1417, %v7260, 0
        %v7270 = vsel %vm1417, %v7262, 0
        %7272 = vmatprep.subr.bf16.mxu0 0
        %7273 = vmatpush1.bf16.xpose.msra.mxu0 0
        %7274 = vmatprep.subr.bf16.mxu0 0
        %7275 = vmatpush1.bf16.xpose.msra.mxu0 0
        %7276 = vmatprep.subr.bf16.mxu0 0
        %7277 = vmatpush1.bf16.xpose.msra.mxu0 0
        %7278 = vmatprep.subr.bf16.mxu0 0
        %7279 = vmatpush1.bf16.xpose.msra.mxu0 0
        %7280 = vmatprep.subr.bf16.mxu0 0
        %7281 = vmatpush1.bf16.xpose.msra.mxu0 0
        %7282 = vmatprep.subr.bf16.mxu0 0
        %7283 = vmatpush1.bf16.xpose.msra.mxu0 0
        %7284 = vmatprep.subr.bf16.mxu0 0
        %7285 = vmatpush1.bf16.xpose.msra.mxu0 0
        %7286 = vmatprep.subr.bf16.mxu0 0
        %7287 = vmatpush1.bf16.xpose.msra.mxu0 %v7270
        %7288 = vmatprep.subr.bf16.mxu0 0
        %7289 = vmatpush2.bf16.xpose.msra.mxu0 0
        %7290 = vmatprep.subr.bf16.mxu0 0
        %7291 = vmatpush2.bf16.xpose.msra.mxu0 0
        %7292 = vmatprep.subr.bf16.mxu0 0
        %7293 = vmatpush2.bf16.xpose.msra.mxu0 0
        %7294 = vmatprep.subr.bf16.mxu0 0
        %7295 = vmatpush2.bf16.xpose.msra.mxu0 0
        %7296 = vmatprep.subr.bf16.mxu0 0
        %7297 = vmatpush2.bf16.xpose.msra.mxu0 0
        %7298 = vmatprep.subr.bf16.mxu0 0
        %7299 = vmatpush2.bf16.xpose.msra.mxu0 0
        %7300 = vmatprep.subr.bf16.mxu0 0
        %7301 = vmatpush2.bf16.xpose.msra.mxu0 0
        %7302 = vmatprep.subr.bf16.mxu0 0
        %7303 = vmatpush2.bf16.xpose.msra.mxu0 0
        %7304 = vmatprep.mubr.bf16.mxu0 0
        %7305 = vmatmul.mubr.bf16.gmra.mxu0 %v7264
        %v7306 = vpop.f32.mrf.mxu0
        %v7307 = vadd.f32 0.0, %v7306
        %v7308 = vpop.f32.mrf.mxu0
        %v7309 = vpop.f32.mrf.mxu0
        %v7310 = vadd.f32 0.0, %v7309
        %v7311 = vpop.f32.mrf.mxu0
        %7312 = vmatprep.mubr.bf16.mxu0 0
        %7313 = vmatmul.mubr.bf16.gmra.mxu0 %v7267
        %v7314 = vpop.f32.mrf.mxu0
        %v7315 = vadd.f32 0.0, %v7314
        %v7316 = vpop.f32.mrf.mxu0
        %v7317 = vpop.f32.mrf.mxu0
        %v7318 = vadd.f32 0.0, %v7317
        %v7319 = vpop.f32.mrf.mxu0
        %7320 = vdwg.mxu0
        %7321 = vrot.lane.b32.xlu0 %v5184, 32
        %v7322 = vpop.permute.xlu0 %7321
        %7323 = vrot.lane.b32.xlu0 %v5185, 32
        %v7324 = vpop.permute.xlu0 %7323
        %7325 = vrot.lane.b32.xlu0 %v5190, 32
        %v7326 = vpop.permute.xlu0 %7325
        %v7328 = vsel %vm1417, %v7322, 0
        %v7331 = vsel %vm1417, %v7324, 0
        %v7334 = vsel %vm1417, %v7326, 0
        %7336 = vmatprep.subr.bf16.mxu0 0
        %7337 = vmatpush1.bf16.xpose.msra.mxu0 0
        %7338 = vmatprep.subr.bf16.mxu0 0
        %7339 = vmatpush1.bf16.xpose.msra.mxu0 0
        %7340 = vmatprep.subr.bf16.mxu0 0
        %7341 = vmatpush1.bf16.xpose.msra.mxu0 0
        %7342 = vmatprep.subr.bf16.mxu0 0
        %7343 = vmatpush1.bf16.xpose.msra.mxu0 0
        %7344 = vmatprep.subr.bf16.mxu0 0
        %7345 = vmatpush1.bf16.xpose.msra.mxu0 0
        %7346 = vmatprep.subr.bf16.mxu0 0
        %7347 = vmatpush1.bf16.xpose.msra.mxu0 0
        %7348 = vmatprep.subr.bf16.mxu0 0
        %7349 = vmatpush1.bf16.xpose.msra.mxu0 0
        %7350 = vmatprep.subr.bf16.mxu0 0
        %7351 = vmatpush1.bf16.xpose.msra.mxu0 %v7334
        %7352 = vmatprep.subr.bf16.mxu0 0
        %7353 = vmatpush2.bf16.xpose.msra.mxu0 0
        %7354 = vmatprep.subr.bf16.mxu0 0
        %7355 = vmatpush2.bf16.xpose.msra.mxu0 0
        %7356 = vmatprep.subr.bf16.mxu0 0
        %7357 = vmatpush2.bf16.xpose.msra.mxu0 0
        %7358 = vmatprep.subr.bf16.mxu0 0
        %7359 = vmatpush2.bf16.xpose.msra.mxu0 0
        %7360 = vmatprep.subr.bf16.mxu0 0
        %7361 = vmatpush2.bf16.xpose.msra.mxu0 0
        %7362 = vmatprep.subr.bf16.mxu0 0
        %7363 = vmatpush2.bf16.xpose.msra.mxu0 0
        %7364 = vmatprep.subr.bf16.mxu0 0
        %7365 = vmatpush2.bf16.xpose.msra.mxu0 0
        %7366 = vmatprep.subr.bf16.mxu0 0
        %7367 = vmatpush2.bf16.xpose.msra.mxu0 0
        %7368 = vmatprep.mubr.bf16.mxu0 0
        %7369 = vmatmul.mubr.bf16.gmra.mxu0 %v7328
        %v7370 = vpop.f32.mrf.mxu0
        %v7371 = vadd.f32 0.0, %v7370
        %v7372 = vpop.f32.mrf.mxu0
        %v7373 = vpop.f32.mrf.mxu0
        %v7374 = vadd.f32 0.0, %v7373
        %v7375 = vpop.f32.mrf.mxu0
        %7376 = vmatprep.mubr.bf16.mxu0 0
        %7377 = vmatmul.mubr.bf16.gmra.mxu0 %v7331
        %v7378 = vpop.f32.mrf.mxu0
        %v7379 = vadd.f32 0.0, %v7378
        %v7380 = vpop.f32.mrf.mxu0
        %v7381 = vpop.f32.mrf.mxu0
        %v7382 = vadd.f32 0.0, %v7381
        %v7383 = vpop.f32.mrf.mxu0
        %7384 = vdwg.mxu0
        %7385 = vrot.lane.b32.xlu0 %v5186, 32
        %v7386 = vpop.permute.xlu0 %7385
        %7387 = vrot.lane.b32.xlu0 %v5187, 32
        %v7388 = vpop.permute.xlu0 %7387
        %7389 = vrot.lane.b32.xlu0 %v5191, 32
        %v7390 = vpop.permute.xlu0 %7389
        %v7392 = vsel %vm1417, %v7386, 0
        %v7395 = vsel %vm1417, %v7388, 0
        %v7398 = vsel %vm1417, %v7390, 0
        %7400 = vmatprep.subr.bf16.mxu0 0
        %7401 = vmatpush1.bf16.xpose.msra.mxu0 0
        %7402 = vmatprep.subr.bf16.mxu0 0
        %7403 = vmatpush1.bf16.xpose.msra.mxu0 0
        %7404 = vmatprep.subr.bf16.mxu0 0
        %7405 = vmatpush1.bf16.xpose.msra.mxu0 0
        %7406 = vmatprep.subr.bf16.mxu0 0
        %7407 = vmatpush1.bf16.xpose.msra.mxu0 0
        %7408 = vmatprep.subr.bf16.mxu0 0
        %7409 = vmatpush1.bf16.xpose.msra.mxu0 0
        %7410 = vmatprep.subr.bf16.mxu0 0
        %7411 = vmatpush1.bf16.xpose.msra.mxu0 0
        %7412 = vmatprep.subr.bf16.mxu0 0
        %7413 = vmatpush1.bf16.xpose.msra.mxu0 0
        %7414 = vmatprep.subr.bf16.mxu0 0
        %7415 = vmatpush1.bf16.xpose.msra.mxu0 %v7398
        %7416 = vmatprep.subr.bf16.mxu0 0
        %7417 = vmatpush2.bf16.xpose.msra.mxu0 0
        %7418 = vmatprep.subr.bf16.mxu0 0
        %7419 = vmatpush2.bf16.xpose.msra.mxu0 0
        %7420 = vmatprep.subr.bf16.mxu0 0
        %7421 = vmatpush2.bf16.xpose.msra.mxu0 0
        %7422 = vmatprep.subr.bf16.mxu0 0
        %7423 = vmatpush2.bf16.xpose.msra.mxu0 0
        %7424 = vmatprep.subr.bf16.mxu0 0
        %7425 = vmatpush2.bf16.xpose.msra.mxu0 0
        %7426 = vmatprep.subr.bf16.mxu0 0
        %7427 = vmatpush2.bf16.xpose.msra.mxu0 0
        %7428 = vmatprep.subr.bf16.mxu0 0
        %7429 = vmatpush2.bf16.xpose.msra.mxu0 0
        %7430 = vmatprep.subr.bf16.mxu0 0
        %7431 = vmatpush2.bf16.xpose.msra.mxu0 0
        %7432 = vmatprep.mubr.bf16.mxu0 0
        %7433 = vmatmul.mubr.bf16.gmra.mxu0 %v7392
        %v7434 = vpop.f32.mrf.mxu0
        %v7435 = vadd.f32 0.0, %v7434
        %v7436 = vpop.f32.mrf.mxu0
        %v7437 = vpop.f32.mrf.mxu0
        %v7438 = vadd.f32 0.0, %v7437
        %v7439 = vpop.f32.mrf.mxu0
        %7440 = vmatprep.mubr.bf16.mxu0 0
        %7441 = vmatmul.mubr.bf16.gmra.mxu0 %v7395
        %v7442 = vpop.f32.mrf.mxu0
        %v7443 = vadd.f32 0.0, %v7442
        %v7444 = vpop.f32.mrf.mxu0
        %v7445 = vpop.f32.mrf.mxu0
        %v7446 = vadd.f32 0.0, %v7445
        %v7447 = vpop.f32.mrf.mxu0
        %7448 = vdwg.mxu0
        %v7449 = vsel %vm5428, %v7243, -inf
        %7450 = vmax.xlane.f32.xlu0 %v7449
        %v7451 = vpop.xlane.xlu0 %7450
        %v7452 = vsel %vm5428, %v7246, -inf
        %7453 = vmax.xlane.f32.xlu0 %v7452
        %v7454 = vpop.xlane.xlu0 %7453
        %v7455 = vsel %vm5428, %v7251, -inf
        %7456 = vmax.xlane.f32.xlu0 %v7455
        %v7457 = vpop.xlane.xlu0 %7456
        %v7458 = vsel %vm5428, %v7254, -inf
        %7459 = vmax.xlane.f32.xlu0 %v7458
        %v7460 = vpop.xlane.xlu0 %7459
        %v7461 = vsel %vm5428, %v7307, -inf
        %7462 = vmax.xlane.f32.xlu0 %v7461
        %v7463 = vpop.xlane.xlu0 %7462
        %v7464 = vsel %vm5428, %v7310, -inf
        %7465 = vmax.xlane.f32.xlu0 %v7464
        %v7466 = vpop.xlane.xlu0 %7465
        %v7467 = vsel %vm5428, %v7315, -inf
        %7468 = vmax.xlane.f32.xlu0 %v7467
        %v7469 = vpop.xlane.xlu0 %7468
        %v7470 = vsel %vm5428, %v7318, -inf
        %7471 = vmax.xlane.f32.xlu0 %v7470
        %v7472 = vpop.xlane.xlu0 %7471
        %v7473 = vsel %vm5428, %v7371, -inf
        %7474 = vmax.xlane.f32.xlu0 %v7473
        %v7475 = vpop.xlane.xlu0 %7474
        %v7476 = vsel %vm5428, %v7374, -inf
        %7477 = vmax.xlane.f32.xlu0 %v7476
        %v7478 = vpop.xlane.xlu0 %7477
        %v7479 = vsel %vm5428, %v7379, -inf
        %7480 = vmax.xlane.f32.xlu0 %v7479
        %v7481 = vpop.xlane.xlu0 %7480
        %v7482 = vsel %vm5428, %v7382, -inf
        %7483 = vmax.xlane.f32.xlu0 %v7482
        %v7484 = vpop.xlane.xlu0 %7483
        %v7485 = vsel %vm5428, %v7435, -inf
        %7486 = vmax.xlane.f32.xlu0 %v7485
        %v7487 = vpop.xlane.xlu0 %7486
        %v7488 = vsel %vm5428, %v7438, -inf
        %7489 = vmax.xlane.f32.xlu0 %v7488
        %v7490 = vpop.xlane.xlu0 %7489
        %v7491 = vsel %vm5428, %v7443, -inf
        %7492 = vmax.xlane.f32.xlu0 %v7491
        %v7493 = vpop.xlane.xlu0 %7492
        %v7494 = vsel %vm5428, %v7446, -inf
        %7495 = vmax.xlane.f32.xlu0 %v7494
        %v7496 = vpop.xlane.xlu0 %7495
        %v7497 = vsub.f32 %v7243, %v7451
        %v7498 = vsub.f32 %v7246, %v7454
        %v7499 = vsub.f32 %v7251, %v7457
        %v7500 = vsub.f32 %v7254, %v7460
        %v7501 = vsub.f32 %v7307, %v7463
        %v7502 = vsub.f32 %v7310, %v7466
        %v7503 = vsub.f32 %v7315, %v7469
        %v7504 = vsub.f32 %v7318, %v7472
        %v7505 = vsub.f32 %v7371, %v7475
        %v7506 = vsub.f32 %v7374, %v7478
        %v7507 = vsub.f32 %v7379, %v7481
        %v7508 = vsub.f32 %v7382, %v7484
        %v7509 = vsub.f32 %v7435, %v7487
        %v7510 = vsub.f32 %v7438, %v7490
        %v7511 = vsub.f32 %v7443, %v7493
        %v7512 = vsub.f32 %v7446, %v7496
        %v7513 = vmul.f32 %v7497, 1.442695
        %v7514 = vpow.pop %v7513
        %v7515 = vmul.f32 %v7498, 1.442695
        %v7516 = vpow.pop %v7515
        %v7517 = vmul.f32 %v7499, 1.442695
        %v7518 = vpow.pop %v7517
        %v7519 = vmul.f32 %v7500, 1.442695
        %v7520 = vpow.pop %v7519
        %v7521 = vmul.f32 %v7501, 1.442695
        %v7522 = vpow.pop %v7521
        %v7523 = vmul.f32 %v7502, 1.442695
        %v7524 = vpow.pop %v7523
        %v7525 = vmul.f32 %v7503, 1.442695
        %v7526 = vpow.pop %v7525
        %v7527 = vmul.f32 %v7504, 1.442695
        %v7528 = vpow.pop %v7527
        %v7529 = vmul.f32 %v7505, 1.442695
        %v7530 = vpow.pop %v7529
        %v7531 = vmul.f32 %v7506, 1.442695
        %v7532 = vpow.pop %v7531
        %v7533 = vmul.f32 %v7507, 1.442695
        %v7534 = vpow.pop %v7533
        %v7535 = vmul.f32 %v7508, 1.442695
        %v7536 = vpow.pop %v7535
        %v7537 = vmul.f32 %v7509, 1.442695
        %v7538 = vpow.pop %v7537
        %v7539 = vmul.f32 %v7510, 1.442695
        %v7540 = vpow.pop %v7539
        %v7541 = vmul.f32 %v7511, 1.442695
        %v7542 = vpow.pop %v7541
        %v7543 = vmul.f32 %v7512, 1.442695
        %v7544 = vpow.pop %v7543
        %v7545 = vsel %vm5428, %v7514, 0.0
        %7546 = vadd.xlane.f32.xlu0 %v7545
        %v7547 = vpop.xlane.xlu0 %7546
        %v7548 = vsel %vm5428, %v7516, 0.0
        %7549 = vadd.xlane.f32.xlu0 %v7548
        %v7550 = vpop.xlane.xlu0 %7549
        %v7551 = vsel %vm5428, %v7518, 0.0
        %7552 = vadd.xlane.f32.xlu0 %v7551
        %v7553 = vpop.xlane.xlu0 %7552
        %v7554 = vsel %vm5428, %v7520, 0.0
        %7555 = vadd.xlane.f32.xlu0 %v7554
        %v7556 = vpop.xlane.xlu0 %7555
        %v7557 = vsel %vm5428, %v7522, 0.0
        %7558 = vadd.xlane.f32.xlu0 %v7557
        %v7559 = vpop.xlane.xlu0 %7558
        %v7560 = vsel %vm5428, %v7524, 0.0
        %7561 = vadd.xlane.f32.xlu0 %v7560
        %v7562 = vpop.xlane.xlu0 %7561
        %v7563 = vsel %vm5428, %v7526, 0.0
        %7564 = vadd.xlane.f32.xlu0 %v7563
        %v7565 = vpop.xlane.xlu0 %7564
        %v7566 = vsel %vm5428, %v7528, 0.0
        %7567 = vadd.xlane.f32.xlu0 %v7566
        %v7568 = vpop.xlane.xlu0 %7567
        %v7569 = vsel %vm5428, %v7530, 0.0
        %7570 = vadd.xlane.f32.xlu0 %v7569
        %v7571 = vpop.xlane.xlu0 %7570
        %v7572 = vsel %vm5428, %v7532, 0.0
        %7573 = vadd.xlane.f32.xlu0 %v7572
        %v7574 = vpop.xlane.xlu0 %7573
        %v7575 = vsel %vm5428, %v7534, 0.0
        %7576 = vadd.xlane.f32.xlu0 %v7575
        %v7577 = vpop.xlane.xlu0 %7576
        %v7578 = vsel %vm5428, %v7536, 0.0
        %7579 = vadd.xlane.f32.xlu0 %v7578
        %v7580 = vpop.xlane.xlu0 %7579
        %v7581 = vsel %vm5428, %v7538, 0.0
        %7582 = vadd.xlane.f32.xlu0 %v7581
        %v7583 = vpop.xlane.xlu0 %7582
        %v7584 = vsel %vm5428, %v7540, 0.0
        %7585 = vadd.xlane.f32.xlu0 %v7584
        %v7586 = vpop.xlane.xlu0 %7585
        %v7587 = vsel %vm5428, %v7542, 0.0
        %7588 = vadd.xlane.f32.xlu0 %v7587
        %v7589 = vpop.xlane.xlu0 %7588
        %v7590 = vsel %vm5428, %v7544, 0.0
        %7591 = vadd.xlane.f32.xlu0 %v7590
        %v7592 = vpop.xlane.xlu0 %7591
        %v7593 = vrcp.pop %v7547
        %v7594 = vrcp.pop %v7550
        %v7595 = vrcp.pop %v7553
        %v7596 = vrcp.pop %v7556
        %v7597 = vrcp.pop %v7559
        %v7598 = vrcp.pop %v7562
        %v7599 = vrcp.pop %v7565
        %v7600 = vrcp.pop %v7568
        %v7601 = vrcp.pop %v7571
        %v7602 = vrcp.pop %v7574
        %v7603 = vrcp.pop %v7577
        %v7604 = vrcp.pop %v7580
        %v7605 = vrcp.pop %v7583
        %v7606 = vrcp.pop %v7586
        %v7607 = vrcp.pop %v7589
        %v7608 = vrcp.pop %v7592
        %v7609 = vmul.f32 %v7514, %v7593
        %v7610 = vmul.f32 %v7516, %v7594
        %v7611 = vmul.f32 %v7518, %v7595
        %v7612 = vmul.f32 %v7520, %v7596
        %v7613 = vmul.f32 %v7522, %v7597
        %v7614 = vmul.f32 %v7524, %v7598
        %v7615 = vmul.f32 %v7526, %v7599
        %v7616 = vmul.f32 %v7528, %v7600
        %v7617 = vmul.f32 %v7530, %v7601
        %v7618 = vmul.f32 %v7532, %v7602
        %v7619 = vmul.f32 %v7534, %v7603
        %v7620 = vmul.f32 %v7536, %v7604
        %v7621 = vmul.f32 %v7538, %v7605
        %v7622 = vmul.f32 %v7540, %v7606
        %v7623 = vmul.f32 %v7542, %v7607
        %v7624 = vmul.f32 %v7544, %v7608
        %v7625 = vpack.c.bf16 %v7610, %v7609
        %v7626 = vpack.c.bf16 %v7612, %v7611
        %v7627 = vpack.c.bf16 %v7614, %v7613
        %v7628 = vpack.c.bf16 %v7616, %v7615
        %v7629 = vpack.c.bf16 %v7618, %v7617
        %v7630 = vpack.c.bf16 %v7620, %v7619
        %v7631 = vpack.c.bf16 %v7622, %v7621
        %v7632 = vpack.c.bf16 %v7624, %v7623
        %7633 = vrot.lane.b32.xlu0 %v5192, 32
        %v7634 = vpop.permute.xlu0 %7633
        %v7637 = vsel %vm5428, %v7625, 0
        %v7640 = vsel %vm5428, %v7626, 0
        %7642 = vmatprep.subr.bf16.mxu0 0
        %7643 = vmatpush1.bf16.msra.mxu0 0
        %7644 = vmatprep.subr.bf16.mxu0 0
        %7645 = vmatpush1.bf16.msra.mxu0 0
        %7646 = vmatprep.subr.bf16.mxu0 0
        %7647 = vmatpush1.bf16.msra.mxu0 0
        %7648 = vmatprep.subr.bf16.mxu0 0
        %7649 = vmatpush1.bf16.msra.mxu0 0
        %7650 = vmatprep.subr.bf16.mxu0 0
        %7651 = vmatpush1.bf16.msra.mxu0 0
        %7652 = vmatprep.subr.bf16.mxu0 0
        %7653 = vmatpush1.bf16.msra.mxu0 0
        %7654 = vmatprep.subr.bf16.mxu0 0
        %7655 = vmatpush1.bf16.msra.mxu0 0
        %7656 = vmatprep.subr.bf16.mxu0 0
        %7657 = vmatpush1.bf16.msra.mxu0 %v7634
        %7658 = vmatprep.subr.bf16.mxu0 0
        %7659 = vmatpush2.bf16.msra.mxu0 0
        %7660 = vmatprep.subr.bf16.mxu0 0
        %7661 = vmatpush2.bf16.msra.mxu0 0
        %7662 = vmatprep.subr.bf16.mxu0 0
        %7663 = vmatpush2.bf16.msra.mxu0 0
        %7664 = vmatprep.subr.bf16.mxu0 0
        %7665 = vmatpush2.bf16.msra.mxu0 0
        %7666 = vmatprep.subr.bf16.mxu0 0
        %7667 = vmatpush2.bf16.msra.mxu0 0
        %7668 = vmatprep.subr.bf16.mxu0 0
        %7669 = vmatpush2.bf16.msra.mxu0 0
        %7670 = vmatprep.subr.bf16.mxu0 0
        %7671 = vmatpush2.bf16.msra.mxu0 0
        %7672 = vmatprep.subr.bf16.mxu0 0
        %7673 = vmatpush2.bf16.msra.mxu0 0
        %7674 = vmatprep.mubr.bf16.mxu0 0
        %7675 = vmatmul.mubr.bf16.gmra.mxu0 %v7637
        %v7676 = vpop.f32.mrf.mxu0
        %v7677 = vadd.f32 0.0, %v7676
        %v7678 = vpop.f32.mrf.mxu0
        %v7679 = vpop.f32.mrf.mxu0
        %v7680 = vadd.f32 0.0, %v7679
        %v7681 = vpop.f32.mrf.mxu0
        %7682 = vmatprep.mubr.bf16.mxu0 0
        %7683 = vmatmul.mubr.bf16.gmra.mxu0 %v7640
        %v7684 = vpop.f32.mrf.mxu0
        %v7685 = vadd.f32 0.0, %v7684
        %v7686 = vpop.f32.mrf.mxu0
        %v7687 = vpop.f32.mrf.mxu0
        %v7688 = vadd.f32 0.0, %v7687
        %v7689 = vpop.f32.mrf.mxu0
        %7690 = vdwg.mxu0
        %7691 = vrot.lane.b32.xlu0 %v5193, 32
        %v7692 = vpop.permute.xlu0 %7691
        %v7695 = vsel %vm5428, %v7627, 0
        %v7698 = vsel %vm5428, %v7628, 0
        %7700 = vmatprep.subr.bf16.mxu0 0
        %7701 = vmatpush1.bf16.msra.mxu0 0
        %7702 = vmatprep.subr.bf16.mxu0 0
        %7703 = vmatpush1.bf16.msra.mxu0 0
        %7704 = vmatprep.subr.bf16.mxu0 0
        %7705 = vmatpush1.bf16.msra.mxu0 0
        %7706 = vmatprep.subr.bf16.mxu0 0
        %7707 = vmatpush1.bf16.msra.mxu0 0
        %7708 = vmatprep.subr.bf16.mxu0 0
        %7709 = vmatpush1.bf16.msra.mxu0 0
        %7710 = vmatprep.subr.bf16.mxu0 0
        %7711 = vmatpush1.bf16.msra.mxu0 0
        %7712 = vmatprep.subr.bf16.mxu0 0
        %7713 = vmatpush1.bf16.msra.mxu0 0
        %7714 = vmatprep.subr.bf16.mxu0 0
        %7715 = vmatpush1.bf16.msra.mxu0 %v7692
        %7716 = vmatprep.subr.bf16.mxu0 0
        %7717 = vmatpush2.bf16.msra.mxu0 0
        %7718 = vmatprep.subr.bf16.mxu0 0
        %7719 = vmatpush2.bf16.msra.mxu0 0
        %7720 = vmatprep.subr.bf16.mxu0 0
        %7721 = vmatpush2.bf16.msra.mxu0 0
        %7722 = vmatprep.subr.bf16.mxu0 0
        %7723 = vmatpush2.bf16.msra.mxu0 0
        %7724 = vmatprep.subr.bf16.mxu0 0
        %7725 = vmatpush2.bf16.msra.mxu0 0
        %7726 = vmatprep.subr.bf16.mxu0 0
        %7727 = vmatpush2.bf16.msra.mxu0 0
        %7728 = vmatprep.subr.bf16.mxu0 0
        %7729 = vmatpush2.bf16.msra.mxu0 0
        %7730 = vmatprep.subr.bf16.mxu0 0
        %7731 = vmatpush2.bf16.msra.mxu0 0
        %7732 = vmatprep.mubr.bf16.mxu0 0
        %7733 = vmatmul.mubr.bf16.gmra.mxu0 %v7695
        %v7734 = vpop.f32.mrf.mxu0
        %v7735 = vadd.f32 0.0, %v7734
        %v7736 = vpop.f32.mrf.mxu0
        %v7737 = vpop.f32.mrf.mxu0
        %v7738 = vadd.f32 0.0, %v7737
        %v7739 = vpop.f32.mrf.mxu0
        %7740 = vmatprep.mubr.bf16.mxu0 0
        %7741 = vmatmul.mubr.bf16.gmra.mxu0 %v7698
        %v7742 = vpop.f32.mrf.mxu0
        %v7743 = vadd.f32 0.0, %v7742
        %v7744 = vpop.f32.mrf.mxu0
        %v7745 = vpop.f32.mrf.mxu0
        %v7746 = vadd.f32 0.0, %v7745
        %v7747 = vpop.f32.mrf.mxu0
        %7748 = vdwg.mxu0
        %7749 = vrot.lane.b32.xlu0 %v5194, 32
        %v7750 = vpop.permute.xlu0 %7749
        %v7753 = vsel %vm5428, %v7629, 0
        %v7756 = vsel %vm5428, %v7630, 0
        %7758 = vmatprep.subr.bf16.mxu0 0
        %7759 = vmatpush1.bf16.msra.mxu0 0
        %7760 = vmatprep.subr.bf16.mxu0 0
        %7761 = vmatpush1.bf16.msra.mxu0 0
        %7762 = vmatprep.subr.bf16.mxu0 0
        %7763 = vmatpush1.bf16.msra.mxu0 0
        %7764 = vmatprep.subr.bf16.mxu0 0
        %7765 = vmatpush1.bf16.msra.mxu0 0
        %7766 = vmatprep.subr.bf16.mxu0 0
        %7767 = vmatpush1.bf16.msra.mxu0 0
        %7768 = vmatprep.subr.bf16.mxu0 0
        %7769 = vmatpush1.bf16.msra.mxu0 0
        %7770 = vmatprep.subr.bf16.mxu0 0
        %7771 = vmatpush1.bf16.msra.mxu0 0
        %7772 = vmatprep.subr.bf16.mxu0 0
        %7773 = vmatpush1.bf16.msra.mxu0 %v7750
        %7774 = vmatprep.subr.bf16.mxu0 0
        %7775 = vmatpush2.bf16.msra.mxu0 0
        %7776 = vmatprep.subr.bf16.mxu0 0
        %7777 = vmatpush2.bf16.msra.mxu0 0
        %7778 = vmatprep.subr.bf16.mxu0 0
        %7779 = vmatpush2.bf16.msra.mxu0 0
        %7780 = vmatprep.subr.bf16.mxu0 0
        %7781 = vmatpush2.bf16.msra.mxu0 0
        %7782 = vmatprep.subr.bf16.mxu0 0
        %7783 = vmatpush2.bf16.msra.mxu0 0
        %7784 = vmatprep.subr.bf16.mxu0 0
        %7785 = vmatpush2.bf16.msra.mxu0 0
        %7786 = vmatprep.subr.bf16.mxu0 0
        %7787 = vmatpush2.bf16.msra.mxu0 0
        %7788 = vmatprep.subr.bf16.mxu0 0
        %7789 = vmatpush2.bf16.msra.mxu0 0
        %7790 = vmatprep.mubr.bf16.mxu0 0
        %7791 = vmatmul.mubr.bf16.gmra.mxu0 %v7753
        %v7792 = vpop.f32.mrf.mxu0
        %v7793 = vadd.f32 0.0, %v7792
        %v7794 = vpop.f32.mrf.mxu0
        %v7795 = vpop.f32.mrf.mxu0
        %v7796 = vadd.f32 0.0, %v7795
        %v7797 = vpop.f32.mrf.mxu0
        %7798 = vmatprep.mubr.bf16.mxu0 0
        %7799 = vmatmul.mubr.bf16.gmra.mxu0 %v7756
        %v7800 = vpop.f32.mrf.mxu0
        %v7801 = vadd.f32 0.0, %v7800
        %v7802 = vpop.f32.mrf.mxu0
        %v7803 = vpop.f32.mrf.mxu0
        %v7804 = vadd.f32 0.0, %v7803
        %v7805 = vpop.f32.mrf.mxu0
        %7806 = vdwg.mxu0
        %7807 = vrot.lane.b32.xlu0 %v5195, 32
        %v7808 = vpop.permute.xlu0 %7807
        %v7811 = vsel %vm5428, %v7631, 0
        %v7814 = vsel %vm5428, %v7632, 0
        %7816 = vmatprep.subr.bf16.mxu0 0
        %7817 = vmatpush1.bf16.msra.mxu0 0
        %7818 = vmatprep.subr.bf16.mxu0 0
        %7819 = vmatpush1.bf16.msra.mxu0 0
        %7820 = vmatprep.subr.bf16.mxu0 0
        %7821 = vmatpush1.bf16.msra.mxu0 0
        %7822 = vmatprep.subr.bf16.mxu0 0
        %7823 = vmatpush1.bf16.msra.mxu0 0
        %7824 = vmatprep.subr.bf16.mxu0 0
        %7825 = vmatpush1.bf16.msra.mxu0 0
        %7826 = vmatprep.subr.bf16.mxu0 0
        %7827 = vmatpush1.bf16.msra.mxu0 0
        %7828 = vmatprep.subr.bf16.mxu0 0
        %7829 = vmatpush1.bf16.msra.mxu0 0
        %7830 = vmatprep.subr.bf16.mxu0 0
        %7831 = vmatpush1.bf16.msra.mxu0 %v7808
        %7832 = vmatprep.subr.bf16.mxu0 0
        %7833 = vmatpush2.bf16.msra.mxu0 0
        %7834 = vmatprep.subr.bf16.mxu0 0
        %7835 = vmatpush2.bf16.msra.mxu0 0
        %7836 = vmatprep.subr.bf16.mxu0 0
        %7837 = vmatpush2.bf16.msra.mxu0 0
        %7838 = vmatprep.subr.bf16.mxu0 0
        %7839 = vmatpush2.bf16.msra.mxu0 0
        %7840 = vmatprep.subr.bf16.mxu0 0
        %7841 = vmatpush2.bf16.msra.mxu0 0
        %7842 = vmatprep.subr.bf16.mxu0 0
        %7843 = vmatpush2.bf16.msra.mxu0 0
        %7844 = vmatprep.subr.bf16.mxu0 0
        %7845 = vmatpush2.bf16.msra.mxu0 0
        %7846 = vmatprep.subr.bf16.mxu0 0
        %7847 = vmatpush2.bf16.msra.mxu0 0
        %7848 = vmatprep.mubr.bf16.mxu0 0
        %7849 = vmatmul.mubr.bf16.gmra.mxu0 %v7811
        %v7850 = vpop.f32.mrf.mxu0
        %v7851 = vadd.f32 0.0, %v7850
        %v7852 = vpop.f32.mrf.mxu0
        %v7853 = vpop.f32.mrf.mxu0
        %v7854 = vadd.f32 0.0, %v7853
        %v7855 = vpop.f32.mrf.mxu0
        %7856 = vmatprep.mubr.bf16.mxu0 0
        %7857 = vmatmul.mubr.bf16.gmra.mxu0 %v7814
        %v7858 = vpop.f32.mrf.mxu0
        %v7859 = vadd.f32 0.0, %v7858
        %v7860 = vpop.f32.mrf.mxu0
        %v7861 = vpop.f32.mrf.mxu0
        %v7862 = vadd.f32 0.0, %v7861
        %v7863 = vpop.f32.mrf.mxu0
        %7864 = vdwg.mxu0
        %7881 = vrot.lane.b32.xlu0 %v6330, 32
        %v7882 = vpop.permute.xlu0 %7881
        %7883 = vrot.lane.b32.xlu0 %v6333, 32
        %v7884 = vpop.permute.xlu0 %7883
        %7885 = vrot.lane.b32.xlu0 %v6338, 32
        %v7886 = vpop.permute.xlu0 %7885
        %7887 = vrot.lane.b32.xlu0 %v6341, 32
        %v7888 = vpop.permute.xlu0 %7887
        %7889 = vrot.lane.b32.xlu0 %v6389, 32
        %v7890 = vpop.permute.xlu0 %7889
        %7891 = vrot.lane.b32.xlu0 %v6392, 32
        %v7892 = vpop.permute.xlu0 %7891
        %7893 = vrot.lane.b32.xlu0 %v6397, 32
        %v7894 = vpop.permute.xlu0 %7893
        %7895 = vrot.lane.b32.xlu0 %v6400, 32
        %v7896 = vpop.permute.xlu0 %7895
        %7897 = vrot.lane.b32.xlu0 %v6448, 32
        %v7898 = vpop.permute.xlu0 %7897
        %7899 = vrot.lane.b32.xlu0 %v6451, 32
        %v7900 = vpop.permute.xlu0 %7899
        %7901 = vrot.lane.b32.xlu0 %v6456, 32
        %v7902 = vpop.permute.xlu0 %7901
        %7903 = vrot.lane.b32.xlu0 %v6459, 32
        %v7904 = vpop.permute.xlu0 %7903
        %7905 = vrot.lane.b32.xlu0 %v6507, 32
        %v7906 = vpop.permute.xlu0 %7905
        %7907 = vrot.lane.b32.xlu0 %v6510, 32
        %v7908 = vpop.permute.xlu0 %7907
        %7909 = vrot.lane.b32.xlu0 %v6515, 32
        %v7910 = vpop.permute.xlu0 %7909
        %7911 = vrot.lane.b32.xlu0 %v6518, 32
        %v7912 = vpop.permute.xlu0 %7911
        %7945 = vrot.lane.b32.xlu0 %v7005, 64
        %v7946 = vpop.permute.xlu0 %7945
        %7947 = vrot.lane.b32.xlu0 %v7008, 64
        %v7948 = vpop.permute.xlu0 %7947
        %7949 = vrot.lane.b32.xlu0 %v7013, 64
        %v7950 = vpop.permute.xlu0 %7949
        %7951 = vrot.lane.b32.xlu0 %v7016, 64
        %v7952 = vpop.permute.xlu0 %7951
        %7953 = vrot.lane.b32.xlu0 %v7063, 64
        %v7954 = vpop.permute.xlu0 %7953
        %7955 = vrot.lane.b32.xlu0 %v7066, 64
        %v7956 = vpop.permute.xlu0 %7955
        %7957 = vrot.lane.b32.xlu0 %v7071, 64
        %v7958 = vpop.permute.xlu0 %7957
        %7959 = vrot.lane.b32.xlu0 %v7074, 64
        %v7960 = vpop.permute.xlu0 %7959
        %7961 = vrot.lane.b32.xlu0 %v7121, 64
        %v7962 = vpop.permute.xlu0 %7961
        %7963 = vrot.lane.b32.xlu0 %v7124, 64
        %v7964 = vpop.permute.xlu0 %7963
        %7965 = vrot.lane.b32.xlu0 %v7129, 64
        %v7966 = vpop.permute.xlu0 %7965
        %7967 = vrot.lane.b32.xlu0 %v7132, 64
        %v7968 = vpop.permute.xlu0 %7967
        %7969 = vrot.lane.b32.xlu0 %v7179, 64
        %v7970 = vpop.permute.xlu0 %7969
        %7971 = vrot.lane.b32.xlu0 %v7182, 64
        %v7972 = vpop.permute.xlu0 %7971
        %7973 = vrot.lane.b32.xlu0 %v7187, 64
        %v7974 = vpop.permute.xlu0 %7973
        %7975 = vrot.lane.b32.xlu0 %v7190, 64
        %v7976 = vpop.permute.xlu0 %7975
        %8009 = vrot.lane.b32.xlu0 %v7677, 96
        %v8010 = vpop.permute.xlu0 %8009
        %8011 = vrot.lane.b32.xlu0 %v7680, 96
        %v8012 = vpop.permute.xlu0 %8011
        %8013 = vrot.lane.b32.xlu0 %v7685, 96
        %v8014 = vpop.permute.xlu0 %8013
        %8015 = vrot.lane.b32.xlu0 %v7688, 96
        %v8016 = vpop.permute.xlu0 %8015
        %8017 = vrot.lane.b32.xlu0 %v7735, 96
        %v8018 = vpop.permute.xlu0 %8017
        %8019 = vrot.lane.b32.xlu0 %v7738, 96
        %v8020 = vpop.permute.xlu0 %8019
        %8021 = vrot.lane.b32.xlu0 %v7743, 96
        %v8022 = vpop.permute.xlu0 %8021
        %8023 = vrot.lane.b32.xlu0 %v7746, 96
        %v8024 = vpop.permute.xlu0 %8023
        %8025 = vrot.lane.b32.xlu0 %v7793, 96
        %v8026 = vpop.permute.xlu0 %8025
        %8027 = vrot.lane.b32.xlu0 %v7796, 96
        %v8028 = vpop.permute.xlu0 %8027
        %8029 = vrot.lane.b32.xlu0 %v7801, 96
        %v8030 = vpop.permute.xlu0 %8029
        %8031 = vrot.lane.b32.xlu0 %v7804, 96
        %v8032 = vpop.permute.xlu0 %8031
        %8033 = vrot.lane.b32.xlu0 %v7851, 96
        %v8034 = vpop.permute.xlu0 %8033
        %8035 = vrot.lane.b32.xlu0 %v7854, 96
        %v8036 = vpop.permute.xlu0 %8035
        %8037 = vrot.lane.b32.xlu0 %v7859, 96
        %v8038 = vpop.permute.xlu0 %8037
        %8039 = vrot.lane.b32.xlu0 %v7862, 96
        %v8040 = vpop.permute.xlu0 %8039
        %v8057 = vsel %vm1417, %v5654, %v7882
        %v8058 = vsel %vm1417, %v5657, %v7884
        %v8059 = vsel %vm1417, %v5662, %v7886
        %v8060 = vsel %vm1417, %v5665, %v7888
        %v8061 = vsel %vm1417, %v5709, %v7890
        %v8062 = vsel %vm1417, %v5712, %v7892
        %v8063 = vsel %vm1417, %v5717, %v7894
        %v8064 = vsel %vm1417, %v5720, %v7896
        %v8065 = vsel %vm1417, %v5764, %v7898
        %v8066 = vsel %vm1417, %v5767, %v7900
        %v8067 = vsel %vm1417, %v5772, %v7902
        %v8068 = vsel %vm1417, %v5775, %v7904
        %v8069 = vsel %vm1417, %v5819, %v7906
        %v8070 = vsel %vm1417, %v5822, %v7908
        %v8071 = vsel %vm1417, %v5827, %v7910
        %v8072 = vsel %vm1417, %v5830, %v7912
        %v8073 = vsel %vm4410, %v8057, %v7946
        %v8074 = vsel %vm4410, %v8058, %v7948
        %v8075 = vsel %vm4410, %v8059, %v7950
        %v8076 = vsel %vm4410, %v8060, %v7952
        %v8077 = vsel %vm4410, %v8061, %v7954
        %v8078 = vsel %vm4410, %v8062, %v7956
        %v8079 = vsel %vm4410, %v8063, %v7958
        %v8080 = vsel %vm4410, %v8064, %v7960
        %v8081 = vsel %vm4410, %v8065, %v7962
        %v8082 = vsel %vm4410, %v8066, %v7964
        %v8083 = vsel %vm4410, %v8067, %v7966
        %v8084 = vsel %vm4410, %v8068, %v7968
        %v8085 = vsel %vm4410, %v8069, %v7970
        %v8086 = vsel %vm4410, %v8070, %v7972
        %v8087 = vsel %vm4410, %v8071, %v7974
        %v8088 = vsel %vm4410, %v8072, %v7976
        %v8089 = vsel %vm4427, %v8073, %v8010
        %v8090 = vsel %vm4427, %v8074, %v8012
        %v8091 = vsel %vm4427, %v8075, %v8014
        %v8092 = vsel %vm4427, %v8076, %v8016
        %v8093 = vsel %vm4427, %v8077, %v8018
        %v8094 = vsel %vm4427, %v8078, %v8020
        %v8095 = vsel %vm4427, %v8079, %v8022
        %v8096 = vsel %vm4427, %v8080, %v8024
        %v8097 = vsel %vm4427, %v8081, %v8026
        %v8098 = vsel %vm4427, %v8082, %v8028
        %v8099 = vsel %vm4427, %v8083, %v8030
        %v8100 = vsel %vm4427, %v8084, %v8032
        %v8101 = vsel %vm4427, %v8085, %v8034
        %v8102 = vsel %vm4427, %v8086, %v8036
        %v8103 = vsel %vm4427, %v8087, %v8038
        %v8104 = vsel %vm4427, %v8088, %v8040
        %v8105 = vpack.c.bf16 %v8090, %v8089
        %v8106 = vpack.c.bf16 %v8092, %v8091
        %v8107 = vpack.c.bf16 %v8094, %v8093
        %v8108 = vpack.c.bf16 %v8096, %v8095
        %v8109 = vpack.c.bf16 %v8098, %v8097
        %v8110 = vpack.c.bf16 %v8100, %v8099
        %v8111 = vpack.c.bf16 %v8102, %v8101
        %v8112 = vpack.c.bf16 %v8104, %v8103
        %v8113 = vld [vmem:[#allocation13] sm:$0xf]
        %v8114 = vld [vmem:[#allocation13 + $0x4] sm:$0xf]
        %v8115 = vld [vmem:[#allocation13 + $0x8] sm:$0xf]
        %v8116 = vld [vmem:[#allocation13 + $0xc] sm:$0xf]
        %v8117 = vld [vmem:[#allocation13 + $0x10] sm:$0xf]
        %v8118 = vld [vmem:[#allocation13 + $0x14] sm:$0xf]
        %v8119 = vld [vmem:[#allocation13 + $0x18] sm:$0xf]
        %v8120 = vld [vmem:[#allocation13 + $0x1c] sm:$0xf]
        %v8121 = vld [vmem:[#allocation13 + $0x20] sm:$0xf]
        %v8122 = vld [vmem:[#allocation13 + $0x24] sm:$0xf]
        %v8123 = vld [vmem:[#allocation13 + $0x28] sm:$0xf]
        %v8124 = vld [vmem:[#allocation13 + $0x2c] sm:$0xf]
        %v8125 = vld [vmem:[#allocation13 + $0x30] sm:$0xf]
        %v8126 = vld [vmem:[#allocation13 + $0x34] sm:$0xf]
        %v8127 = vld [vmem:[#allocation13 + $0x38] sm:$0xf]
        %v8128 = vld [vmem:[#allocation13 + $0x3c] sm:$0xf]
        %v8145 = vunpack.c.l.b16 %v8113
        %v8146 = vunpack.c.l.b16 %v8114
        %v8147 = vunpack.c.l.b16 %v8115
        %v8148 = vunpack.c.l.b16 %v8116
        %v8149 = vunpack.c.l.b16 %v8117
        %v8150 = vunpack.c.l.b16 %v8118
        %v8151 = vunpack.c.l.b16 %v8119
        %v8152 = vunpack.c.l.b16 %v8120
        %v8153 = vunpack.c.l.b16 %v8121
        %v8154 = vunpack.c.l.b16 %v8122
        %v8155 = vunpack.c.l.b16 %v8123
        %v8156 = vunpack.c.l.b16 %v8124
        %v8157 = vunpack.c.l.b16 %v8125
        %v8158 = vunpack.c.l.b16 %v8126
        %v8159 = vunpack.c.l.b16 %v8127
        %v8160 = vunpack.c.l.b16 %v8128
        %v8161 = vpack.c.b16 %v8146, %v8145
        %v8162 = vpack.c.b16 %v8148, %v8147
        %v8163 = vpack.c.b16 %v8150, %v8149
        %v8164 = vpack.c.b16 %v8152, %v8151
        %v8165 = vpack.c.b16 %v8154, %v8153
        %v8166 = vpack.c.b16 %v8156, %v8155
        %v8167 = vpack.c.b16 %v8158, %v8157
        %v8168 = vpack.c.b16 %v8160, %v8159
        %8177 = vmatprep.subr.bf16.mxu0 0
        %8178 = vmatpush1.bf16.msra.mxu0 %v8168
        %8179 = vmatprep.subr.bf16.mxu0 0
        %8180 = vmatpush1.bf16.msra.mxu0 %v8167
        %8181 = vmatprep.subr.bf16.mxu0 0
        %8182 = vmatpush1.bf16.msra.mxu0 %v8166
        %8183 = vmatprep.subr.bf16.mxu0 0
        %8184 = vmatpush1.bf16.msra.mxu0 %v8165
        %8185 = vmatprep.subr.bf16.mxu0 0
        %8186 = vmatpush1.bf16.msra.mxu0 %v8164
        %8187 = vmatprep.subr.bf16.mxu0 0
        %8188 = vmatpush1.bf16.msra.mxu0 %v8163
        %8189 = vmatprep.subr.bf16.mxu0 0
        %8190 = vmatpush1.bf16.msra.mxu0 %v8162
        %8191 = vmatprep.subr.bf16.mxu0 0
        %8192 = vmatpush1.bf16.msra.mxu0 %v8161
        %8193 = vmatprep.subr.bf16.mxu0 0
        %8194 = vmatpush2.bf16.msra.mxu0 0
        %8195 = vmatprep.subr.bf16.mxu0 0
        %8196 = vmatpush2.bf16.msra.mxu0 0
        %8197 = vmatprep.subr.bf16.mxu0 0
        %8198 = vmatpush2.bf16.msra.mxu0 0
        %8199 = vmatprep.subr.bf16.mxu0 0
        %8200 = vmatpush2.bf16.msra.mxu0 0
        %8201 = vmatprep.subr.bf16.mxu0 0
        %8202 = vmatpush2.bf16.msra.mxu0 0
        %8203 = vmatprep.subr.bf16.mxu0 0
        %8204 = vmatpush2.bf16.msra.mxu0 0
        %8205 = vmatprep.subr.bf16.mxu0 0
        %8206 = vmatpush2.bf16.msra.mxu0 0
        %8207 = vmatprep.subr.bf16.mxu0 0
        %8208 = vmatpush2.bf16.msra.mxu0 0
        %8209 = vmatprep.mubr.bf16.mxu0 0
        %8210 = vmatmul.mubr.bf16.gmra.mxu0 %v8105
        %v8211 = vpop.f32.mrf.mxu0
        %v8212 = vadd.f32 0.0, %v8211
        %v8213 = vpop.f32.mrf.mxu0
        %v8214 = vpop.f32.mrf.mxu0
        %v8215 = vadd.f32 0.0, %v8214
        %v8216 = vpop.f32.mrf.mxu0
        %8217 = vmatprep.mubr.bf16.mxu0 0
        %8218 = vmatmul.mubr.bf16.gmra.mxu0 %v8106
        %v8219 = vpop.f32.mrf.mxu0
        %v8220 = vadd.f32 0.0, %v8219
        %v8221 = vpop.f32.mrf.mxu0
        %v8222 = vpop.f32.mrf.mxu0
        %v8223 = vadd.f32 0.0, %v8222
        %v8224 = vpop.f32.mrf.mxu0
        %8225 = vmatprep.mubr.bf16.mxu0 0
        %8226 = vmatmul.mubr.bf16.gmra.mxu0 %v8107
        %v8227 = vpop.f32.mrf.mxu0
        %v8228 = vadd.f32 0.0, %v8227
        %v8229 = vpop.f32.mrf.mxu0
        %v8230 = vpop.f32.mrf.mxu0
        %v8231 = vadd.f32 0.0, %v8230
        %v8232 = vpop.f32.mrf.mxu0
        %8233 = vmatprep.mubr.bf16.mxu0 0
        %8234 = vmatmul.mubr.bf16.gmra.mxu0 %v8108
        %v8235 = vpop.f32.mrf.mxu0
        %v8236 = vadd.f32 0.0, %v8235
        %v8237 = vpop.f32.mrf.mxu0
        %v8238 = vpop.f32.mrf.mxu0
        %v8239 = vadd.f32 0.0, %v8238
        %v8240 = vpop.f32.mrf.mxu0
        %8241 = vmatprep.mubr.bf16.mxu0 0
        %8242 = vmatmul.mubr.bf16.gmra.mxu0 %v8109
        %v8243 = vpop.f32.mrf.mxu0
        %v8244 = vadd.f32 0.0, %v8243
        %v8245 = vpop.f32.mrf.mxu0
        %v8246 = vpop.f32.mrf.mxu0
        %v8247 = vadd.f32 0.0, %v8246
        %v8248 = vpop.f32.mrf.mxu0
        %8249 = vmatprep.mubr.bf16.mxu0 0
        %8250 = vmatmul.mubr.bf16.gmra.mxu0 %v8110
        %v8251 = vpop.f32.mrf.mxu0
        %v8252 = vadd.f32 0.0, %v8251
        %v8253 = vpop.f32.mrf.mxu0
        %v8254 = vpop.f32.mrf.mxu0
        %v8255 = vadd.f32 0.0, %v8254
        %v8256 = vpop.f32.mrf.mxu0
        %8257 = vmatprep.mubr.bf16.mxu0 0
        %8258 = vmatmul.mubr.bf16.gmra.mxu0 %v8111
        %v8259 = vpop.f32.mrf.mxu0
        %v8260 = vadd.f32 0.0, %v8259
        %v8261 = vpop.f32.mrf.mxu0
        %v8262 = vpop.f32.mrf.mxu0
        %v8263 = vadd.f32 0.0, %v8262
        %v8264 = vpop.f32.mrf.mxu0
        %8265 = vmatprep.mubr.bf16.mxu0 0
        %8266 = vmatmul.mubr.bf16.gmra.mxu0 %v8112
        %v8267 = vpop.f32.mrf.mxu0
        %v8268 = vadd.f32 0.0, %v8267
        %v8269 = vpop.f32.mrf.mxu0
        %v8270 = vpop.f32.mrf.mxu0
        %v8271 = vadd.f32 0.0, %v8270
        %v8272 = vpop.f32.mrf.mxu0
        %8273 = vdwg.mxu0
        %v8274 = vadd.f32 %v4636, %v8212
        %v8275 = vadd.f32 %v4637, %v8215
        %v8276 = vadd.f32 %v4638, %v8220
        %v8277 = vadd.f32 %v4639, %v8223
        %v8278 = vadd.f32 %v4640, %v8228
        %v8279 = vadd.f32 %v4641, %v8231
        %v8280 = vadd.f32 %v4642, %v8236
        %v8281 = vadd.f32 %v4643, %v8239
        %v8282 = vadd.f32 %v4644, %v8244
        %v8283 = vadd.f32 %v4645, %v8247
        %v8284 = vadd.f32 %v4646, %v8252
        %v8285 = vadd.f32 %v4647, %v8255
        %v8286 = vadd.f32 %v4648, %v8260
        %v8287 = vadd.f32 %v4649, %v8263
        %v8288 = vadd.f32 %v4650, %v8268
        %v8289 = vadd.f32 %v4651, %v8271
        %v8290 = vld [vmem:[%s12] sm:$0x1]
        %v8292 = vlaneseq
        %v8293 = vshrl.u32 %v8292, 7
        %v8294 = vsub.s32 0, %v8293
        %v8295 = vrot.slane %v8290, %v8294
        %v8297 = vadd.f32 %v8274, %v8295
        %v8298 = vadd.f32 %v8275, %v8295
        %v8299 = vadd.f32 %v8276, %v8295
        %v8300 = vadd.f32 %v8277, %v8295
        %v8301 = vadd.f32 %v8278, %v8295
        %v8302 = vadd.f32 %v8279, %v8295
        %v8303 = vadd.f32 %v8280, %v8295
        %v8304 = vadd.f32 %v8281, %v8295
        %v8305 = vadd.f32 %v8282, %v8295
        %v8306 = vadd.f32 %v8283, %v8295
        %v8307 = vadd.f32 %v8284, %v8295
        %v8308 = vadd.f32 %v8285, %v8295
        %v8309 = vadd.f32 %v8286, %v8295
        %v8310 = vadd.f32 %v8287, %v8295
        %v8311 = vadd.f32 %v8288, %v8295
        %v8312 = vadd.f32 %v8289, %v8295
        %v8313 = vld [vmem:[%s13] sm:$0x1]
        %v8314 = vld [vmem:[%s14] sm:$0x1]
        %8315 = vadd.xlane.f32.xlu0 %v8297
        %v8316 = vpop.xlane.xlu0 %8315
        %8317 = vadd.xlane.f32.xlu0 %v8298
        %v8318 = vpop.xlane.xlu0 %8317
        %8319 = vadd.xlane.f32.xlu0 %v8299
        %v8320 = vpop.xlane.xlu0 %8319
        %8321 = vadd.xlane.f32.xlu0 %v8300
        %v8322 = vpop.xlane.xlu0 %8321
        %8323 = vadd.xlane.f32.xlu0 %v8301
        %v8324 = vpop.xlane.xlu0 %8323
        %8325 = vadd.xlane.f32.xlu0 %v8302
        %v8326 = vpop.xlane.xlu0 %8325
        %8327 = vadd.xlane.f32.xlu0 %v8303
        %v8328 = vpop.xlane.xlu0 %8327
        %8329 = vadd.xlane.f32.xlu0 %v8304
        %v8330 = vpop.xlane.xlu0 %8329
        %8331 = vadd.xlane.f32.xlu0 %v8305
        %v8332 = vpop.xlane.xlu0 %8331
        %8333 = vadd.xlane.f32.xlu0 %v8306
        %v8334 = vpop.xlane.xlu0 %8333
        %8335 = vadd.xlane.f32.xlu0 %v8307
        %v8336 = vpop.xlane.xlu0 %8335
        %8337 = vadd.xlane.f32.xlu0 %v8308
        %v8338 = vpop.xlane.xlu0 %8337
        %8339 = vadd.xlane.f32.xlu0 %v8309
        %v8340 = vpop.xlane.xlu0 %8339
        %8341 = vadd.xlane.f32.xlu0 %v8310
        %v8342 = vpop.xlane.xlu0 %8341
        %8343 = vadd.xlane.f32.xlu0 %v8311
        %v8344 = vpop.xlane.xlu0 %8343
        %8345 = vadd.xlane.f32.xlu0 %v8312
        %v8346 = vpop.xlane.xlu0 %8345
        %v8347 = vmul.f32 %v8316, %v826
        %v8348 = vmul.f32 %v8318, %v826
        %v8349 = vmul.f32 %v8320, %v826
        %v8350 = vmul.f32 %v8322, %v826
        %v8351 = vmul.f32 %v8324, %v826
        %v8352 = vmul.f32 %v8326, %v826
        %v8353 = vmul.f32 %v8328, %v826
        %v8354 = vmul.f32 %v8330, %v826
        %v8355 = vmul.f32 %v8332, %v826
        %v8356 = vmul.f32 %v8334, %v826
        %v8357 = vmul.f32 %v8336, %v826
        %v8358 = vmul.f32 %v8338, %v826
        %v8359 = vmul.f32 %v8340, %v826
        %v8360 = vmul.f32 %v8342, %v826
        %v8361 = vmul.f32 %v8344, %v826
        %v8362 = vmul.f32 %v8346, %v826
        %v8363 = vsub.f32 %v8297, %v8347
        %v8364 = vsub.f32 %v8298, %v8348
        %v8365 = vsub.f32 %v8299, %v8349
        %v8366 = vsub.f32 %v8300, %v8350
        %v8367 = vsub.f32 %v8301, %v8351
        %v8368 = vsub.f32 %v8302, %v8352
        %v8369 = vsub.f32 %v8303, %v8353
        %v8370 = vsub.f32 %v8304, %v8354
        %v8371 = vsub.f32 %v8305, %v8355
        %v8372 = vsub.f32 %v8306, %v8356
        %v8373 = vsub.f32 %v8307, %v8357
        %v8374 = vsub.f32 %v8308, %v8358
        %v8375 = vsub.f32 %v8309, %v8359
        %v8376 = vsub.f32 %v8310, %v8360
        %v8377 = vsub.f32 %v8311, %v8361
        %v8378 = vsub.f32 %v8312, %v8362
        %v8379 = vmul.f32 %v8363, %v8363
        %v8380 = vmul.f32 %v8364, %v8364
        %v8381 = vmul.f32 %v8365, %v8365
        %v8382 = vmul.f32 %v8366, %v8366
        %v8383 = vmul.f32 %v8367, %v8367
        %v8384 = vmul.f32 %v8368, %v8368
        %v8385 = vmul.f32 %v8369, %v8369
        %v8386 = vmul.f32 %v8370, %v8370
        %v8387 = vmul.f32 %v8371, %v8371
        %v8388 = vmul.f32 %v8372, %v8372
        %v8389 = vmul.f32 %v8373, %v8373
        %v8390 = vmul.f32 %v8374, %v8374
        %v8391 = vmul.f32 %v8375, %v8375
        %v8392 = vmul.f32 %v8376, %v8376
        %v8393 = vmul.f32 %v8377, %v8377
        %v8394 = vmul.f32 %v8378, %v8378
        %8395 = vadd.xlane.f32.xlu0 %v8379
        %v8396 = vpop.xlane.xlu0 %8395
        %8397 = vadd.xlane.f32.xlu0 %v8380
        %v8398 = vpop.xlane.xlu0 %8397
        %8399 = vadd.xlane.f32.xlu0 %v8381
        %v8400 = vpop.xlane.xlu0 %8399
        %8401 = vadd.xlane.f32.xlu0 %v8382
        %v8402 = vpop.xlane.xlu0 %8401
        %8403 = vadd.xlane.f32.xlu0 %v8383
        %v8404 = vpop.xlane.xlu0 %8403
        %8405 = vadd.xlane.f32.xlu0 %v8384
        %v8406 = vpop.xlane.xlu0 %8405
        %8407 = vadd.xlane.f32.xlu0 %v8385
        %v8408 = vpop.xlane.xlu0 %8407
        %8409 = vadd.xlane.f32.xlu0 %v8386
        %v8410 = vpop.xlane.xlu0 %8409
        %8411 = vadd.xlane.f32.xlu0 %v8387
        %v8412 = vpop.xlane.xlu0 %8411
        %8413 = vadd.xlane.f32.xlu0 %v8388
        %v8414 = vpop.xlane.xlu0 %8413
        %8415 = vadd.xlane.f32.xlu0 %v8389
        %v8416 = vpop.xlane.xlu0 %8415
        %8417 = vadd.xlane.f32.xlu0 %v8390
        %v8418 = vpop.xlane.xlu0 %8417
        %8419 = vadd.xlane.f32.xlu0 %v8391
        %v8420 = vpop.xlane.xlu0 %8419
        %8421 = vadd.xlane.f32.xlu0 %v8392
        %v8422 = vpop.xlane.xlu0 %8421
        %8423 = vadd.xlane.f32.xlu0 %v8393
        %v8424 = vpop.xlane.xlu0 %8423
        %8425 = vadd.xlane.f32.xlu0 %v8394
        %v8426 = vpop.xlane.xlu0 %8425
        %v8427 = vmul.f32 %v8396, %v826
        %v8428 = vmul.f32 %v8398, %v826
        %v8429 = vmul.f32 %v8400, %v826
        %v8430 = vmul.f32 %v8402, %v826
        %v8431 = vmul.f32 %v8404, %v826
        %v8432 = vmul.f32 %v8406, %v826
        %v8433 = vmul.f32 %v8408, %v826
        %v8434 = vmul.f32 %v8410, %v826
        %v8435 = vmul.f32 %v8412, %v826
        %v8436 = vmul.f32 %v8414, %v826
        %v8437 = vmul.f32 %v8416, %v826
        %v8438 = vmul.f32 %v8418, %v826
        %v8439 = vmul.f32 %v8420, %v826
        %v8440 = vmul.f32 %v8422, %v826
        %v8441 = vmul.f32 %v8424, %v826
        %v8442 = vmul.f32 %v8426, %v826
        %v8443 = vadd.f32 %v8427, 1e-05
        %v8444 = vadd.f32 %v8428, 1e-05
        %v8445 = vadd.f32 %v8429, 1e-05
        %v8446 = vadd.f32 %v8430, 1e-05
        %v8447 = vadd.f32 %v8431, 1e-05
        %v8448 = vadd.f32 %v8432, 1e-05
        %v8449 = vadd.f32 %v8433, 1e-05
        %v8450 = vadd.f32 %v8434, 1e-05
        %v8451 = vadd.f32 %v8435, 1e-05
        %v8452 = vadd.f32 %v8436, 1e-05
        %v8453 = vadd.f32 %v8437, 1e-05
        %v8454 = vadd.f32 %v8438, 1e-05
        %v8455 = vadd.f32 %v8439, 1e-05
        %v8456 = vadd.f32 %v8440, 1e-05
        %v8457 = vadd.f32 %v8441, 1e-05
        %v8458 = vadd.f32 %v8442, 1e-05
        %v8459 = vrsqrt.pop %v8443
        %v8460 = vrsqrt.pop %v8444
        %v8461 = vrsqrt.pop %v8445
        %v8462 = vrsqrt.pop %v8446
        %v8463 = vrsqrt.pop %v8447
        %v8464 = vrsqrt.pop %v8448
        %v8465 = vrsqrt.pop %v8449
        %v8466 = vrsqrt.pop %v8450
        %v8467 = vrsqrt.pop %v8451
        %v8468 = vrsqrt.pop %v8452
        %v8469 = vrsqrt.pop %v8453
        %v8470 = vrsqrt.pop %v8454
        %v8471 = vrsqrt.pop %v8455
        %v8472 = vrsqrt.pop %v8456
        %v8473 = vrsqrt.pop %v8457
        %v8474 = vrsqrt.pop %v8458
        %v8475 = vmul.f32 %v8363, %v8459
        %v8476 = vmul.f32 %v8364, %v8460
        %v8477 = vmul.f32 %v8365, %v8461
        %v8478 = vmul.f32 %v8366, %v8462
        %v8479 = vmul.f32 %v8367, %v8463
        %v8480 = vmul.f32 %v8368, %v8464
        %v8481 = vmul.f32 %v8369, %v8465
        %v8482 = vmul.f32 %v8370, %v8466
        %v8483 = vmul.f32 %v8371, %v8467
        %v8484 = vmul.f32 %v8372, %v8468
        %v8485 = vmul.f32 %v8373, %v8469
        %v8486 = vmul.f32 %v8374, %v8470
        %v8487 = vmul.f32 %v8375, %v8471
        %v8488 = vmul.f32 %v8376, %v8472
        %v8489 = vmul.f32 %v8377, %v8473
        %v8490 = vmul.f32 %v8378, %v8474
        %v8492 = vlaneseq
        %v8493 = vshrl.u32 %v8492, 7
        %v8494 = vsub.s32 0, %v8493
        %v8495 = vrot.slane %v8313, %v8494
        %v8497 = vmul.f32 %v8475, %v8495
        %v8498 = vmul.f32 %v8476, %v8495
        %v8499 = vmul.f32 %v8477, %v8495
        %v8500 = vmul.f32 %v8478, %v8495
        %v8501 = vmul.f32 %v8479, %v8495
        %v8502 = vmul.f32 %v8480, %v8495
        %v8503 = vmul.f32 %v8481, %v8495
        %v8504 = vmul.f32 %v8482, %v8495
        %v8505 = vmul.f32 %v8483, %v8495
        %v8506 = vmul.f32 %v8484, %v8495
        %v8507 = vmul.f32 %v8485, %v8495
        %v8508 = vmul.f32 %v8486, %v8495
        %v8509 = vmul.f32 %v8487, %v8495
        %v8510 = vmul.f32 %v8488, %v8495
        %v8511 = vmul.f32 %v8489, %v8495
        %v8512 = vmul.f32 %v8490, %v8495
        %v8514 = vlaneseq
        %v8515 = vshrl.u32 %v8514, 7
        %v8516 = vsub.s32 0, %v8515
        %v8517 = vrot.slane %v8314, %v8516
        %v8519 = vadd.f32 %v8497, %v8517
        %v8520 = vadd.f32 %v8498, %v8517
        %v8521 = vadd.f32 %v8499, %v8517
        %v8522 = vadd.f32 %v8500, %v8517
        %v8523 = vadd.f32 %v8501, %v8517
        %v8524 = vadd.f32 %v8502, %v8517
        %v8525 = vadd.f32 %v8503, %v8517
        %v8526 = vadd.f32 %v8504, %v8517
        %v8527 = vadd.f32 %v8505, %v8517
        %v8528 = vadd.f32 %v8506, %v8517
        %v8529 = vadd.f32 %v8507, %v8517
        %v8530 = vadd.f32 %v8508, %v8517
        %v8531 = vadd.f32 %v8509, %v8517
        %v8532 = vadd.f32 %v8510, %v8517
        %v8533 = vadd.f32 %v8511, %v8517
        %v8534 = vadd.f32 %v8512, %v8517
        %v8535 = vpack.c.bf16 %v8520, %v8519
        %v8536 = vpack.c.bf16 %v8522, %v8521
        %v8537 = vpack.c.bf16 %v8524, %v8523
        %v8538 = vpack.c.bf16 %v8526, %v8525
        %v8539 = vpack.c.bf16 %v8528, %v8527
        %v8540 = vpack.c.bf16 %v8530, %v8529
        %v8541 = vpack.c.bf16 %v8532, %v8531
        %v8542 = vpack.c.bf16 %v8534, %v8533
        %v8543 = vld [vmem:[#allocation14] sm:$0xff]
        %v8544 = vld [vmem:[#allocation14 + $0x8] sm:$0xff]
        %v8545 = vld [vmem:[#allocation14 + $0x10] sm:$0xff]
        %v8546 = vld [vmem:[#allocation14 + $0x18] sm:$0xff]
        %v8547 = vld [vmem:[#allocation14 + $0x20] sm:$0xff]
        %v8548 = vld [vmem:[#allocation14 + $0x28] sm:$0xff]
        %v8549 = vld [vmem:[#allocation14 + $0x30] sm:$0xff]
        %v8550 = vld [vmem:[#allocation14 + $0x38] sm:$0xff]
        %v8551 = vld [vmem:[#allocation14 + $0x40] sm:$0xff]
        %v8552 = vld [vmem:[#allocation14 + $0x48] sm:$0xff]
        %v8553 = vld [vmem:[#allocation14 + $0x50] sm:$0xff]
        %v8554 = vld [vmem:[#allocation14 + $0x58] sm:$0xff]
        %v8555 = vld [vmem:[#allocation14 + $0x60] sm:$0xff]
        %v8556 = vld [vmem:[#allocation14 + $0x68] sm:$0xff]
        %v8557 = vld [vmem:[#allocation14 + $0x70] sm:$0xff]
        %v8558 = vld [vmem:[#allocation14 + $0x78] sm:$0xff]
        %v8559 = vld [vmem:[#allocation14 + $0x80] sm:$0xff]
        %v8560 = vld [vmem:[#allocation14 + $0x88] sm:$0xff]
        %v8561 = vld [vmem:[#allocation14 + $0x90] sm:$0xff]
        %v8562 = vld [vmem:[#allocation14 + $0x98] sm:$0xff]
        %v8563 = vld [vmem:[#allocation14 + $0xa0] sm:$0xff]
        %v8564 = vld [vmem:[#allocation14 + $0xa8] sm:$0xff]
        %v8565 = vld [vmem:[#allocation14 + $0xb0] sm:$0xff]
        %v8566 = vld [vmem:[#allocation14 + $0xb8] sm:$0xff]
        %v8567 = vld [vmem:[#allocation14 + $0xc0] sm:$0xff]
        %v8568 = vld [vmem:[#allocation14 + $0xc8] sm:$0xff]
        %v8569 = vld [vmem:[#allocation14 + $0xd0] sm:$0xff]
        %v8570 = vld [vmem:[#allocation14 + $0xd8] sm:$0xff]
        %v8571 = vld [vmem:[#allocation14 + $0xe0] sm:$0xff]
        %v8572 = vld [vmem:[#allocation14 + $0xe8] sm:$0xff]
        %v8573 = vld [vmem:[#allocation14 + $0xf0] sm:$0xff]
        %v8574 = vld [vmem:[#allocation14 + $0xf8] sm:$0xff]
        %v8575 = vld [vmem:[#allocation14 + $0x100] sm:$0xff]
        %v8576 = vld [vmem:[#allocation14 + $0x108] sm:$0xff]
        %v8577 = vld [vmem:[#allocation14 + $0x110] sm:$0xff]
        %v8578 = vld [vmem:[#allocation14 + $0x118] sm:$0xff]
        %v8579 = vld [vmem:[#allocation14 + $0x120] sm:$0xff]
        %v8580 = vld [vmem:[#allocation14 + $0x128] sm:$0xff]
        %v8581 = vld [vmem:[#allocation14 + $0x130] sm:$0xff]
        %v8582 = vld [vmem:[#allocation14 + $0x138] sm:$0xff]
        %v8583 = vld [vmem:[#allocation14 + $0x140] sm:$0xff]
        %v8584 = vld [vmem:[#allocation14 + $0x148] sm:$0xff]
        %v8585 = vld [vmem:[#allocation14 + $0x150] sm:$0xff]
        %v8586 = vld [vmem:[#allocation14 + $0x158] sm:$0xff]
        %v8587 = vld [vmem:[#allocation14 + $0x160] sm:$0xff]
        %v8588 = vld [vmem:[#allocation14 + $0x168] sm:$0xff]
        %v8589 = vld [vmem:[#allocation14 + $0x170] sm:$0xff]
        %v8590 = vld [vmem:[#allocation14 + $0x178] sm:$0xff]
        %v8591 = vld [vmem:[#allocation14 + $0x180] sm:$0xff]
        %v8592 = vld [vmem:[#allocation14 + $0x188] sm:$0xff]
        %v8593 = vld [vmem:[#allocation14 + $0x190] sm:$0xff]
        %v8594 = vld [vmem:[#allocation14 + $0x198] sm:$0xff]
        %v8595 = vld [vmem:[#allocation14 + $0x1a0] sm:$0xff]
        %v8596 = vld [vmem:[#allocation14 + $0x1a8] sm:$0xff]
        %v8597 = vld [vmem:[#allocation14 + $0x1b0] sm:$0xff]
        %v8598 = vld [vmem:[#allocation14 + $0x1b8] sm:$0xff]
        %v8599 = vld [vmem:[#allocation14 + $0x1c0] sm:$0xff]
        %v8600 = vld [vmem:[#allocation14 + $0x1c8] sm:$0xff]
        %v8601 = vld [vmem:[#allocation14 + $0x1d0] sm:$0xff]
        %v8602 = vld [vmem:[#allocation14 + $0x1d8] sm:$0xff]
        %v8603 = vld [vmem:[#allocation14 + $0x1e0] sm:$0xff]
        %v8604 = vld [vmem:[#allocation14 + $0x1e8] sm:$0xff]
        %v8605 = vld [vmem:[#allocation14 + $0x1f0] sm:$0xff]
        %v8606 = vld [vmem:[#allocation14 + $0x1f8] sm:$0xff]
        %v8607 = vld [vmem:[%s16] sm:$0xff]
        %v8609 = vlaneseq
        %v8610 = vshrl.u32 %v8609, 7
        %v8611 = vsub.s32 0, %v8610
        %v8612 = vrot.slane %v8607, %v8611
        %v8613 = vlaneseq
        %v8614 = vshrl.u32 %v8613, 7
        %v8615 = vsub.s32 1, %v8614
        %v8616 = vrot.slane %v8607, %v8615
        %v8617 = vlaneseq
        %v8618 = vshrl.u32 %v8617, 7
        %v8619 = vsub.s32 2, %v8618
        %v8620 = vrot.slane %v8607, %v8619
        %v8621 = vlaneseq
        %v8622 = vshrl.u32 %v8621, 7
        %v8623 = vsub.s32 3, %v8622
        %v8624 = vrot.slane %v8607, %v8623
        %v8625 = vlaneseq
        %v8626 = vshrl.u32 %v8625, 7
        %v8627 = vsub.s32 4, %v8626
        %v8628 = vrot.slane %v8607, %v8627
        %v8629 = vlaneseq
        %v8630 = vshrl.u32 %v8629, 7
        %v8631 = vsub.s32 5, %v8630
        %v8632 = vrot.slane %v8607, %v8631
        %v8633 = vlaneseq
        %v8634 = vshrl.u32 %v8633, 7
        %v8635 = vsub.s32 6, %v8634
        %v8636 = vrot.slane %v8607, %v8635
        %v8637 = vlaneseq
        %v8638 = vshrl.u32 %v8637, 7
        %v8639 = vsub.s32 7, %v8638
        %v8640 = vrot.slane %v8607, %v8639
        %v8713 = vunpack.c.l.b16 %v8543
        %v8714 = vunpack.c.h.b16 %v8543
        %v8715 = vunpack.c.l.b16 %v8544
        %v8716 = vunpack.c.h.b16 %v8544
        %v8717 = vunpack.c.l.b16 %v8545
        %v8718 = vunpack.c.h.b16 %v8545
        %v8719 = vunpack.c.l.b16 %v8546
        %v8720 = vunpack.c.h.b16 %v8546
        %v8721 = vunpack.c.l.b16 %v8547
        %v8722 = vunpack.c.h.b16 %v8547
        %v8723 = vunpack.c.l.b16 %v8548
        %v8724 = vunpack.c.h.b16 %v8548
        %v8725 = vunpack.c.l.b16 %v8549
        %v8726 = vunpack.c.h.b16 %v8549
        %v8727 = vunpack.c.l.b16 %v8550
        %v8728 = vunpack.c.h.b16 %v8550
        %v8729 = vunpack.c.l.b16 %v8551
        %v8730 = vunpack.c.h.b16 %v8551
        %v8731 = vunpack.c.l.b16 %v8552
        %v8732 = vunpack.c.h.b16 %v8552
        %v8733 = vunpack.c.l.b16 %v8553
        %v8734 = vunpack.c.h.b16 %v8553
        %v8735 = vunpack.c.l.b16 %v8554
        %v8736 = vunpack.c.h.b16 %v8554
        %v8737 = vunpack.c.l.b16 %v8555
        %v8738 = vunpack.c.h.b16 %v8555
        %v8739 = vunpack.c.l.b16 %v8556
        %v8740 = vunpack.c.h.b16 %v8556
        %v8741 = vunpack.c.l.b16 %v8557
        %v8742 = vunpack.c.h.b16 %v8557
        %v8743 = vunpack.c.l.b16 %v8558
        %v8744 = vunpack.c.h.b16 %v8558
        %v8745 = vunpack.c.l.b16 %v8559
        %v8746 = vunpack.c.h.b16 %v8559
        %v8747 = vunpack.c.l.b16 %v8560
        %v8748 = vunpack.c.h.b16 %v8560
        %v8749 = vunpack.c.l.b16 %v8561
        %v8750 = vunpack.c.h.b16 %v8561
        %v8751 = vunpack.c.l.b16 %v8562
        %v8752 = vunpack.c.h.b16 %v8562
        %v8753 = vunpack.c.l.b16 %v8563
        %v8754 = vunpack.c.h.b16 %v8563
        %v8755 = vunpack.c.l.b16 %v8564
        %v8756 = vunpack.c.h.b16 %v8564
        %v8757 = vunpack.c.l.b16 %v8565
        %v8758 = vunpack.c.h.b16 %v8565
        %v8759 = vunpack.c.l.b16 %v8566
        %v8760 = vunpack.c.h.b16 %v8566
        %v8761 = vunpack.c.l.b16 %v8567
        %v8762 = vunpack.c.h.b16 %v8567
        %v8763 = vunpack.c.l.b16 %v8568
        %v8764 = vunpack.c.h.b16 %v8568
        %v8765 = vunpack.c.l.b16 %v8569
        %v8766 = vunpack.c.h.b16 %v8569
        %v8767 = vunpack.c.l.b16 %v8570
        %v8768 = vunpack.c.h.b16 %v8570
        %v8769 = vunpack.c.l.b16 %v8571
        %v8770 = vunpack.c.h.b16 %v8571
        %v8771 = vunpack.c.l.b16 %v8572
        %v8772 = vunpack.c.h.b16 %v8572
        %v8773 = vunpack.c.l.b16 %v8573
        %v8774 = vunpack.c.h.b16 %v8573
        %v8775 = vunpack.c.l.b16 %v8574
        %v8776 = vunpack.c.h.b16 %v8574
        %v8777 = vunpack.c.l.b16 %v8575
        %v8778 = vunpack.c.h.b16 %v8575
        %v8779 = vunpack.c.l.b16 %v8576
        %v8780 = vunpack.c.h.b16 %v8576
        %v8781 = vunpack.c.l.b16 %v8577
        %v8782 = vunpack.c.h.b16 %v8577
        %v8783 = vunpack.c.l.b16 %v8578
        %v8784 = vunpack.c.h.b16 %v8578
        %v8785 = vunpack.c.l.b16 %v8579
        %v8786 = vunpack.c.h.b16 %v8579
        %v8787 = vunpack.c.l.b16 %v8580
        %v8788 = vunpack.c.h.b16 %v8580
        %v8789 = vunpack.c.l.b16 %v8581
        %v8790 = vunpack.c.h.b16 %v8581
        %v8791 = vunpack.c.l.b16 %v8582
        %v8792 = vunpack.c.h.b16 %v8582
        %v8793 = vunpack.c.l.b16 %v8583
        %v8794 = vunpack.c.h.b16 %v8583
        %v8795 = vunpack.c.l.b16 %v8584
        %v8796 = vunpack.c.h.b16 %v8584
        %v8797 = vunpack.c.l.b16 %v8585
        %v8798 = vunpack.c.h.b16 %v8585
        %v8799 = vunpack.c.l.b16 %v8586
        %v8800 = vunpack.c.h.b16 %v8586
        %v8801 = vunpack.c.l.b16 %v8587
        %v8802 = vunpack.c.h.b16 %v8587
        %v8803 = vunpack.c.l.b16 %v8588
        %v8804 = vunpack.c.h.b16 %v8588
        %v8805 = vunpack.c.l.b16 %v8589
        %v8806 = vunpack.c.h.b16 %v8589
        %v8807 = vunpack.c.l.b16 %v8590
        %v8808 = vunpack.c.h.b16 %v8590
        %v8809 = vunpack.c.l.b16 %v8591
        %v8810 = vunpack.c.h.b16 %v8591
        %v8811 = vunpack.c.l.b16 %v8592
        %v8812 = vunpack.c.h.b16 %v8592
        %v8813 = vunpack.c.l.b16 %v8593
        %v8814 = vunpack.c.h.b16 %v8593
        %v8815 = vunpack.c.l.b16 %v8594
        %v8816 = vunpack.c.h.b16 %v8594
        %v8817 = vunpack.c.l.b16 %v8595
        %v8818 = vunpack.c.h.b16 %v8595
        %v8819 = vunpack.c.l.b16 %v8596
        %v8820 = vunpack.c.h.b16 %v8596
        %v8821 = vunpack.c.l.b16 %v8597
        %v8822 = vunpack.c.h.b16 %v8597
        %v8823 = vunpack.c.l.b16 %v8598
        %v8824 = vunpack.c.h.b16 %v8598
        %v8825 = vunpack.c.l.b16 %v8599
        %v8826 = vunpack.c.h.b16 %v8599
        %v8827 = vunpack.c.l.b16 %v8600
        %v8828 = vunpack.c.h.b16 %v8600
        %v8829 = vunpack.c.l.b16 %v8601
        %v8830 = vunpack.c.h.b16 %v8601
        %v8831 = vunpack.c.l.b16 %v8602
        %v8832 = vunpack.c.h.b16 %v8602
        %v8833 = vunpack.c.l.b16 %v8603
        %v8834 = vunpack.c.h.b16 %v8603
        %v8835 = vunpack.c.l.b16 %v8604
        %v8836 = vunpack.c.h.b16 %v8604
        %v8837 = vunpack.c.l.b16 %v8605
        %v8838 = vunpack.c.h.b16 %v8605
        %v8839 = vunpack.c.l.b16 %v8606
        %v8840 = vunpack.c.h.b16 %v8606
        %v8841 = vpack.c.b16 %v8721, %v8713
        %v8842 = vpack.c.b16 %v8722, %v8714
        %v8843 = vpack.c.b16 %v8723, %v8715
        %v8844 = vpack.c.b16 %v8724, %v8716
        %v8845 = vpack.c.b16 %v8725, %v8717
        %v8846 = vpack.c.b16 %v8726, %v8718
        %v8847 = vpack.c.b16 %v8727, %v8719
        %v8848 = vpack.c.b16 %v8728, %v8720
        %v8849 = vpack.c.b16 %v8737, %v8729
        %v8850 = vpack.c.b16 %v8738, %v8730
        %v8851 = vpack.c.b16 %v8739, %v8731
        %v8852 = vpack.c.b16 %v8740, %v8732
        %v8853 = vpack.c.b16 %v8741, %v8733
        %v8854 = vpack.c.b16 %v8742, %v8734
        %v8855 = vpack.c.b16 %v8743, %v8735
        %v8856 = vpack.c.b16 %v8744, %v8736
        %v8857 = vpack.c.b16 %v8753, %v8745
        %v8858 = vpack.c.b16 %v8754, %v8746
        %v8859 = vpack.c.b16 %v8755, %v8747
        %v8860 = vpack.c.b16 %v8756, %v8748
        %v8861 = vpack.c.b16 %v8757, %v8749
        %v8862 = vpack.c.b16 %v8758, %v8750
        %v8863 = vpack.c.b16 %v8759, %v8751
        %v8864 = vpack.c.b16 %v8760, %v8752
        %v8865 = vpack.c.b16 %v8769, %v8761
        %v8866 = vpack.c.b16 %v8770, %v8762
        %v8867 = vpack.c.b16 %v8771, %v8763
        %v8868 = vpack.c.b16 %v8772, %v8764
        %v8869 = vpack.c.b16 %v8773, %v8765
        %v8870 = vpack.c.b16 %v8774, %v8766
        %v8871 = vpack.c.b16 %v8775, %v8767
        %v8872 = vpack.c.b16 %v8776, %v8768
        %v8873 = vpack.c.b16 %v8785, %v8777
        %v8874 = vpack.c.b16 %v8786, %v8778
        %v8875 = vpack.c.b16 %v8787, %v8779
        %v8876 = vpack.c.b16 %v8788, %v8780
        %v8877 = vpack.c.b16 %v8789, %v8781
        %v8878 = vpack.c.b16 %v8790, %v8782
        %v8879 = vpack.c.b16 %v8791, %v8783
        %v8880 = vpack.c.b16 %v8792, %v8784
        %v8881 = vpack.c.b16 %v8801, %v8793
        %v8882 = vpack.c.b16 %v8802, %v8794
        %v8883 = vpack.c.b16 %v8803, %v8795
        %v8884 = vpack.c.b16 %v8804, %v8796
        %v8885 = vpack.c.b16 %v8805, %v8797
        %v8886 = vpack.c.b16 %v8806, %v8798
        %v8887 = vpack.c.b16 %v8807, %v8799
        %v8888 = vpack.c.b16 %v8808, %v8800
        %v8889 = vpack.c.b16 %v8817, %v8809
        %v8890 = vpack.c.b16 %v8818, %v8810
        %v8891 = vpack.c.b16 %v8819, %v8811
        %v8892 = vpack.c.b16 %v8820, %v8812
        %v8893 = vpack.c.b16 %v8821, %v8813
        %v8894 = vpack.c.b16 %v8822, %v8814
        %v8895 = vpack.c.b16 %v8823, %v8815
        %v8896 = vpack.c.b16 %v8824, %v8816
        %v8897 = vpack.c.b16 %v8833, %v8825
        %v8898 = vpack.c.b16 %v8834, %v8826
        %v8899 = vpack.c.b16 %v8835, %v8827
        %v8900 = vpack.c.b16 %v8836, %v8828
        %v8901 = vpack.c.b16 %v8837, %v8829
        %v8902 = vpack.c.b16 %v8838, %v8830
        %v8903 = vpack.c.b16 %v8839, %v8831
        %v8904 = vpack.c.b16 %v8840, %v8832
        %8969 = vmatprep.subr.bf16.mxu0 %v8898
        %8970 = vmatpush1.bf16.msra.mxu0 %v8897
        %8971 = vmatprep.subr.bf16.mxu0 %v8890
        %8972 = vmatpush1.bf16.msra.mxu0 %v8889
        %8973 = vmatprep.subr.bf16.mxu0 %v8882
        %8974 = vmatpush1.bf16.msra.mxu0 %v8881
        %8975 = vmatprep.subr.bf16.mxu0 %v8874
        %8976 = vmatpush1.bf16.msra.mxu0 %v8873
        %8977 = vmatprep.subr.bf16.mxu0 %v8866
        %8978 = vmatpush1.bf16.msra.mxu0 %v8865
        %8979 = vmatprep.subr.bf16.mxu0 %v8858
        %8980 = vmatpush1.bf16.msra.mxu0 %v8857
        %8981 = vmatprep.subr.bf16.mxu0 %v8850
        %8982 = vmatpush1.bf16.msra.mxu0 %v8849
        %8983 = vmatprep.subr.bf16.mxu0 %v8842
        %8984 = vmatpush1.bf16.msra.mxu0 %v8841
        %8985 = vmatprep.subr.bf16.mxu0 0
        %8986 = vmatpush2.bf16.msra.mxu0 0
        %8987 = vmatprep.subr.bf16.mxu0 0
        %8988 = vmatpush2.bf16.msra.mxu0 0
        %8989 = vmatprep.subr.bf16.mxu0 0
        %8990 = vmatpush2.bf16.msra.mxu0 0
        %8991 = vmatprep.subr.bf16.mxu0 0
        %8992 = vmatpush2.bf16.msra.mxu0 0
        %8993 = vmatprep.subr.bf16.mxu0 0
        %8994 = vmatpush2.bf16.msra.mxu0 0
        %8995 = vmatprep.subr.bf16.mxu0 0
        %8996 = vmatpush2.bf16.msra.mxu0 0
        %8997 = vmatprep.subr.bf16.mxu0 0
        %8998 = vmatpush2.bf16.msra.mxu0 0
        %8999 = vmatprep.subr.bf16.mxu0 0
        %9000 = vmatpush2.bf16.msra.mxu0 0
        %9001 = vmatprep.mubr.bf16.mxu0 0
        %9002 = vmatmul.mubr.bf16.gmra.mxu0 %v8535
        %v9003 = vpop.f32.mrf.mxu0
        %v9004 = vadd.f32 %v8612, %v9003
        %v9005 = vpop.f32.mrf.mxu0
        %v9006 = vadd.f32 %v8616, %v9005
        %v9007 = vpop.f32.mrf.mxu0
        %v9008 = vadd.f32 %v8612, %v9007
        %v9009 = vpop.f32.mrf.mxu0
        %v9010 = vadd.f32 %v8616, %v9009
        %9011 = vmatprep.mubr.bf16.mxu0 0
        %9012 = vmatmul.mubr.bf16.gmra.mxu0 %v8536
        %v9013 = vpop.f32.mrf.mxu0
        %v9014 = vadd.f32 %v8612, %v9013
        %v9015 = vpop.f32.mrf.mxu0
        %v9016 = vadd.f32 %v8616, %v9015
        %v9017 = vpop.f32.mrf.mxu0
        %v9018 = vadd.f32 %v8612, %v9017
        %v9019 = vpop.f32.mrf.mxu0
        %v9020 = vadd.f32 %v8616, %v9019
        %9021 = vmatprep.mubr.bf16.mxu0 0
        %9022 = vmatmul.mubr.bf16.gmra.mxu0 %v8537
        %v9023 = vpop.f32.mrf.mxu0
        %v9024 = vadd.f32 %v8612, %v9023
        %v9025 = vpop.f32.mrf.mxu0
        %v9026 = vadd.f32 %v8616, %v9025
        %v9027 = vpop.f32.mrf.mxu0
        %v9028 = vadd.f32 %v8612, %v9027
        %v9029 = vpop.f32.mrf.mxu0
        %v9030 = vadd.f32 %v8616, %v9029
        %9031 = vmatprep.mubr.bf16.mxu0 0
        %9032 = vmatmul.mubr.bf16.gmra.mxu0 %v8538
        %v9033 = vpop.f32.mrf.mxu0
        %v9034 = vadd.f32 %v8612, %v9033
        %v9035 = vpop.f32.mrf.mxu0
        %v9036 = vadd.f32 %v8616, %v9035
        %v9037 = vpop.f32.mrf.mxu0
        %v9038 = vadd.f32 %v8612, %v9037
        %v9039 = vpop.f32.mrf.mxu0
        %v9040 = vadd.f32 %v8616, %v9039
        %9041 = vmatprep.mubr.bf16.mxu0 0
        %9042 = vmatmul.mubr.bf16.gmra.mxu0 %v8539
        %v9043 = vpop.f32.mrf.mxu0
        %v9044 = vadd.f32 %v8612, %v9043
        %v9045 = vpop.f32.mrf.mxu0
        %v9046 = vadd.f32 %v8616, %v9045
        %v9047 = vpop.f32.mrf.mxu0
        %v9048 = vadd.f32 %v8612, %v9047
        %v9049 = vpop.f32.mrf.mxu0
        %v9050 = vadd.f32 %v8616, %v9049
        %9051 = vmatprep.mubr.bf16.mxu0 0
        %9052 = vmatmul.mubr.bf16.gmra.mxu0 %v8540
        %v9053 = vpop.f32.mrf.mxu0
        %v9054 = vadd.f32 %v8612, %v9053
        %v9055 = vpop.f32.mrf.mxu0
        %v9056 = vadd.f32 %v8616, %v9055
        %v9057 = vpop.f32.mrf.mxu0
        %v9058 = vadd.f32 %v8612, %v9057
        %v9059 = vpop.f32.mrf.mxu0
        %v9060 = vadd.f32 %v8616, %v9059
        %9061 = vmatprep.mubr.bf16.mxu0 0
        %9062 = vmatmul.mubr.bf16.gmra.mxu0 %v8541
        %v9063 = vpop.f32.mrf.mxu0
        %v9064 = vadd.f32 %v8612, %v9063
        %v9065 = vpop.f32.mrf.mxu0
        %v9066 = vadd.f32 %v8616, %v9065
        %v9067 = vpop.f32.mrf.mxu0
        %v9068 = vadd.f32 %v8612, %v9067
        %v9069 = vpop.f32.mrf.mxu0
        %v9070 = vadd.f32 %v8616, %v9069
        %9071 = vmatprep.mubr.bf16.mxu0 0
        %9072 = vmatmul.mubr.bf16.gmra.mxu0 %v8542
        %v9073 = vpop.f32.mrf.mxu0
        %v9074 = vadd.f32 %v8612, %v9073
        %v9075 = vpop.f32.mrf.mxu0
        %v9076 = vadd.f32 %v8616, %v9075
        %v9077 = vpop.f32.mrf.mxu0
        %v9078 = vadd.f32 %v8612, %v9077
        %v9079 = vpop.f32.mrf.mxu0
        %v9080 = vadd.f32 %v8616, %v9079
        %9081 = vdwg.mxu0
        %9082 = vmatprep.subr.bf16.mxu0 %v8900
        %9083 = vmatpush1.bf16.msra.mxu0 %v8899
        %9084 = vmatprep.subr.bf16.mxu0 %v8892
        %9085 = vmatpush1.bf16.msra.mxu0 %v8891
        %9086 = vmatprep.subr.bf16.mxu0 %v8884
        %9087 = vmatpush1.bf16.msra.mxu0 %v8883
        %9088 = vmatprep.subr.bf16.mxu0 %v8876
        %9089 = vmatpush1.bf16.msra.mxu0 %v8875
        %9090 = vmatprep.subr.bf16.mxu0 %v8868
        %9091 = vmatpush1.bf16.msra.mxu0 %v8867
        %9092 = vmatprep.subr.bf16.mxu0 %v8860
        %9093 = vmatpush1.bf16.msra.mxu0 %v8859
        %9094 = vmatprep.subr.bf16.mxu0 %v8852
        %9095 = vmatpush1.bf16.msra.mxu0 %v8851
        %9096 = vmatprep.subr.bf16.mxu0 %v8844
        %9097 = vmatpush1.bf16.msra.mxu0 %v8843
        %9098 = vmatprep.subr.bf16.mxu0 0
        %9099 = vmatpush2.bf16.msra.mxu0 0
        %9100 = vmatprep.subr.bf16.mxu0 0
        %9101 = vmatpush2.bf16.msra.mxu0 0
        %9102 = vmatprep.subr.bf16.mxu0 0
        %9103 = vmatpush2.bf16.msra.mxu0 0
        %9104 = vmatprep.subr.bf16.mxu0 0
        %9105 = vmatpush2.bf16.msra.mxu0 0
        %9106 = vmatprep.subr.bf16.mxu0 0
        %9107 = vmatpush2.bf16.msra.mxu0 0
        %9108 = vmatprep.subr.bf16.mxu0 0
        %9109 = vmatpush2.bf16.msra.mxu0 0
        %9110 = vmatprep.subr.bf16.mxu0 0
        %9111 = vmatpush2.bf16.msra.mxu0 0
        %9112 = vmatprep.subr.bf16.mxu0 0
        %9113 = vmatpush2.bf16.msra.mxu0 0
        %9114 = vmatprep.mubr.bf16.mxu0 0
        %9115 = vmatmul.mubr.bf16.gmra.mxu0 %v8535
        %v9116 = vpop.f32.mrf.mxu0
        %v9117 = vadd.f32 %v8620, %v9116
        %v9118 = vpop.f32.mrf.mxu0
        %v9119 = vadd.f32 %v8624, %v9118
        %v9120 = vpop.f32.mrf.mxu0
        %v9121 = vadd.f32 %v8620, %v9120
        %v9122 = vpop.f32.mrf.mxu0
        %v9123 = vadd.f32 %v8624, %v9122
        %9124 = vmatprep.mubr.bf16.mxu0 0
        %9125 = vmatmul.mubr.bf16.gmra.mxu0 %v8536
        %v9126 = vpop.f32.mrf.mxu0
        %v9127 = vadd.f32 %v8620, %v9126
        %v9128 = vpop.f32.mrf.mxu0
        %v9129 = vadd.f32 %v8624, %v9128
        %v9130 = vpop.f32.mrf.mxu0
        %v9131 = vadd.f32 %v8620, %v9130
        %v9132 = vpop.f32.mrf.mxu0
        %v9133 = vadd.f32 %v8624, %v9132
        %9134 = vmatprep.mubr.bf16.mxu0 0
        %9135 = vmatmul.mubr.bf16.gmra.mxu0 %v8537
        %v9136 = vpop.f32.mrf.mxu0
        %v9137 = vadd.f32 %v8620, %v9136
        %v9138 = vpop.f32.mrf.mxu0
        %v9139 = vadd.f32 %v8624, %v9138
        %v9140 = vpop.f32.mrf.mxu0
        %v9141 = vadd.f32 %v8620, %v9140
        %v9142 = vpop.f32.mrf.mxu0
        %v9143 = vadd.f32 %v8624, %v9142
        %9144 = vmatprep.mubr.bf16.mxu0 0
        %9145 = vmatmul.mubr.bf16.gmra.mxu0 %v8538
        %v9146 = vpop.f32.mrf.mxu0
        %v9147 = vadd.f32 %v8620, %v9146
        %v9148 = vpop.f32.mrf.mxu0
        %v9149 = vadd.f32 %v8624, %v9148
        %v9150 = vpop.f32.mrf.mxu0
        %v9151 = vadd.f32 %v8620, %v9150
        %v9152 = vpop.f32.mrf.mxu0
        %v9153 = vadd.f32 %v8624, %v9152
        %9154 = vmatprep.mubr.bf16.mxu0 0
        %9155 = vmatmul.mubr.bf16.gmra.mxu0 %v8539
        %v9156 = vpop.f32.mrf.mxu0
        %v9157 = vadd.f32 %v8620, %v9156
        %v9158 = vpop.f32.mrf.mxu0
        %v9159 = vadd.f32 %v8624, %v9158
        %v9160 = vpop.f32.mrf.mxu0
        %v9161 = vadd.f32 %v8620, %v9160
        %v9162 = vpop.f32.mrf.mxu0
        %v9163 = vadd.f32 %v8624, %v9162
        %9164 = vmatprep.mubr.bf16.mxu0 0
        %9165 = vmatmul.mubr.bf16.gmra.mxu0 %v8540
        %v9166 = vpop.f32.mrf.mxu0
        %v9167 = vadd.f32 %v8620, %v9166
        %v9168 = vpop.f32.mrf.mxu0
        %v9169 = vadd.f32 %v8624, %v9168
        %v9170 = vpop.f32.mrf.mxu0
        %v9171 = vadd.f32 %v8620, %v9170
        %v9172 = vpop.f32.mrf.mxu0
        %v9173 = vadd.f32 %v8624, %v9172
        %9174 = vmatprep.mubr.bf16.mxu0 0
        %9175 = vmatmul.mubr.bf16.gmra.mxu0 %v8541
        %v9176 = vpop.f32.mrf.mxu0
        %v9177 = vadd.f32 %v8620, %v9176
        %v9178 = vpop.f32.mrf.mxu0
        %v9179 = vadd.f32 %v8624, %v9178
        %v9180 = vpop.f32.mrf.mxu0
        %v9181 = vadd.f32 %v8620, %v9180
        %v9182 = vpop.f32.mrf.mxu0
        %v9183 = vadd.f32 %v8624, %v9182
        %9184 = vmatprep.mubr.bf16.mxu0 0
        %9185 = vmatmul.mubr.bf16.gmra.mxu0 %v8542
        %v9186 = vpop.f32.mrf.mxu0
        %v9187 = vadd.f32 %v8620, %v9186
        %v9188 = vpop.f32.mrf.mxu0
        %v9189 = vadd.f32 %v8624, %v9188
        %v9190 = vpop.f32.mrf.mxu0
        %v9191 = vadd.f32 %v8620, %v9190
        %v9192 = vpop.f32.mrf.mxu0
        %v9193 = vadd.f32 %v8624, %v9192
        %9194 = vdwg.mxu0
        %9195 = vmatprep.subr.bf16.mxu0 %v8902
        %9196 = vmatpush1.bf16.msra.mxu0 %v8901
        %9197 = vmatprep.subr.bf16.mxu0 %v8894
        %9198 = vmatpush1.bf16.msra.mxu0 %v8893
        %9199 = vmatprep.subr.bf16.mxu0 %v8886
        %9200 = vmatpush1.bf16.msra.mxu0 %v8885
        %9201 = vmatprep.subr.bf16.mxu0 %v8878
        %9202 = vmatpush1.bf16.msra.mxu0 %v8877
        %9203 = vmatprep.subr.bf16.mxu0 %v8870
        %9204 = vmatpush1.bf16.msra.mxu0 %v8869
        %9205 = vmatprep.subr.bf16.mxu0 %v8862
        %9206 = vmatpush1.bf16.msra.mxu0 %v8861
        %9207 = vmatprep.subr.bf16.mxu0 %v8854
        %9208 = vmatpush1.bf16.msra.mxu0 %v8853
        %9209 = vmatprep.subr.bf16.mxu0 %v8846
        %9210 = vmatpush1.bf16.msra.mxu0 %v8845
        %9211 = vmatprep.subr.bf16.mxu0 0
        %9212 = vmatpush2.bf16.msra.mxu0 0
        %9213 = vmatprep.subr.bf16.mxu0 0
        %9214 = vmatpush2.bf16.msra.mxu0 0
        %9215 = vmatprep.subr.bf16.mxu0 0
        %9216 = vmatpush2.bf16.msra.mxu0 0
        %9217 = vmatprep.subr.bf16.mxu0 0
        %9218 = vmatpush2.bf16.msra.mxu0 0
        %9219 = vmatprep.subr.bf16.mxu0 0
        %9220 = vmatpush2.bf16.msra.mxu0 0
        %9221 = vmatprep.subr.bf16.mxu0 0
        %9222 = vmatpush2.bf16.msra.mxu0 0
        %9223 = vmatprep.subr.bf16.mxu0 0
        %9224 = vmatpush2.bf16.msra.mxu0 0
        %9225 = vmatprep.subr.bf16.mxu0 0
        %9226 = vmatpush2.bf16.msra.mxu0 0
        %9227 = vmatprep.mubr.bf16.mxu0 0
        %9228 = vmatmul.mubr.bf16.gmra.mxu0 %v8535
        %v9229 = vpop.f32.mrf.mxu0
        %v9230 = vadd.f32 %v8628, %v9229
        %v9231 = vpop.f32.mrf.mxu0
        %v9232 = vadd.f32 %v8632, %v9231
        %v9233 = vpop.f32.mrf.mxu0
        %v9234 = vadd.f32 %v8628, %v9233
        %v9235 = vpop.f32.mrf.mxu0
        %v9236 = vadd.f32 %v8632, %v9235
        %9237 = vmatprep.mubr.bf16.mxu0 0
        %9238 = vmatmul.mubr.bf16.gmra.mxu0 %v8536
        %v9239 = vpop.f32.mrf.mxu0
        %v9240 = vadd.f32 %v8628, %v9239
        %v9241 = vpop.f32.mrf.mxu0
        %v9242 = vadd.f32 %v8632, %v9241
        %v9243 = vpop.f32.mrf.mxu0
        %v9244 = vadd.f32 %v8628, %v9243
        %v9245 = vpop.f32.mrf.mxu0
        %v9246 = vadd.f32 %v8632, %v9245
        %9247 = vmatprep.mubr.bf16.mxu0 0
        %9248 = vmatmul.mubr.bf16.gmra.mxu0 %v8537
        %v9249 = vpop.f32.mrf.mxu0
        %v9250 = vadd.f32 %v8628, %v9249
        %v9251 = vpop.f32.mrf.mxu0
        %v9252 = vadd.f32 %v8632, %v9251
        %v9253 = vpop.f32.mrf.mxu0
        %v9254 = vadd.f32 %v8628, %v9253
        %v9255 = vpop.f32.mrf.mxu0
        %v9256 = vadd.f32 %v8632, %v9255
        %9257 = vmatprep.mubr.bf16.mxu0 0
        %9258 = vmatmul.mubr.bf16.gmra.mxu0 %v8538
        %v9259 = vpop.f32.mrf.mxu0
        %v9260 = vadd.f32 %v8628, %v9259
        %v9261 = vpop.f32.mrf.mxu0
        %v9262 = vadd.f32 %v8632, %v9261
        %v9263 = vpop.f32.mrf.mxu0
        %v9264 = vadd.f32 %v8628, %v9263
        %v9265 = vpop.f32.mrf.mxu0
        %v9266 = vadd.f32 %v8632, %v9265
        %9267 = vmatprep.mubr.bf16.mxu0 0
        %9268 = vmatmul.mubr.bf16.gmra.mxu0 %v8539
        %v9269 = vpop.f32.mrf.mxu0
        %v9270 = vadd.f32 %v8628, %v9269
        %v9271 = vpop.f32.mrf.mxu0
        %v9272 = vadd.f32 %v8632, %v9271
        %v9273 = vpop.f32.mrf.mxu0
        %v9274 = vadd.f32 %v8628, %v9273
        %v9275 = vpop.f32.mrf.mxu0
        %v9276 = vadd.f32 %v8632, %v9275
        %9277 = vmatprep.mubr.bf16.mxu0 0
        %9278 = vmatmul.mubr.bf16.gmra.mxu0 %v8540
        %v9279 = vpop.f32.mrf.mxu0
        %v9280 = vadd.f32 %v8628, %v9279
        %v9281 = vpop.f32.mrf.mxu0
        %v9282 = vadd.f32 %v8632, %v9281
        %v9283 = vpop.f32.mrf.mxu0
        %v9284 = vadd.f32 %v8628, %v9283
        %v9285 = vpop.f32.mrf.mxu0
        %v9286 = vadd.f32 %v8632, %v9285
        %9287 = vmatprep.mubr.bf16.mxu0 0
        %9288 = vmatmul.mubr.bf16.gmra.mxu0 %v8541
        %v9289 = vpop.f32.mrf.mxu0
        %v9290 = vadd.f32 %v8628, %v9289
        %v9291 = vpop.f32.mrf.mxu0
        %v9292 = vadd.f32 %v8632, %v9291
        %v9293 = vpop.f32.mrf.mxu0
        %v9294 = vadd.f32 %v8628, %v9293
        %v9295 = vpop.f32.mrf.mxu0
        %v9296 = vadd.f32 %v8632, %v9295
        %9297 = vmatprep.mubr.bf16.mxu0 0
        %9298 = vmatmul.mubr.bf16.gmra.mxu0 %v8542
        %v9299 = vpop.f32.mrf.mxu0
        %v9300 = vadd.f32 %v8628, %v9299
        %v9301 = vpop.f32.mrf.mxu0
        %v9302 = vadd.f32 %v8632, %v9301
        %v9303 = vpop.f32.mrf.mxu0
        %v9304 = vadd.f32 %v8628, %v9303
        %v9305 = vpop.f32.mrf.mxu0
        %v9306 = vadd.f32 %v8632, %v9305
        %9307 = vdwg.mxu0
        %9308 = vmatprep.subr.bf16.mxu0 %v8904
        %9309 = vmatpush1.bf16.msra.mxu0 %v8903
        %9310 = vmatprep.subr.bf16.mxu0 %v8896
        %9311 = vmatpush1.bf16.msra.mxu0 %v8895
        %9312 = vmatprep.subr.bf16.mxu0 %v8888
        %9313 = vmatpush1.bf16.msra.mxu0 %v8887
        %9314 = vmatprep.subr.bf16.mxu0 %v8880
        %9315 = vmatpush1.bf16.msra.mxu0 %v8879
        %9316 = vmatprep.subr.bf16.mxu0 %v8872
        %9317 = vmatpush1.bf16.msra.mxu0 %v8871
        %9318 = vmatprep.subr.bf16.mxu0 %v8864
        %9319 = vmatpush1.bf16.msra.mxu0 %v8863
        %9320 = vmatprep.subr.bf16.mxu0 %v8856
        %9321 = vmatpush1.bf16.msra.mxu0 %v8855
        %9322 = vmatprep.subr.bf16.mxu0 %v8848
        %9323 = vmatpush1.bf16.msra.mxu0 %v8847
        %9324 = vmatprep.subr.bf16.mxu0 0
        %9325 = vmatpush2.bf16.msra.mxu0 0
        %9326 = vmatprep.subr.bf16.mxu0 0
        %9327 = vmatpush2.bf16.msra.mxu0 0
        %9328 = vmatprep.subr.bf16.mxu0 0
        %9329 = vmatpush2.bf16.msra.mxu0 0
        %9330 = vmatprep.subr.bf16.mxu0 0
        %9331 = vmatpush2.bf16.msra.mxu0 0
        %9332 = vmatprep.subr.bf16.mxu0 0
        %9333 = vmatpush2.bf16.msra.mxu0 0
        %9334 = vmatprep.subr.bf16.mxu0 0
        %9335 = vmatpush2.bf16.msra.mxu0 0
        %9336 = vmatprep.subr.bf16.mxu0 0
        %9337 = vmatpush2.bf16.msra.mxu0 0
        %9338 = vmatprep.subr.bf16.mxu0 0
        %9339 = vmatpush2.bf16.msra.mxu0 0
        %9340 = vmatprep.mubr.bf16.mxu0 0
        %9341 = vmatmul.mubr.bf16.gmra.mxu0 %v8535
        %v9342 = vpop.f32.mrf.mxu0
        %v9343 = vadd.f32 %v8636, %v9342
        %v9344 = vpop.f32.mrf.mxu0
        %v9345 = vadd.f32 %v8640, %v9344
        %v9346 = vpop.f32.mrf.mxu0
        %v9347 = vadd.f32 %v8636, %v9346
        %v9348 = vpop.f32.mrf.mxu0
        %v9349 = vadd.f32 %v8640, %v9348
        %9350 = vmatprep.mubr.bf16.mxu0 0
        %9351 = vmatmul.mubr.bf16.gmra.mxu0 %v8536
        %v9352 = vpop.f32.mrf.mxu0
        %v9353 = vadd.f32 %v8636, %v9352
        %v9354 = vpop.f32.mrf.mxu0
        %v9355 = vadd.f32 %v8640, %v9354
        %v9356 = vpop.f32.mrf.mxu0
        %v9357 = vadd.f32 %v8636, %v9356
        %v9358 = vpop.f32.mrf.mxu0
        %v9359 = vadd.f32 %v8640, %v9358
        %9360 = vmatprep.mubr.bf16.mxu0 0
        %9361 = vmatmul.mubr.bf16.gmra.mxu0 %v8537
        %v9362 = vpop.f32.mrf.mxu0
        %v9363 = vadd.f32 %v8636, %v9362
        %v9364 = vpop.f32.mrf.mxu0
        %v9365 = vadd.f32 %v8640, %v9364
        %v9366 = vpop.f32.mrf.mxu0
        %v9367 = vadd.f32 %v8636, %v9366
        %v9368 = vpop.f32.mrf.mxu0
        %v9369 = vadd.f32 %v8640, %v9368
        %9370 = vmatprep.mubr.bf16.mxu0 0
        %9371 = vmatmul.mubr.bf16.gmra.mxu0 %v8538
        %v9372 = vpop.f32.mrf.mxu0
        %v9373 = vadd.f32 %v8636, %v9372
        %v9374 = vpop.f32.mrf.mxu0
        %v9375 = vadd.f32 %v8640, %v9374
        %v9376 = vpop.f32.mrf.mxu0
        %v9377 = vadd.f32 %v8636, %v9376
        %v9378 = vpop.f32.mrf.mxu0
        %v9379 = vadd.f32 %v8640, %v9378
        %9380 = vmatprep.mubr.bf16.mxu0 0
        %9381 = vmatmul.mubr.bf16.gmra.mxu0 %v8539
        %v9382 = vpop.f32.mrf.mxu0
        %v9383 = vadd.f32 %v8636, %v9382
        %v9384 = vpop.f32.mrf.mxu0
        %v9385 = vadd.f32 %v8640, %v9384
        %v9386 = vpop.f32.mrf.mxu0
        %v9387 = vadd.f32 %v8636, %v9386
        %v9388 = vpop.f32.mrf.mxu0
        %v9389 = vadd.f32 %v8640, %v9388
        %9390 = vmatprep.mubr.bf16.mxu0 0
        %9391 = vmatmul.mubr.bf16.gmra.mxu0 %v8540
        %v9392 = vpop.f32.mrf.mxu0
        %v9393 = vadd.f32 %v8636, %v9392
        %v9394 = vpop.f32.mrf.mxu0
        %v9395 = vadd.f32 %v8640, %v9394
        %v9396 = vpop.f32.mrf.mxu0
        %v9397 = vadd.f32 %v8636, %v9396
        %v9398 = vpop.f32.mrf.mxu0
        %v9399 = vadd.f32 %v8640, %v9398
        %9400 = vmatprep.mubr.bf16.mxu0 0
        %9401 = vmatmul.mubr.bf16.gmra.mxu0 %v8541
        %v9402 = vpop.f32.mrf.mxu0
        %v9403 = vadd.f32 %v8636, %v9402
        %v9404 = vpop.f32.mrf.mxu0
        %v9405 = vadd.f32 %v8640, %v9404
        %v9406 = vpop.f32.mrf.mxu0
        %v9407 = vadd.f32 %v8636, %v9406
        %v9408 = vpop.f32.mrf.mxu0
        %v9409 = vadd.f32 %v8640, %v9408
        %9410 = vmatprep.mubr.bf16.mxu0 0
        %9411 = vmatmul.mubr.bf16.gmra.mxu0 %v8542
        %v9412 = vpop.f32.mrf.mxu0
        %v9413 = vadd.f32 %v8636, %v9412
        %v9414 = vpop.f32.mrf.mxu0
        %v9415 = vadd.f32 %v8640, %v9414
        %v9416 = vpop.f32.mrf.mxu0
        %v9417 = vadd.f32 %v8636, %v9416
        %v9418 = vpop.f32.mrf.mxu0
        %v9419 = vadd.f32 %v8640, %v9418
        %9420 = vdwg.mxu0
        %v9421 = vmul.f32 %v9230, 0.5
        %v9422 = vmul.f32 %v9232, 0.5
        %v9423 = vmul.f32 %v9343, 0.5
        %v9424 = vmul.f32 %v9345, 0.5
        %v9425 = vmul.f32 %v9234, 0.5
        %v9426 = vmul.f32 %v9236, 0.5
        %v9427 = vmul.f32 %v9347, 0.5
        %v9428 = vmul.f32 %v9349, 0.5
        %v9429 = vmul.f32 %v9240, 0.5
        %v9430 = vmul.f32 %v9242, 0.5
        %v9431 = vmul.f32 %v9353, 0.5
        %v9432 = vmul.f32 %v9355, 0.5
        %v9433 = vmul.f32 %v9244, 0.5
        %v9434 = vmul.f32 %v9246, 0.5
        %v9435 = vmul.f32 %v9357, 0.5
        %v9436 = vmul.f32 %v9359, 0.5
        %v9437 = vmul.f32 %v9250, 0.5
        %v9438 = vmul.f32 %v9252, 0.5
        %v9439 = vmul.f32 %v9363, 0.5
        %v9440 = vmul.f32 %v9365, 0.5
        %v9441 = vmul.f32 %v9254, 0.5
        %v9442 = vmul.f32 %v9256, 0.5
        %v9443 = vmul.f32 %v9367, 0.5
        %v9444 = vmul.f32 %v9369, 0.5
        %v9445 = vmul.f32 %v9260, 0.5
        %v9446 = vmul.f32 %v9262, 0.5
        %v9447 = vmul.f32 %v9373, 0.5
        %v9448 = vmul.f32 %v9375, 0.5
        %v9449 = vmul.f32 %v9264, 0.5
        %v9450 = vmul.f32 %v9266, 0.5
        %v9451 = vmul.f32 %v9377, 0.5
        %v9452 = vmul.f32 %v9379, 0.5
        %v9453 = vmul.f32 %v9270, 0.5
        %v9454 = vmul.f32 %v9272, 0.5
        %v9455 = vmul.f32 %v9383, 0.5
        %v9456 = vmul.f32 %v9385, 0.5
        %v9457 = vmul.f32 %v9274, 0.5
        %v9458 = vmul.f32 %v9276, 0.5
        %v9459 = vmul.f32 %v9387, 0.5
        %v9460 = vmul.f32 %v9389, 0.5
        %v9461 = vmul.f32 %v9280, 0.5
        %v9462 = vmul.f32 %v9282, 0.5
        %v9463 = vmul.f32 %v9393, 0.5
        %v9464 = vmul.f32 %v9395, 0.5
        %v9465 = vmul.f32 %v9284, 0.5
        %v9466 = vmul.f32 %v9286, 0.5
        %v9467 = vmul.f32 %v9397, 0.5
        %v9468 = vmul.f32 %v9399, 0.5
        %v9469 = vmul.f32 %v9290, 0.5
        %v9470 = vmul.f32 %v9292, 0.5
        %v9471 = vmul.f32 %v9403, 0.5
        %v9472 = vmul.f32 %v9405, 0.5
        %v9473 = vmul.f32 %v9294, 0.5
        %v9474 = vmul.f32 %v9296, 0.5
        %v9475 = vmul.f32 %v9407, 0.5
        %v9476 = vmul.f32 %v9409, 0.5
        %v9477 = vmul.f32 %v9300, 0.5
        %v9478 = vmul.f32 %v9302, 0.5
        %v9479 = vmul.f32 %v9413, 0.5
        %v9480 = vmul.f32 %v9415, 0.5
        %v9481 = vmul.f32 %v9304, 0.5
        %v9482 = vmul.f32 %v9306, 0.5
        %v9483 = vmul.f32 %v9417, 0.5
        %v9484 = vmul.f32 %v9419, 0.5
        %v9485 = vmul.f32 %v9230, 0.044715
        %v9486 = vmul.f32 %v9232, 0.044715
        %v9487 = vmul.f32 %v9343, 0.044715
        %v9488 = vmul.f32 %v9345, 0.044715
        %v9489 = vmul.f32 %v9234, 0.044715
        %v9490 = vmul.f32 %v9236, 0.044715
        %v9491 = vmul.f32 %v9347, 0.044715
        %v9492 = vmul.f32 %v9349, 0.044715
        %v9493 = vmul.f32 %v9240, 0.044715
        %v9494 = vmul.f32 %v9242, 0.044715
        %v9495 = vmul.f32 %v9353, 0.044715
        %v9496 = vmul.f32 %v9355, 0.044715
        %v9497 = vmul.f32 %v9244, 0.044715
        %v9498 = vmul.f32 %v9246, 0.044715
        %v9499 = vmul.f32 %v9357, 0.044715
        %v9500 = vmul.f32 %v9359, 0.044715
        %v9501 = vmul.f32 %v9250, 0.044715
        %v9502 = vmul.f32 %v9252, 0.044715
        %v9503 = vmul.f32 %v9363, 0.044715
        %v9504 = vmul.f32 %v9365, 0.044715
        %v9505 = vmul.f32 %v9254, 0.044715
        %v9506 = vmul.f32 %v9256, 0.044715
        %v9507 = vmul.f32 %v9367, 0.044715
        %v9508 = vmul.f32 %v9369, 0.044715
        %v9509 = vmul.f32 %v9260, 0.044715
        %v9510 = vmul.f32 %v9262, 0.044715
        %v9511 = vmul.f32 %v9373, 0.044715
        %v9512 = vmul.f32 %v9375, 0.044715
        %v9513 = vmul.f32 %v9264, 0.044715
        %v9514 = vmul.f32 %v9266, 0.044715
        %v9515 = vmul.f32 %v9377, 0.044715
        %v9516 = vmul.f32 %v9379, 0.044715
        %v9517 = vmul.f32 %v9270, 0.044715
        %v9518 = vmul.f32 %v9272, 0.044715
        %v9519 = vmul.f32 %v9383, 0.044715
        %v9520 = vmul.f32 %v9385, 0.044715
        %v9521 = vmul.f32 %v9274, 0.044715
        %v9522 = vmul.f32 %v9276, 0.044715
        %v9523 = vmul.f32 %v9387, 0.044715
        %v9524 = vmul.f32 %v9389, 0.044715
        %v9525 = vmul.f32 %v9280, 0.044715
        %v9526 = vmul.f32 %v9282, 0.044715
        %v9527 = vmul.f32 %v9393, 0.044715
        %v9528 = vmul.f32 %v9395, 0.044715
        %v9529 = vmul.f32 %v9284, 0.044715
        %v9530 = vmul.f32 %v9286, 0.044715
        %v9531 = vmul.f32 %v9397, 0.044715
        %v9532 = vmul.f32 %v9399, 0.044715
        %v9533 = vmul.f32 %v9290, 0.044715
        %v9534 = vmul.f32 %v9292, 0.044715
        %v9535 = vmul.f32 %v9403, 0.044715
        %v9536 = vmul.f32 %v9405, 0.044715
        %v9537 = vmul.f32 %v9294, 0.044715
        %v9538 = vmul.f32 %v9296, 0.044715
        %v9539 = vmul.f32 %v9407, 0.044715
        %v9540 = vmul.f32 %v9409, 0.044715
        %v9541 = vmul.f32 %v9300, 0.044715
        %v9542 = vmul.f32 %v9302, 0.044715
        %v9543 = vmul.f32 %v9413, 0.044715
        %v9544 = vmul.f32 %v9415, 0.044715
        %v9545 = vmul.f32 %v9304, 0.044715
        %v9546 = vmul.f32 %v9306, 0.044715
        %v9547 = vmul.f32 %v9417, 0.044715
        %v9548 = vmul.f32 %v9419, 0.044715
        %v9549 = vmul.f32 %v9485, %v9230
        %v9550 = vmul.f32 %v9486, %v9232
        %v9551 = vmul.f32 %v9487, %v9343
        %v9552 = vmul.f32 %v9488, %v9345
        %v9553 = vmul.f32 %v9489, %v9234
        %v9554 = vmul.f32 %v9490, %v9236
        %v9555 = vmul.f32 %v9491, %v9347
        %v9556 = vmul.f32 %v9492, %v9349
        %v9557 = vmul.f32 %v9493, %v9240
        %v9558 = vmul.f32 %v9494, %v9242
        %v9559 = vmul.f32 %v9495, %v9353
        %v9560 = vmul.f32 %v9496, %v9355
        %v9561 = vmul.f32 %v9497, %v9244
        %v9562 = vmul.f32 %v9498, %v9246
        %v9563 = vmul.f32 %v9499, %v9357
        %v9564 = vmul.f32 %v9500, %v9359
        %v9565 = vmul.f32 %v9501, %v9250
        %v9566 = vmul.f32 %v9502, %v9252
        %v9567 = vmul.f32 %v9503, %v9363
        %v9568 = vmul.f32 %v9504, %v9365
        %v9569 = vmul.f32 %v9505, %v9254
        %v9570 = vmul.f32 %v9506, %v9256
        %v9571 = vmul.f32 %v9507, %v9367
        %v9572 = vmul.f32 %v9508, %v9369
        %v9573 = vmul.f32 %v9509, %v9260
        %v9574 = vmul.f32 %v9510, %v9262
        %v9575 = vmul.f32 %v9511, %v9373
        %v9576 = vmul.f32 %v9512, %v9375
        %v9577 = vmul.f32 %v9513, %v9264
        %v9578 = vmul.f32 %v9514, %v9266
        %v9579 = vmul.f32 %v9515, %v9377
        %v9580 = vmul.f32 %v9516, %v9379
        %v9581 = vmul.f32 %v9517, %v9270
        %v9582 = vmul.f32 %v9518, %v9272
        %v9583 = vmul.f32 %v9519, %v9383
        %v9584 = vmul.f32 %v9520, %v9385
        %v9585 = vmul.f32 %v9521, %v9274
        %v9586 = vmul.f32 %v9522, %v9276
        %v9587 = vmul.f32 %v9523, %v9387
        %v9588 = vmul.f32 %v9524, %v9389
        %v9589 = vmul.f32 %v9525, %v9280
        %v9590 = vmul.f32 %v9526, %v9282
        %v9591 = vmul.f32 %v9527, %v9393
        %v9592 = vmul.f32 %v9528, %v9395
        %v9593 = vmul.f32 %v9529, %v9284
        %v9594 = vmul.f32 %v9530, %v9286
        %v9595 = vmul.f32 %v9531, %v9397
        %v9596 = vmul.f32 %v9532, %v9399
        %v9597 = vmul.f32 %v9533, %v9290
        %v9598 = vmul.f32 %v9534, %v9292
        %v9599 = vmul.f32 %v9535, %v9403
        %v9600 = vmul.f32 %v9536, %v9405
        %v9601 = vmul.f32 %v9537, %v9294
        %v9602 = vmul.f32 %v9538, %v9296
        %v9603 = vmul.f32 %v9539, %v9407
        %v9604 = vmul.f32 %v9540, %v9409
        %v9605 = vmul.f32 %v9541, %v9300
        %v9606 = vmul.f32 %v9542, %v9302
        %v9607 = vmul.f32 %v9543, %v9413
        %v9608 = vmul.f32 %v9544, %v9415
        %v9609 = vmul.f32 %v9545, %v9304
        %v9610 = vmul.f32 %v9546, %v9306
        %v9611 = vmul.f32 %v9547, %v9417
        %v9612 = vmul.f32 %v9548, %v9419
        %v9613 = vmul.f32 %v9549, %v9230
        %v9614 = vmul.f32 %v9550, %v9232
        %v9615 = vmul.f32 %v9551, %v9343
        %v9616 = vmul.f32 %v9552, %v9345
        %v9617 = vmul.f32 %v9553, %v9234
        %v9618 = vmul.f32 %v9554, %v9236
        %v9619 = vmul.f32 %v9555, %v9347
        %v9620 = vmul.f32 %v9556, %v9349
        %v9621 = vmul.f32 %v9557, %v9240
        %v9622 = vmul.f32 %v9558, %v9242
        %v9623 = vmul.f32 %v9559, %v9353
        %v9624 = vmul.f32 %v9560, %v9355
        %v9625 = vmul.f32 %v9561, %v9244
        %v9626 = vmul.f32 %v9562, %v9246
        %v9627 = vmul.f32 %v9563, %v9357
        %v9628 = vmul.f32 %v9564, %v9359
        %v9629 = vmul.f32 %v9565, %v9250
        %v9630 = vmul.f32 %v9566, %v9252
        %v9631 = vmul.f32 %v9567, %v9363
        %v9632 = vmul.f32 %v9568, %v9365
        %v9633 = vmul.f32 %v9569, %v9254
        %v9634 = vmul.f32 %v9570, %v9256
        %v9635 = vmul.f32 %v9571, %v9367
        %v9636 = vmul.f32 %v9572, %v9369
        %v9637 = vmul.f32 %v9573, %v9260
        %v9638 = vmul.f32 %v9574, %v9262
        %v9639 = vmul.f32 %v9575, %v9373
        %v9640 = vmul.f32 %v9576, %v9375
        %v9641 = vmul.f32 %v9577, %v9264
        %v9642 = vmul.f32 %v9578, %v9266
        %v9643 = vmul.f32 %v9579, %v9377
        %v9644 = vmul.f32 %v9580, %v9379
        %v9645 = vmul.f32 %v9581, %v9270
        %v9646 = vmul.f32 %v9582, %v9272
        %v9647 = vmul.f32 %v9583, %v9383
        %v9648 = vmul.f32 %v9584, %v9385
        %v9649 = vmul.f32 %v9585, %v9274
        %v9650 = vmul.f32 %v9586, %v9276
        %v9651 = vmul.f32 %v9587, %v9387
        %v9652 = vmul.f32 %v9588, %v9389
        %v9653 = vmul.f32 %v9589, %v9280
        %v9654 = vmul.f32 %v9590, %v9282
        %v9655 = vmul.f32 %v9591, %v9393
        %v9656 = vmul.f32 %v9592, %v9395
        %v9657 = vmul.f32 %v9593, %v9284
        %v9658 = vmul.f32 %v9594, %v9286
        %v9659 = vmul.f32 %v9595, %v9397
        %v9660 = vmul.f32 %v9596, %v9399
        %v9661 = vmul.f32 %v9597, %v9290
        %v9662 = vmul.f32 %v9598, %v9292
        %v9663 = vmul.f32 %v9599, %v9403
        %v9664 = vmul.f32 %v9600, %v9405
        %v9665 = vmul.f32 %v9601, %v9294
        %v9666 = vmul.f32 %v9602, %v9296
        %v9667 = vmul.f32 %v9603, %v9407
        %v9668 = vmul.f32 %v9604, %v9409
        %v9669 = vmul.f32 %v9605, %v9300
        %v9670 = vmul.f32 %v9606, %v9302
        %v9671 = vmul.f32 %v9607, %v9413
        %v9672 = vmul.f32 %v9608, %v9415
        %v9673 = vmul.f32 %v9609, %v9304
        %v9674 = vmul.f32 %v9610, %v9306
        %v9675 = vmul.f32 %v9611, %v9417
        %v9676 = vmul.f32 %v9612, %v9419
        %v9677 = vadd.f32 %v9230, %v9613
        %v9678 = vadd.f32 %v9232, %v9614
        %v9679 = vadd.f32 %v9343, %v9615
        %v9680 = vadd.f32 %v9345, %v9616
        %v9681 = vadd.f32 %v9234, %v9617
        %v9682 = vadd.f32 %v9236, %v9618
        %v9683 = vadd.f32 %v9347, %v9619
        %v9684 = vadd.f32 %v9349, %v9620
        %v9685 = vadd.f32 %v9240, %v9621
        %v9686 = vadd.f32 %v9242, %v9622
        %v9687 = vadd.f32 %v9353, %v9623
        %v9688 = vadd.f32 %v9355, %v9624
        %v9689 = vadd.f32 %v9244, %v9625
        %v9690 = vadd.f32 %v9246, %v9626
        %v9691 = vadd.f32 %v9357, %v9627
        %v9692 = vadd.f32 %v9359, %v9628
        %v9693 = vadd.f32 %v9250, %v9629
        %v9694 = vadd.f32 %v9252, %v9630
        %v9695 = vadd.f32 %v9363, %v9631
        %v9696 = vadd.f32 %v9365, %v9632
        %v9697 = vadd.f32 %v9254, %v9633
        %v9698 = vadd.f32 %v9256, %v9634
        %v9699 = vadd.f32 %v9367, %v9635
        %v9700 = vadd.f32 %v9369, %v9636
        %v9701 = vadd.f32 %v9260, %v9637
        %v9702 = vadd.f32 %v9262, %v9638
        %v9703 = vadd.f32 %v9373, %v9639
        %v9704 = vadd.f32 %v9375, %v9640
        %v9705 = vadd.f32 %v9264, %v9641
        %v9706 = vadd.f32 %v9266, %v9642
        %v9707 = vadd.f32 %v9377, %v9643
        %v9708 = vadd.f32 %v9379, %v9644
        %v9709 = vadd.f32 %v9270, %v9645
        %v9710 = vadd.f32 %v9272, %v9646
        %v9711 = vadd.f32 %v9383, %v9647
        %v9712 = vadd.f32 %v9385, %v9648
        %v9713 = vadd.f32 %v9274, %v9649
        %v9714 = vadd.f32 %v9276, %v9650
        %v9715 = vadd.f32 %v9387, %v9651
        %v9716 = vadd.f32 %v9389, %v9652
        %v9717 = vadd.f32 %v9280, %v9653
        %v9718 = vadd.f32 %v9282, %v9654
        %v9719 = vadd.f32 %v9393, %v9655
        %v9720 = vadd.f32 %v9395, %v9656
        %v9721 = vadd.f32 %v9284, %v9657
        %v9722 = vadd.f32 %v9286, %v9658
        %v9723 = vadd.f32 %v9397, %v9659
        %v9724 = vadd.f32 %v9399, %v9660
        %v9725 = vadd.f32 %v9290, %v9661
        %v9726 = vadd.f32 %v9292, %v9662
        %v9727 = vadd.f32 %v9403, %v9663
        %v9728 = vadd.f32 %v9405, %v9664
        %v9729 = vadd.f32 %v9294, %v9665
        %v9730 = vadd.f32 %v9296, %v9666
        %v9731 = vadd.f32 %v9407, %v9667
        %v9732 = vadd.f32 %v9409, %v9668
        %v9733 = vadd.f32 %v9300, %v9669
        %v9734 = vadd.f32 %v9302, %v9670
        %v9735 = vadd.f32 %v9413, %v9671
        %v9736 = vadd.f32 %v9415, %v9672
        %v9737 = vadd.f32 %v9304, %v9673
        %v9738 = vadd.f32 %v9306, %v9674
        %v9739 = vadd.f32 %v9417, %v9675
        %v9740 = vadd.f32 %v9419, %v9676
        %v9741 = vmul.f32 %v9677, 0.7978846
        %v9742 = vmul.f32 %v9678, 0.7978846
        %v9743 = vmul.f32 %v9679, 0.7978846
        %v9744 = vmul.f32 %v9680, 0.7978846
        %v9745 = vmul.f32 %v9681, 0.7978846
        %v9746 = vmul.f32 %v9682, 0.7978846
        %v9747 = vmul.f32 %v9683, 0.7978846
        %v9748 = vmul.f32 %v9684, 0.7978846
        %v9749 = vmul.f32 %v9685, 0.7978846
        %v9750 = vmul.f32 %v9686, 0.7978846
        %v9751 = vmul.f32 %v9687, 0.7978846
        %v9752 = vmul.f32 %v9688, 0.7978846
        %v9753 = vmul.f32 %v9689, 0.7978846
        %v9754 = vmul.f32 %v9690, 0.7978846
        %v9755 = vmul.f32 %v9691, 0.7978846
        %v9756 = vmul.f32 %v9692, 0.7978846
        %v9757 = vmul.f32 %v9693, 0.7978846
        %v9758 = vmul.f32 %v9694, 0.7978846
        %v9759 = vmul.f32 %v9695, 0.7978846
        %v9760 = vmul.f32 %v9696, 0.7978846
        %v9761 = vmul.f32 %v9697, 0.7978846
        %v9762 = vmul.f32 %v9698, 0.7978846
        %v9763 = vmul.f32 %v9699, 0.7978846
        %v9764 = vmul.f32 %v9700, 0.7978846
        %v9765 = vmul.f32 %v9701, 0.7978846
        %v9766 = vmul.f32 %v9702, 0.7978846
        %v9767 = vmul.f32 %v9703, 0.7978846
        %v9768 = vmul.f32 %v9704, 0.7978846
        %v9769 = vmul.f32 %v9705, 0.7978846
        %v9770 = vmul.f32 %v9706, 0.7978846
        %v9771 = vmul.f32 %v9707, 0.7978846
        %v9772 = vmul.f32 %v9708, 0.7978846
        %v9773 = vmul.f32 %v9709, 0.7978846
        %v9774 = vmul.f32 %v9710, 0.7978846
        %v9775 = vmul.f32 %v9711, 0.7978846
        %v9776 = vmul.f32 %v9712, 0.7978846
        %v9777 = vmul.f32 %v9713, 0.7978846
        %v9778 = vmul.f32 %v9714, 0.7978846
        %v9779 = vmul.f32 %v9715, 0.7978846
        %v9780 = vmul.f32 %v9716, 0.7978846
        %v9781 = vmul.f32 %v9717, 0.7978846
        %v9782 = vmul.f32 %v9718, 0.7978846
        %v9783 = vmul.f32 %v9719, 0.7978846
        %v9784 = vmul.f32 %v9720, 0.7978846
        %v9785 = vmul.f32 %v9721, 0.7978846
        %v9786 = vmul.f32 %v9722, 0.7978846
        %v9787 = vmul.f32 %v9723, 0.7978846
        %v9788 = vmul.f32 %v9724, 0.7978846
        %v9789 = vmul.f32 %v9725, 0.7978846
        %v9790 = vmul.f32 %v9726, 0.7978846
        %v9791 = vmul.f32 %v9727, 0.7978846
        %v9792 = vmul.f32 %v9728, 0.7978846
        %v9793 = vmul.f32 %v9729, 0.7978846
        %v9794 = vmul.f32 %v9730, 0.7978846
        %v9795 = vmul.f32 %v9731, 0.7978846
        %v9796 = vmul.f32 %v9732, 0.7978846
        %v9797 = vmul.f32 %v9733, 0.7978846
        %v9798 = vmul.f32 %v9734, 0.7978846
        %v9799 = vmul.f32 %v9735, 0.7978846
        %v9800 = vmul.f32 %v9736, 0.7978846
        %v9801 = vmul.f32 %v9737, 0.7978846
        %v9802 = vmul.f32 %v9738, 0.7978846
        %v9803 = vmul.f32 %v9739, 0.7978846
        %v9804 = vmul.f32 %v9740, 0.7978846
        %v9805 = vtanh.pop %v9741
        %v9806 = vtanh.pop %v9742
        %v9807 = vtanh.pop %v9743
        %v9808 = vtanh.pop %v9744
        %v9809 = vtanh.pop %v9745
        %v9810 = vtanh.pop %v9746
        %v9811 = vtanh.pop %v9747
        %v9812 = vtanh.pop %v9748
        %v9813 = vtanh.pop %v9749
        %v9814 = vtanh.pop %v9750
        %v9815 = vtanh.pop %v9751
        %v9816 = vtanh.pop %v9752
        %v9817 = vtanh.pop %v9753
        %v9818 = vtanh.pop %v9754
        %v9819 = vtanh.pop %v9755
        %v9820 = vtanh.pop %v9756
        %v9821 = vtanh.pop %v9757
        %v9822 = vtanh.pop %v9758
        %v9823 = vtanh.pop %v9759
        %v9824 = vtanh.pop %v9760
        %v9825 = vtanh.pop %v9761
        %v9826 = vtanh.pop %v9762
        %v9827 = vtanh.pop %v9763
        %v9828 = vtanh.pop %v9764
        %v9829 = vtanh.pop %v9765
        %v9830 = vtanh.pop %v9766
        %v9831 = vtanh.pop %v9767
        %v9832 = vtanh.pop %v9768
        %v9833 = vtanh.pop %v9769
        %v9834 = vtanh.pop %v9770
        %v9835 = vtanh.pop %v9771
        %v9836 = vtanh.pop %v9772
        %v9837 = vtanh.pop %v9773
        %v9838 = vtanh.pop %v9774
        %v9839 = vtanh.pop %v9775
        %v9840 = vtanh.pop %v9776
        %v9841 = vtanh.pop %v9777
        %v9842 = vtanh.pop %v9778
        %v9843 = vtanh.pop %v9779
        %v9844 = vtanh.pop %v9780
        %v9845 = vtanh.pop %v9781
        %v9846 = vtanh.pop %v9782
        %v9847 = vtanh.pop %v9783
        %v9848 = vtanh.pop %v9784
        %v9849 = vtanh.pop %v9785
        %v9850 = vtanh.pop %v9786
        %v9851 = vtanh.pop %v9787
        %v9852 = vtanh.pop %v9788
        %v9853 = vtanh.pop %v9789
        %v9854 = vtanh.pop %v9790
        %v9855 = vtanh.pop %v9791
        %v9856 = vtanh.pop %v9792
        %v9857 = vtanh.pop %v9793
        %v9858 = vtanh.pop %v9794
        %v9859 = vtanh.pop %v9795
        %v9860 = vtanh.pop %v9796
        %v9861 = vtanh.pop %v9797
        %v9862 = vtanh.pop %v9798
        %v9863 = vtanh.pop %v9799
        %v9864 = vtanh.pop %v9800
        %v9865 = vtanh.pop %v9801
        %v9866 = vtanh.pop %v9802
        %v9867 = vtanh.pop %v9803
        %v9868 = vtanh.pop %v9804
        %v9869 = vadd.f32 %v9805, 1.0
        %v9870 = vadd.f32 %v9806, 1.0
        %v9871 = vadd.f32 %v9807, 1.0
        %v9872 = vadd.f32 %v9808, 1.0
        %v9873 = vadd.f32 %v9809, 1.0
        %v9874 = vadd.f32 %v9810, 1.0
        %v9875 = vadd.f32 %v9811, 1.0
        %v9876 = vadd.f32 %v9812, 1.0
        %v9877 = vadd.f32 %v9813, 1.0
        %v9878 = vadd.f32 %v9814, 1.0
        %v9879 = vadd.f32 %v9815, 1.0
        %v9880 = vadd.f32 %v9816, 1.0
        %v9881 = vadd.f32 %v9817, 1.0
        %v9882 = vadd.f32 %v9818, 1.0
        %v9883 = vadd.f32 %v9819, 1.0
        %v9884 = vadd.f32 %v9820, 1.0
        %v9885 = vadd.f32 %v9821, 1.0
        %v9886 = vadd.f32 %v9822, 1.0
        %v9887 = vadd.f32 %v9823, 1.0
        %v9888 = vadd.f32 %v9824, 1.0
        %v9889 = vadd.f32 %v9825, 1.0
        %v9890 = vadd.f32 %v9826, 1.0
        %v9891 = vadd.f32 %v9827, 1.0
        %v9892 = vadd.f32 %v9828, 1.0
        %v9893 = vadd.f32 %v9829, 1.0
        %v9894 = vadd.f32 %v9830, 1.0
        %v9895 = vadd.f32 %v9831, 1.0
        %v9896 = vadd.f32 %v9832, 1.0
        %v9897 = vadd.f32 %v9833, 1.0
        %v9898 = vadd.f32 %v9834, 1.0
        %v9899 = vadd.f32 %v9835, 1.0
        %v9900 = vadd.f32 %v9836, 1.0
        %v9901 = vadd.f32 %v9837, 1.0
        %v9902 = vadd.f32 %v9838, 1.0
        %v9903 = vadd.f32 %v9839, 1.0
        %v9904 = vadd.f32 %v9840, 1.0
        %v9905 = vadd.f32 %v9841, 1.0
        %v9906 = vadd.f32 %v9842, 1.0
        %v9907 = vadd.f32 %v9843, 1.0
        %v9908 = vadd.f32 %v9844, 1.0
        %v9909 = vadd.f32 %v9845, 1.0
        %v9910 = vadd.f32 %v9846, 1.0
        %v9911 = vadd.f32 %v9847, 1.0
        %v9912 = vadd.f32 %v9848, 1.0
        %v9913 = vadd.f32 %v9849, 1.0
        %v9914 = vadd.f32 %v9850, 1.0
        %v9915 = vadd.f32 %v9851, 1.0
        %v9916 = vadd.f32 %v9852, 1.0
        %v9917 = vadd.f32 %v9853, 1.0
        %v9918 = vadd.f32 %v9854, 1.0
        %v9919 = vadd.f32 %v9855, 1.0
        %v9920 = vadd.f32 %v9856, 1.0
        %v9921 = vadd.f32 %v9857, 1.0
        %v9922 = vadd.f32 %v9858, 1.0
        %v9923 = vadd.f32 %v9859, 1.0
        %v9924 = vadd.f32 %v9860, 1.0
        %v9925 = vadd.f32 %v9861, 1.0
        %v9926 = vadd.f32 %v9862, 1.0
        %v9927 = vadd.f32 %v9863, 1.0
        %v9928 = vadd.f32 %v9864, 1.0
        %v9929 = vadd.f32 %v9865, 1.0
        %v9930 = vadd.f32 %v9866, 1.0
        %v9931 = vadd.f32 %v9867, 1.0
        %v9932 = vadd.f32 %v9868, 1.0
        %v9933 = vmul.f32 %v9421, %v9869
        %v9934 = vmul.f32 %v9422, %v9870
        %v9935 = vmul.f32 %v9423, %v9871
        %v9936 = vmul.f32 %v9424, %v9872
        %v9937 = vmul.f32 %v9425, %v9873
        %v9938 = vmul.f32 %v9426, %v9874
        %v9939 = vmul.f32 %v9427, %v9875
        %v9940 = vmul.f32 %v9428, %v9876
        %v9941 = vmul.f32 %v9429, %v9877
        %v9942 = vmul.f32 %v9430, %v9878
        %v9943 = vmul.f32 %v9431, %v9879
        %v9944 = vmul.f32 %v9432, %v9880
        %v9945 = vmul.f32 %v9433, %v9881
        %v9946 = vmul.f32 %v9434, %v9882
        %v9947 = vmul.f32 %v9435, %v9883
        %v9948 = vmul.f32 %v9436, %v9884
        %v9949 = vmul.f32 %v9437, %v9885
        %v9950 = vmul.f32 %v9438, %v9886
        %v9951 = vmul.f32 %v9439, %v9887
        %v9952 = vmul.f32 %v9440, %v9888
        %v9953 = vmul.f32 %v9441, %v9889
        %v9954 = vmul.f32 %v9442, %v9890
        %v9955 = vmul.f32 %v9443, %v9891
        %v9956 = vmul.f32 %v9444, %v9892
        %v9957 = vmul.f32 %v9445, %v9893
        %v9958 = vmul.f32 %v9446, %v9894
        %v9959 = vmul.f32 %v9447, %v9895
        %v9960 = vmul.f32 %v9448, %v9896
        %v9961 = vmul.f32 %v9449, %v9897
        %v9962 = vmul.f32 %v9450, %v9898
        %v9963 = vmul.f32 %v9451, %v9899
        %v9964 = vmul.f32 %v9452, %v9900
        %v9965 = vmul.f32 %v9453, %v9901
        %v9966 = vmul.f32 %v9454, %v9902
        %v9967 = vmul.f32 %v9455, %v9903
        %v9968 = vmul.f32 %v9456, %v9904
        %v9969 = vmul.f32 %v9457, %v9905
        %v9970 = vmul.f32 %v9458, %v9906
        %v9971 = vmul.f32 %v9459, %v9907
        %v9972 = vmul.f32 %v9460, %v9908
        %v9973 = vmul.f32 %v9461, %v9909
        %v9974 = vmul.f32 %v9462, %v9910
        %v9975 = vmul.f32 %v9463, %v9911
        %v9976 = vmul.f32 %v9464, %v9912
        %v9977 = vmul.f32 %v9465, %v9913
        %v9978 = vmul.f32 %v9466, %v9914
        %v9979 = vmul.f32 %v9467, %v9915
        %v9980 = vmul.f32 %v9468, %v9916
        %v9981 = vmul.f32 %v9469, %v9917
        %v9982 = vmul.f32 %v9470, %v9918
        %v9983 = vmul.f32 %v9471, %v9919
        %v9984 = vmul.f32 %v9472, %v9920
        %v9985 = vmul.f32 %v9473, %v9921
        %v9986 = vmul.f32 %v9474, %v9922
        %v9987 = vmul.f32 %v9475, %v9923
        %v9988 = vmul.f32 %v9476, %v9924
        %v9989 = vmul.f32 %v9477, %v9925
        %v9990 = vmul.f32 %v9478, %v9926
        %v9991 = vmul.f32 %v9479, %v9927
        %v9992 = vmul.f32 %v9480, %v9928
        %v9993 = vmul.f32 %v9481, %v9929
        %v9994 = vmul.f32 %v9482, %v9930
        %v9995 = vmul.f32 %v9483, %v9931
        %v9996 = vmul.f32 %v9484, %v9932
        %v9997 = vmul.f32 %v9004, %v9933
        %v9998 = vmul.f32 %v9006, %v9934
        %v9999 = vmul.f32 %v9117, %v9935
        %v10000 = vmul.f32 %v9119, %v9936
        %v10001 = vmul.f32 %v9008, %v9937
        %v10002 = vmul.f32 %v9010, %v9938
        %v10003 = vmul.f32 %v9121, %v9939
        %v10004 = vmul.f32 %v9123, %v9940
        %v10005 = vmul.f32 %v9014, %v9941
        %v10006 = vmul.f32 %v9016, %v9942
        %v10007 = vmul.f32 %v9127, %v9943
        %v10008 = vmul.f32 %v9129, %v9944
        %v10009 = vmul.f32 %v9018, %v9945
        %v10010 = vmul.f32 %v9020, %v9946
        %v10011 = vmul.f32 %v9131, %v9947
        %v10012 = vmul.f32 %v9133, %v9948
        %v10013 = vmul.f32 %v9024, %v9949
        %v10014 = vmul.f32 %v9026, %v9950
        %v10015 = vmul.f32 %v9137, %v9951
        %v10016 = vmul.f32 %v9139, %v9952
        %v10017 = vmul.f32 %v9028, %v9953
        %v10018 = vmul.f32 %v9030, %v9954
        %v10019 = vmul.f32 %v9141, %v9955
        %v10020 = vmul.f32 %v9143, %v9956
        %v10021 = vmul.f32 %v9034, %v9957
        %v10022 = vmul.f32 %v9036, %v9958
        %v10023 = vmul.f32 %v9147, %v9959
        %v10024 = vmul.f32 %v9149, %v9960
        %v10025 = vmul.f32 %v9038, %v9961
        %v10026 = vmul.f32 %v9040, %v9962
        %v10027 = vmul.f32 %v9151, %v9963
        %v10028 = vmul.f32 %v9153, %v9964
        %v10029 = vmul.f32 %v9044, %v9965
        %v10030 = vmul.f32 %v9046, %v9966
        %v10031 = vmul.f32 %v9157, %v9967
        %v10032 = vmul.f32 %v9159, %v9968
        %v10033 = vmul.f32 %v9048, %v9969
        %v10034 = vmul.f32 %v9050, %v9970
        %v10035 = vmul.f32 %v9161, %v9971
        %v10036 = vmul.f32 %v9163, %v9972
        %v10037 = vmul.f32 %v9054, %v9973
        %v10038 = vmul.f32 %v9056, %v9974
        %v10039 = vmul.f32 %v9167, %v9975
        %v10040 = vmul.f32 %v9169, %v9976
        %v10041 = vmul.f32 %v9058, %v9977
        %v10042 = vmul.f32 %v9060, %v9978
        %v10043 = vmul.f32 %v9171, %v9979
        %v10044 = vmul.f32 %v9173, %v9980
        %v10045 = vmul.f32 %v9064, %v9981
        %v10046 = vmul.f32 %v9066, %v9982
        %v10047 = vmul.f32 %v9177, %v9983
        %v10048 = vmul.f32 %v9179, %v9984
        %v10049 = vmul.f32 %v9068, %v9985
        %v10050 = vmul.f32 %v9070, %v9986
        %v10051 = vmul.f32 %v9181, %v9987
        %v10052 = vmul.f32 %v9183, %v9988
        %v10053 = vmul.f32 %v9074, %v9989
        %v10054 = vmul.f32 %v9076, %v9990
        %v10055 = vmul.f32 %v9187, %v9991
        %v10056 = vmul.f32 %v9189, %v9992
        %v10057 = vmul.f32 %v9078, %v9993
        %v10058 = vmul.f32 %v9080, %v9994
        %v10059 = vmul.f32 %v9191, %v9995
        %v10060 = vmul.f32 %v9193, %v9996
        %v10061 = vpack.c.bf16 %v10001, %v9997
        %v10062 = vpack.c.bf16 %v10002, %v9998
        %v10063 = vpack.c.bf16 %v10003, %v9999
        %v10064 = vpack.c.bf16 %v10004, %v10000
        %v10065 = vpack.c.bf16 %v10009, %v10005
        %v10066 = vpack.c.bf16 %v10010, %v10006
        %v10067 = vpack.c.bf16 %v10011, %v10007
        %v10068 = vpack.c.bf16 %v10012, %v10008
        %v10069 = vpack.c.bf16 %v10017, %v10013
        %v10070 = vpack.c.bf16 %v10018, %v10014
        %v10071 = vpack.c.bf16 %v10019, %v10015
        %v10072 = vpack.c.bf16 %v10020, %v10016
        %v10073 = vpack.c.bf16 %v10025, %v10021
        %v10074 = vpack.c.bf16 %v10026, %v10022
        %v10075 = vpack.c.bf16 %v10027, %v10023
        %v10076 = vpack.c.bf16 %v10028, %v10024
        %v10077 = vpack.c.bf16 %v10033, %v10029
        %v10078 = vpack.c.bf16 %v10034, %v10030
        %v10079 = vpack.c.bf16 %v10035, %v10031
        %v10080 = vpack.c.bf16 %v10036, %v10032
        %v10081 = vpack.c.bf16 %v10041, %v10037
        %v10082 = vpack.c.bf16 %v10042, %v10038
        %v10083 = vpack.c.bf16 %v10043, %v10039
        %v10084 = vpack.c.bf16 %v10044, %v10040
        %v10085 = vpack.c.bf16 %v10049, %v10045
        %v10086 = vpack.c.bf16 %v10050, %v10046
        %v10087 = vpack.c.bf16 %v10051, %v10047
        %v10088 = vpack.c.bf16 %v10052, %v10048
        %v10089 = vpack.c.bf16 %v10057, %v10053
        %v10090 = vpack.c.bf16 %v10058, %v10054
        %v10091 = vpack.c.bf16 %v10059, %v10055
        %v10092 = vpack.c.bf16 %v10060, %v10056
        %v10093 = vld [vmem:[#allocation16] sm:$0xf]
        %v10094 = vld [vmem:[#allocation16 + $0x4] sm:$0xf]
        %v10095 = vld [vmem:[#allocation16 + $0x8] sm:$0xf]
        %v10096 = vld [vmem:[#allocation16 + $0xc] sm:$0xf]
        %v10097 = vld [vmem:[#allocation16 + $0x10] sm:$0xf]
        %v10098 = vld [vmem:[#allocation16 + $0x14] sm:$0xf]
        %v10099 = vld [vmem:[#allocation16 + $0x18] sm:$0xf]
        %v10100 = vld [vmem:[#allocation16 + $0x1c] sm:$0xf]
        %v10101 = vld [vmem:[#allocation16 + $0x20] sm:$0xf]
        %v10102 = vld [vmem:[#allocation16 + $0x24] sm:$0xf]
        %v10103 = vld [vmem:[#allocation16 + $0x28] sm:$0xf]
        %v10104 = vld [vmem:[#allocation16 + $0x2c] sm:$0xf]
        %v10105 = vld [vmem:[#allocation16 + $0x30] sm:$0xf]
        %v10106 = vld [vmem:[#allocation16 + $0x34] sm:$0xf]
        %v10107 = vld [vmem:[#allocation16 + $0x38] sm:$0xf]
        %v10108 = vld [vmem:[#allocation16 + $0x3c] sm:$0xf]
        %v10109 = vld [vmem:[#allocation16 + $0x40] sm:$0xf]
        %v10110 = vld [vmem:[#allocation16 + $0x44] sm:$0xf]
        %v10111 = vld [vmem:[#allocation16 + $0x48] sm:$0xf]
        %v10112 = vld [vmem:[#allocation16 + $0x4c] sm:$0xf]
        %v10113 = vld [vmem:[#allocation16 + $0x50] sm:$0xf]
        %v10114 = vld [vmem:[#allocation16 + $0x54] sm:$0xf]
        %v10115 = vld [vmem:[#allocation16 + $0x58] sm:$0xf]
        %v10116 = vld [vmem:[#allocation16 + $0x5c] sm:$0xf]
        %v10117 = vld [vmem:[#allocation16 + $0x60] sm:$0xf]
        %v10118 = vld [vmem:[#allocation16 + $0x64] sm:$0xf]
        %v10119 = vld [vmem:[#allocation16 + $0x68] sm:$0xf]
        %v10120 = vld [vmem:[#allocation16 + $0x6c] sm:$0xf]
        %v10121 = vld [vmem:[#allocation16 + $0x70] sm:$0xf]
        %v10122 = vld [vmem:[#allocation16 + $0x74] sm:$0xf]
        %v10123 = vld [vmem:[#allocation16 + $0x78] sm:$0xf]
        %v10124 = vld [vmem:[#allocation16 + $0x7c] sm:$0xf]
        %v10125 = vld [vmem:[#allocation16 + $0x80] sm:$0xf]
        %v10126 = vld [vmem:[#allocation16 + $0x84] sm:$0xf]
        %v10127 = vld [vmem:[#allocation16 + $0x88] sm:$0xf]
        %v10128 = vld [vmem:[#allocation16 + $0x8c] sm:$0xf]
        %v10129 = vld [vmem:[#allocation16 + $0x90] sm:$0xf]
        %v10130 = vld [vmem:[#allocation16 + $0x94] sm:$0xf]
        %v10131 = vld [vmem:[#allocation16 + $0x98] sm:$0xf]
        %v10132 = vld [vmem:[#allocation16 + $0x9c] sm:$0xf]
        %v10133 = vld [vmem:[#allocation16 + $0xa0] sm:$0xf]
        %v10134 = vld [vmem:[#allocation16 + $0xa4] sm:$0xf]
        %v10135 = vld [vmem:[#allocation16 + $0xa8] sm:$0xf]
        %v10136 = vld [vmem:[#allocation16 + $0xac] sm:$0xf]
        %v10137 = vld [vmem:[#allocation16 + $0xb0] sm:$0xf]
        %v10138 = vld [vmem:[#allocation16 + $0xb4] sm:$0xf]
        %v10139 = vld [vmem:[#allocation16 + $0xb8] sm:$0xf]
        %v10140 = vld [vmem:[#allocation16 + $0xbc] sm:$0xf]
        %v10141 = vld [vmem:[#allocation16 + $0xc0] sm:$0xf]
        %v10142 = vld [vmem:[#allocation16 + $0xc4] sm:$0xf]
        %v10143 = vld [vmem:[#allocation16 + $0xc8] sm:$0xf]
        %v10144 = vld [vmem:[#allocation16 + $0xcc] sm:$0xf]
        %v10145 = vld [vmem:[#allocation16 + $0xd0] sm:$0xf]
        %v10146 = vld [vmem:[#allocation16 + $0xd4] sm:$0xf]
        %v10147 = vld [vmem:[#allocation16 + $0xd8] sm:$0xf]
        %v10148 = vld [vmem:[#allocation16 + $0xdc] sm:$0xf]
        %v10149 = vld [vmem:[#allocation16 + $0xe0] sm:$0xf]
        %v10150 = vld [vmem:[#allocation16 + $0xe4] sm:$0xf]
        %v10151 = vld [vmem:[#allocation16 + $0xe8] sm:$0xf]
        %v10152 = vld [vmem:[#allocation16 + $0xec] sm:$0xf]
        %v10153 = vld [vmem:[#allocation16 + $0xf0] sm:$0xf]
        %v10154 = vld [vmem:[#allocation16 + $0xf4] sm:$0xf]
        %v10155 = vld [vmem:[#allocation16 + $0xf8] sm:$0xf]
        %v10156 = vld [vmem:[#allocation16 + $0xfc] sm:$0xf]
        %v10221 = vunpack.c.l.b16 %v10093
        %v10222 = vunpack.c.l.b16 %v10094
        %v10223 = vunpack.c.l.b16 %v10095
        %v10224 = vunpack.c.l.b16 %v10096
        %v10225 = vunpack.c.l.b16 %v10097
        %v10226 = vunpack.c.l.b16 %v10098
        %v10227 = vunpack.c.l.b16 %v10099
        %v10228 = vunpack.c.l.b16 %v10100
        %v10229 = vunpack.c.l.b16 %v10101
        %v10230 = vunpack.c.l.b16 %v10102
        %v10231 = vunpack.c.l.b16 %v10103
        %v10232 = vunpack.c.l.b16 %v10104
        %v10233 = vunpack.c.l.b16 %v10105
        %v10234 = vunpack.c.l.b16 %v10106
        %v10235 = vunpack.c.l.b16 %v10107
        %v10236 = vunpack.c.l.b16 %v10108
        %v10237 = vunpack.c.l.b16 %v10109
        %v10238 = vunpack.c.l.b16 %v10110
        %v10239 = vunpack.c.l.b16 %v10111
        %v10240 = vunpack.c.l.b16 %v10112
        %v10241 = vunpack.c.l.b16 %v10113
        %v10242 = vunpack.c.l.b16 %v10114
        %v10243 = vunpack.c.l.b16 %v10115
        %v10244 = vunpack.c.l.b16 %v10116
        %v10245 = vunpack.c.l.b16 %v10117
        %v10246 = vunpack.c.l.b16 %v10118
        %v10247 = vunpack.c.l.b16 %v10119
        %v10248 = vunpack.c.l.b16 %v10120
        %v10249 = vunpack.c.l.b16 %v10121
        %v10250 = vunpack.c.l.b16 %v10122
        %v10251 = vunpack.c.l.b16 %v10123
        %v10252 = vunpack.c.l.b16 %v10124
        %v10253 = vunpack.c.l.b16 %v10125
        %v10254 = vunpack.c.l.b16 %v10126
        %v10255 = vunpack.c.l.b16 %v10127
        %v10256 = vunpack.c.l.b16 %v10128
        %v10257 = vunpack.c.l.b16 %v10129
        %v10258 = vunpack.c.l.b16 %v10130
        %v10259 = vunpack.c.l.b16 %v10131
        %v10260 = vunpack.c.l.b16 %v10132
        %v10261 = vunpack.c.l.b16 %v10133
        %v10262 = vunpack.c.l.b16 %v10134
        %v10263 = vunpack.c.l.b16 %v10135
        %v10264 = vunpack.c.l.b16 %v10136
        %v10265 = vunpack.c.l.b16 %v10137
        %v10266 = vunpack.c.l.b16 %v10138
        %v10267 = vunpack.c.l.b16 %v10139
        %v10268 = vunpack.c.l.b16 %v10140
        %v10269 = vunpack.c.l.b16 %v10141
        %v10270 = vunpack.c.l.b16 %v10142
        %v10271 = vunpack.c.l.b16 %v10143
        %v10272 = vunpack.c.l.b16 %v10144
        %v10273 = vunpack.c.l.b16 %v10145
        %v10274 = vunpack.c.l.b16 %v10146
        %v10275 = vunpack.c.l.b16 %v10147
        %v10276 = vunpack.c.l.b16 %v10148
        %v10277 = vunpack.c.l.b16 %v10149
        %v10278 = vunpack.c.l.b16 %v10150
        %v10279 = vunpack.c.l.b16 %v10151
        %v10280 = vunpack.c.l.b16 %v10152
        %v10281 = vunpack.c.l.b16 %v10153
        %v10282 = vunpack.c.l.b16 %v10154
        %v10283 = vunpack.c.l.b16 %v10155
        %v10284 = vunpack.c.l.b16 %v10156
        %v10285 = vpack.c.b16 %v10222, %v10221
        %v10286 = vpack.c.b16 %v10224, %v10223
        %v10287 = vpack.c.b16 %v10226, %v10225
        %v10288 = vpack.c.b16 %v10228, %v10227
        %v10289 = vpack.c.b16 %v10230, %v10229
        %v10290 = vpack.c.b16 %v10232, %v10231
        %v10291 = vpack.c.b16 %v10234, %v10233
        %v10292 = vpack.c.b16 %v10236, %v10235
        %v10293 = vpack.c.b16 %v10238, %v10237
        %v10294 = vpack.c.b16 %v10240, %v10239
        %v10295 = vpack.c.b16 %v10242, %v10241
        %v10296 = vpack.c.b16 %v10244, %v10243
        %v10297 = vpack.c.b16 %v10246, %v10245
        %v10298 = vpack.c.b16 %v10248, %v10247
        %v10299 = vpack.c.b16 %v10250, %v10249
        %v10300 = vpack.c.b16 %v10252, %v10251
        %v10301 = vpack.c.b16 %v10254, %v10253
        %v10302 = vpack.c.b16 %v10256, %v10255
        %v10303 = vpack.c.b16 %v10258, %v10257
        %v10304 = vpack.c.b16 %v10260, %v10259
        %v10305 = vpack.c.b16 %v10262, %v10261
        %v10306 = vpack.c.b16 %v10264, %v10263
        %v10307 = vpack.c.b16 %v10266, %v10265
        %v10308 = vpack.c.b16 %v10268, %v10267
        %v10309 = vpack.c.b16 %v10270, %v10269
        %v10310 = vpack.c.b16 %v10272, %v10271
        %v10311 = vpack.c.b16 %v10274, %v10273
        %v10312 = vpack.c.b16 %v10276, %v10275
        %v10313 = vpack.c.b16 %v10278, %v10277
        %v10314 = vpack.c.b16 %v10280, %v10279
        %v10315 = vpack.c.b16 %v10282, %v10281
        %v10316 = vpack.c.b16 %v10284, %v10283
        %10349 = vmatprep.subr.bf16.mxu0 0
        %10350 = vmatpush1.bf16.msra.mxu0 %v10292
        %10351 = vmatprep.subr.bf16.mxu0 0
        %10352 = vmatpush1.bf16.msra.mxu0 %v10291
        %10353 = vmatprep.subr.bf16.mxu0 0
        %10354 = vmatpush1.bf16.msra.mxu0 %v10290
        %10355 = vmatprep.subr.bf16.mxu0 0
        %10356 = vmatpush1.bf16.msra.mxu0 %v10289
        %10357 = vmatprep.subr.bf16.mxu0 0
        %10358 = vmatpush1.bf16.msra.mxu0 %v10288
        %10359 = vmatprep.subr.bf16.mxu0 0
        %10360 = vmatpush1.bf16.msra.mxu0 %v10287
        %10361 = vmatprep.subr.bf16.mxu0 0
        %10362 = vmatpush1.bf16.msra.mxu0 %v10286
        %10363 = vmatprep.subr.bf16.mxu0 0
        %10364 = vmatpush1.bf16.msra.mxu0 %v10285
        %10365 = vmatprep.subr.bf16.mxu0 0
        %10366 = vmatpush2.bf16.msra.mxu0 %v10300
        %10367 = vmatprep.subr.bf16.mxu0 0
        %10368 = vmatpush2.bf16.msra.mxu0 %v10299
        %10369 = vmatprep.subr.bf16.mxu0 0
        %10370 = vmatpush2.bf16.msra.mxu0 %v10298
        %10371 = vmatprep.subr.bf16.mxu0 0
        %10372 = vmatpush2.bf16.msra.mxu0 %v10297
        %10373 = vmatprep.subr.bf16.mxu0 0
        %10374 = vmatpush2.bf16.msra.mxu0 %v10296
        %10375 = vmatprep.subr.bf16.mxu0 0
        %10376 = vmatpush2.bf16.msra.mxu0 %v10295
        %10377 = vmatprep.subr.bf16.mxu0 0
        %10378 = vmatpush2.bf16.msra.mxu0 %v10294
        %10379 = vmatprep.subr.bf16.mxu0 0
        %10380 = vmatpush2.bf16.msra.mxu0 %v10293
        %10381 = vmatprep.mubr.bf16.mxu0 %v10062
        %10382 = vmatmul.mubr.bf16.gmra.mxu0 %v10061
        %v10383 = vpop.f32.mrf.mxu0
        %v10384 = vadd.f32 0.0, %v10383
        %v10385 = vpop.f32.mrf.mxu0
        %v10386 = vpop.f32.mrf.mxu0
        %v10387 = vadd.f32 0.0, %v10386
        %v10388 = vpop.f32.mrf.mxu0
        %10389 = vmatprep.mubr.bf16.mxu0 %v10066
        %10390 = vmatmul.mubr.bf16.gmra.mxu0 %v10065
        %v10391 = vpop.f32.mrf.mxu0
        %v10392 = vadd.f32 0.0, %v10391
        %v10393 = vpop.f32.mrf.mxu0
        %v10394 = vpop.f32.mrf.mxu0
        %v10395 = vadd.f32 0.0, %v10394
        %v10396 = vpop.f32.mrf.mxu0
        %10397 = vmatprep.mubr.bf16.mxu0 %v10070
        %10398 = vmatmul.mubr.bf16.gmra.mxu0 %v10069
        %v10399 = vpop.f32.mrf.mxu0
        %v10400 = vadd.f32 0.0, %v10399
        %v10401 = vpop.f32.mrf.mxu0
        %v10402 = vpop.f32.mrf.mxu0
        %v10403 = vadd.f32 0.0, %v10402
        %v10404 = vpop.f32.mrf.mxu0
        %10405 = vmatprep.mubr.bf16.mxu0 %v10074
        %10406 = vmatmul.mubr.bf16.gmra.mxu0 %v10073
        %v10407 = vpop.f32.mrf.mxu0
        %v10408 = vadd.f32 0.0, %v10407
        %v10409 = vpop.f32.mrf.mxu0
        %v10410 = vpop.f32.mrf.mxu0
        %v10411 = vadd.f32 0.0, %v10410
        %v10412 = vpop.f32.mrf.mxu0
        %10413 = vmatprep.mubr.bf16.mxu0 %v10078
        %10414 = vmatmul.mubr.bf16.gmra.mxu0 %v10077
        %v10415 = vpop.f32.mrf.mxu0
        %v10416 = vadd.f32 0.0, %v10415
        %v10417 = vpop.f32.mrf.mxu0
        %v10418 = vpop.f32.mrf.mxu0
        %v10419 = vadd.f32 0.0, %v10418
        %v10420 = vpop.f32.mrf.mxu0
        %10421 = vmatprep.mubr.bf16.mxu0 %v10082
        %10422 = vmatmul.mubr.bf16.gmra.mxu0 %v10081
        %v10423 = vpop.f32.mrf.mxu0
        %v10424 = vadd.f32 0.0, %v10423
        %v10425 = vpop.f32.mrf.mxu0
        %v10426 = vpop.f32.mrf.mxu0
        %v10427 = vadd.f32 0.0, %v10426
        %v10428 = vpop.f32.mrf.mxu0
        %10429 = vmatprep.mubr.bf16.mxu0 %v10086
        %10430 = vmatmul.mubr.bf16.gmra.mxu0 %v10085
        %v10431 = vpop.f32.mrf.mxu0
        %v10432 = vadd.f32 0.0, %v10431
        %v10433 = vpop.f32.mrf.mxu0
        %v10434 = vpop.f32.mrf.mxu0
        %v10435 = vadd.f32 0.0, %v10434
        %v10436 = vpop.f32.mrf.mxu0
        %10437 = vmatprep.mubr.bf16.mxu0 %v10090
        %10438 = vmatmul.mubr.bf16.gmra.mxu0 %v10089
        %v10439 = vpop.f32.mrf.mxu0
        %v10440 = vadd.f32 0.0, %v10439
        %v10441 = vpop.f32.mrf.mxu0
        %v10442 = vpop.f32.mrf.mxu0
        %v10443 = vadd.f32 0.0, %v10442
        %v10444 = vpop.f32.mrf.mxu0
        %10445 = vdwg.mxu0
        %10446 = vmatprep.subr.bf16.mxu0 0
        %10447 = vmatpush1.bf16.msra.mxu0 %v10308
        %10448 = vmatprep.subr.bf16.mxu0 0
        %10449 = vmatpush1.bf16.msra.mxu0 %v10307
        %10450 = vmatprep.subr.bf16.mxu0 0
        %10451 = vmatpush1.bf16.msra.mxu0 %v10306
        %10452 = vmatprep.subr.bf16.mxu0 0
        %10453 = vmatpush1.bf16.msra.mxu0 %v10305
        %10454 = vmatprep.subr.bf16.mxu0 0
        %10455 = vmatpush1.bf16.msra.mxu0 %v10304
        %10456 = vmatprep.subr.bf16.mxu0 0
        %10457 = vmatpush1.bf16.msra.mxu0 %v10303
        %10458 = vmatprep.subr.bf16.mxu0 0
        %10459 = vmatpush1.bf16.msra.mxu0 %v10302
        %10460 = vmatprep.subr.bf16.mxu0 0
        %10461 = vmatpush1.bf16.msra.mxu0 %v10301
        %10462 = vmatprep.subr.bf16.mxu0 0
        %10463 = vmatpush2.bf16.msra.mxu0 %v10316
        %10464 = vmatprep.subr.bf16.mxu0 0
        %10465 = vmatpush2.bf16.msra.mxu0 %v10315
        %10466 = vmatprep.subr.bf16.mxu0 0
        %10467 = vmatpush2.bf16.msra.mxu0 %v10314
        %10468 = vmatprep.subr.bf16.mxu0 0
        %10469 = vmatpush2.bf16.msra.mxu0 %v10313
        %10470 = vmatprep.subr.bf16.mxu0 0
        %10471 = vmatpush2.bf16.msra.mxu0 %v10312
        %10472 = vmatprep.subr.bf16.mxu0 0
        %10473 = vmatpush2.bf16.msra.mxu0 %v10311
        %10474 = vmatprep.subr.bf16.mxu0 0
        %10475 = vmatpush2.bf16.msra.mxu0 %v10310
        %10476 = vmatprep.subr.bf16.mxu0 0
        %10477 = vmatpush2.bf16.msra.mxu0 %v10309
        %10478 = vmatprep.mubr.bf16.mxu0 %v10064
        %10479 = vmatmul.mubr.bf16.gmra.mxu0 %v10063
        %v10480 = vpop.f32.mrf.mxu0
        %v10481 = vadd.f32 %v10384, %v10480
        %v10482 = vpop.f32.mrf.mxu0
        %v10483 = vpop.f32.mrf.mxu0
        %v10484 = vadd.f32 %v10387, %v10483
        %v10485 = vpop.f32.mrf.mxu0
        %10486 = vmatprep.mubr.bf16.mxu0 %v10068
        %10487 = vmatmul.mubr.bf16.gmra.mxu0 %v10067
        %v10488 = vpop.f32.mrf.mxu0
        %v10489 = vadd.f32 %v10392, %v10488
        %v10490 = vpop.f32.mrf.mxu0
        %v10491 = vpop.f32.mrf.mxu0
        %v10492 = vadd.f32 %v10395, %v10491
        %v10493 = vpop.f32.mrf.mxu0
        %10494 = vmatprep.mubr.bf16.mxu0 %v10072
        %10495 = vmatmul.mubr.bf16.gmra.mxu0 %v10071
        %v10496 = vpop.f32.mrf.mxu0
        %v10497 = vadd.f32 %v10400, %v10496
        %v10498 = vpop.f32.mrf.mxu0
        %v10499 = vpop.f32.mrf.mxu0
        %v10500 = vadd.f32 %v10403, %v10499
        %v10501 = vpop.f32.mrf.mxu0
        %10502 = vmatprep.mubr.bf16.mxu0 %v10076
        %10503 = vmatmul.mubr.bf16.gmra.mxu0 %v10075
        %v10504 = vpop.f32.mrf.mxu0
        %v10505 = vadd.f32 %v10408, %v10504
        %v10506 = vpop.f32.mrf.mxu0
        %v10507 = vpop.f32.mrf.mxu0
        %v10508 = vadd.f32 %v10411, %v10507
        %v10509 = vpop.f32.mrf.mxu0
        %10510 = vmatprep.mubr.bf16.mxu0 %v10080
        %10511 = vmatmul.mubr.bf16.gmra.mxu0 %v10079
        %v10512 = vpop.f32.mrf.mxu0
        %v10513 = vadd.f32 %v10416, %v10512
        %v10514 = vpop.f32.mrf.mxu0
        %v10515 = vpop.f32.mrf.mxu0
        %v10516 = vadd.f32 %v10419, %v10515
        %v10517 = vpop.f32.mrf.mxu0
        %10518 = vmatprep.mubr.bf16.mxu0 %v10084
        %10519 = vmatmul.mubr.bf16.gmra.mxu0 %v10083
        %v10520 = vpop.f32.mrf.mxu0
        %v10521 = vadd.f32 %v10424, %v10520
        %v10522 = vpop.f32.mrf.mxu0
        %v10523 = vpop.f32.mrf.mxu0
        %v10524 = vadd.f32 %v10427, %v10523
        %v10525 = vpop.f32.mrf.mxu0
        %10526 = vmatprep.mubr.bf16.mxu0 %v10088
        %10527 = vmatmul.mubr.bf16.gmra.mxu0 %v10087
        %v10528 = vpop.f32.mrf.mxu0
        %v10529 = vadd.f32 %v10432, %v10528
        %v10530 = vpop.f32.mrf.mxu0
        %v10531 = vpop.f32.mrf.mxu0
        %v10532 = vadd.f32 %v10435, %v10531
        %v10533 = vpop.f32.mrf.mxu0
        %10534 = vmatprep.mubr.bf16.mxu0 %v10092
        %10535 = vmatmul.mubr.bf16.gmra.mxu0 %v10091
        %v10536 = vpop.f32.mrf.mxu0
        %v10537 = vadd.f32 %v10440, %v10536
        %v10538 = vpop.f32.mrf.mxu0
        %v10539 = vpop.f32.mrf.mxu0
        %v10540 = vadd.f32 %v10443, %v10539
        %v10541 = vpop.f32.mrf.mxu0
        %10542 = vdwg.mxu0
        %v10543 = vadd.f32 %v8297, %v10481
        %v10544 = vadd.f32 %v8298, %v10484
        %v10545 = vadd.f32 %v8299, %v10489
        %v10546 = vadd.f32 %v8300, %v10492
        %v10547 = vadd.f32 %v8301, %v10497
        %v10548 = vadd.f32 %v8302, %v10500
        %v10549 = vadd.f32 %v8303, %v10505
        %v10550 = vadd.f32 %v8304, %v10508
        %v10551 = vadd.f32 %v8305, %v10513
        %v10552 = vadd.f32 %v8306, %v10516
        %v10553 = vadd.f32 %v8307, %v10521
        %v10554 = vadd.f32 %v8308, %v10524
        %v10555 = vadd.f32 %v8309, %v10529
        %v10556 = vadd.f32 %v8310, %v10532
        %v10557 = vadd.f32 %v8311, %v10537
        %v10558 = vadd.f32 %v8312, %v10540
        %v10559 = vld [vmem:[%s18] sm:$0x1]
        %v10561 = vlaneseq
        %v10562 = vshrl.u32 %v10561, 7
        %v10563 = vsub.s32 0, %v10562
        %v10564 = vrot.slane %v10559, %v10563
        %v10566 = vadd.f32 %v10543, %v10564
        %v10567 = vadd.f32 %v10544, %v10564
        %v10568 = vadd.f32 %v10545, %v10564
        %v10569 = vadd.f32 %v10546, %v10564
        %v10570 = vadd.f32 %v10547, %v10564
        %v10571 = vadd.f32 %v10548, %v10564
        %v10572 = vadd.f32 %v10549, %v10564
        %v10573 = vadd.f32 %v10550, %v10564
        %v10574 = vadd.f32 %v10551, %v10564
        %v10575 = vadd.f32 %v10552, %v10564
        %v10576 = vadd.f32 %v10553, %v10564
        %v10577 = vadd.f32 %v10554, %v10564
        %v10578 = vadd.f32 %v10555, %v10564
        %v10579 = vadd.f32 %v10556, %v10564
        %v10580 = vadd.f32 %v10557, %v10564
        %v10581 = vadd.f32 %v10558, %v10564
        %10582 = vst [vmem:[%s763] sm:$0xff] %v10566
        %10583 = vst [vmem:[%s763 + $0x8] sm:$0xff] %v10567
        %10584 = vst [vmem:[%s763 + $0x10] sm:$0xff] %v10568
        %10585 = vst [vmem:[%s763 + $0x18] sm:$0xff] %v10569
        %10586 = vst [vmem:[%s763 + $0x20] sm:$0xff] %v10570
        %10587 = vst [vmem:[%s763 + $0x28] sm:$0xff] %v10571
        %10588 = vst [vmem:[%s763 + $0x30] sm:$0xff] %v10572
        %10589 = vst [vmem:[%s763 + $0x38] sm:$0xff] %v10573
        %10590 = vst [vmem:[%s763 + $0x40] sm:$0xff] %v10574
        %10591 = vst [vmem:[%s763 + $0x48] sm:$0xff] %v10575
        %10592 = vst [vmem:[%s763 + $0x50] sm:$0xff] %v10576
        %10593 = vst [vmem:[%s763 + $0x58] sm:$0xff] %v10577
        %10594 = vst [vmem:[%s763 + $0x60] sm:$0xff] %v10578
        %10595 = vst [vmem:[%s763 + $0x68] sm:$0xff] %v10579
        %10596 = vst [vmem:[%s763 + $0x70] sm:$0xff] %v10580
        %10597 = vst [vmem:[%s763 + $0x78] sm:$0xff] %v10581
        %s10598 = sand.u32 %s459, 1
        %s10599 = scalar_lea.sflag [#allocation4], %s10598
        %s10600 = sand.u32 %s459, 1
        %s10601 = smul.addr %s10600, 128
        %s10602 = scalar_lea.vmem [#allocation17], %s10601
        // Predicated region
        $region133: #{tpu_custom_call.1} parent=95 // pred_check
          %p10603 = pneg %p469
        $region134: #{tpu_custom_call.1} parent=95 // pred_check_branch
          %10605 = sbr.rel (%p10603) target = $region136
        $region135: #{tpu_custom_call.1} parent=95 // pred_region
          %s10606 = smul.u32 4, %s42
          %s10608 = ssub.s32 2048, 2048
          %10609 = vsyncadd %s10599, %s10608
          %s10610 = smul.addr %s10606, 4
          %s10611 = smul.addr %s10610, 128
          %s10612 = scalar_lea.hbm %s19, %s10611
          %s10613 = sshll.u32 %s10602, 4
          %s10614 = int_to_ptr.vmem [resolvable:$true] %s10613
          %10619 = dma.vmem_to_hbm [thread:$0]  %s10614, 2048, %s10612, %s10599, 128, 128, 8
        $region136: #{tpu_custom_call.1} parent=95 // pred_fallthru
          _
      $region96: #{tpu_custom_call.1} parent=5 // pred_fallthru
        _
      %p10620 = scmp.le.s32.totalorder 2, %s37
      // Predicated region
      $region137: #{tpu_custom_call.1} parent=5 // pred_check
        %p10621 = pneg %p10620
      $region138: #{tpu_custom_call.1} parent=5 // pred_check_branch
        %10623 = sbr.rel (%p10621) target = $region140
      $region139: #{tpu_custom_call.1} parent=5 // pred_region
        %s10624 = ssub.s32 %s37, 2
        // Predicated region
        $region141: #{tpu_custom_call.1} parent=139 // pred_check
          %p10625 = pneg %p475
        $region142: #{tpu_custom_call.1} parent=139 // pred_check_branch
          %10627 = sbr.rel (%p10625) target = $region144
        $region143: #{tpu_custom_call.1} parent=139 // pred_region
          %s10628 = sand.u32 %s460, 1
          %s10629 = scalar_lea.sflag [#allocation4], %s10628
          %s10630 = sand.u32 %s460, 1
          %s10631 = smul.addr %s10630, 128
          %s10632 = scalar_lea.vmem [#allocation17], %s10631
          %10633 = dma.done %s10629, 2048
        $region144: #{tpu_custom_call.1} parent=139 // pred_fallthru
          _
      $region140: #{tpu_custom_call.1} parent=5 // pred_fallthru
        _
    $region6: #{tpu_custom_call.1} parent=1 // loop_footer
      %s41 = sadd.s32 1, %s37
    $region7: #{tpu_custom_call.1} parent=1 // loop_footer_branch
      %36 = sbr.rel target = $region3
    $region8: #{tpu_custom_call.1} parent=1 // loop_exit
      _
    %10634 = vsyncpa [#allocation3], 1
    %s10635 = scalar_lea.sflag [#allocation3], 1
    %10636 = vsyncpa %s10635, 1
    %10637 = vsyncpa [#allocation6], 1
    %s10638 = scalar_lea.sflag [#allocation6], 1
    %10639 = vsyncpa %s10638, 1
    %10640 = vsyncpa [#allocation9], 1
    %10641 = vsyncpa [#allocation12], 1
    %10642 = vsyncpa [#allocation15], 1
    %10643 = vsyncpa [#allocation4], 1
    %s10644 = scalar_lea.sflag [#allocation4], 1
    %10645 = vsyncpa %s10644, 1

</llo_original>
